<compile_context>
chip_gen: v5e
topology: v5e:2x2
jax: 0.10.0
libtpu: 0.0.40
codegen_flags: <defaults>
</compile_context>

<pallas_src>
import math
from functools import partial

import numpy as np
import jax
import jax.numpy as jnp
from jax import lax
from jax.experimental import pallas as pl
from jax.experimental.pallas import tpu as pltpu


_VMEM_LIMIT = 32 * 1024 * 1024   # fits v5e/v6e (128 MiB) and v7x (64 MiB physical)


def _cp(sems):
    return pltpu.CompilerParams(dimension_semantics=sems,
                                vmem_limit_bytes=_VMEM_LIMIT)


def _pick_tile(dim, cap, candidates):
    """Largest tile: full dim if small, else the biggest divisor from candidates."""
    if dim <= cap:
        return dim
    for c in candidates:
        if dim % c == 0:
            return c
    return dim


# ----------------------------- tiled linear kernel ---------------------------

def _matmul_kernel(act):
    def kernel(x_ref, w_ref, b_ref, o_ref, acc_ref):
        @pl.when(pl.program_id(2) == 0)
        def _():
            acc_ref[...] = jnp.zeros_like(acc_ref)

        acc_ref[...] += jnp.dot(x_ref[...], w_ref[...],
                                preferred_element_type=jnp.float32)

        @pl.when(pl.program_id(2) == pl.num_programs(2) - 1)
        def _():
            y = acc_ref[...] + b_ref[...]
            if act == "relu":
                y = jnp.maximum(y, 0.0)
            elif act == "gelu":
                # TODO(synk): torch F.gelu is exact-erf; tanh-approx GELU used in-kernel.
                y = jax.nn.gelu(y, approximate=True)
            o_ref[...] = y
    return kernel


def linear_pallas(x, w, b, act="none"):
    """[..., K] @ [K, N] + b with optional fused activation.

    bf16 MXU operands, f32 accumulation, grid over (M, N, K) tiles with a VMEM
    accumulator; M/N axes 'parallel' (megacore), K 'arbitrary' (reduction).
    """
    lead, K = x.shape[:-1], x.shape[-1]
    N = w.shape[1]
    x2 = x.reshape(-1, K).astype(jnp.bfloat16)
    wb = w.astype(jnp.bfloat16)
    M = x2.shape[0]
    tm = _pick_tile(M, 256, (256, 128, 64, 32, 16, 8))
    tn = _pick_tile(N, 512, (512, 256, 128))
    tk = _pick_tile(K, 1024, (512, 256))
    out = pl.pallas_call(
        _matmul_kernel(act),
        grid=(M // tm, N // tn, K // tk),
        in_specs=[pl.BlockSpec((tm, tk), lambda i, j, k: (i, k)),
                  pl.BlockSpec((tk, tn), lambda i, j, k: (k, j)),
                  pl.BlockSpec((1, tn), lambda i, j, k: (0, j))],
        out_specs=pl.BlockSpec((tm, tn), lambda i, j, k: (i, j)),
        out_shape=jax.ShapeDtypeStruct((M, N), jnp.float32),
        scratch_shapes=[pltpu.VMEM((tm, tn), jnp.float32)],
        compiler_params=_cp(("parallel", "parallel", "arbitrary")),
    )(x2, wb, b.reshape(1, N).astype(jnp.float32))
    return out.reshape(*lead, N)


# --------------------------- (add +) LayerNorm kernel -------------------------

def _ln_kernel(eps, add):
    def kernel(*refs):
        if add:
            x_ref, y_ref, g_ref, b_ref, o_ref = refs
            z = x_ref[...] + y_ref[...]
        else:
            x_ref, g_ref, b_ref, o_ref = refs
            z = x_ref[...]
        mu = jnp.mean(z, axis=-1, keepdims=True)
        var = jnp.mean((z - mu) ** 2, axis=-1, keepdims=True)
        o_ref[...] = (z - mu) * lax.rsqrt(var + eps) * g_ref[...] + b_ref[...]
    return kernel


def layernorm_pallas(x, gamma, beta, y=None, eps=1e-5):
    """LayerNorm(x) or fused LayerNorm(x + y) (residual fused into the kernel)."""
    lead, D = x.shape[:-1], x.shape[-1]
    x2 = x.reshape(-1, D)
    M = x2.shape[0]
    tm = _pick_tile(M, 512, (512, 256, 128, 64, 32, 16, 8))
    add = y is not None
    args = [x2] + ([y.reshape(-1, D)] if add else []) \
        + [gamma.reshape(1, D), beta.reshape(1, D)]
    in_specs = ([pl.BlockSpec((tm, D), lambda i: (i, 0))] * (2 if add else 1)
                + [pl.BlockSpec((1, D), lambda i: (0, 0))] * 2)
    out = pl.pallas_call(
        _ln_kernel(eps, add),
        grid=(M // tm,),
        in_specs=in_specs,
        out_specs=pl.BlockSpec((tm, D), lambda i: (i, 0)),
        out_shape=jax.ShapeDtypeStruct((M, D), jnp.float32),
        compiler_params=_cp(("parallel",)),
    )(*args)
    return out.reshape(*lead, D)


# ------------------- fused FFN + adapter + residual + LN ---------------------

def _ffn_block_kernel(eps):
    def kernel(x_ref, w1, b1, w2, b2, wd, bd, wu, bu, g, be, o_ref):
        x = x_ref[...]
        h = jnp.dot(x.astype(jnp.bfloat16), w1[...],
                    preferred_element_type=jnp.float32) + b1[...]
        # TODO(synk): torch F.gelu is exact-erf; tanh-approx GELU used in-kernel.
        h = jax.nn.gelu(h, approximate=True)
        y = jnp.dot(h.astype(jnp.bfloat16), w2[...],
                    preferred_element_type=jnp.float32) + b2[...]
        # TODO(synk): EncoderLayer-with-adapter source not provided; adapter applied
        # to the FFN branch output before the final residual + norm.
        a = jnp.dot(y.astype(jnp.bfloat16), wd[...],
                    preferred_element_type=jnp.float32) + bd[...]
        a = jnp.maximum(a, 0.0)
        y = y + jnp.dot(a.astype(jnp.bfloat16), wu[...],
                        preferred_element_type=jnp.float32) + bu[...]
        z = x + y
        mu = jnp.mean(z, axis=-1, keepdims=True)
        var = jnp.mean((z - mu) ** 2, axis=-1, keepdims=True)
        o_ref[...] = (z - mu) * lax.rsqrt(var + eps) * g[...] + be[...]
    return kernel


def ffn_adapter_ln_pallas(x, p, eps=1e-5):
    lead, D = x.shape[:-1], x.shape[-1]
    x2 = x.reshape(-1, D)
    M = x2.shape[0]
    F = p["w_ff1"].shape[1]
    A = p["w_down"].shape[1]
    tm = _pick_tile(M, 256, (256, 128, 64, 32, 16, 8))
    bf = lambda w: w.astype(jnp.bfloat16)
    row = lambda v: v.reshape(1, -1)
    full = lambda shape: pl.BlockSpec(shape, lambda i: (0, 0))
    out = pl.pallas_call(
        _ffn_block_kernel(eps),
        grid=(M // tm,),
        in_specs=[pl.BlockSpec((tm, D), lambda i: (i, 0)),
                  full((D, F)), full((1, F)),
                  full((F, D)), full((1, D)),
                  full((D, A)), full((1, A)),
                  full((A, D)), full((1, D)),
                  full((1, D)), full((1, D))],
        out_specs=pl.BlockSpec((tm, D), lambda i: (i, 0)),
        out_shape=jax.ShapeDtypeStruct((M, D), jnp.float32),
        compiler_params=_cp(("parallel",)),
    )(x2, bf(p["w_ff1"]), row(p["b_ff1"]), bf(p["w_ff2"]), row(p["b_ff2"]),
      bf(p["w_down"]), row(p["b_down"]), bf(p["w_up"]), row(p["b_up"]),
      row(p["ln_g"]), row(p["ln_b"]))
    return out.reshape(*lead, D)


# ------------------------- fused attention sublayer --------------------------

def _attn_block_kernel(*, causal, H, D, self_attn, fuse_out, eps=1e-5):
    # Heads stay lane-packed ([L, H*Dh] tiles); per-head 2D contractions in-kernel.
    # TODO(synk): for long sequences (L >= ~512) restructure as a flash-style kernel
    # with a tiled kv grid axis and running max/sum accumulators.
    def kernel(*refs):
        it = iter(refs)
        xq_ref = next(it)
        xq = xq_ref[0]                                    # (Lq, D) f32 (residual)
        xqb = xq.astype(jnp.bfloat16)
        if self_attn:
            wqkv, bqkv = next(it), next(it)
            qkv = jnp.dot(xqb, wqkv[...],
                          preferred_element_type=jnp.float32) + bqkv[...]
            q, k, v = qkv[:, :D], qkv[:, D:2 * D], qkv[:, 2 * D:]
        else:
            xkv_ref = next(it)
            xkvb = xkv_ref[0].astype(jnp.bfloat16)
            wq, bq, wkv, bkv = next(it), next(it), next(it), next(it)
            q = jnp.dot(xqb, wq[...], preferred_element_type=jnp.float32) + bq[...]
            kv = jnp.dot(xkvb, wkv[...], preferred_element_type=jnp.float32) + bkv[...]
            k, v = kv[:, :D], kv[:, D:]
        if fuse_out:
            wo, bo, g, be = next(it), next(it), next(it), next(it)
        o_ref = next(it)

        Lq, Lk = q.shape[0], k.shape[0]
        Dh = D // H
        qb = q.astype(jnp.bfloat16)      # 1/sqrt(Dh) softmax scale folded into Wq
        kb = k.astype(jnp.bfloat16)
        vb = v.astype(jnp.bfloat16)
        if causal:
            qi = lax.broadcasted_iota(jnp.int32, (Lq, Lk), 0)
            ki = lax.broadcasted_iota(jnp.int32, (Lq, Lk), 1)
            neg = jnp.where(ki <= qi, 0.0, -1e30).astype(jnp.float32)
        outs = []
        for h in range(H):
            sl = slice(h * Dh, (h + 1) * Dh)
            s = jnp.einsum("qd,kd->qk", qb[:, sl], kb[:, sl],
                           preferred_element_type=jnp.float32)
            if causal:
                s = s + neg
            m = jnp.max(s, axis=-1, keepdims=True)
            p = jnp.exp(s - m)                                       # f32 elementwise
            a = p * pl.reciprocal(jnp.sum(p, axis=-1, keepdims=True), approx=True)
            outs.append(jnp.einsum("qk,kd->qd", a.astype(jnp.bfloat16), vb[:, sl],
                                   preferred_element_type=jnp.float32))
        o = jnp.concatenate(outs, axis=-1)                 # (Lq, D), (q, (h d)) layout

        if fuse_out:
            y = jnp.dot(o.astype(jnp.bfloat16), wo[...],
                        preferred_element_type=jnp.float32) + bo[...]
            z = xq + y
            mu = jnp.mean(z, axis=-1, keepdims=True)
            var = jnp.mean((z - mu) ** 2, axis=-1, keepdims=True)
            o_ref[0] = (z - mu) * lax.rsqrt(var + eps) * g[...] + be[...]
        else:
            o_ref[0] = o
    return kernel


def _proj_resid_ln_kernel(eps):
    def kernel(o_ref, x_ref, wo, bo, g, be, out_ref):
        y = jnp.dot(o_ref[0].astype(jnp.bfloat16), wo[...],
                    preferred_element_type=jnp.float32) + bo[...]
        z = x_ref[0] + y
        mu = jnp.mean(z, axis=-1, keepdims=True)
        var = jnp.mean((z - mu) ** 2, axis=-1, keepdims=True)
        out_ref[0] = (z - mu) * lax.rsqrt(var + eps) * g[...] + be[...]
    return kernel


def proj_residual_ln_pallas(o, x, wo, bo, g, b, eps=1e-5):
    """out = LayerNorm(x + o @ Wo + bo), gridded per batch element."""
    B, L, D = x.shape
    full = lambda shape: pl.BlockSpec(shape, lambda i: (0, 0))
    seq = pl.BlockSpec((1, L, D), lambda i: (i, 0, 0))
    return pl.pallas_call(
        _proj_resid_ln_kernel(eps),
        grid=(B,),
        in_specs=[seq, seq, full((D, D)), full((1, D)), full((1, D)), full((1, D))],
        out_specs=seq,
        out_shape=jax.ShapeDtypeStruct((B, L, D), jnp.float32),
        compiler_params=_cp(("parallel",)),
    )(o, x, wo.astype(jnp.bfloat16), bo.reshape(1, D),
      g.reshape(1, D), b.reshape(1, D))


def attention_sublayer(p, x_q, x_kv, ln_g, ln_b, *, n_heads, causal, mix, self_attn):
    """Full attention sublayer: LayerNorm(x_q + Wo @ attn(Wq x_q, Wkv x_kv) + bo).

    mix=False : ONE fused pallas_call per batch element (QKV proj + attention +
                out-proj + residual + LN; weights resident in VMEM).
    mix=True  : attention-core kernel -> torch 'mix' (L,H) scramble as a tiny XLA
                permute -> fused out-proj + residual + LN kernel.
    """
    B, Lq, D = x_q.shape
    Lk = x_kv.shape[1]
    bf = lambda w: w.astype(jnp.bfloat16)
    row = lambda v: v.reshape(1, -1).astype(jnp.float32)
    full = lambda shape: pl.BlockSpec(shape, lambda b: (0, 0))
    seq_spec = lambda L: pl.BlockSpec((1, L, D), lambda b: (b, 0, 0))
    fuse_out = not mix

    kernel = _attn_block_kernel(causal=causal, H=n_heads, D=D,
                                self_attn=self_attn, fuse_out=fuse_out)
    args, specs = [x_q], [seq_spec(Lq)]
    if self_attn:
        # fused QKV projection: one matmul with N = 3*d_model (lane-dense weight)
        wqkv = jnp.concatenate([p["wq"], p["wkv"]], axis=1)
        bqkv = jnp.concatenate([p["bq"], p["bkv"]], axis=0)
        args += [bf(wqkv), row(bqkv)]
        specs += [full((D, 3 * D)), full((1, 3 * D))]
    else:
        args += [x_kv, bf(p["wq"]), row(p["bq"]), bf(p["wkv"]), row(p["bkv"])]
        specs += [seq_spec(Lk), full((D, D)), full((1, D)),
                  full((D, 2 * D)), full((1, 2 * D))]
    if fuse_out:
        args += [bf(p["wo"]), row(p["bo"]), row(ln_g), row(ln_b)]
        specs += [full((D, D)), full((1, D)), full((1, D)), full((1, D))]

    out = pl.pallas_call(
        kernel,
        grid=(B,),
        in_specs=specs,
        out_specs=pl.BlockSpec((1, Lq, D), lambda b: (b, 0, 0)),
        out_shape=jax.ShapeDtypeStruct((B, Lq, D), jnp.float32),
        compiler_params=_cp(("parallel",)),
    )(*args)

    if fuse_out:
        return out

    # torch mix: out.transpose(2,1).contiguous().view(B, L, -1) on (B, L, H, Dh)
    Dh = D // n_heads
    mixed = (out.reshape(B, Lq, n_heads, Dh).transpose(0, 2, 1, 3)
                .reshape(B, Lq, D))
    return proj_residual_ln_pallas(mixed, x_q, p["wo"], p["bo"], ln_g, ln_b)


# -------------------------- distil conv layer --------------------------------

def _distil_conv_kernel():
    def kernel(x_ref, w_ref, b_ref, o_ref):
        x = x_ref[0]                                        # (L, C) f32
        L = x.shape[0]
        # circular k=3 taps via XLU rolls (no im2col HBM tensor)
        x_prev = pltpu.roll(x, shift=1, axis=0)
        x_next = pltpu.roll(x, shift=L - 1, axis=0)
        cols = jnp.concatenate([x_prev, x, x_next], axis=-1)   # (L, 3C)
        y = jnp.dot(cols.astype(jnp.bfloat16), w_ref[...],
                    preferred_element_type=jnp.float32) + b_ref[...]   # BN folded in w/b
        y = jnp.where(y > 0, y, jnp.exp(jnp.minimum(y, 0.0)) - 1.0)    # ELU, f32
        # MaxPool1d(kernel=3, stride=2, padding=1): 3-tap neighborhood max here,
        # the stride-2 pick happens as a single XLA slice in the wrapper.
        rows = lax.broadcasted_iota(jnp.int32, y.shape, 0)
        y_prev = jnp.where(rows == 0, -jnp.inf, pltpu.roll(y, shift=1, axis=0))
        y_next = jnp.where(rows == L - 1, -jnp.inf, pltpu.roll(y, shift=L - 1, axis=0))
        o_ref[0] = jnp.maximum(jnp.maximum(y_prev, y), y_next)
    return kernel


def conv_layer(p, x):
    B, L, C = x.shape
    m = pl.pallas_call(
        _distil_conv_kernel(),
        grid=(B,),
        in_specs=[pl.BlockSpec((1, L, C), lambda b: (b, 0, 0)),
                  pl.BlockSpec((3 * C, C), lambda b: (0, 0)),
                  pl.BlockSpec((1, C), lambda b: (0, 0))],
        out_specs=pl.BlockSpec((1, L, C), lambda b: (b, 0, 0)),
        out_shape=jax.ShapeDtypeStruct((B, L, C), jnp.float32),
        compiler_params=_cp(("parallel",)),
    )(x, p["w"].astype(jnp.bfloat16), p["b"].reshape(1, C))
    return m[:, ::2, :]        # MaxPool stride-2 downsample


# ------------------------------ embedding ------------------------------------

def _embed_kernel():
    def kernel(x_ref, pt_ref, w_ref, o_ref):
        x = x_ref[0]                                        # (L, Cin)
        L = x.shape[0]
        cols = jnp.concatenate([pltpu.roll(x, shift=1, axis=0), x,
                                pltpu.roll(x, shift=L - 1, axis=0)], axis=-1)
        val = jnp.dot(cols.astype(jnp.bfloat16), w_ref[...],
                      preferred_element_type=jnp.float32)
        o_ref[0] = val + pt_ref[0]
    return kernel


def data_embedding(p, x, x_mark, pe_table, temporal):
    B, L, Cin = x.shape
    D = p["w_token"].shape[1]
    idx = x_mark.astype(jnp.int32)
    # fixed (sinusoidal) temporal embedding, freq='h': [month, day, weekday, hour]
    pos_temp = (pe_table[:L][None]
                + temporal["month"][idx[..., 0]] + temporal["day"][idx[..., 1]]
                + temporal["weekday"][idx[..., 2]] + temporal["hour"][idx[..., 3]])
    return pl.pallas_call(
        _embed_kernel(),
        grid=(B,),
        in_specs=[pl.BlockSpec((1, L, Cin), lambda b: (b, 0, 0)),
                  pl.BlockSpec((1, L, D), lambda b: (b, 0, 0)),
                  pl.BlockSpec((3 * Cin, D), lambda b: (0, 0))],
        out_specs=pl.BlockSpec((1, L, D), lambda b: (b, 0, 0)),
        out_shape=jax.ShapeDtypeStruct((B, L, D), jnp.float32),
        compiler_params=_cp(("parallel",)),
    )(x, pos_temp, p["w_token"].astype(jnp.bfloat16))


# ----------------------------- model pieces ----------------------------------

def encoder_layer(p, x, n_heads):
    x = attention_sublayer(p["attn"], x, x, p["ln1_g"], p["ln1_b"],
                           n_heads=n_heads, causal=False, mix=False, self_attn=True)
    return ffn_adapter_ln_pallas(x, p["ffn"])


def decoder_layer(p, x, cross, n_heads, mix):
    x = attention_sublayer(p["self_attn"], x, x, p["ln1_g"], p["ln1_b"],
                           n_heads=n_heads, causal=True, mix=mix, self_attn=True)
    x = attention_sublayer(p["cross_attn"], x, cross, p["ln2_g"], p["ln2_b"],
                           n_heads=n_heads, causal=False, mix=False, self_attn=False)
    return ffn_adapter_ln_pallas(x, p["ffn"])


def informer_forward(params, x_enc, x_mark_enc, x_dec, x_mark_dec, *,
                     n_heads, pred_len, mix=True):
    enc = data_embedding(params["enc_emb"], x_enc, x_mark_enc,
                         params["pe"], params["temporal"])
    n_enc = len(params["enc_layers"])
    for i in range(n_enc - 1):                      # distil=True interleaving
        enc = encoder_layer(params["enc_layers"][i], enc, n_heads)
        enc = conv_layer(params["conv_layers"][i], enc)
    enc = encoder_layer(params["enc_layers"][-1], enc, n_heads)
    enc = layernorm_pallas(enc, params["enc_norm_g"], params["enc_norm_b"])

    dec = data_embedding(params["dec_emb"], x_dec, x_mark_dec,
                         params["pe"], params["temporal"])
    for lp in params["dec_layers"]:
        dec = decoder_layer(lp, dec, enc, n_heads, mix)
    dec = layernorm_pallas(dec, params["dec_norm_g"], params["dec_norm_b"])
    out = linear_pallas(dec, params["w_proj"], params["b_proj"])
    return out[:, -pred_len:, :]


# ----------------------------- parameter init --------------------------------

def sinusoid_table(n, d):
    pe = np.zeros((n, d), dtype=np.float32)
    position = np.arange(n, dtype=np.float32)[:, None]
    div_term = np.exp(np.arange(0, d, 2, dtype=np.float32) * -(math.log(10000.0) / d))
    pe[:, 0::2] = np.sin(position * div_term)
    pe[:, 1::2] = np.cos(position * div_term)
    return pe


def init_params(key, cfg):
    d_model, d_ff, adapter_dim = cfg["d_model"], cfg["d_ff"], cfg["adapter_dim"]
    n_heads = cfg["n_heads"]
    keys = jax.random.split(key, 512)
    ctr = [0]

    def W(shape):
        k = keys[ctr[0]]; ctr[0] += 1
        return 0.02 * jax.random.normal(k, shape, jnp.float32)

    z = lambda *s: jnp.zeros(s, jnp.float32)
    ones = lambda *s: jnp.ones(s, jnp.float32)
    attn_scale = 1.0 / math.sqrt(d_model // n_heads)

    def attn_p():
        # 1/sqrt(Dh) softmax scale folded into the Q projection (weights and bias)
        return dict(wq=W((d_model, d_model)) * attn_scale, bq=z(d_model) * attn_scale,
                    wkv=W((d_model, 2 * d_model)), bkv=z(2 * d_model),
                    wo=W((d_model, d_model)), bo=z(d_model))

    def ffn_p():
        return dict(w_ff1=W((d_model, d_ff)), b_ff1=z(d_ff),
                    w_ff2=W((d_ff, d_model)), b_ff2=z(d_model),
                    w_down=W((d_model, adapter_dim)), b_down=z(adapter_dim),
                    w_up=W((adapter_dim, d_model)), b_up=z(d_model),
                    ln_g=ones(d_model), ln_b=z(d_model))

    def enc_layer_p():
        return dict(attn=attn_p(), ln1_g=ones(d_model), ln1_b=z(d_model), ffn=ffn_p())

    def dec_layer_p():
        return dict(self_attn=attn_p(), cross_attn=attn_p(),
                    ln1_g=ones(d_model), ln1_b=z(d_model),
                    ln2_g=ones(d_model), ln2_b=z(d_model),
                    ffn=ffn_p())

    bn_scale = 1.0 / math.sqrt(1.0 + 1e-5)   # eval-mode BN (default stats) folded in
    params = dict(
        enc_emb=dict(w_token=W((3 * cfg["enc_in"], d_model))),   # conv has no bias
        dec_emb=dict(w_token=W((3 * cfg["dec_in"], d_model))),
        enc_layers=[enc_layer_p() for _ in range(cfg["e_layers"])],
        conv_layers=[dict(w=W((3 * d_model, d_model)) * bn_scale,
                          b=z(d_model) * bn_scale)
                     for _ in range(cfg["e_layers"] - 1)],
        dec_layers=[dec_layer_p() for _ in range(cfg["d_layers"])],
        enc_norm_g=ones(d_model), enc_norm_b=z(d_model),
        dec_norm_g=ones(d_model), dec_norm_b=z(d_model),
        w_proj=W((d_model, cfg["c_out"])), b_proj=z(cfg["c_out"]),
        pe=jnp.asarray(sinusoid_table(cfg["max_len"], d_model)),
        temporal=dict(month=jnp.asarray(sinusoid_table(13, d_model)),
                      day=jnp.asarray(sinusoid_table(32, d_model)),
                      weekday=jnp.asarray(sinusoid_table(7, d_model)),
                      hour=jnp.asarray(sinusoid_table(24, d_model))),
    )
    return params


# ----------------------------------- main -------------------------------------

if __name__ == "__main__":
    B = 2
    cfg = dict(enc_in=4, dec_in=4, c_out=4, d_model=32, n_heads=4, d_ff=32,
               e_layers=2, d_layers=1, adapter_dim=16, max_len=64)
    seq_len, label_len, pred_len = 16, 8, 8
    dec_len = label_len + pred_len

    key = jax.random.PRNGKey(0)
    k_par, k1, k2, k3, k4 = jax.random.split(key, 5)
    params = init_params(k_par, cfg)

    x_enc = jax.random.normal(k1, (B, seq_len, cfg["enc_in"]), jnp.float32)
    x_dec = jax.random.normal(k2, (B, dec_len, cfg["dec_in"]), jnp.float32)

    def make_marks(k, L):
        ks = jax.random.split(k, 4)
        month = jax.random.randint(ks[0], (B, L, 1), 0, 13)
        day = jax.random.randint(ks[1], (B, L, 1), 0, 32)
        weekday = jax.random.randint(ks[2], (B, L, 1), 0, 7)
        hour = jax.random.randint(ks[3], (B, L, 1), 0, 24)
        return jnp.concatenate([month, day, weekday, hour], -1).astype(jnp.float32)

    x_mark_enc = make_marks(k3, seq_len)
    x_mark_dec = make_marks(k4, dec_len)

    fwd = jax.jit(partial(informer_forward, n_heads=cfg["n_heads"],
                          pred_len=pred_len, mix=True))
    out = fwd(params, x_enc, x_mark_enc, x_dec, x_mark_dec)
    out = jax.block_until_ready(out)
    assert out.shape == (B, pred_len, cfg["c_out"]), out.shape
    assert bool(jnp.all(jnp.isfinite(out)))
    print("KERNEL_OK")
</pallas_src>

<mosaic_0001>
module attributes {stable_mosaic.version = 11 : i64} {
  func.func @kernel(%arg0: i32, %arg1: memref<1x16x4xf32, #tpu.memory_space<vmem>>, %arg2: memref<1x16x32xf32, #tpu.memory_space<vmem>>, %arg3: memref<12x32xbf16, #tpu.memory_space<vmem>>, %arg4: memref<1x16x32xf32, #tpu.memory_space<vmem>>) attributes {dimension_semantics = [#tpu.dimension_semantics<parallel>], iteration_bounds = array<i64: 2>, scalar_prefetch = 0 : i64, scratch_operands = 0 : i64, tpu.core_type = #tpu.core_type<tc>, window_params = [{transform_indices = @transform_0, window_bounds = array<i64: 1, 16, 4>}, {transform_indices = @transform_1, window_bounds = array<i64: 1, 16, 32>}, {pipeline_mode = #tpu.pipeline_mode<synchronous>, transform_indices = @transform_2, window_bounds = array<i64: 12, 32>}, {transform_indices = @transform_3, window_bounds = array<i64: 1, 16, 32>}]} {
    %c0 = arith.constant 0 : index
    %c0_0 = arith.constant 0 : index
    %c0_1 = arith.constant 0 : index
    %0 = vector.load %arg1[%c0, %c0_0, %c0_1] : memref<1x16x4xf32, #tpu.memory_space<vmem>>, vector<1x16x4xf32>
    %1 = vector.shape_cast %0 : vector<1x16x4xf32> to vector<16x4xf32>
    %c1_i32 = arith.constant 1 : i32
    %2 = tpu.dynamic_rotate %1 by %c1_i32 dim 0 : vector<16x4xf32>, i32 -> vector<16x4xf32>
    %c15_i32 = arith.constant 15 : i32
    %3 = tpu.dynamic_rotate %1 by %c15_i32 dim 0 : vector<16x4xf32>, i32 -> vector<16x4xf32>
    %4 = tpu.concatenate %2, %1, %3 in 1 : vector<16x4xf32>, vector<16x4xf32>, vector<16x4xf32> -> vector<16x12xf32>
    %5 = arith.truncf %4 : vector<16x12xf32> to vector<16x12xbf16>
    %c0_2 = arith.constant 0 : index
    %c0_3 = arith.constant 0 : index
    %6 = vector.load %arg3[%c0_2, %c0_3] : memref<12x32xbf16, #tpu.memory_space<vmem>>, vector<12x32xbf16>
    %cst = arith.constant dense<0.000000e+00> : vector<16x32xf32>
    %7 = tpu.matmul %5, %6, %cst {dimension_numbers = #tpu.dot_dimension_numbers<[1], [0], [0], [1], [0, 0, 1, 1], [], []>} : vector<16x12xbf16>, vector<12x32xbf16>, vector<16x32xf32> -> vector<16x32xf32>
    %c0_4 = arith.constant 0 : index
    %c0_5 = arith.constant 0 : index
    %c0_6 = arith.constant 0 : index
    %8 = vector.load %arg2[%c0_4, %c0_5, %c0_6] : memref<1x16x32xf32, #tpu.memory_space<vmem>>, vector<1x16x32xf32>
    %9 = vector.shape_cast %8 : vector<1x16x32xf32> to vector<16x32xf32>
    %10 = arith.addf %7, %9 : vector<16x32xf32>
    %c0_7 = arith.constant 0 : index
    %c0_8 = arith.constant 0 : index
    %c0_9 = arith.constant 0 : index
    %11 = vector.load %arg4[%c0_7, %c0_8, %c0_9] : memref<1x16x32xf32, #tpu.memory_space<vmem>>, vector<1x16x32xf32>
    %12 = vector.shape_cast %11 : vector<1x16x32xf32> to vector<16x32xf32>
    %13 = vector.shape_cast %10 : vector<16x32xf32> to vector<1x16x32xf32>
    tpu.vector_store %arg4[%c0_7, %c0_8, %c0_9], %13 {strides = array<i32>} : memref<1x16x32xf32, #tpu.memory_space<vmem>>, vector<1x16x32xf32>,
    return
  }
  func.func @transform_0(%arg0: i32) -> (i32, i32, i32) {
    %c0_i32 = arith.constant 0 : i32
    %c0_i32_0 = arith.constant 0 : i32
    %c0_i32_1 = arith.constant 0 : i32
    return %arg0, %c0_i32, %c0_i32_0 : i32, i32, i32
  }
  func.func @transform_1(%arg0: i32) -> (i32, i32, i32) {
    %c0_i32 = arith.constant 0 : i32
    %c0_i32_0 = arith.constant 0 : i32
    %c0_i32_1 = arith.constant 0 : i32
    return %arg0, %c0_i32, %c0_i32_0 : i32, i32, i32
  }
  func.func @transform_2(%arg0: i32) -> (i32, i32) {
    %c0_i32 = arith.constant 0 : i32
    %c0_i32_0 = arith.constant 0 : i32
    %c0_i32_1 = arith.constant 0 : i32
    return %c0_i32, %c0_i32_0 : i32, i32
  }
  func.func @transform_3(%arg0: i32) -> (i32, i32, i32) {
    %c0_i32 = arith.constant 0 : i32
    %c0_i32_0 = arith.constant 0 : i32
    %c0_i32_1 = arith.constant 0 : i32
    return %arg0, %c0_i32, %c0_i32_0 : i32, i32, i32
  }
}

module attributes {stable_mosaic.version = 11 : i64} {
  func.func @kernel(%arg0: i32, %arg1: memref<1x16x32xf32, #tpu.memory_space<vmem>>, %arg2: memref<32x96xbf16, #tpu.memory_space<vmem>>, %arg3: memref<1x96xf32, #tpu.memory_space<vmem>>, %arg4: memref<1x16x32xf32, #tpu.memory_space<vmem>>) attributes {dimension_semantics = [#tpu.dimension_semantics<parallel>], iteration_bounds = array<i64: 2>, scalar_prefetch = 0 : i64, scratch_operands = 0 : i64, tpu.core_type = #tpu.core_type<tc>, window_params = [{transform_indices = @transform_0, window_bounds = array<i64: 1, 16, 32>}, {pipeline_mode = #tpu.pipeline_mode<synchronous>, transform_indices = @transform_1, window_bounds = array<i64: 32, 96>}, {pipeline_mode = #tpu.pipeline_mode<synchronous>, transform_indices = @transform_2, window_bounds = array<i64: 1, 96>}, {transform_indices = @transform_3, window_bounds = array<i64: 1, 16, 32>}]} {
    %c0 = arith.constant 0 : index
    %c0_0 = arith.constant 0 : index
    %c0_1 = arith.constant 0 : index
    %0 = vector.load %arg1[%c0, %c0_0, %c0_1] : memref<1x16x32xf32, #tpu.memory_space<vmem>>, vector<1x16x32xf32>
    %1 = vector.shape_cast %0 : vector<1x16x32xf32> to vector<16x32xf32>
    %2 = arith.truncf %1 : vector<16x32xf32> to vector<16x32xbf16>
    %c0_2 = arith.constant 0 : index
    %c0_3 = arith.constant 0 : index
    %3 = vector.load %arg2[%c0_2, %c0_3] : memref<32x96xbf16, #tpu.memory_space<vmem>>, vector<32x96xbf16>
    %cst = arith.constant dense<0.000000e+00> : vector<16x96xf32>
    %4 = tpu.matmul %2, %3, %cst {dimension_numbers = #tpu.dot_dimension_numbers<[1], [0], [0], [1], [0, 0, 1, 1], [], []>} : vector<16x32xbf16>, vector<32x96xbf16>, vector<16x96xf32> -> vector<16x96xf32>
    %c0_4 = arith.constant 0 : index
    %c0_5 = arith.constant 0 : index
    %5 = vector.load %arg3[%c0_4, %c0_5] : memref<1x96xf32, #tpu.memory_space<vmem>>, vector<1x96xf32>
    %6 = vector.broadcast %5 : vector<1x96xf32> to vector<16x96xf32>
    %7 = arith.addf %4, %6 : vector<16x96xf32>
    %8 = vector.extract_strided_slice %7 {offsets = [0, 0], sizes = [16, 32], strides = [1, 1]} : vector<16x96xf32> to vector<16x32xf32>
    %9 = vector.extract_strided_slice %7 {offsets = [0, 32], sizes = [16, 32], strides = [1, 1]} : vector<16x96xf32> to vector<16x32xf32>
    %10 = vector.extract_strided_slice %7 {offsets = [0, 64], sizes = [16, 32], strides = [1, 1]} : vector<16x96xf32> to vector<16x32xf32>
    %11 = arith.truncf %8 : vector<16x32xf32> to vector<16x32xbf16>
    %12 = arith.truncf %9 : vector<16x32xf32> to vector<16x32xbf16>
    %13 = arith.truncf %10 : vector<16x32xf32> to vector<16x32xbf16>
    %14 = tpu.iota {dimensions = array<i32: 0>} : vector<16x16xi32>
    %15 = tpu.iota {dimensions = array<i32: 1>} : vector<16x16xi32>
    %16 = arith.cmpi sle, %15, %14 : vector<16x16xi32>
    %cst_6 = arith.constant 0.000000e+00 : f32
    %cst_7 = arith.constant -1.000000e+30 : f32
    %17 = vector.broadcast %cst_6 : f32 to vector<16x16xf32>
    %18 = vector.broadcast %cst_7 : f32 to vector<16x16xf32>
    %19 = arith.select %16, %17, %18 : vector<16x16xi1>, vector<16x16xf32>
    %20 = vector.extract_strided_slice %11 {offsets = [0, 0], sizes = [16, 8], strides = [1, 1]} : vector<16x32xbf16> to vector<16x8xbf16>
    %21 = vector.extract_strided_slice %12 {offsets = [0, 0], sizes = [16, 8], strides = [1, 1]} : vector<16x32xbf16> to vector<16x8xbf16>
    "tpu.trace_start"() <{level = 10 : i32, message = "qd,kd->qk"}> : () -> ()
    %cst_8 = arith.constant dense<0.000000e+00> : vector<16x16xf32>
    %22 = tpu.matmul %20, %21, %cst_8 {dimension_numbers = #tpu.dot_dimension_numbers<[1], [1], [0], [0], [0, 0, 1, 0], [], []>} : vector<16x8xbf16>, vector<16x8xbf16>, vector<16x16xf32> -> vector<16x16xf32>
    "tpu.trace_stop"() : () -> ()
    %23 = arith.addf %22, %19 : vector<16x16xf32>
    %cst_9 = arith.constant dense<0xFF800000> : vector<16xf32>
    %24 = vector.multi_reduction <maximumf>, %23, %cst_9 [1] : vector<16x16xf32> to vector<16xf32>
    %25 = vector.shape_cast %24 : vector<16xf32> to vector<16x1xf32>
    %26 = vector.broadcast %25 : vector<16x1xf32> to vector<16x16xf32>
    %27 = arith.subf %23, %26 : vector<16x16xf32>
    %28 = math.exp %27 : vector<16x16xf32>
    %cst_10 = arith.constant dense<0.000000e+00> : vector<16xf32>
    %29 = vector.multi_reduction <add>, %28, %cst_10 [1] : vector<16x16xf32> to vector<16xf32>
    %30 = vector.shape_cast %29 : vector<16xf32> to vector<16x1xf32>
    %31 = tpu.reciprocal %30 {approx = true} : vector<16x1xf32> -> vector<16x1xf32>
    %32 = vector.broadcast %31 : vector<16x1xf32> to vector<16x16xf32>
    %33 = arith.mulf %28, %32 : vector<16x16xf32>
    %34 = arith.truncf %33 : vector<16x16xf32> to vector<16x16xbf16>
    %35 = vector.extract_strided_slice %13 {offsets = [0, 0], sizes = [16, 8], strides = [1, 1]} : vector<16x32xbf16> to vector<16x8xbf16>
    "tpu.trace_start"() <{level = 10 : i32, message = "qk,kd->qd"}> : () -> ()
    %cst_11 = arith.constant dense<0.000000e+00> : vector<16x8xf32>
    %36 = tpu.matmul %34, %35, %cst_11 {dimension_numbers = #tpu.dot_dimension_numbers<[1], [0], [0], [1], [0, 0, 1, 1], [], []>} : vector<16x16xbf16>, vector<16x8xbf16>, vector<16x8xf32> -> vector<16x8xf32>
    "tpu.trace_stop"() : () -> ()
    %37 = vector.extract_strided_slice %11 {offsets = [0, 8], sizes = [16, 8], strides = [1, 1]} : vector<16x32xbf16> to vector<16x8xbf16>
    %38 = vector.extract_strided_slice %12 {offsets = [0, 8], sizes = [16, 8], strides = [1, 1]} : vector<16x32xbf16> to vector<16x8xbf16>
    "tpu.trace_start"() <{level = 10 : i32, message = "qd,kd->qk"}> : () -> ()
    %cst_12 = arith.constant dense<0.000000e+00> : vector<16x16xf32>
    %39 = tpu.matmul %37, %38, %cst_12 {dimension_numbers = #tpu.dot_dimension_numbers<[1], [1], [0], [0], [0, 0, 1, 0], [], []>} : vector<16x8xbf16>, vector<16x8xbf16>, vector<16x16xf32> -> vector<16x16xf32>
    "tpu.trace_stop"() : () -> ()
    %40 = arith.addf %39, %19 : vector<16x16xf32>
    %cst_13 = arith.constant dense<0xFF800000> : vector<16xf32>
    %41 = vector.multi_reduction <maximumf>, %40, %cst_13 [1] : vector<16x16xf32> to vector<16xf32>
    %42 = vector.shape_cast %41 : vector<16xf32> to vector<16x1xf32>
    %43 = vector.broadcast %42 : vector<16x1xf32> to vector<16x16xf32>
    %44 = arith.subf %40, %43 : vector<16x16xf32>
    %45 = math.exp %44 : vector<16x16xf32>
    %cst_14 = arith.constant dense<0.000000e+00> : vector<16xf32>
    %46 = vector.multi_reduction <add>, %45, %cst_14 [1] : vector<16x16xf32> to vector<16xf32>
    %47 = vector.shape_cast %46 : vector<16xf32> to vector<16x1xf32>
    %48 = tpu.reciprocal %47 {approx = true} : vector<16x1xf32> -> vector<16x1xf32>
    %49 = vector.broadcast %48 : vector<16x1xf32> to vector<16x16xf32>
    %50 = arith.mulf %45, %49 : vector<16x16xf32>
    %51 = arith.truncf %50 : vector<16x16xf32> to vector<16x16xbf16>
    %52 = vector.extract_strided_slice %13 {offsets = [0, 8], sizes = [16, 8], strides = [1, 1]} : vector<16x32xbf16> to vector<16x8xbf16>
    "tpu.trace_start"() <{level = 10 : i32, message = "qk,kd->qd"}> : () -> ()
    %cst_15 = arith.constant dense<0.000000e+00> : vector<16x8xf32>
    %53 = tpu.matmul %51, %52, %cst_15 {dimension_numbers = #tpu.dot_dimension_numbers<[1], [0], [0], [1], [0, 0, 1, 1], [], []>} : vector<16x16xbf16>, vector<16x8xbf16>, vector<16x8xf32> -> vector<16x8xf32>
    "tpu.trace_stop"() : () -> ()
    %54 = vector.extract_strided_slice %11 {offsets = [0, 16], sizes = [16, 8], strides = [1, 1]} : vector<16x32xbf16> to vector<16x8xbf16>
    %55 = vector.extract_strided_slice %12 {offsets = [0, 16], sizes = [16, 8], strides = [1, 1]} : vector<16x32xbf16> to vector<16x8xbf16>
    "tpu.trace_start"() <{level = 10 : i32, message = "qd,kd->qk"}> : () -> ()
    %cst_16 = arith.constant dense<0.000000e+00> : vector<16x16xf32>
    %56 = tpu.matmul %54, %55, %cst_16 {dimension_numbers = #tpu.dot_dimension_numbers<[1], [1], [0], [0], [0, 0, 1, 0], [], []>} : vector<16x8xbf16>, vector<16x8xbf16>, vector<16x16xf32> -> vector<16x16xf32>
    "tpu.trace_stop"() : () -> ()
    %57 = arith.addf %56, %19 : vector<16x16xf32>
    %cst_17 = arith.constant dense<0xFF800000> : vector<16xf32>
    %58 = vector.multi_reduction <maximumf>, %57, %cst_17 [1] : vector<16x16xf32> to vector<16xf32>
    %59 = vector.shape_cast %58 : vector<16xf32> to vector<16x1xf32>
    %60 = vector.broadcast %59 : vector<16x1xf32> to vector<16x16xf32>
    %61 = arith.subf %57, %60 : vector<16x16xf32>
    %62 = math.exp %61 : vector<16x16xf32>
    %cst_18 = arith.constant dense<0.000000e+00> : vector<16xf32>
    %63 = vector.multi_reduction <add>, %62, %cst_18 [1] : vector<16x16xf32> to vector<16xf32>
    %64 = vector.shape_cast %63 : vector<16xf32> to vector<16x1xf32>
    %65 = tpu.reciprocal %64 {approx = true} : vector<16x1xf32> -> vector<16x1xf32>
    %66 = vector.broadcast %65 : vector<16x1xf32> to vector<16x16xf32>
    %67 = arith.mulf %62, %66 : vector<16x16xf32>
    %68 = arith.truncf %67 : vector<16x16xf32> to vector<16x16xbf16>
    %69 = vector.extract_strided_slice %13 {offsets = [0, 16], sizes = [16, 8], strides = [1, 1]} : vector<16x32xbf16> to vector<16x8xbf16>
    "tpu.trace_start"() <{level = 10 : i32, message = "qk,kd->qd"}> : () -> ()
    %cst_19 = arith.constant dense<0.000000e+00> : vector<16x8xf32>
    %70 = tpu.matmul %68, %69, %cst_19 {dimension_numbers = #tpu.dot_dimension_numbers<[1], [0], [0], [1], [0, 0, 1, 1], [], []>} : vector<16x16xbf16>, vector<16x8xbf16>, vector<16x8xf32> -> vector<16x8xf32>
    "tpu.trace_stop"() : () -> ()
    %71 = vector.extract_strided_slice %11 {offsets = [0, 24], sizes = [16, 8], strides = [1, 1]} : vector<16x32xbf16> to vector<16x8xbf16>
    %72 = vector.extract_strided_slice %12 {offsets = [0, 24], sizes = [16, 8], strides = [1, 1]} : vector<16x32xbf16> to vector<16x8xbf16>
    "tpu.trace_start"() <{level = 10 : i32, message = "qd,kd->qk"}> : () -> ()
    %cst_20 = arith.constant dense<0.000000e+00> : vector<16x16xf32>
    %73 = tpu.matmul %71, %72, %cst_20 {dimension_numbers = #tpu.dot_dimension_numbers<[1], [1], [0], [0], [0, 0, 1, 0], [], []>} : vector<16x8xbf16>, vector<16x8xbf16>, vector<16x16xf32> -> vector<16x16xf32>
    "tpu.trace_stop"() : () -> ()
    %74 = arith.addf %73, %19 : vector<16x16xf32>
    %cst_21 = arith.constant dense<0xFF800000> : vector<16xf32>
    %75 = vector.multi_reduction <maximumf>, %74, %cst_21 [1] : vector<16x16xf32> to vector<16xf32>
    %76 = vector.shape_cast %75 : vector<16xf32> to vector<16x1xf32>
    %77 = vector.broadcast %76 : vector<16x1xf32> to vector<16x16xf32>
    %78 = arith.subf %74, %77 : vector<16x16xf32>
    %79 = math.exp %78 : vector<16x16xf32>
    %cst_22 = arith.constant dense<0.000000e+00> : vector<16xf32>
    %80 = vector.multi_reduction <add>, %79, %cst_22 [1] : vector<16x16xf32> to vector<16xf32>
    %81 = vector.shape_cast %80 : vector<16xf32> to vector<16x1xf32>
    %82 = tpu.reciprocal %81 {approx = true} : vector<16x1xf32> -> vector<16x1xf32>
    %83 = vector.broadcast %82 : vector<16x1xf32> to vector<16x16xf32>
    %84 = arith.mulf %79, %83 : vector<16x16xf32>
    %85 = arith.truncf %84 : vector<16x16xf32> to vector<16x16xbf16>
    %86 = vector.extract_strided_slice %13 {offsets = [0, 24], sizes = [16, 8], strides = [1, 1]} : vector<16x32xbf16> to vector<16x8xbf16>
    "tpu.trace_start"() <{level = 10 : i32, message = "qk,kd->qd"}> : () -> ()
    %cst_23 = arith.constant dense<0.000000e+00> : vector<16x8xf32>
    %87 = tpu.matmul %85, %86, %cst_23 {dimension_numbers = #tpu.dot_dimension_numbers<[1], [0], [0], [1], [0, 0, 1, 1], [], []>} : vector<16x16xbf16>, vector<16x8xbf16>, vector<16x8xf32> -> vector<16x8xf32>
    "tpu.trace_stop"() : () -> ()
    %88 = tpu.concatenate %36, %53, %70, %87 in 1 : vector<16x8xf32>, vector<16x8xf32>, vector<16x8xf32>, vector<16x8xf32> -> vector<16x32xf32>
    %c0_24 = arith.constant 0 : index
    %c0_25 = arith.constant 0 : index
    %c0_26 = arith.constant 0 : index
    %89 = vector.load %arg4[%c0_24, %c0_25, %c0_26] : memref<1x16x32xf32, #tpu.memory_space<vmem>>, vector<1x16x32xf32>
    %90 = vector.shape_cast %89 : vector<1x16x32xf32> to vector<16x32xf32>
    %91 = vector.shape_cast %88 : vector<16x32xf32> to vector<1x16x32xf32>
    tpu.vector_store %arg4[%c0_24, %c0_25, %c0_26], %91 {strides = array<i32>} : memref<1x16x32xf32, #tpu.memory_space<vmem>>, vector<1x16x32xf32>,
    return
  }
  func.func @transform_0(%arg0: i32) -> (i32, i32, i32) {
    %c0_i32 = arith.constant 0 : i32
    %c0_i32_0 = arith.constant 0 : i32
    %c0_i32_1 = arith.constant 0 : i32
    return %arg0, %c0_i32, %c0_i32_0 : i32, i32, i32
  }
  func.func @transform_1(%arg0: i32) -> (i32, i32) {
    %c0_i32 = arith.constant 0 : i32
    %c0_i32_0 = arith.constant 0 : i32
    %c0_i32_1 = arith.constant 0 : i32
    return %c0_i32, %c0_i32_0 : i32, i32
  }
  func.func @transform_2(%arg0: i32) -> (i32, i32) {
    %c0_i32 = arith.constant 0 : i32
    %c0_i32_0 = arith.constant 0 : i32
    %c0_i32_1 = arith.constant 0 : i32
    return %c0_i32, %c0_i32_0 : i32, i32
  }
  func.func @transform_3(%arg0: i32) -> (i32, i32, i32) {
    %c0_i32 = arith.constant 0 : i32
    %c0_i32_0 = arith.constant 0 : i32
    %c0_i32_1 = arith.constant 0 : i32
    return %arg0, %c0_i32, %c0_i32_0 : i32, i32, i32
  }
}

module attributes {stable_mosaic.version = 11 : i64} {
  func.func @kernel(%arg0: i32, %arg1: memref<1x16x32xf32, #tpu.memory_space<vmem>>, %arg2: memref<1x16x32xf32, #tpu.memory_space<vmem>>, %arg3: memref<32x32xbf16, #tpu.memory_space<vmem>>, %arg4: memref<1x32xf32, #tpu.memory_space<vmem>>, %arg5: memref<1x32xf32, #tpu.memory_space<vmem>>, %arg6: memref<1x32xf32, #tpu.memory_space<vmem>>, %arg7: memref<1x16x32xf32, #tpu.memory_space<vmem>>) attributes {dimension_semantics = [#tpu.dimension_semantics<parallel>], iteration_bounds = array<i64: 2>, scalar_prefetch = 0 : i64, scratch_operands = 0 : i64, tpu.core_type = #tpu.core_type<tc>, window_params = [{transform_indices = @transform_0, window_bounds = array<i64: 1, 16, 32>}, {transform_indices = @transform_1, window_bounds = array<i64: 1, 16, 32>}, {pipeline_mode = #tpu.pipeline_mode<synchronous>, transform_indices = @transform_2, window_bounds = array<i64: 32, 32>}, {pipeline_mode = #tpu.pipeline_mode<synchronous>, transform_indices = @transform_3, window_bounds = array<i64: 1, 32>}, {pipeline_mode = #tpu.pipeline_mode<synchronous>, transform_indices = @transform_4, window_bounds = array<i64: 1, 32>}, {pipeline_mode = #tpu.pipeline_mode<synchronous>, transform_indices = @transform_5, window_bounds = array<i64: 1, 32>}, {transform_indices = @transform_6, window_bounds = array<i64: 1, 16, 32>}]} {
    %c0 = arith.constant 0 : index
    %c0_0 = arith.constant 0 : index
    %c0_1 = arith.constant 0 : index
    %0 = vector.load %arg1[%c0, %c0_0, %c0_1] : memref<1x16x32xf32, #tpu.memory_space<vmem>>, vector<1x16x32xf32>
    %1 = vector.shape_cast %0 : vector<1x16x32xf32> to vector<16x32xf32>
    %2 = arith.truncf %1 : vector<16x32xf32> to vector<16x32xbf16>
    %c0_2 = arith.constant 0 : index
    %c0_3 = arith.constant 0 : index
    %3 = vector.load %arg3[%c0_2, %c0_3] : memref<32x32xbf16, #tpu.memory_space<vmem>>, vector<32x32xbf16>
    %cst = arith.constant dense<0.000000e+00> : vector<16x32xf32>
    %4 = tpu.matmul %2, %3, %cst {dimension_numbers = #tpu.dot_dimension_numbers<[1], [0], [0], [1], [0, 0, 1, 1], [], []>} : vector<16x32xbf16>, vector<32x32xbf16>, vector<16x32xf32> -> vector<16x32xf32>
    %c0_4 = arith.constant 0 : index
    %c0_5 = arith.constant 0 : index
    %5 = vector.load %arg4[%c0_4, %c0_5] : memref<1x32xf32, #tpu.memory_space<vmem>>, vector<1x32xf32>
    %6 = vector.broadcast %5 : vector<1x32xf32> to vector<16x32xf32>
    %7 = arith.addf %4, %6 : vector<16x32xf32>
    %c0_6 = arith.constant 0 : index
    %c0_7 = arith.constant 0 : index
    %c0_8 = arith.constant 0 : index
    %8 = vector.load %arg2[%c0_6, %c0_7, %c0_8] : memref<1x16x32xf32, #tpu.memory_space<vmem>>, vector<1x16x32xf32>
    %9 = vector.shape_cast %8 : vector<1x16x32xf32> to vector<16x32xf32>
    %10 = arith.addf %9, %7 : vector<16x32xf32>
    %cst_9 = arith.constant dense<0.000000e+00> : vector<16xf32>
    %11 = vector.multi_reduction <add>, %10, %cst_9 [1] : vector<16x32xf32> to vector<16xf32>
    %12 = vector.shape_cast %11 : vector<16xf32> to vector<16x1xf32>
    %cst_10 = arith.constant 3.200000e+01 : f32
    %13 = vector.broadcast %cst_10 : f32 to vector<16x1xf32>
    %14 = arith.divf %12, %13 : vector<16x1xf32>
    %15 = vector.broadcast %14 : vector<16x1xf32> to vector<16x32xf32>
    %16 = arith.subf %10, %15 : vector<16x32xf32>
    %17 = arith.mulf %16, %16 : vector<16x32xf32>
    %cst_11 = arith.constant dense<0.000000e+00> : vector<16xf32>
    %18 = vector.multi_reduction <add>, %17, %cst_11 [1] : vector<16x32xf32> to vector<16xf32>
    %19 = vector.shape_cast %18 : vector<16xf32> to vector<16x1xf32>
    %cst_12 = arith.constant 3.200000e+01 : f32
    %20 = vector.broadcast %cst_12 : f32 to vector<16x1xf32>
    %21 = arith.divf %19, %20 : vector<16x1xf32>
    %22 = vector.broadcast %14 : vector<16x1xf32> to vector<16x32xf32>
    %23 = arith.subf %10, %22 : vector<16x32xf32>
    %cst_13 = arith.constant 9.99999974E-6 : f32
    %24 = vector.broadcast %cst_13 : f32 to vector<16x1xf32>
    %25 = arith.addf %21, %24 : vector<16x1xf32>
    %26 = math.rsqrt %25 : vector<16x1xf32>
    %27 = vector.broadcast %26 : vector<16x1xf32> to vector<16x32xf32>
    %28 = arith.mulf %23, %27 : vector<16x32xf32>
    %c0_14 = arith.constant 0 : index
    %c0_15 = arith.constant 0 : index
    %29 = vector.load %arg5[%c0_14, %c0_15] : memref<1x32xf32, #tpu.memory_space<vmem>>, vector<1x32xf32>
    %30 = vector.broadcast %29 : vector<1x32xf32> to vector<16x32xf32>
    %31 = arith.mulf %28, %30 : vector<16x32xf32>
    %c0_16 = arith.constant 0 : index
    %c0_17 = arith.constant 0 : index
    %32 = vector.load %arg6[%c0_16, %c0_17] : memref<1x32xf32, #tpu.memory_space<vmem>>, vector<1x32xf32>
    %33 = vector.broadcast %32 : vector<1x32xf32> to vector<16x32xf32>
    %34 = arith.addf %31, %33 : vector<16x32xf32>
    %c0_18 = arith.constant 0 : index
    %c0_19 = arith.constant 0 : index
    %c0_20 = arith.constant 0 : index
    %35 = vector.load %arg7[%c0_18, %c0_19, %c0_20] : memref<1x16x32xf32, #tpu.memory_space<vmem>>, vector<1x16x32xf32>
    %36 = vector.shape_cast %35 : vector<1x16x32xf32> to vector<16x32xf32>
    %37 = vector.shape_cast %34 : vector<16x32xf32> to vector<1x16x32xf32>
    tpu.vector_store %arg7[%c0_18, %c0_19, %c0_20], %37 {strides = array<i32>} : memref<1x16x32xf32, #tpu.memory_space<vmem>>, vector<1x16x32xf32>,
    return
  }
  func.func @transform_0(%arg0: i32) -> (i32, i32, i32) {
    %c0_i32 = arith.constant 0 : i32
    %c0_i32_0 = arith.constant 0 : i32
    %c0_i32_1 = arith.constant 0 : i32
    return %arg0, %c0_i32, %c0_i32_0 : i32, i32, i32
  }
  func.func @transform_1(%arg0: i32) -> (i32, i32, i32) {
    %c0_i32 = arith.constant 0 : i32
    %c0_i32_0 = arith.constant 0 : i32
    %c0_i32_1 = arith.constant 0 : i32
    return %arg0, %c0_i32, %c0_i32_0 : i32, i32, i32
  }
  func.func @transform_2(%arg0: i32) -> (i32, i32) {
    %c0_i32 = arith.constant 0 : i32
    %c0_i32_0 = arith.constant 0 : i32
    %c0_i32_1 = arith.constant 0 : i32
    return %c0_i32, %c0_i32_0 : i32, i32
  }
  func.func @transform_3(%arg0: i32) -> (i32, i32) {
    %c0_i32 = arith.constant 0 : i32
    %c0_i32_0 = arith.constant 0 : i32
    %c0_i32_1 = arith.constant 0 : i32
    return %c0_i32, %c0_i32_0 : i32, i32
  }
  func.func @transform_4(%arg0: i32) -> (i32, i32) {
    %c0_i32 = arith.constant 0 : i32
    %c0_i32_0 = arith.constant 0 : i32
    %c0_i32_1 = arith.constant 0 : i32
    return %c0_i32, %c0_i32_0 : i32, i32
  }
  func.func @transform_5(%arg0: i32) -> (i32, i32) {
    %c0_i32 = arith.constant 0 : i32
    %c0_i32_0 = arith.constant 0 : i32
    %c0_i32_1 = arith.constant 0 : i32
    return %c0_i32, %c0_i32_0 : i32, i32
  }
  func.func @transform_6(%arg0: i32) -> (i32, i32, i32) {
    %c0_i32 = arith.constant 0 : i32
    %c0_i32_0 = arith.constant 0 : i32
    %c0_i32_1 = arith.constant 0 : i32
    return %arg0, %c0_i32, %c0_i32_0 : i32, i32, i32
  }
}

module attributes {stable_mosaic.version = 11 : i64} {
  func.func @kernel(%arg0: i32, %arg1: memref<1x16x32xf32, #tpu.memory_space<vmem>>, %arg2: memref<32x96xbf16, #tpu.memory_space<vmem>>, %arg3: memref<1x96xf32, #tpu.memory_space<vmem>>, %arg4: memref<32x32xbf16, #tpu.memory_space<vmem>>, %arg5: memref<1x32xf32, #tpu.memory_space<vmem>>, %arg6: memref<1x32xf32, #tpu.memory_space<vmem>>, %arg7: memref<1x32xf32, #tpu.memory_space<vmem>>, %arg8: memref<1x16x32xf32, #tpu.memory_space<vmem>>) attributes {dimension_semantics = [#tpu.dimension_semantics<parallel>], iteration_bounds = array<i64: 2>, scalar_prefetch = 0 : i64, scratch_operands = 0 : i64, tpu.core_type = #tpu.core_type<tc>, window_params = [{transform_indices = @transform_0, window_bounds = array<i64: 1, 16, 32>}, {pipeline_mode = #tpu.pipeline_mode<synchronous>, transform_indices = @transform_1, window_bounds = array<i64: 32, 96>}, {pipeline_mode = #tpu.pipeline_mode<synchronous>, transform_indices = @transform_2, window_bounds = array<i64: 1, 96>}, {pipeline_mode = #tpu.pipeline_mode<synchronous>, transform_indices = @transform_3, window_bounds = array<i64: 32, 32>}, {pipeline_mode = #tpu.pipeline_mode<synchronous>, transform_indices = @transform_4, window_bounds = array<i64: 1, 32>}, {pipeline_mode = #tpu.pipeline_mode<synchronous>, transform_indices = @transform_5, window_bounds = array<i64: 1, 32>}, {pipeline_mode = #tpu.pipeline_mode<synchronous>, transform_indices = @transform_6, window_bounds = array<i64: 1, 32>}, {transform_indices = @transform_7, window_bounds = array<i64: 1, 16, 32>}]} {
    %c0 = arith.constant 0 : index
    %c0_0 = arith.constant 0 : index
    %c0_1 = arith.constant 0 : index
    %0 = vector.load %arg1[%c0, %c0_0, %c0_1] : memref<1x16x32xf32, #tpu.memory_space<vmem>>, vector<1x16x32xf32>
    %1 = vector.shape_cast %0 : vector<1x16x32xf32> to vector<16x32xf32>
    %2 = arith.truncf %1 : vector<16x32xf32> to vector<16x32xbf16>
    %c0_2 = arith.constant 0 : index
    %c0_3 = arith.constant 0 : index
    %3 = vector.load %arg2[%c0_2, %c0_3] : memref<32x96xbf16, #tpu.memory_space<vmem>>, vector<32x96xbf16>
    %cst = arith.constant dense<0.000000e+00> : vector<16x96xf32>
    %4 = tpu.matmul %2, %3, %cst {dimension_numbers = #tpu.dot_dimension_numbers<[1], [0], [0], [1], [0, 0, 1, 1], [], []>} : vector<16x32xbf16>, vector<32x96xbf16>, vector<16x96xf32> -> vector<16x96xf32>
    %c0_4 = arith.constant 0 : index
    %c0_5 = arith.constant 0 : index
    %5 = vector.load %arg3[%c0_4, %c0_5] : memref<1x96xf32, #tpu.memory_space<vmem>>, vector<1x96xf32>
    %6 = vector.broadcast %5 : vector<1x96xf32> to vector<16x96xf32>
    %7 = arith.addf %4, %6 : vector<16x96xf32>
    %8 = vector.extract_strided_slice %7 {offsets = [0, 0], sizes = [16, 32], strides = [1, 1]} : vector<16x96xf32> to vector<16x32xf32>
    %9 = vector.extract_strided_slice %7 {offsets = [0, 32], sizes = [16, 32], strides = [1, 1]} : vector<16x96xf32> to vector<16x32xf32>
    %10 = vector.extract_strided_slice %7 {offsets = [0, 64], sizes = [16, 32], strides = [1, 1]} : vector<16x96xf32> to vector<16x32xf32>
    %11 = arith.truncf %8 : vector<16x32xf32> to vector<16x32xbf16>
    %12 = arith.truncf %9 : vector<16x32xf32> to vector<16x32xbf16>
    %13 = arith.truncf %10 : vector<16x32xf32> to vector<16x32xbf16>
    %14 = vector.extract_strided_slice %11 {offsets = [0, 0], sizes = [16, 8], strides = [1, 1]} : vector<16x32xbf16> to vector<16x8xbf16>
    %15 = vector.extract_strided_slice %12 {offsets = [0, 0], sizes = [16, 8], strides = [1, 1]} : vector<16x32xbf16> to vector<16x8xbf16>
    "tpu.trace_start"() <{level = 10 : i32, message = "qd,kd->qk"}> : () -> ()
    %cst_6 = arith.constant dense<0.000000e+00> : vector<16x16xf32>
    %16 = tpu.matmul %14, %15, %cst_6 {dimension_numbers = #tpu.dot_dimension_numbers<[1], [1], [0], [0], [0, 0, 1, 0], [], []>} : vector<16x8xbf16>, vector<16x8xbf16>, vector<16x16xf32> -> vector<16x16xf32>
    "tpu.trace_stop"() : () -> ()
    %cst_7 = arith.constant dense<0xFF800000> : vector<16xf32>
    %17 = vector.multi_reduction <maximumf>, %16, %cst_7 [1] : vector<16x16xf32> to vector<16xf32>
    %18 = vector.shape_cast %17 : vector<16xf32> to vector<16x1xf32>
    %19 = vector.broadcast %18 : vector<16x1xf32> to vector<16x16xf32>
    %20 = arith.subf %16, %19 : vector<16x16xf32>
    %21 = math.exp %20 : vector<16x16xf32>
    %cst_8 = arith.constant dense<0.000000e+00> : vector<16xf32>
    %22 = vector.multi_reduction <add>, %21, %cst_8 [1] : vector<16x16xf32> to vector<16xf32>
    %23 = vector.shape_cast %22 : vector<16xf32> to vector<16x1xf32>
    %24 = tpu.reciprocal %23 {approx = true} : vector<16x1xf32> -> vector<16x1xf32>
    %25 = vector.broadcast %24 : vector<16x1xf32> to vector<16x16xf32>
    %26 = arith.mulf %21, %25 : vector<16x16xf32>
    %27 = arith.truncf %26 : vector<16x16xf32> to vector<16x16xbf16>
    %28 = vector.extract_strided_slice %13 {offsets = [0, 0], sizes = [16, 8], strides = [1, 1]} : vector<16x32xbf16> to vector<16x8xbf16>
    "tpu.trace_start"() <{level = 10 : i32, message = "qk,kd->qd"}> : () -> ()
    %cst_9 = arith.constant dense<0.000000e+00> : vector<16x8xf32>
    %29 = tpu.matmul %27, %28, %cst_9 {dimension_numbers = #tpu.dot_dimension_numbers<[1], [0], [0], [1], [0, 0, 1, 1], [], []>} : vector<16x16xbf16>, vector<16x8xbf16>, vector<16x8xf32> -> vector<16x8xf32>
    "tpu.trace_stop"() : () -> ()
    %30 = vector.extract_strided_slice %11 {offsets = [0, 8], sizes = [16, 8], strides = [1, 1]} : vector<16x32xbf16> to vector<16x8xbf16>
    %31 = vector.extract_strided_slice %12 {offsets = [0, 8], sizes = [16, 8], strides = [1, 1]} : vector<16x32xbf16> to vector<16x8xbf16>
    "tpu.trace_start"() <{level = 10 : i32, message = "qd,kd->qk"}> : () -> ()
    %cst_10 = arith.constant dense<0.000000e+00> : vector<16x16xf32>
    %32 = tpu.matmul %30, %31, %cst_10 {dimension_numbers = #tpu.dot_dimension_numbers<[1], [1], [0], [0], [0, 0, 1, 0], [], []>} : vector<16x8xbf16>, vector<16x8xbf16>, vector<16x16xf32> -> vector<16x16xf32>
    "tpu.trace_stop"() : () -> ()
    %cst_11 = arith.constant dense<0xFF800000> : vector<16xf32>
    %33 = vector.multi_reduction <maximumf>, %32, %cst_11 [1] : vector<16x16xf32> to vector<16xf32>
    %34 = vector.shape_cast %33 : vector<16xf32> to vector<16x1xf32>
    %35 = vector.broadcast %34 : vector<16x1xf32> to vector<16x16xf32>
    %36 = arith.subf %32, %35 : vector<16x16xf32>
    %37 = math.exp %36 : vector<16x16xf32>
    %cst_12 = arith.constant dense<0.000000e+00> : vector<16xf32>
    %38 = vector.multi_reduction <add>, %37, %cst_12 [1] : vector<16x16xf32> to vector<16xf32>
    %39 = vector.shape_cast %38 : vector<16xf32> to vector<16x1xf32>
    %40 = tpu.reciprocal %39 {approx = true} : vector<16x1xf32> -> vector<16x1xf32>
    %41 = vector.broadcast %40 : vector<16x1xf32> to vector<16x16xf32>
    %42 = arith.mulf %37, %41 : vector<16x16xf32>
    %43 = arith.truncf %42 : vector<16x16xf32> to vector<16x16xbf16>
    %44 = vector.extract_strided_slice %13 {offsets = [0, 8], sizes = [16, 8], strides = [1, 1]} : vector<16x32xbf16> to vector<16x8xbf16>
    "tpu.trace_start"() <{level = 10 : i32, message = "qk,kd->qd"}> : () -> ()
    %cst_13 = arith.constant dense<0.000000e+00> : vector<16x8xf32>
    %45 = tpu.matmul %43, %44, %cst_13 {dimension_numbers = #tpu.dot_dimension_numbers<[1], [0], [0], [1], [0, 0, 1, 1], [], []>} : vector<16x16xbf16>, vector<16x8xbf16>, vector<16x8xf32> -> vector<16x8xf32>
    "tpu.trace_stop"() : () -> ()
    %46 = vector.extract_strided_slice %11 {offsets = [0, 16], sizes = [16, 8], strides = [1, 1]} : vector<16x32xbf16> to vector<16x8xbf16>
    %47 = vector.extract_strided_slice %12 {offsets = [0, 16], sizes = [16, 8], strides = [1, 1]} : vector<16x32xbf16> to vector<16x8xbf16>
    "tpu.trace_start"() <{level = 10 : i32, message = "qd,kd->qk"}> : () -> ()
    %cst_14 = arith.constant dense<0.000000e+00> : vector<16x16xf32>
    %48 = tpu.matmul %46, %47, %cst_14 {dimension_numbers = #tpu.dot_dimension_numbers<[1], [1], [0], [0], [0, 0, 1, 0], [], []>} : vector<16x8xbf16>, vector<16x8xbf16>, vector<16x16xf32> -> vector<16x16xf32>
    "tpu.trace_stop"() : () -> ()
    %cst_15 = arith.constant dense<0xFF800000> : vector<16xf32>
    %49 = vector.multi_reduction <maximumf>, %48, %cst_15 [1] : vector<16x16xf32> to vector<16xf32>
    %50 = vector.shape_cast %49 : vector<16xf32> to vector<16x1xf32>
    %51 = vector.broadcast %50 : vector<16x1xf32> to vector<16x16xf32>
    %52 = arith.subf %48, %51 : vector<16x16xf32>
    %53 = math.exp %52 : vector<16x16xf32>
    %cst_16 = arith.constant dense<0.000000e+00> : vector<16xf32>
    %54 = vector.multi_reduction <add>, %53, %cst_16 [1] : vector<16x16xf32> to vector<16xf32>
    %55 = vector.shape_cast %54 : vector<16xf32> to vector<16x1xf32>
    %56 = tpu.reciprocal %55 {approx = true} : vector<16x1xf32> -> vector<16x1xf32>
    %57 = vector.broadcast %56 : vector<16x1xf32> to vector<16x16xf32>
    %58 = arith.mulf %53, %57 : vector<16x16xf32>
    %59 = arith.truncf %58 : vector<16x16xf32> to vector<16x16xbf16>
    %60 = vector.extract_strided_slice %13 {offsets = [0, 16], sizes = [16, 8], strides = [1, 1]} : vector<16x32xbf16> to vector<16x8xbf16>
    "tpu.trace_start"() <{level = 10 : i32, message = "qk,kd->qd"}> : () -> ()
    %cst_17 = arith.constant dense<0.000000e+00> : vector<16x8xf32>
    %61 = tpu.matmul %59, %60, %cst_17 {dimension_numbers = #tpu.dot_dimension_numbers<[1], [0], [0], [1], [0, 0, 1, 1], [], []>} : vector<16x16xbf16>, vector<16x8xbf16>, vector<16x8xf32> -> vector<16x8xf32>
    "tpu.trace_stop"() : () -> ()
    %62 = vector.extract_strided_slice %11 {offsets = [0, 24], sizes = [16, 8], strides = [1, 1]} : vector<16x32xbf16> to vector<16x8xbf16>
    %63 = vector.extract_strided_slice %12 {offsets = [0, 24], sizes = [16, 8], strides = [1, 1]} : vector<16x32xbf16> to vector<16x8xbf16>
    "tpu.trace_start"() <{level = 10 : i32, message = "qd,kd->qk"}> : () -> ()
    %cst_18 = arith.constant dense<0.000000e+00> : vector<16x16xf32>
    %64 = tpu.matmul %62, %63, %cst_18 {dimension_numbers = #tpu.dot_dimension_numbers<[1], [1], [0], [0], [0, 0, 1, 0], [], []>} : vector<16x8xbf16>, vector<16x8xbf16>, vector<16x16xf32> -> vector<16x16xf32>
    "tpu.trace_stop"() : () -> ()
    %cst_19 = arith.constant dense<0xFF800000> : vector<16xf32>
    %65 = vector.multi_reduction <maximumf>, %64, %cst_19 [1] : vector<16x16xf32> to vector<16xf32>
    %66 = vector.shape_cast %65 : vector<16xf32> to vector<16x1xf32>
    %67 = vector.broadcast %66 : vector<16x1xf32> to vector<16x16xf32>
    %68 = arith.subf %64, %67 : vector<16x16xf32>
    %69 = math.exp %68 : vector<16x16xf32>
    %cst_20 = arith.constant dense<0.000000e+00> : vector<16xf32>
    %70 = vector.multi_reduction <add>, %69, %cst_20 [1] : vector<16x16xf32> to vector<16xf32>
    %71 = vector.shape_cast %70 : vector<16xf32> to vector<16x1xf32>
    %72 = tpu.reciprocal %71 {approx = true} : vector<16x1xf32> -> vector<16x1xf32>
    %73 = vector.broadcast %72 : vector<16x1xf32> to vector<16x16xf32>
    %74 = arith.mulf %69, %73 : vector<16x16xf32>
    %75 = arith.truncf %74 : vector<16x16xf32> to vector<16x16xbf16>
    %76 = vector.extract_strided_slice %13 {offsets = [0, 24], sizes = [16, 8], strides = [1, 1]} : vector<16x32xbf16> to vector<16x8xbf16>
    "tpu.trace_start"() <{level = 10 : i32, message = "qk,kd->qd"}> : () -> ()
    %cst_21 = arith.constant dense<0.000000e+00> : vector<16x8xf32>
    %77 = tpu.matmul %75, %76, %cst_21 {dimension_numbers = #tpu.dot_dimension_numbers<[1], [0], [0], [1], [0, 0, 1, 1], [], []>} : vector<16x16xbf16>, vector<16x8xbf16>, vector<16x8xf32> -> vector<16x8xf32>
    "tpu.trace_stop"() : () -> ()
    %78 = tpu.concatenate %29, %45, %61, %77 in 1 : vector<16x8xf32>, vector<16x8xf32>, vector<16x8xf32>, vector<16x8xf32> -> vector<16x32xf32>
    %79 = arith.truncf %78 : vector<16x32xf32> to vector<16x32xbf16>
    %c0_22 = arith.constant 0 : index
    %c0_23 = arith.constant 0 : index
    %80 = vector.load %arg4[%c0_22, %c0_23] : memref<32x32xbf16, #tpu.memory_space<vmem>>, vector<32x32xbf16>
    %cst_24 = arith.constant dense<0.000000e+00> : vector<16x32xf32>
    %81 = tpu.matmul %79, %80, %cst_24 {dimension_numbers = #tpu.dot_dimension_numbers<[1], [0], [0], [1], [0, 0, 1, 1], [], []>} : vector<16x32xbf16>, vector<32x32xbf16>, vector<16x32xf32> -> vector<16x32xf32>
    %c0_25 = arith.constant 0 : index
    %c0_26 = arith.constant 0 : index
    %82 = vector.load %arg5[%c0_25, %c0_26] : memref<1x32xf32, #tpu.memory_space<vmem>>, vector<1x32xf32>
    %83 = vector.broadcast %82 : vector<1x32xf32> to vector<16x32xf32>
    %84 = arith.addf %81, %83 : vector<16x32xf32>
    %85 = arith.addf %1, %84 : vector<16x32xf32>
    %cst_27 = arith.constant dense<0.000000e+00> : vector<16xf32>
    %86 = vector.multi_reduction <add>, %85, %cst_27 [1] : vector<16x32xf32> to vector<16xf32>
    %87 = vector.shape_cast %86 : vector<16xf32> to vector<16x1xf32>
    %cst_28 = arith.constant 3.200000e+01 : f32
    %88 = vector.broadcast %cst_28 : f32 to vector<16x1xf32>
    %89 = arith.divf %87, %88 : vector<16x1xf32>
    %90 = vector.broadcast %89 : vector<16x1xf32> to vector<16x32xf32>
    %91 = arith.subf %85, %90 : vector<16x32xf32>
    %92 = arith.mulf %91, %91 : vector<16x32xf32>
    %cst_29 = arith.constant dense<0.000000e+00> : vector<16xf32>
    %93 = vector.multi_reduction <add>, %92, %cst_29 [1] : vector<16x32xf32> to vector<16xf32>
    %94 = vector.shape_cast %93 : vector<16xf32> to vector<16x1xf32>
    %cst_30 = arith.constant 3.200000e+01 : f32
    %95 = vector.broadcast %cst_30 : f32 to vector<16x1xf32>
    %96 = arith.divf %94, %95 : vector<16x1xf32>
    %97 = vector.broadcast %89 : vector<16x1xf32> to vector<16x32xf32>
    %98 = arith.subf %85, %97 : vector<16x32xf32>
    %cst_31 = arith.constant 9.99999974E-6 : f32
    %99 = vector.broadcast %cst_31 : f32 to vector<16x1xf32>
    %100 = arith.addf %96, %99 : vector<16x1xf32>
    %101 = math.rsqrt %100 : vector<16x1xf32>
    %102 = vector.broadcast %101 : vector<16x1xf32> to vector<16x32xf32>
    %103 = arith.mulf %98, %102 : vector<16x32xf32>
    %c0_32 = arith.constant 0 : index
    %c0_33 = arith.constant 0 : index
    %104 = vector.load %arg6[%c0_32, %c0_33] : memref<1x32xf32, #tpu.memory_space<vmem>>, vector<1x32xf32>
    %105 = vector.broadcast %104 : vector<1x32xf32> to vector<16x32xf32>
    %106 = arith.mulf %103, %105 : vector<16x32xf32>
    %c0_34 = arith.constant 0 : index
    %c0_35 = arith.constant 0 : index
    %107 = vector.load %arg7[%c0_34, %c0_35] : memref<1x32xf32, #tpu.memory_space<vmem>>, vector<1x32xf32>
    %108 = vector.broadcast %107 : vector<1x32xf32> to vector<16x32xf32>
    %109 = arith.addf %106, %108 : vector<16x32xf32>
    %c0_36 = arith.constant 0 : index
    %c0_37 = arith.constant 0 : index
    %c0_38 = arith.constant 0 : index
    %110 = vector.load %arg8[%c0_36, %c0_37, %c0_38] : memref<1x16x32xf32, #tpu.memory_space<vmem>>, vector<1x16x32xf32>
    %111 = vector.shape_cast %110 : vector<1x16x32xf32> to vector<16x32xf32>
    %112 = vector.shape_cast %109 : vector<16x32xf32> to vector<1x16x32xf32>
    tpu.vector_store %arg8[%c0_36, %c0_37, %c0_38], %112 {strides = array<i32>} : memref<1x16x32xf32, #tpu.memory_space<vmem>>, vector<1x16x32xf32>,
    return
  }
  func.func @transform_0(%arg0: i32) -> (i32, i32, i32) {
    %c0_i32 = arith.constant 0 : i32
    %c0_i32_0 = arith.constant 0 : i32
    %c0_i32_1 = arith.constant 0 : i32
    return %arg0, %c0_i32, %c0_i32_0 : i32, i32, i32
  }
  func.func @transform_1(%arg0: i32) -> (i32, i32) {
    %c0_i32 = arith.constant 0 : i32
    %c0_i32_0 = arith.constant 0 : i32
    %c0_i32_1 = arith.constant 0 : i32
    return %c0_i32, %c0_i32_0 : i32, i32
  }
  func.func @transform_2(%arg0: i32) -> (i32, i32) {
    %c0_i32 = arith.constant 0 : i32
    %c0_i32_0 = arith.constant 0 : i32
    %c0_i32_1 = arith.constant 0 : i32
    return %c0_i32, %c0_i32_0 : i32, i32
  }
  func.func @transform_3(%arg0: i32) -> (i32, i32) {
    %c0_i32 = arith.constant 0 : i32
    %c0_i32_0 = arith.constant 0 : i32
    %c0_i32_1 = arith.constant 0 : i32
    return %c0_i32, %c0_i32_0 : i32, i32
  }
  func.func @transform_4(%arg0: i32) -> (i32, i32) {
    %c0_i32 = arith.constant 0 : i32
    %c0_i32_0 = arith.constant 0 : i32
    %c0_i32_1 = arith.constant 0 : i32
    return %c0_i32, %c0_i32_0 : i32, i32
  }
  func.func @transform_5(%arg0: i32) -> (i32, i32) {
    %c0_i32 = arith.constant 0 : i32
    %c0_i32_0 = arith.constant 0 : i32
    %c0_i32_1 = arith.constant 0 : i32
    return %c0_i32, %c0_i32_0 : i32, i32
  }
  func.func @transform_6(%arg0: i32) -> (i32, i32) {
    %c0_i32 = arith.constant 0 : i32
    %c0_i32_0 = arith.constant 0 : i32
    %c0_i32_1 = arith.constant 0 : i32
    return %c0_i32, %c0_i32_0 : i32, i32
  }
  func.func @transform_7(%arg0: i32) -> (i32, i32, i32) {
    %c0_i32 = arith.constant 0 : i32
    %c0_i32_0 = arith.constant 0 : i32
    %c0_i32_1 = arith.constant 0 : i32
    return %arg0, %c0_i32, %c0_i32_0 : i32, i32, i32
  }
}

module attributes {stable_mosaic.version = 11 : i64} {
  func.func @kernel(%arg0: i32, %arg1: memref<1x16x32xf32, #tpu.memory_space<vmem>>, %arg2: memref<96x32xbf16, #tpu.memory_space<vmem>>, %arg3: memref<1x32xf32, #tpu.memory_space<vmem>>, %arg4: memref<1x16x32xf32, #tpu.memory_space<vmem>>) attributes {dimension_semantics = [#tpu.dimension_semantics<parallel>], iteration_bounds = array<i64: 2>, scalar_prefetch = 0 : i64, scratch_operands = 0 : i64, tpu.core_type = #tpu.core_type<tc>, window_params = [{transform_indices = @transform_0, window_bounds = array<i64: 1, 16, 32>}, {pipeline_mode = #tpu.pipeline_mode<synchronous>, transform_indices = @transform_1, window_bounds = array<i64: 96, 32>}, {pipeline_mode = #tpu.pipeline_mode<synchronous>, transform_indices = @transform_2, window_bounds = array<i64: 1, 32>}, {transform_indices = @transform_3, window_bounds = array<i64: 1, 16, 32>}]} {
    %c0 = arith.constant 0 : index
    %c0_0 = arith.constant 0 : index
    %c0_1 = arith.constant 0 : index
    %0 = vector.load %arg1[%c0, %c0_0, %c0_1] : memref<1x16x32xf32, #tpu.memory_space<vmem>>, vector<1x16x32xf32>
    %1 = vector.shape_cast %0 : vector<1x16x32xf32> to vector<16x32xf32>
    %c1_i32 = arith.constant 1 : i32
    %2 = tpu.dynamic_rotate %1 by %c1_i32 dim 0 : vector<16x32xf32>, i32 -> vector<16x32xf32>
    %c15_i32 = arith.constant 15 : i32
    %3 = tpu.dynamic_rotate %1 by %c15_i32 dim 0 : vector<16x32xf32>, i32 -> vector<16x32xf32>
    %4 = tpu.concatenate %2, %1, %3 in 1 : vector<16x32xf32>, vector<16x32xf32>, vector<16x32xf32> -> vector<16x96xf32>
    %5 = arith.truncf %4 : vector<16x96xf32> to vector<16x96xbf16>
    %c0_2 = arith.constant 0 : index
    %c0_3 = arith.constant 0 : index
    %6 = vector.load %arg2[%c0_2, %c0_3] : memref<96x32xbf16, #tpu.memory_space<vmem>>, vector<96x32xbf16>
    %cst = arith.constant dense<0.000000e+00> : vector<16x32xf32>
    %7 = tpu.matmul %5, %6, %cst {dimension_numbers = #tpu.dot_dimension_numbers<[1], [0], [0], [1], [0, 0, 1, 1], [], []>} : vector<16x96xbf16>, vector<96x32xbf16>, vector<16x32xf32> -> vector<16x32xf32>
    %c0_4 = arith.constant 0 : index
    %c0_5 = arith.constant 0 : index
    %8 = vector.load %arg3[%c0_4, %c0_5] : memref<1x32xf32, #tpu.memory_space<vmem>>, vector<1x32xf32>
    %9 = vector.broadcast %8 : vector<1x32xf32> to vector<16x32xf32>
    %10 = arith.addf %7, %9 : vector<16x32xf32>
    %cst_6 = arith.constant 0.000000e+00 : f32
    %11 = vector.broadcast %cst_6 : f32 to vector<16x32xf32>
    %12 = arith.cmpf ogt, %10, %11 : vector<16x32xf32>
    %cst_7 = arith.constant 0.000000e+00 : f32
    %13 = vector.broadcast %cst_7 : f32 to vector<16x32xf32>
    %14 = arith.minimumf %10, %13 : vector<16x32xf32>
    %15 = math.exp %14 : vector<16x32xf32>
    %cst_8 = arith.constant 1.000000e+00 : f32
    %16 = vector.broadcast %cst_8 : f32 to vector<16x32xf32>
    %17 = arith.subf %15, %16 : vector<16x32xf32>
    %18 = arith.select %12, %10, %17 : vector<16x32xi1>, vector<16x32xf32>
    %19 = tpu.iota {dimensions = array<i32: 0>} : vector<16x32xi32>
    %c0_i32 = arith.constant 0 : i32
    %20 = vector.broadcast %c0_i32 : i32 to vector<16x32xi32>
    %21 = arith.cmpi eq, %19, %20 : vector<16x32xi32>
    %c1_i32_9 = arith.constant 1 : i32
    %22 = tpu.dynamic_rotate %18 by %c1_i32_9 dim 0 : vector<16x32xf32>, i32 -> vector<16x32xf32>
    %cst_10 = arith.constant 0xFF800000 : f32
    %23 = vector.broadcast %cst_10 : f32 to vector<16x32xf32>
    %24 = arith.select %21, %23, %22 : vector<16x32xi1>, vector<16x32xf32>
    %c15_i32_11 = arith.constant 15 : i32
    %25 = vector.broadcast %c15_i32_11 : i32 to vector<16x32xi32>
    %26 = arith.cmpi eq, %19, %25 : vector<16x32xi32>
    %c15_i32_12 = arith.constant 15 : i32
    %27 = tpu.dynamic_rotate %18 by %c15_i32_12 dim 0 : vector<16x32xf32>, i32 -> vector<16x32xf32>
    %cst_13 = arith.constant 0xFF800000 : f32
    %28 = vector.broadcast %cst_13 : f32 to vector<16x32xf32>
    %29 = arith.select %26, %28, %27 : vector<16x32xi1>, vector<16x32xf32>
    %30 = arith.maximumf %24, %18 : vector<16x32xf32>
    %31 = arith.maximumf %30, %29 : vector<16x32xf32>
    %c0_14 = arith.constant 0 : index
    %c0_15 = arith.constant 0 : index
    %c0_16 = arith.constant 0 : index
    %32 = vector.load %arg4[%c0_14, %c0_15, %c0_16] : memref<1x16x32xf32, #tpu.memory_space<vmem>>, vector<1x16x32xf32>
    %33 = vector.shape_cast %32 : vector<1x16x32xf32> to vector<16x32xf32>
    %34 = vector.shape_cast %31 : vector<16x32xf32> to vector<1x16x32xf32>
    tpu.vector_store %arg4[%c0_14, %c0_15, %c0_16], %34 {strides = array<i32>} : memref<1x16x32xf32, #tpu.memory_space<vmem>>, vector<1x16x32xf32>,
    return
  }
  func.func @transform_0(%arg0: i32) -> (i32, i32, i32) {
    %c0_i32 = arith.constant 0 : i32
    %c0_i32_0 = arith.constant 0 : i32
    %c0_i32_1 = arith.constant 0 : i32
    return %arg0, %c0_i32, %c0_i32_0 : i32, i32, i32
  }
  func.func @transform_1(%arg0: i32) -> (i32, i32) {
    %c0_i32 = arith.constant 0 : i32
    %c0_i32_0 = arith.constant 0 : i32
    %c0_i32_1 = arith.constant 0 : i32
    return %c0_i32, %c0_i32_0 : i32, i32
  }
  func.func @transform_2(%arg0: i32) -> (i32, i32) {
    %c0_i32 = arith.constant 0 : i32
    %c0_i32_0 = arith.constant 0 : i32
    %c0_i32_1 = arith.constant 0 : i32
    return %c0_i32, %c0_i32_0 : i32, i32
  }
  func.func @transform_3(%arg0: i32) -> (i32, i32, i32) {
    %c0_i32 = arith.constant 0 : i32
    %c0_i32_0 = arith.constant 0 : i32
    %c0_i32_1 = arith.constant 0 : i32
    return %arg0, %c0_i32, %c0_i32_0 : i32, i32, i32
  }
}

module attributes {stable_mosaic.version = 11 : i64} {
  func.func @kernel(%arg0: i32, %arg1: memref<32x32xf32, #tpu.memory_space<vmem>>, %arg2: memref<32x32xbf16, #tpu.memory_space<vmem>>, %arg3: memref<1x32xf32, #tpu.memory_space<vmem>>, %arg4: memref<32x32xbf16, #tpu.memory_space<vmem>>, %arg5: memref<1x32xf32, #tpu.memory_space<vmem>>, %arg6: memref<32x16xbf16, #tpu.memory_space<vmem>>, %arg7: memref<1x16xf32, #tpu.memory_space<vmem>>, %arg8: memref<16x32xbf16, #tpu.memory_space<vmem>>, %arg9: memref<1x32xf32, #tpu.memory_space<vmem>>, %arg10: memref<1x32xf32, #tpu.memory_space<vmem>>, %arg11: memref<1x32xf32, #tpu.memory_space<vmem>>, %arg12: memref<32x32xf32, #tpu.memory_space<vmem>>) attributes {dimension_semantics = [#tpu.dimension_semantics<parallel>], iteration_bounds = array<i64: 1>, scalar_prefetch = 0 : i64, scratch_operands = 0 : i64, tpu.core_type = #tpu.core_type<tc>, window_params = [{transform_indices = @transform_0, window_bounds = array<i64: 32, 32>}, {pipeline_mode = #tpu.pipeline_mode<synchronous>, transform_indices = @transform_1, window_bounds = array<i64: 32, 32>}, {pipeline_mode = #tpu.pipeline_mode<synchronous>, transform_indices = @transform_2, window_bounds = array<i64: 1, 32>}, {pipeline_mode = #tpu.pipeline_mode<synchronous>, transform_indices = @transform_3, window_bounds = array<i64: 32, 32>}, {pipeline_mode = #tpu.pipeline_mode<synchronous>, transform_indices = @transform_4, window_bounds = array<i64: 1, 32>}, {pipeline_mode = #tpu.pipeline_mode<synchronous>, transform_indices = @transform_5, window_bounds = array<i64: 32, 16>}, {pipeline_mode = #tpu.pipeline_mode<synchronous>, transform_indices = @transform_6, window_bounds = array<i64: 1, 16>}, {pipeline_mode = #tpu.pipeline_mode<synchronous>, transform_indices = @transform_7, window_bounds = array<i64: 16, 32>}, {pipeline_mode = #tpu.pipeline_mode<synchronous>, transform_indices = @transform_8, window_bounds = array<i64: 1, 32>}, {pipeline_mode = #tpu.pipeline_mode<synchronous>, transform_indices = @transform_9, window_bounds = array<i64: 1, 32>}, {pipeline_mode = #tpu.pipeline_mode<synchronous>, transform_indices = @transform_10, window_bounds = array<i64: 1, 32>}, {transform_indices = @transform_11, window_bounds = array<i64: 32, 32>}]} {
    %c0 = arith.constant 0 : index
    %c0_0 = arith.constant 0 : index
    %0 = vector.load %arg1[%c0, %c0_0] : memref<32x32xf32, #tpu.memory_space<vmem>>, vector<32x32xf32>
    %1 = arith.truncf %0 : vector<32x32xf32> to vector<32x32xbf16>
    %c0_1 = arith.constant 0 : index
    %c0_2 = arith.constant 0 : index
    %2 = vector.load %arg2[%c0_1, %c0_2] : memref<32x32xbf16, #tpu.memory_space<vmem>>, vector<32x32xbf16>
    %cst = arith.constant dense<0.000000e+00> : vector<32x32xf32>
    %3 = tpu.matmul %1, %2, %cst {dimension_numbers = #tpu.dot_dimension_numbers<[1], [0], [0], [1], [0, 0, 1, 1], [], []>} : vector<32x32xbf16>, vector<32x32xbf16>, vector<32x32xf32> -> vector<32x32xf32>
    %c0_3 = arith.constant 0 : index
    %c0_4 = arith.constant 0 : index
    %4 = vector.load %arg3[%c0_3, %c0_4] : memref<1x32xf32, #tpu.memory_space<vmem>>, vector<1x32xf32>
    %5 = vector.broadcast %4 : vector<1x32xf32> to vector<32x32xf32>
    %6 = arith.addf %3, %5 : vector<32x32xf32>
    %7 = arith.mulf %6, %6 : vector<32x32xf32>
    %8 = arith.mulf %6, %7 : vector<32x32xf32>
    %cst_5 = arith.constant 4.471500e-02 : f32
    %9 = vector.broadcast %cst_5 : f32 to vector<32x32xf32>
    %10 = arith.mulf %9, %8 : vector<32x32xf32>
    %11 = arith.addf %6, %10 : vector<32x32xf32>
    %cst_6 = arith.constant 0.797884583 : f32
    %12 = vector.broadcast %cst_6 : f32 to vector<32x32xf32>
    %13 = arith.mulf %12, %11 : vector<32x32xf32>
    %14 = math.tanh %13 : vector<32x32xf32>
    %cst_7 = arith.constant 1.000000e+00 : f32
    %15 = vector.broadcast %cst_7 : f32 to vector<32x32xf32>
    %16 = arith.addf %15, %14 : vector<32x32xf32>
    %cst_8 = arith.constant 5.000000e-01 : f32
    %17 = vector.broadcast %cst_8 : f32 to vector<32x32xf32>
    %18 = arith.mulf %17, %16 : vector<32x32xf32>
    %19 = arith.mulf %6, %18 : vector<32x32xf32>
    %20 = arith.truncf %19 : vector<32x32xf32> to vector<32x32xbf16>
    %c0_9 = arith.constant 0 : index
    %c0_10 = arith.constant 0 : index
    %21 = vector.load %arg4[%c0_9, %c0_10] : memref<32x32xbf16, #tpu.memory_space<vmem>>, vector<32x32xbf16>
    %cst_11 = arith.constant dense<0.000000e+00> : vector<32x32xf32>
    %22 = tpu.matmul %20, %21, %cst_11 {dimension_numbers = #tpu.dot_dimension_numbers<[1], [0], [0], [1], [0, 0, 1, 1], [], []>} : vector<32x32xbf16>, vector<32x32xbf16>, vector<32x32xf32> -> vector<32x32xf32>
    %c0_12 = arith.constant 0 : index
    %c0_13 = arith.constant 0 : index
    %23 = vector.load %arg5[%c0_12, %c0_13] : memref<1x32xf32, #tpu.memory_space<vmem>>, vector<1x32xf32>
    %24 = vector.broadcast %23 : vector<1x32xf32> to vector<32x32xf32>
    %25 = arith.addf %22, %24 : vector<32x32xf32>
    %26 = arith.truncf %25 : vector<32x32xf32> to vector<32x32xbf16>
    %c0_14 = arith.constant 0 : index
    %c0_15 = arith.constant 0 : index
    %27 = vector.load %arg6[%c0_14, %c0_15] : memref<32x16xbf16, #tpu.memory_space<vmem>>, vector<32x16xbf16>
    %cst_16 = arith.constant dense<0.000000e+00> : vector<32x16xf32>
    %28 = tpu.matmul %26, %27, %cst_16 {dimension_numbers = #tpu.dot_dimension_numbers<[1], [0], [0], [1], [0, 0, 1, 1], [], []>} : vector<32x32xbf16>, vector<32x16xbf16>, vector<32x16xf32> -> vector<32x16xf32>
    %c0_17 = arith.constant 0 : index
    %c0_18 = arith.constant 0 : index
    %29 = vector.load %arg7[%c0_17, %c0_18] : memref<1x16xf32, #tpu.memory_space<vmem>>, vector<1x16xf32>
    %30 = vector.broadcast %29 : vector<1x16xf32> to vector<32x16xf32>
    %31 = arith.addf %28, %30 : vector<32x16xf32>
    %cst_19 = arith.constant 0.000000e+00 : f32
    %32 = vector.broadcast %cst_19 : f32 to vector<32x16xf32>
    %33 = arith.maximumf %31, %32 : vector<32x16xf32>
    %34 = arith.truncf %33 : vector<32x16xf32> to vector<32x16xbf16>
    %c0_20 = arith.constant 0 : index
    %c0_21 = arith.constant 0 : index
    %35 = vector.load %arg8[%c0_20, %c0_21] : memref<16x32xbf16, #tpu.memory_space<vmem>>, vector<16x32xbf16>
    %cst_22 = arith.constant dense<0.000000e+00> : vector<32x32xf32>
    %36 = tpu.matmul %34, %35, %cst_22 {dimension_numbers = #tpu.dot_dimension_numbers<[1], [0], [0], [1], [0, 0, 1, 1], [], []>} : vector<32x16xbf16>, vector<16x32xbf16>, vector<32x32xf32> -> vector<32x32xf32>
    %37 = arith.addf %25, %36 : vector<32x32xf32>
    %c0_23 = arith.constant 0 : index
    %c0_24 = arith.constant 0 : index
    %38 = vector.load %arg9[%c0_23, %c0_24] : memref<1x32xf32, #tpu.memory_space<vmem>>, vector<1x32xf32>
    %39 = vector.broadcast %38 : vector<1x32xf32> to vector<32x32xf32>
    %40 = arith.addf %37, %39 : vector<32x32xf32>
    %41 = arith.addf %0, %40 : vector<32x32xf32>
    %cst_25 = arith.constant dense<0.000000e+00> : vector<32xf32>
    %42 = vector.multi_reduction <add>, %41, %cst_25 [1] : vector<32x32xf32> to vector<32xf32>
    %43 = vector.shape_cast %42 : vector<32xf32> to vector<32x1xf32>
    %cst_26 = arith.constant 3.200000e+01 : f32
    %44 = vector.broadcast %cst_26 : f32 to vector<32x1xf32>
    %45 = arith.divf %43, %44 : vector<32x1xf32>
    %46 = vector.broadcast %45 : vector<32x1xf32> to vector<32x32xf32>
    %47 = arith.subf %41, %46 : vector<32x32xf32>
    %48 = arith.mulf %47, %47 : vector<32x32xf32>
    %cst_27 = arith.constant dense<0.000000e+00> : vector<32xf32>
    %49 = vector.multi_reduction <add>, %48, %cst_27 [1] : vector<32x32xf32> to vector<32xf32>
    %50 = vector.shape_cast %49 : vector<32xf32> to vector<32x1xf32>
    %cst_28 = arith.constant 3.200000e+01 : f32
    %51 = vector.broadcast %cst_28 : f32 to vector<32x1xf32>
    %52 = arith.divf %50, %51 : vector<32x1xf32>
    %53 = vector.broadcast %45 : vector<32x1xf32> to vector<32x32xf32>
    %54 = arith.subf %41, %53 : vector<32x32xf32>
    %cst_29 = arith.constant 9.99999974E-6 : f32
    %55 = vector.broadcast %cst_29 : f32 to vector<32x1xf32>
    %56 = arith.addf %52, %55 : vector<32x1xf32>
    %57 = math.rsqrt %56 : vector<32x1xf32>
    %58 = vector.broadcast %57 : vector<32x1xf32> to vector<32x32xf32>
    %59 = arith.mulf %54, %58 : vector<32x32xf32>
    %c0_30 = arith.constant 0 : index
    %c0_31 = arith.constant 0 : index
    %60 = vector.load %arg10[%c0_30, %c0_31] : memref<1x32xf32, #tpu.memory_space<vmem>>, vector<1x32xf32>
    %61 = vector.broadcast %60 : vector<1x32xf32> to vector<32x32xf32>
    %62 = arith.mulf %59, %61 : vector<32x32xf32>
    %c0_32 = arith.constant 0 : index
    %c0_33 = arith.constant 0 : index
    %63 = vector.load %arg11[%c0_32, %c0_33] : memref<1x32xf32, #tpu.memory_space<vmem>>, vector<1x32xf32>
    %64 = vector.broadcast %63 : vector<1x32xf32> to vector<32x32xf32>
    %65 = arith.addf %62, %64 : vector<32x32xf32>
    %c0_34 = arith.constant 0 : index
    %c0_35 = arith.constant 0 : index
    %66 = vector.load %arg12[%c0_34, %c0_35] : memref<32x32xf32, #tpu.memory_space<vmem>>, vector<32x32xf32>
    tpu.vector_store %arg12[%c0_34, %c0_35], %65 {strides = array<i32>} : memref<32x32xf32, #tpu.memory_space<vmem>>, vector<32x32xf32>,
    return
  }
  func.func @transform_0(%arg0: i32) -> (i32, i32) {
    %c0_i32 = arith.constant 0 : i32
    %c0_i32_0 = arith.constant 0 : i32
    return %arg0, %c0_i32 : i32, i32
  }
  func.func @transform_1(%arg0: i32) -> (i32, i32) {
    %c0_i32 = arith.constant 0 : i32
    %c0_i32_0 = arith.constant 0 : i32
    %c0_i32_1 = arith.constant 0 : i32
    return %c0_i32, %c0_i32_0 : i32, i32
  }
  func.func @transform_2(%arg0: i32) -> (i32, i32) {
    %c0_i32 = arith.constant 0 : i32
    %c0_i32_0 = arith.constant 0 : i32
    %c0_i32_1 = arith.constant 0 : i32
    return %c0_i32, %c0_i32_0 : i32, i32
  }
  func.func @transform_3(%arg0: i32) -> (i32, i32) {
    %c0_i32 = arith.constant 0 : i32
    %c0_i32_0 = arith.constant 0 : i32
    %c0_i32_1 = arith.constant 0 : i32
    return %c0_i32, %c0_i32_0 : i32, i32
  }
  func.func @transform_4(%arg0: i32) -> (i32, i32) {
    %c0_i32 = arith.constant 0 : i32
    %c0_i32_0 = arith.constant 0 : i32
    %c0_i32_1 = arith.constant 0 : i32
    return %c0_i32, %c0_i32_0 : i32, i32
  }
  func.func @transform_5(%arg0: i32) -> (i32, i32) {
    %c0_i32 = arith.constant 0 : i32
    %c0_i32_0 = arith.constant 0 : i32
    %c0_i32_1 = arith.constant 0 : i32
    return %c0_i32, %c0_i32_0 : i32, i32
  }
  func.func @transform_6(%arg0: i32) -> (i32, i32) {
    %c0_i32 = arith.constant 0 : i32
    %c0_i32_0 = arith.constant 0 : i32
    %c0_i32_1 = arith.constant 0 : i32
    return %c0_i32, %c0_i32_0 : i32, i32
  }
  func.func @transform_7(%arg0: i32) -> (i32, i32) {
    %c0_i32 = arith.constant 0 : i32
    %c0_i32_0 = arith.constant 0 : i32
    %c0_i32_1 = arith.constant 0 : i32
    return %c0_i32, %c0_i32_0 : i32, i32
  }
  func.func @transform_8(%arg0: i32) -> (i32, i32) {
    %c0_i32 = arith.constant 0 : i32
    %c0_i32_0 = arith.constant 0 : i32
    %c0_i32_1 = arith.constant 0 : i32
    return %c0_i32, %c0_i32_0 : i32, i32
  }
  func.func @transform_9(%arg0: i32) -> (i32, i32) {
    %c0_i32 = arith.constant 0 : i32
    %c0_i32_0 = arith.constant 0 : i32
    %c0_i32_1 = arith.constant 0 : i32
    return %c0_i32, %c0_i32_0 : i32, i32
  }
  func.func @transform_10(%arg0: i32) -> (i32, i32) {
    %c0_i32 = arith.constant 0 : i32
    %c0_i32_0 = arith.constant 0 : i32
    %c0_i32_1 = arith.constant 0 : i32
    return %c0_i32, %c0_i32_0 : i32, i32
  }
  func.func @transform_11(%arg0: i32) -> (i32, i32) {
    %c0_i32 = arith.constant 0 : i32
    %c0_i32_0 = arith.constant 0 : i32
    return %arg0, %c0_i32 : i32, i32
  }
}

module attributes {stable_mosaic.version = 11 : i64} {
  func.func @kernel(%arg0: i32, %arg1: memref<1x8x32xf32, #tpu.memory_space<vmem>>, %arg2: memref<32x96xbf16, #tpu.memory_space<vmem>>, %arg3: memref<1x96xf32, #tpu.memory_space<vmem>>, %arg4: memref<32x32xbf16, #tpu.memory_space<vmem>>, %arg5: memref<1x32xf32, #tpu.memory_space<vmem>>, %arg6: memref<1x32xf32, #tpu.memory_space<vmem>>, %arg7: memref<1x32xf32, #tpu.memory_space<vmem>>, %arg8: memref<1x8x32xf32, #tpu.memory_space<vmem>>) attributes {dimension_semantics = [#tpu.dimension_semantics<parallel>], iteration_bounds = array<i64: 2>, scalar_prefetch = 0 : i64, scratch_operands = 0 : i64, tpu.core_type = #tpu.core_type<tc>, window_params = [{transform_indices = @transform_0, window_bounds = array<i64: 1, 8, 32>}, {pipeline_mode = #tpu.pipeline_mode<synchronous>, transform_indices = @transform_1, window_bounds = array<i64: 32, 96>}, {pipeline_mode = #tpu.pipeline_mode<synchronous>, transform_indices = @transform_2, window_bounds = array<i64: 1, 96>}, {pipeline_mode = #tpu.pipeline_mode<synchronous>, transform_indices = @transform_3, window_bounds = array<i64: 32, 32>}, {pipeline_mode = #tpu.pipeline_mode<synchronous>, transform_indices = @transform_4, window_bounds = array<i64: 1, 32>}, {pipeline_mode = #tpu.pipeline_mode<synchronous>, transform_indices = @transform_5, window_bounds = array<i64: 1, 32>}, {pipeline_mode = #tpu.pipeline_mode<synchronous>, transform_indices = @transform_6, window_bounds = array<i64: 1, 32>}, {transform_indices = @transform_7, window_bounds = array<i64: 1, 8, 32>}]} {
    %c0 = arith.constant 0 : index
    %c0_0 = arith.constant 0 : index
    %c0_1 = arith.constant 0 : index
    %0 = vector.load %arg1[%c0, %c0_0, %c0_1] : memref<1x8x32xf32, #tpu.memory_space<vmem>>, vector<1x8x32xf32>
    %1 = vector.shape_cast %0 : vector<1x8x32xf32> to vector<8x32xf32>
    %2 = arith.truncf %1 : vector<8x32xf32> to vector<8x32xbf16>
    %c0_2 = arith.constant 0 : index
    %c0_3 = arith.constant 0 : index
    %3 = vector.load %arg2[%c0_2, %c0_3] : memref<32x96xbf16, #tpu.memory_space<vmem>>, vector<32x96xbf16>
    %cst = arith.constant dense<0.000000e+00> : vector<8x96xf32>
    %4 = tpu.matmul %2, %3, %cst {dimension_numbers = #tpu.dot_dimension_numbers<[1], [0], [0], [1], [0, 0, 1, 1], [], []>} : vector<8x32xbf16>, vector<32x96xbf16>, vector<8x96xf32> -> vector<8x96xf32>
    %c0_4 = arith.constant 0 : index
    %c0_5 = arith.constant 0 : index
    %5 = vector.load %arg3[%c0_4, %c0_5] : memref<1x96xf32, #tpu.memory_space<vmem>>, vector<1x96xf32>
    %6 = vector.broadcast %5 : vector<1x96xf32> to vector<8x96xf32>
    %7 = arith.addf %4, %6 : vector<8x96xf32>
    %8 = vector.extract_strided_slice %7 {offsets = [0, 0], sizes = [8, 32], strides = [1, 1]} : vector<8x96xf32> to vector<8x32xf32>
    %9 = vector.extract_strided_slice %7 {offsets = [0, 32], sizes = [8, 32], strides = [1, 1]} : vector<8x96xf32> to vector<8x32xf32>
    %10 = vector.extract_strided_slice %7 {offsets = [0, 64], sizes = [8, 32], strides = [1, 1]} : vector<8x96xf32> to vector<8x32xf32>
    %11 = arith.truncf %8 : vector<8x32xf32> to vector<8x32xbf16>
    %12 = arith.truncf %9 : vector<8x32xf32> to vector<8x32xbf16>
    %13 = arith.truncf %10 : vector<8x32xf32> to vector<8x32xbf16>
    %14 = vector.extract_strided_slice %11 {offsets = [0, 0], sizes = [8, 8], strides = [1, 1]} : vector<8x32xbf16> to vector<8x8xbf16>
    %15 = vector.extract_strided_slice %12 {offsets = [0, 0], sizes = [8, 8], strides = [1, 1]} : vector<8x32xbf16> to vector<8x8xbf16>
    "tpu.trace_start"() <{level = 10 : i32, message = "qd,kd->qk"}> : () -> ()
    %cst_6 = arith.constant dense<0.000000e+00> : vector<8x8xf32>
    %16 = tpu.matmul %14, %15, %cst_6 {dimension_numbers = #tpu.dot_dimension_numbers<[1], [1], [0], [0], [0, 0, 1, 0], [], []>} : vector<8x8xbf16>, vector<8x8xbf16>, vector<8x8xf32> -> vector<8x8xf32>
    "tpu.trace_stop"() : () -> ()
    %cst_7 = arith.constant dense<0xFF800000> : vector<8xf32>
    %17 = vector.multi_reduction <maximumf>, %16, %cst_7 [1] : vector<8x8xf32> to vector<8xf32>
    %18 = vector.shape_cast %17 : vector<8xf32> to vector<8x1xf32>
    %19 = vector.broadcast %18 : vector<8x1xf32> to vector<8x8xf32>
    %20 = arith.subf %16, %19 : vector<8x8xf32>
    %21 = math.exp %20 : vector<8x8xf32>
    %cst_8 = arith.constant dense<0.000000e+00> : vector<8xf32>
    %22 = vector.multi_reduction <add>, %21, %cst_8 [1] : vector<8x8xf32> to vector<8xf32>
    %23 = vector.shape_cast %22 : vector<8xf32> to vector<8x1xf32>
    %24 = tpu.reciprocal %23 {approx = true} : vector<8x1xf32> -> vector<8x1xf32>
    %25 = vector.broadcast %24 : vector<8x1xf32> to vector<8x8xf32>
    %26 = arith.mulf %21, %25 : vector<8x8xf32>
    %27 = arith.truncf %26 : vector<8x8xf32> to vector<8x8xbf16>
    %28 = vector.extract_strided_slice %13 {offsets = [0, 0], sizes = [8, 8], strides = [1, 1]} : vector<8x32xbf16> to vector<8x8xbf16>
    "tpu.trace_start"() <{level = 10 : i32, message = "qk,kd->qd"}> : () -> ()
    %cst_9 = arith.constant dense<0.000000e+00> : vector<8x8xf32>
    %29 = tpu.matmul %27, %28, %cst_9 {dimension_numbers = #tpu.dot_dimension_numbers<[1], [0], [0], [1], [0, 0, 1, 1], [], []>} : vector<8x8xbf16>, vector<8x8xbf16>, vector<8x8xf32> -> vector<8x8xf32>
    "tpu.trace_stop"() : () -> ()
    %30 = vector.extract_strided_slice %11 {offsets = [0, 8], sizes = [8, 8], strides = [1, 1]} : vector<8x32xbf16> to vector<8x8xbf16>
    %31 = vector.extract_strided_slice %12 {offsets = [0, 8], sizes = [8, 8], strides = [1, 1]} : vector<8x32xbf16> to vector<8x8xbf16>
    "tpu.trace_start"() <{level = 10 : i32, message = "qd,kd->qk"}> : () -> ()
    %cst_10 = arith.constant dense<0.000000e+00> : vector<8x8xf32>
    %32 = tpu.matmul %30, %31, %cst_10 {dimension_numbers = #tpu.dot_dimension_numbers<[1], [1], [0], [0], [0, 0, 1, 0], [], []>} : vector<8x8xbf16>, vector<8x8xbf16>, vector<8x8xf32> -> vector<8x8xf32>
    "tpu.trace_stop"() : () -> ()
    %cst_11 = arith.constant dense<0xFF800000> : vector<8xf32>
    %33 = vector.multi_reduction <maximumf>, %32, %cst_11 [1] : vector<8x8xf32> to vector<8xf32>
    %34 = vector.shape_cast %33 : vector<8xf32> to vector<8x1xf32>
    %35 = vector.broadcast %34 : vector<8x1xf32> to vector<8x8xf32>
    %36 = arith.subf %32, %35 : vector<8x8xf32>
    %37 = math.exp %36 : vector<8x8xf32>
    %cst_12 = arith.constant dense<0.000000e+00> : vector<8xf32>
    %38 = vector.multi_reduction <add>, %37, %cst_12 [1] : vector<8x8xf32> to vector<8xf32>
    %39 = vector.shape_cast %38 : vector<8xf32> to vector<8x1xf32>
    %40 = tpu.reciprocal %39 {approx = true} : vector<8x1xf32> -> vector<8x1xf32>
    %41 = vector.broadcast %40 : vector<8x1xf32> to vector<8x8xf32>
    %42 = arith.mulf %37, %41 : vector<8x8xf32>
    %43 = arith.truncf %42 : vector<8x8xf32> to vector<8x8xbf16>
    %44 = vector.extract_strided_slice %13 {offsets = [0, 8], sizes = [8, 8], strides = [1, 1]} : vector<8x32xbf16> to vector<8x8xbf16>
    "tpu.trace_start"() <{level = 10 : i32, message = "qk,kd->qd"}> : () -> ()
    %cst_13 = arith.constant dense<0.000000e+00> : vector<8x8xf32>
    %45 = tpu.matmul %43, %44, %cst_13 {dimension_numbers = #tpu.dot_dimension_numbers<[1], [0], [0], [1], [0, 0, 1, 1], [], []>} : vector<8x8xbf16>, vector<8x8xbf16>, vector<8x8xf32> -> vector<8x8xf32>
    "tpu.trace_stop"() : () -> ()
    %46 = vector.extract_strided_slice %11 {offsets = [0, 16], sizes = [8, 8], strides = [1, 1]} : vector<8x32xbf16> to vector<8x8xbf16>
    %47 = vector.extract_strided_slice %12 {offsets = [0, 16], sizes = [8, 8], strides = [1, 1]} : vector<8x32xbf16> to vector<8x8xbf16>
    "tpu.trace_start"() <{level = 10 : i32, message = "qd,kd->qk"}> : () -> ()
    %cst_14 = arith.constant dense<0.000000e+00> : vector<8x8xf32>
    %48 = tpu.matmul %46, %47, %cst_14 {dimension_numbers = #tpu.dot_dimension_numbers<[1], [1], [0], [0], [0, 0, 1, 0], [], []>} : vector<8x8xbf16>, vector<8x8xbf16>, vector<8x8xf32> -> vector<8x8xf32>
    "tpu.trace_stop"() : () -> ()
    %cst_15 = arith.constant dense<0xFF800000> : vector<8xf32>
    %49 = vector.multi_reduction <maximumf>, %48, %cst_15 [1] : vector<8x8xf32> to vector<8xf32>
    %50 = vector.shape_cast %49 : vector<8xf32> to vector<8x1xf32>
    %51 = vector.broadcast %50 : vector<8x1xf32> to vector<8x8xf32>
    %52 = arith.subf %48, %51 : vector<8x8xf32>
    %53 = math.exp %52 : vector<8x8xf32>
    %cst_16 = arith.constant dense<0.000000e+00> : vector<8xf32>
    %54 = vector.multi_reduction <add>, %53, %cst_16 [1] : vector<8x8xf32> to vector<8xf32>
    %55 = vector.shape_cast %54 : vector<8xf32> to vector<8x1xf32>
    %56 = tpu.reciprocal %55 {approx = true} : vector<8x1xf32> -> vector<8x1xf32>
    %57 = vector.broadcast %56 : vector<8x1xf32> to vector<8x8xf32>
    %58 = arith.mulf %53, %57 : vector<8x8xf32>
    %59 = arith.truncf %58 : vector<8x8xf32> to vector<8x8xbf16>
    %60 = vector.extract_strided_slice %13 {offsets = [0, 16], sizes = [8, 8], strides = [1, 1]} : vector<8x32xbf16> to vector<8x8xbf16>
    "tpu.trace_start"() <{level = 10 : i32, message = "qk,kd->qd"}> : () -> ()
    %cst_17 = arith.constant dense<0.000000e+00> : vector<8x8xf32>
    %61 = tpu.matmul %59, %60, %cst_17 {dimension_numbers = #tpu.dot_dimension_numbers<[1], [0], [0], [1], [0, 0, 1, 1], [], []>} : vector<8x8xbf16>, vector<8x8xbf16>, vector<8x8xf32> -> vector<8x8xf32>
    "tpu.trace_stop"() : () -> ()
    %62 = vector.extract_strided_slice %11 {offsets = [0, 24], sizes = [8, 8], strides = [1, 1]} : vector<8x32xbf16> to vector<8x8xbf16>
    %63 = vector.extract_strided_slice %12 {offsets = [0, 24], sizes = [8, 8], strides = [1, 1]} : vector<8x32xbf16> to vector<8x8xbf16>
    "tpu.trace_start"() <{level = 10 : i32, message = "qd,kd->qk"}> : () -> ()
    %cst_18 = arith.constant dense<0.000000e+00> : vector<8x8xf32>
    %64 = tpu.matmul %62, %63, %cst_18 {dimension_numbers = #tpu.dot_dimension_numbers<[1], [1], [0], [0], [0, 0, 1, 0], [], []>} : vector<8x8xbf16>, vector<8x8xbf16>, vector<8x8xf32> -> vector<8x8xf32>
    "tpu.trace_stop"() : () -> ()
    %cst_19 = arith.constant dense<0xFF800000> : vector<8xf32>
    %65 = vector.multi_reduction <maximumf>, %64, %cst_19 [1] : vector<8x8xf32> to vector<8xf32>
    %66 = vector.shape_cast %65 : vector<8xf32> to vector<8x1xf32>
    %67 = vector.broadcast %66 : vector<8x1xf32> to vector<8x8xf32>
    %68 = arith.subf %64, %67 : vector<8x8xf32>
    %69 = math.exp %68 : vector<8x8xf32>
    %cst_20 = arith.constant dense<0.000000e+00> : vector<8xf32>
    %70 = vector.multi_reduction <add>, %69, %cst_20 [1] : vector<8x8xf32> to vector<8xf32>
    %71 = vector.shape_cast %70 : vector<8xf32> to vector<8x1xf32>
    %72 = tpu.reciprocal %71 {approx = true} : vector<8x1xf32> -> vector<8x1xf32>
    %73 = vector.broadcast %72 : vector<8x1xf32> to vector<8x8xf32>
    %74 = arith.mulf %69, %73 : vector<8x8xf32>
    %75 = arith.truncf %74 : vector<8x8xf32> to vector<8x8xbf16>
    %76 = vector.extract_strided_slice %13 {offsets = [0, 24], sizes = [8, 8], strides = [1, 1]} : vector<8x32xbf16> to vector<8x8xbf16>
    "tpu.trace_start"() <{level = 10 : i32, message = "qk,kd->qd"}> : () -> ()
    %cst_21 = arith.constant dense<0.000000e+00> : vector<8x8xf32>
    %77 = tpu.matmul %75, %76, %cst_21 {dimension_numbers = #tpu.dot_dimension_numbers<[1], [0], [0], [1], [0, 0, 1, 1], [], []>} : vector<8x8xbf16>, vector<8x8xbf16>, vector<8x8xf32> -> vector<8x8xf32>
    "tpu.trace_stop"() : () -> ()
    %78 = tpu.concatenate %29, %45, %61, %77 in 1 : vector<8x8xf32>, vector<8x8xf32>, vector<8x8xf32>, vector<8x8xf32> -> vector<8x32xf32>
    %79 = arith.truncf %78 : vector<8x32xf32> to vector<8x32xbf16>
    %c0_22 = arith.constant 0 : index
    %c0_23 = arith.constant 0 : index
    %80 = vector.load %arg4[%c0_22, %c0_23] : memref<32x32xbf16, #tpu.memory_space<vmem>>, vector<32x32xbf16>
    %cst_24 = arith.constant dense<0.000000e+00> : vector<8x32xf32>
    %81 = tpu.matmul %79, %80, %cst_24 {dimension_numbers = #tpu.dot_dimension_numbers<[1], [0], [0], [1], [0, 0, 1, 1], [], []>} : vector<8x32xbf16>, vector<32x32xbf16>, vector<8x32xf32> -> vector<8x32xf32>
    %c0_25 = arith.constant 0 : index
    %c0_26 = arith.constant 0 : index
    %82 = vector.load %arg5[%c0_25, %c0_26] : memref<1x32xf32, #tpu.memory_space<vmem>>, vector<1x32xf32>
    %83 = vector.broadcast %82 : vector<1x32xf32> to vector<8x32xf32>
    %84 = arith.addf %81, %83 : vector<8x32xf32>
    %85 = arith.addf %1, %84 : vector<8x32xf32>
    %cst_27 = arith.constant dense<0.000000e+00> : vector<8xf32>
    %86 = vector.multi_reduction <add>, %85, %cst_27 [1] : vector<8x32xf32> to vector<8xf32>
    %87 = vector.shape_cast %86 : vector<8xf32> to vector<8x1xf32>
    %cst_28 = arith.constant 3.200000e+01 : f32
    %88 = vector.broadcast %cst_28 : f32 to vector<8x1xf32>
    %89 = arith.divf %87, %88 : vector<8x1xf32>
    %90 = vector.broadcast %89 : vector<8x1xf32> to vector<8x32xf32>
    %91 = arith.subf %85, %90 : vector<8x32xf32>
    %92 = arith.mulf %91, %91 : vector<8x32xf32>
    %cst_29 = arith.constant dense<0.000000e+00> : vector<8xf32>
    %93 = vector.multi_reduction <add>, %92, %cst_29 [1] : vector<8x32xf32> to vector<8xf32>
    %94 = vector.shape_cast %93 : vector<8xf32> to vector<8x1xf32>
    %cst_30 = arith.constant 3.200000e+01 : f32
    %95 = vector.broadcast %cst_30 : f32 to vector<8x1xf32>
    %96 = arith.divf %94, %95 : vector<8x1xf32>
    %97 = vector.broadcast %89 : vector<8x1xf32> to vector<8x32xf32>
    %98 = arith.subf %85, %97 : vector<8x32xf32>
    %cst_31 = arith.constant 9.99999974E-6 : f32
    %99 = vector.broadcast %cst_31 : f32 to vector<8x1xf32>
    %100 = arith.addf %96, %99 : vector<8x1xf32>
    %101 = math.rsqrt %100 : vector<8x1xf32>
    %102 = vector.broadcast %101 : vector<8x1xf32> to vector<8x32xf32>
    %103 = arith.mulf %98, %102 : vector<8x32xf32>
    %c0_32 = arith.constant 0 : index
    %c0_33 = arith.constant 0 : index
    %104 = vector.load %arg6[%c0_32, %c0_33] : memref<1x32xf32, #tpu.memory_space<vmem>>, vector<1x32xf32>
    %105 = vector.broadcast %104 : vector<1x32xf32> to vector<8x32xf32>
    %106 = arith.mulf %103, %105 : vector<8x32xf32>
    %c0_34 = arith.constant 0 : index
    %c0_35 = arith.constant 0 : index
    %107 = vector.load %arg7[%c0_34, %c0_35] : memref<1x32xf32, #tpu.memory_space<vmem>>, vector<1x32xf32>
    %108 = vector.broadcast %107 : vector<1x32xf32> to vector<8x32xf32>
    %109 = arith.addf %106, %108 : vector<8x32xf32>
    %c0_36 = arith.constant 0 : index
    %c0_37 = arith.constant 0 : index
    %c0_38 = arith.constant 0 : index
    %110 = vector.load %arg8[%c0_36, %c0_37, %c0_38] : memref<1x8x32xf32, #tpu.memory_space<vmem>>, vector<1x8x32xf32>
    %111 = vector.shape_cast %110 : vector<1x8x32xf32> to vector<8x32xf32>
    %112 = vector.shape_cast %109 : vector<8x32xf32> to vector<1x8x32xf32>
    tpu.vector_store %arg8[%c0_36, %c0_37, %c0_38], %112 {strides = array<i32>} : memref<1x8x32xf32, #tpu.memory_space<vmem>>, vector<1x8x32xf32>,
    return
  }
  func.func @transform_0(%arg0: i32) -> (i32, i32, i32) {
    %c0_i32 = arith.constant 0 : i32
    %c0_i32_0 = arith.constant 0 : i32
    %c0_i32_1 = arith.constant 0 : i32
    return %arg0, %c0_i32, %c0_i32_0 : i32, i32, i32
  }
  func.func @transform_1(%arg0: i32) -> (i32, i32) {
    %c0_i32 = arith.constant 0 : i32
    %c0_i32_0 = arith.constant 0 : i32
    %c0_i32_1 = arith.constant 0 : i32
    return %c0_i32, %c0_i32_0 : i32, i32
  }
  func.func @transform_2(%arg0: i32) -> (i32, i32) {
    %c0_i32 = arith.constant 0 : i32
    %c0_i32_0 = arith.constant 0 : i32
    %c0_i32_1 = arith.constant 0 : i32
    return %c0_i32, %c0_i32_0 : i32, i32
  }
  func.func @transform_3(%arg0: i32) -> (i32, i32) {
    %c0_i32 = arith.constant 0 : i32
    %c0_i32_0 = arith.constant 0 : i32
    %c0_i32_1 = arith.constant 0 : i32
    return %c0_i32, %c0_i32_0 : i32, i32
  }
  func.func @transform_4(%arg0: i32) -> (i32, i32) {
    %c0_i32 = arith.constant 0 : i32
    %c0_i32_0 = arith.constant 0 : i32
    %c0_i32_1 = arith.constant 0 : i32
    return %c0_i32, %c0_i32_0 : i32, i32
  }
  func.func @transform_5(%arg0: i32) -> (i32, i32) {
    %c0_i32 = arith.constant 0 : i32
    %c0_i32_0 = arith.constant 0 : i32
    %c0_i32_1 = arith.constant 0 : i32
    return %c0_i32, %c0_i32_0 : i32, i32
  }
  func.func @transform_6(%arg0: i32) -> (i32, i32) {
    %c0_i32 = arith.constant 0 : i32
    %c0_i32_0 = arith.constant 0 : i32
    %c0_i32_1 = arith.constant 0 : i32
    return %c0_i32, %c0_i32_0 : i32, i32
  }
  func.func @transform_7(%arg0: i32) -> (i32, i32, i32) {
    %c0_i32 = arith.constant 0 : i32
    %c0_i32_0 = arith.constant 0 : i32
    %c0_i32_1 = arith.constant 0 : i32
    return %arg0, %c0_i32, %c0_i32_0 : i32, i32, i32
  }
}

module attributes {stable_mosaic.version = 11 : i64} {
  func.func @kernel(%arg0: i32, %arg1: memref<16x32xf32, #tpu.memory_space<vmem>>, %arg2: memref<32x32xbf16, #tpu.memory_space<vmem>>, %arg3: memref<1x32xf32, #tpu.memory_space<vmem>>, %arg4: memref<32x32xbf16, #tpu.memory_space<vmem>>, %arg5: memref<1x32xf32, #tpu.memory_space<vmem>>, %arg6: memref<32x16xbf16, #tpu.memory_space<vmem>>, %arg7: memref<1x16xf32, #tpu.memory_space<vmem>>, %arg8: memref<16x32xbf16, #tpu.memory_space<vmem>>, %arg9: memref<1x32xf32, #tpu.memory_space<vmem>>, %arg10: memref<1x32xf32, #tpu.memory_space<vmem>>, %arg11: memref<1x32xf32, #tpu.memory_space<vmem>>, %arg12: memref<16x32xf32, #tpu.memory_space<vmem>>) attributes {dimension_semantics = [#tpu.dimension_semantics<parallel>], iteration_bounds = array<i64: 1>, scalar_prefetch = 0 : i64, scratch_operands = 0 : i64, tpu.core_type = #tpu.core_type<tc>, window_params = [{transform_indices = @transform_0, window_bounds = array<i64: 16, 32>}, {pipeline_mode = #tpu.pipeline_mode<synchronous>, transform_indices = @transform_1, window_bounds = array<i64: 32, 32>}, {pipeline_mode = #tpu.pipeline_mode<synchronous>, transform_indices = @transform_2, window_bounds = array<i64: 1, 32>}, {pipeline_mode = #tpu.pipeline_mode<synchronous>, transform_indices = @transform_3, window_bounds = array<i64: 32, 32>}, {pipeline_mode = #tpu.pipeline_mode<synchronous>, transform_indices = @transform_4, window_bounds = array<i64: 1, 32>}, {pipeline_mode = #tpu.pipeline_mode<synchronous>, transform_indices = @transform_5, window_bounds = array<i64: 32, 16>}, {pipeline_mode = #tpu.pipeline_mode<synchronous>, transform_indices = @transform_6, window_bounds = array<i64: 1, 16>}, {pipeline_mode = #tpu.pipeline_mode<synchronous>, transform_indices = @transform_7, window_bounds = array<i64: 16, 32>}, {pipeline_mode = #tpu.pipeline_mode<synchronous>, transform_indices = @transform_8, window_bounds = array<i64: 1, 32>}, {pipeline_mode = #tpu.pipeline_mode<synchronous>, transform_indices = @transform_9, window_bounds = array<i64: 1, 32>}, {pipeline_mode = #tpu.pipeline_mode<synchronous>, transform_indices = @transform_10, window_bounds = array<i64: 1, 32>}, {transform_indices = @transform_11, window_bounds = array<i64: 16, 32>}]} {
    %c0 = arith.constant 0 : index
    %c0_0 = arith.constant 0 : index
    %0 = vector.load %arg1[%c0, %c0_0] : memref<16x32xf32, #tpu.memory_space<vmem>>, vector<16x32xf32>
    %1 = arith.truncf %0 : vector<16x32xf32> to vector<16x32xbf16>
    %c0_1 = arith.constant 0 : index
    %c0_2 = arith.constant 0 : index
    %2 = vector.load %arg2[%c0_1, %c0_2] : memref<32x32xbf16, #tpu.memory_space<vmem>>, vector<32x32xbf16>
    %cst = arith.constant dense<0.000000e+00> : vector<16x32xf32>
    %3 = tpu.matmul %1, %2, %cst {dimension_numbers = #tpu.dot_dimension_numbers<[1], [0], [0], [1], [0, 0, 1, 1], [], []>} : vector<16x32xbf16>, vector<32x32xbf16>, vector<16x32xf32> -> vector<16x32xf32>
    %c0_3 = arith.constant 0 : index
    %c0_4 = arith.constant 0 : index
    %4 = vector.load %arg3[%c0_3, %c0_4] : memref<1x32xf32, #tpu.memory_space<vmem>>, vector<1x32xf32>
    %5 = vector.broadcast %4 : vector<1x32xf32> to vector<16x32xf32>
    %6 = arith.addf %3, %5 : vector<16x32xf32>
    %7 = arith.mulf %6, %6 : vector<16x32xf32>
    %8 = arith.mulf %6, %7 : vector<16x32xf32>
    %cst_5 = arith.constant 4.471500e-02 : f32
    %9 = vector.broadcast %cst_5 : f32 to vector<16x32xf32>
    %10 = arith.mulf %9, %8 : vector<16x32xf32>
    %11 = arith.addf %6, %10 : vector<16x32xf32>
    %cst_6 = arith.constant 0.797884583 : f32
    %12 = vector.broadcast %cst_6 : f32 to vector<16x32xf32>
    %13 = arith.mulf %12, %11 : vector<16x32xf32>
    %14 = math.tanh %13 : vector<16x32xf32>
    %cst_7 = arith.constant 1.000000e+00 : f32
    %15 = vector.broadcast %cst_7 : f32 to vector<16x32xf32>
    %16 = arith.addf %15, %14 : vector<16x32xf32>
    %cst_8 = arith.constant 5.000000e-01 : f32
    %17 = vector.broadcast %cst_8 : f32 to vector<16x32xf32>
    %18 = arith.mulf %17, %16 : vector<16x32xf32>
    %19 = arith.mulf %6, %18 : vector<16x32xf32>
    %20 = arith.truncf %19 : vector<16x32xf32> to vector<16x32xbf16>
    %c0_9 = arith.constant 0 : index
    %c0_10 = arith.constant 0 : index
    %21 = vector.load %arg4[%c0_9, %c0_10] : memref<32x32xbf16, #tpu.memory_space<vmem>>, vector<32x32xbf16>
    %cst_11 = arith.constant dense<0.000000e+00> : vector<16x32xf32>
    %22 = tpu.matmul %20, %21, %cst_11 {dimension_numbers = #tpu.dot_dimension_numbers<[1], [0], [0], [1], [0, 0, 1, 1], [], []>} : vector<16x32xbf16>, vector<32x32xbf16>, vector<16x32xf32> -> vector<16x32xf32>
    %c0_12 = arith.constant 0 : index
    %c0_13 = arith.constant 0 : index
    %23 = vector.load %arg5[%c0_12, %c0_13] : memref<1x32xf32, #tpu.memory_space<vmem>>, vector<1x32xf32>
    %24 = vector.broadcast %23 : vector<1x32xf32> to vector<16x32xf32>
    %25 = arith.addf %22, %24 : vector<16x32xf32>
    %26 = arith.truncf %25 : vector<16x32xf32> to vector<16x32xbf16>
    %c0_14 = arith.constant 0 : index
    %c0_15 = arith.constant 0 : index
    %27 = vector.load %arg6[%c0_14, %c0_15] : memref<32x16xbf16, #tpu.memory_space<vmem>>, vector<32x16xbf16>
    %cst_16 = arith.constant dense<0.000000e+00> : vector<16x16xf32>
    %28 = tpu.matmul %26, %27, %cst_16 {dimension_numbers = #tpu.dot_dimension_numbers<[1], [0], [0], [1], [0, 0, 1, 1], [], []>} : vector<16x32xbf16>, vector<32x16xbf16>, vector<16x16xf32> -> vector<16x16xf32>
    %c0_17 = arith.constant 0 : index
    %c0_18 = arith.constant 0 : index
    %29 = vector.load %arg7[%c0_17, %c0_18] : memref<1x16xf32, #tpu.memory_space<vmem>>, vector<1x16xf32>
    %30 = vector.broadcast %29 : vector<1x16xf32> to vector<16x16xf32>
    %31 = arith.addf %28, %30 : vector<16x16xf32>
    %cst_19 = arith.constant 0.000000e+00 : f32
    %32 = vector.broadcast %cst_19 : f32 to vector<16x16xf32>
    %33 = arith.maximumf %31, %32 : vector<16x16xf32>
    %34 = arith.truncf %33 : vector<16x16xf32> to vector<16x16xbf16>
    %c0_20 = arith.constant 0 : index
    %c0_21 = arith.constant 0 : index
    %35 = vector.load %arg8[%c0_20, %c0_21] : memref<16x32xbf16, #tpu.memory_space<vmem>>, vector<16x32xbf16>
    %cst_22 = arith.constant dense<0.000000e+00> : vector<16x32xf32>
    %36 = tpu.matmul %34, %35, %cst_22 {dimension_numbers = #tpu.dot_dimension_numbers<[1], [0], [0], [1], [0, 0, 1, 1], [], []>} : vector<16x16xbf16>, vector<16x32xbf16>, vector<16x32xf32> -> vector<16x32xf32>
    %37 = arith.addf %25, %36 : vector<16x32xf32>
    %c0_23 = arith.constant 0 : index
    %c0_24 = arith.constant 0 : index
    %38 = vector.load %arg9[%c0_23, %c0_24] : memref<1x32xf32, #tpu.memory_space<vmem>>, vector<1x32xf32>
    %39 = vector.broadcast %38 : vector<1x32xf32> to vector<16x32xf32>
    %40 = arith.addf %37, %39 : vector<16x32xf32>
    %41 = arith.addf %0, %40 : vector<16x32xf32>
    %cst_25 = arith.constant dense<0.000000e+00> : vector<16xf32>
    %42 = vector.multi_reduction <add>, %41, %cst_25 [1] : vector<16x32xf32> to vector<16xf32>
    %43 = vector.shape_cast %42 : vector<16xf32> to vector<16x1xf32>
    %cst_26 = arith.constant 3.200000e+01 : f32
    %44 = vector.broadcast %cst_26 : f32 to vector<16x1xf32>
    %45 = arith.divf %43, %44 : vector<16x1xf32>
    %46 = vector.broadcast %45 : vector<16x1xf32> to vector<16x32xf32>
    %47 = arith.subf %41, %46 : vector<16x32xf32>
    %48 = arith.mulf %47, %47 : vector<16x32xf32>
    %cst_27 = arith.constant dense<0.000000e+00> : vector<16xf32>
    %49 = vector.multi_reduction <add>, %48, %cst_27 [1] : vector<16x32xf32> to vector<16xf32>
    %50 = vector.shape_cast %49 : vector<16xf32> to vector<16x1xf32>
    %cst_28 = arith.constant 3.200000e+01 : f32
    %51 = vector.broadcast %cst_28 : f32 to vector<16x1xf32>
    %52 = arith.divf %50, %51 : vector<16x1xf32>
    %53 = vector.broadcast %45 : vector<16x1xf32> to vector<16x32xf32>
    %54 = arith.subf %41, %53 : vector<16x32xf32>
    %cst_29 = arith.constant 9.99999974E-6 : f32
    %55 = vector.broadcast %cst_29 : f32 to vector<16x1xf32>
    %56 = arith.addf %52, %55 : vector<16x1xf32>
    %57 = math.rsqrt %56 : vector<16x1xf32>
    %58 = vector.broadcast %57 : vector<16x1xf32> to vector<16x32xf32>
    %59 = arith.mulf %54, %58 : vector<16x32xf32>
    %c0_30 = arith.constant 0 : index
    %c0_31 = arith.constant 0 : index
    %60 = vector.load %arg10[%c0_30, %c0_31] : memref<1x32xf32, #tpu.memory_space<vmem>>, vector<1x32xf32>
    %61 = vector.broadcast %60 : vector<1x32xf32> to vector<16x32xf32>
    %62 = arith.mulf %59, %61 : vector<16x32xf32>
    %c0_32 = arith.constant 0 : index
    %c0_33 = arith.constant 0 : index
    %63 = vector.load %arg11[%c0_32, %c0_33] : memref<1x32xf32, #tpu.memory_space<vmem>>, vector<1x32xf32>
    %64 = vector.broadcast %63 : vector<1x32xf32> to vector<16x32xf32>
    %65 = arith.addf %62, %64 : vector<16x32xf32>
    %c0_34 = arith.constant 0 : index
    %c0_35 = arith.constant 0 : index
    %66 = vector.load %arg12[%c0_34, %c0_35] : memref<16x32xf32, #tpu.memory_space<vmem>>, vector<16x32xf32>
    tpu.vector_store %arg12[%c0_34, %c0_35], %65 {strides = array<i32>} : memref<16x32xf32, #tpu.memory_space<vmem>>, vector<16x32xf32>,
    return
  }
  func.func @transform_0(%arg0: i32) -> (i32, i32) {
    %c0_i32 = arith.constant 0 : i32
    %c0_i32_0 = arith.constant 0 : i32
    return %arg0, %c0_i32 : i32, i32
  }
  func.func @transform_1(%arg0: i32) -> (i32, i32) {
    %c0_i32 = arith.constant 0 : i32
    %c0_i32_0 = arith.constant 0 : i32
    %c0_i32_1 = arith.constant 0 : i32
    return %c0_i32, %c0_i32_0 : i32, i32
  }
  func.func @transform_2(%arg0: i32) -> (i32, i32) {
    %c0_i32 = arith.constant 0 : i32
    %c0_i32_0 = arith.constant 0 : i32
    %c0_i32_1 = arith.constant 0 : i32
    return %c0_i32, %c0_i32_0 : i32, i32
  }
  func.func @transform_3(%arg0: i32) -> (i32, i32) {
    %c0_i32 = arith.constant 0 : i32
    %c0_i32_0 = arith.constant 0 : i32
    %c0_i32_1 = arith.constant 0 : i32
    return %c0_i32, %c0_i32_0 : i32, i32
  }
  func.func @transform_4(%arg0: i32) -> (i32, i32) {
    %c0_i32 = arith.constant 0 : i32
    %c0_i32_0 = arith.constant 0 : i32
    %c0_i32_1 = arith.constant 0 : i32
    return %c0_i32, %c0_i32_0 : i32, i32
  }
  func.func @transform_5(%arg0: i32) -> (i32, i32) {
    %c0_i32 = arith.constant 0 : i32
    %c0_i32_0 = arith.constant 0 : i32
    %c0_i32_1 = arith.constant 0 : i32
    return %c0_i32, %c0_i32_0 : i32, i32
  }
  func.func @transform_6(%arg0: i32) -> (i32, i32) {
    %c0_i32 = arith.constant 0 : i32
    %c0_i32_0 = arith.constant 0 : i32
    %c0_i32_1 = arith.constant 0 : i32
    return %c0_i32, %c0_i32_0 : i32, i32
  }
  func.func @transform_7(%arg0: i32) -> (i32, i32) {
    %c0_i32 = arith.constant 0 : i32
    %c0_i32_0 = arith.constant 0 : i32
    %c0_i32_1 = arith.constant 0 : i32
    return %c0_i32, %c0_i32_0 : i32, i32
  }
  func.func @transform_8(%arg0: i32) -> (i32, i32) {
    %c0_i32 = arith.constant 0 : i32
    %c0_i32_0 = arith.constant 0 : i32
    %c0_i32_1 = arith.constant 0 : i32
    return %c0_i32, %c0_i32_0 : i32, i32
  }
  func.func @transform_9(%arg0: i32) -> (i32, i32) {
    %c0_i32 = arith.constant 0 : i32
    %c0_i32_0 = arith.constant 0 : i32
    %c0_i32_1 = arith.constant 0 : i32
    return %c0_i32, %c0_i32_0 : i32, i32
  }
  func.func @transform_10(%arg0: i32) -> (i32, i32) {
    %c0_i32 = arith.constant 0 : i32
    %c0_i32_0 = arith.constant 0 : i32
    %c0_i32_1 = arith.constant 0 : i32
    return %c0_i32, %c0_i32_0 : i32, i32
  }
  func.func @transform_11(%arg0: i32) -> (i32, i32) {
    %c0_i32 = arith.constant 0 : i32
    %c0_i32_0 = arith.constant 0 : i32
    return %arg0, %c0_i32 : i32, i32
  }
}

module attributes {stable_mosaic.version = 11 : i64} {
  func.func @kernel(%arg0: i32, %arg1: memref<16x32xf32, #tpu.memory_space<vmem>>, %arg2: memref<1x32xf32, #tpu.memory_space<vmem>>, %arg3: memref<1x32xf32, #tpu.memory_space<vmem>>, %arg4: memref<16x32xf32, #tpu.memory_space<vmem>>) attributes {dimension_semantics = [#tpu.dimension_semantics<parallel>], iteration_bounds = array<i64: 1>, scalar_prefetch = 0 : i64, scratch_operands = 0 : i64, tpu.core_type = #tpu.core_type<tc>, window_params = [{transform_indices = @transform_0, window_bounds = array<i64: 16, 32>}, {pipeline_mode = #tpu.pipeline_mode<synchronous>, transform_indices = @transform_1, window_bounds = array<i64: 1, 32>}, {pipeline_mode = #tpu.pipeline_mode<synchronous>, transform_indices = @transform_2, window_bounds = array<i64: 1, 32>}, {transform_indices = @transform_3, window_bounds = array<i64: 16, 32>}]} {
    %c0 = arith.constant 0 : index
    %c0_0 = arith.constant 0 : index
    %0 = vector.load %arg1[%c0, %c0_0] : memref<16x32xf32, #tpu.memory_space<vmem>>, vector<16x32xf32>
    %cst = arith.constant dense<0.000000e+00> : vector<16xf32>
    %1 = vector.multi_reduction <add>, %0, %cst [1] : vector<16x32xf32> to vector<16xf32>
    %2 = vector.shape_cast %1 : vector<16xf32> to vector<16x1xf32>
    %cst_1 = arith.constant 3.200000e+01 : f32
    %3 = vector.broadcast %cst_1 : f32 to vector<16x1xf32>
    %4 = arith.divf %2, %3 : vector<16x1xf32>
    %5 = vector.broadcast %4 : vector<16x1xf32> to vector<16x32xf32>
    %6 = arith.subf %0, %5 : vector<16x32xf32>
    %7 = arith.mulf %6, %6 : vector<16x32xf32>
    %cst_2 = arith.constant dense<0.000000e+00> : vector<16xf32>
    %8 = vector.multi_reduction <add>, %7, %cst_2 [1] : vector<16x32xf32> to vector<16xf32>
    %9 = vector.shape_cast %8 : vector<16xf32> to vector<16x1xf32>
    %cst_3 = arith.constant 3.200000e+01 : f32
    %10 = vector.broadcast %cst_3 : f32 to vector<16x1xf32>
    %11 = arith.divf %9, %10 : vector<16x1xf32>
    %12 = vector.broadcast %4 : vector<16x1xf32> to vector<16x32xf32>
    %13 = arith.subf %0, %12 : vector<16x32xf32>
    %cst_4 = arith.constant 9.99999974E-6 : f32
    %14 = vector.broadcast %cst_4 : f32 to vector<16x1xf32>
    %15 = arith.addf %11, %14 : vector<16x1xf32>
    %16 = math.rsqrt %15 : vector<16x1xf32>
    %17 = vector.broadcast %16 : vector<16x1xf32> to vector<16x32xf32>
    %18 = arith.mulf %13, %17 : vector<16x32xf32>
    %c0_5 = arith.constant 0 : index
    %c0_6 = arith.constant 0 : index
    %19 = vector.load %arg2[%c0_5, %c0_6] : memref<1x32xf32, #tpu.memory_space<vmem>>, vector<1x32xf32>
    %20 = vector.broadcast %19 : vector<1x32xf32> to vector<16x32xf32>
    %21 = arith.mulf %18, %20 : vector<16x32xf32>
    %c0_7 = arith.constant 0 : index
    %c0_8 = arith.constant 0 : index
    %22 = vector.load %arg3[%c0_7, %c0_8] : memref<1x32xf32, #tpu.memory_space<vmem>>, vector<1x32xf32>
    %23 = vector.broadcast %22 : vector<1x32xf32> to vector<16x32xf32>
    %24 = arith.addf %21, %23 : vector<16x32xf32>
    %c0_9 = arith.constant 0 : index
    %c0_10 = arith.constant 0 : index
    %25 = vector.load %arg4[%c0_9, %c0_10] : memref<16x32xf32, #tpu.memory_space<vmem>>, vector<16x32xf32>
    tpu.vector_store %arg4[%c0_9, %c0_10], %24 {strides = array<i32>} : memref<16x32xf32, #tpu.memory_space<vmem>>, vector<16x32xf32>,
    return
  }
  func.func @transform_0(%arg0: i32) -> (i32, i32) {
    %c0_i32 = arith.constant 0 : i32
    %c0_i32_0 = arith.constant 0 : i32
    return %arg0, %c0_i32 : i32, i32
  }
  func.func @transform_1(%arg0: i32) -> (i32, i32) {
    %c0_i32 = arith.constant 0 : i32
    %c0_i32_0 = arith.constant 0 : i32
    %c0_i32_1 = arith.constant 0 : i32
    return %c0_i32, %c0_i32_0 : i32, i32
  }
  func.func @transform_2(%arg0: i32) -> (i32, i32) {
    %c0_i32 = arith.constant 0 : i32
    %c0_i32_0 = arith.constant 0 : i32
    %c0_i32_1 = arith.constant 0 : i32
    return %c0_i32, %c0_i32_0 : i32, i32
  }
  func.func @transform_3(%arg0: i32) -> (i32, i32) {
    %c0_i32 = arith.constant 0 : i32
    %c0_i32_0 = arith.constant 0 : i32
    return %arg0, %c0_i32 : i32, i32
  }
}

module attributes {stable_mosaic.version = 11 : i64} {
  func.func @kernel(%arg0: i32, %arg1: memref<1x16x32xf32, #tpu.memory_space<vmem>>, %arg2: memref<1x8x32xf32, #tpu.memory_space<vmem>>, %arg3: memref<32x32xbf16, #tpu.memory_space<vmem>>, %arg4: memref<1x32xf32, #tpu.memory_space<vmem>>, %arg5: memref<32x64xbf16, #tpu.memory_space<vmem>>, %arg6: memref<1x64xf32, #tpu.memory_space<vmem>>, %arg7: memref<32x32xbf16, #tpu.memory_space<vmem>>, %arg8: memref<1x32xf32, #tpu.memory_space<vmem>>, %arg9: memref<1x32xf32, #tpu.memory_space<vmem>>, %arg10: memref<1x32xf32, #tpu.memory_space<vmem>>, %arg11: memref<1x16x32xf32, #tpu.memory_space<vmem>>) attributes {dimension_semantics = [#tpu.dimension_semantics<parallel>], iteration_bounds = array<i64: 2>, scalar_prefetch = 0 : i64, scratch_operands = 0 : i64, tpu.core_type = #tpu.core_type<tc>, window_params = [{transform_indices = @transform_0, window_bounds = array<i64: 1, 16, 32>}, {transform_indices = @transform_1, window_bounds = array<i64: 1, 8, 32>}, {pipeline_mode = #tpu.pipeline_mode<synchronous>, transform_indices = @transform_2, window_bounds = array<i64: 32, 32>}, {pipeline_mode = #tpu.pipeline_mode<synchronous>, transform_indices = @transform_3, window_bounds = array<i64: 1, 32>}, {pipeline_mode = #tpu.pipeline_mode<synchronous>, transform_indices = @transform_4, window_bounds = array<i64: 32, 64>}, {pipeline_mode = #tpu.pipeline_mode<synchronous>, transform_indices = @transform_5, window_bounds = array<i64: 1, 64>}, {pipeline_mode = #tpu.pipeline_mode<synchronous>, transform_indices = @transform_6, window_bounds = array<i64: 32, 32>}, {pipeline_mode = #tpu.pipeline_mode<synchronous>, transform_indices = @transform_7, window_bounds = array<i64: 1, 32>}, {pipeline_mode = #tpu.pipeline_mode<synchronous>, transform_indices = @transform_8, window_bounds = array<i64: 1, 32>}, {pipeline_mode = #tpu.pipeline_mode<synchronous>, transform_indices = @transform_9, window_bounds = array<i64: 1, 32>}, {transform_indices = @transform_10, window_bounds = array<i64: 1, 16, 32>}]} {
    %c0 = arith.constant 0 : index
    %c0_0 = arith.constant 0 : index
    %c0_1 = arith.constant 0 : index
    %0 = vector.load %arg1[%c0, %c0_0, %c0_1] : memref<1x16x32xf32, #tpu.memory_space<vmem>>, vector<1x16x32xf32>
    %1 = vector.shape_cast %0 : vector<1x16x32xf32> to vector<16x32xf32>
    %2 = arith.truncf %1 : vector<16x32xf32> to vector<16x32xbf16>
    %c0_2 = arith.constant 0 : index
    %c0_3 = arith.constant 0 : index
    %c0_4 = arith.constant 0 : index
    %3 = vector.load %arg2[%c0_2, %c0_3, %c0_4] : memref<1x8x32xf32, #tpu.memory_space<vmem>>, vector<1x8x32xf32>
    %4 = vector.shape_cast %3 : vector<1x8x32xf32> to vector<8x32xf32>
    %5 = arith.truncf %4 : vector<8x32xf32> to vector<8x32xbf16>
    %c0_5 = arith.constant 0 : index
    %c0_6 = arith.constant 0 : index
    %6 = vector.load %arg3[%c0_5, %c0_6] : memref<32x32xbf16, #tpu.memory_space<vmem>>, vector<32x32xbf16>
    %cst = arith.constant dense<0.000000e+00> : vector<16x32xf32>
    %7 = tpu.matmul %2, %6, %cst {dimension_numbers = #tpu.dot_dimension_numbers<[1], [0], [0], [1], [0, 0, 1, 1], [], []>} : vector<16x32xbf16>, vector<32x32xbf16>, vector<16x32xf32> -> vector<16x32xf32>
    %c0_7 = arith.constant 0 : index
    %c0_8 = arith.constant 0 : index
    %8 = vector.load %arg4[%c0_7, %c0_8] : memref<1x32xf32, #tpu.memory_space<vmem>>, vector<1x32xf32>
    %9 = vector.broadcast %8 : vector<1x32xf32> to vector<16x32xf32>
    %10 = arith.addf %7, %9 : vector<16x32xf32>
    %c0_9 = arith.constant 0 : index
    %c0_10 = arith.constant 0 : index
    %11 = vector.load %arg5[%c0_9, %c0_10] : memref<32x64xbf16, #tpu.memory_space<vmem>>, vector<32x64xbf16>
    %cst_11 = arith.constant dense<0.000000e+00> : vector<8x64xf32>
    %12 = tpu.matmul %5, %11, %cst_11 {dimension_numbers = #tpu.dot_dimension_numbers<[1], [0], [0], [1], [0, 0, 1, 1], [], []>} : vector<8x32xbf16>, vector<32x64xbf16>, vector<8x64xf32> -> vector<8x64xf32>
    %c0_12 = arith.constant 0 : index
    %c0_13 = arith.constant 0 : index
    %13 = vector.load %arg6[%c0_12, %c0_13] : memref<1x64xf32, #tpu.memory_space<vmem>>, vector<1x64xf32>
    %14 = vector.broadcast %13 : vector<1x64xf32> to vector<8x64xf32>
    %15 = arith.addf %12, %14 : vector<8x64xf32>
    %16 = vector.extract_strided_slice %15 {offsets = [0, 0], sizes = [8, 32], strides = [1, 1]} : vector<8x64xf32> to vector<8x32xf32>
    %17 = vector.extract_strided_slice %15 {offsets = [0, 32], sizes = [8, 32], strides = [1, 1]} : vector<8x64xf32> to vector<8x32xf32>
    %18 = arith.truncf %10 : vector<16x32xf32> to vector<16x32xbf16>
    %19 = arith.truncf %16 : vector<8x32xf32> to vector<8x32xbf16>
    %20 = arith.truncf %17 : vector<8x32xf32> to vector<8x32xbf16>
    %21 = vector.extract_strided_slice %18 {offsets = [0, 0], sizes = [16, 8], strides = [1, 1]} : vector<16x32xbf16> to vector<16x8xbf16>
    %22 = vector.extract_strided_slice %19 {offsets = [0, 0], sizes = [8, 8], strides = [1, 1]} : vector<8x32xbf16> to vector<8x8xbf16>
    "tpu.trace_start"() <{level = 10 : i32, message = "qd,kd->qk"}> : () -> ()
    %cst_14 = arith.constant dense<0.000000e+00> : vector<16x8xf32>
    %23 = tpu.matmul %21, %22, %cst_14 {dimension_numbers = #tpu.dot_dimension_numbers<[1], [1], [0], [0], [0, 0, 1, 0], [], []>} : vector<16x8xbf16>, vector<8x8xbf16>, vector<16x8xf32> -> vector<16x8xf32>
    "tpu.trace_stop"() : () -> ()
    %cst_15 = arith.constant dense<0xFF800000> : vector<16xf32>
    %24 = vector.multi_reduction <maximumf>, %23, %cst_15 [1] : vector<16x8xf32> to vector<16xf32>
    %25 = vector.shape_cast %24 : vector<16xf32> to vector<16x1xf32>
    %26 = vector.broadcast %25 : vector<16x1xf32> to vector<16x8xf32>
    %27 = arith.subf %23, %26 : vector<16x8xf32>
    %28 = math.exp %27 : vector<16x8xf32>
    %cst_16 = arith.constant dense<0.000000e+00> : vector<16xf32>
    %29 = vector.multi_reduction <add>, %28, %cst_16 [1] : vector<16x8xf32> to vector<16xf32>
    %30 = vector.shape_cast %29 : vector<16xf32> to vector<16x1xf32>
    %31 = tpu.reciprocal %30 {approx = true} : vector<16x1xf32> -> vector<16x1xf32>
    %32 = vector.broadcast %31 : vector<16x1xf32> to vector<16x8xf32>
    %33 = arith.mulf %28, %32 : vector<16x8xf32>
    %34 = arith.truncf %33 : vector<16x8xf32> to vector<16x8xbf16>
    %35 = vector.extract_strided_slice %20 {offsets = [0, 0], sizes = [8, 8], strides = [1, 1]} : vector<8x32xbf16> to vector<8x8xbf16>
    "tpu.trace_start"() <{level = 10 : i32, message = "qk,kd->qd"}> : () -> ()
    %cst_17 = arith.constant dense<0.000000e+00> : vector<16x8xf32>
    %36 = tpu.matmul %34, %35, %cst_17 {dimension_numbers = #tpu.dot_dimension_numbers<[1], [0], [0], [1], [0, 0, 1, 1], [], []>} : vector<16x8xbf16>, vector<8x8xbf16>, vector<16x8xf32> -> vector<16x8xf32>
    "tpu.trace_stop"() : () -> ()
    %37 = vector.extract_strided_slice %18 {offsets = [0, 8], sizes = [16, 8], strides = [1, 1]} : vector<16x32xbf16> to vector<16x8xbf16>
    %38 = vector.extract_strided_slice %19 {offsets = [0, 8], sizes = [8, 8], strides = [1, 1]} : vector<8x32xbf16> to vector<8x8xbf16>
    "tpu.trace_start"() <{level = 10 : i32, message = "qd,kd->qk"}> : () -> ()
    %cst_18 = arith.constant dense<0.000000e+00> : vector<16x8xf32>
    %39 = tpu.matmul %37, %38, %cst_18 {dimension_numbers = #tpu.dot_dimension_numbers<[1], [1], [0], [0], [0, 0, 1, 0], [], []>} : vector<16x8xbf16>, vector<8x8xbf16>, vector<16x8xf32> -> vector<16x8xf32>
    "tpu.trace_stop"() : () -> ()
    %cst_19 = arith.constant dense<0xFF800000> : vector<16xf32>
    %40 = vector.multi_reduction <maximumf>, %39, %cst_19 [1] : vector<16x8xf32> to vector<16xf32>
    %41 = vector.shape_cast %40 : vector<16xf32> to vector<16x1xf32>
    %42 = vector.broadcast %41 : vector<16x1xf32> to vector<16x8xf32>
    %43 = arith.subf %39, %42 : vector<16x8xf32>
    %44 = math.exp %43 : vector<16x8xf32>
    %cst_20 = arith.constant dense<0.000000e+00> : vector<16xf32>
    %45 = vector.multi_reduction <add>, %44, %cst_20 [1] : vector<16x8xf32> to vector<16xf32>
    %46 = vector.shape_cast %45 : vector<16xf32> to vector<16x1xf32>
    %47 = tpu.reciprocal %46 {approx = true} : vector<16x1xf32> -> vector<16x1xf32>
    %48 = vector.broadcast %47 : vector<16x1xf32> to vector<16x8xf32>
    %49 = arith.mulf %44, %48 : vector<16x8xf32>
    %50 = arith.truncf %49 : vector<16x8xf32> to vector<16x8xbf16>
    %51 = vector.extract_strided_slice %20 {offsets = [0, 8], sizes = [8, 8], strides = [1, 1]} : vector<8x32xbf16> to vector<8x8xbf16>
    "tpu.trace_start"() <{level = 10 : i32, message = "qk,kd->qd"}> : () -> ()
    %cst_21 = arith.constant dense<0.000000e+00> : vector<16x8xf32>
    %52 = tpu.matmul %50, %51, %cst_21 {dimension_numbers = #tpu.dot_dimension_numbers<[1], [0], [0], [1], [0, 0, 1, 1], [], []>} : vector<16x8xbf16>, vector<8x8xbf16>, vector<16x8xf32> -> vector<16x8xf32>
    "tpu.trace_stop"() : () -> ()
    %53 = vector.extract_strided_slice %18 {offsets = [0, 16], sizes = [16, 8], strides = [1, 1]} : vector<16x32xbf16> to vector<16x8xbf16>
    %54 = vector.extract_strided_slice %19 {offsets = [0, 16], sizes = [8, 8], strides = [1, 1]} : vector<8x32xbf16> to vector<8x8xbf16>
    "tpu.trace_start"() <{level = 10 : i32, message = "qd,kd->qk"}> : () -> ()
    %cst_22 = arith.constant dense<0.000000e+00> : vector<16x8xf32>
    %55 = tpu.matmul %53, %54, %cst_22 {dimension_numbers = #tpu.dot_dimension_numbers<[1], [1], [0], [0], [0, 0, 1, 0], [], []>} : vector<16x8xbf16>, vector<8x8xbf16>, vector<16x8xf32> -> vector<16x8xf32>
    "tpu.trace_stop"() : () -> ()
    %cst_23 = arith.constant dense<0xFF800000> : vector<16xf32>
    %56 = vector.multi_reduction <maximumf>, %55, %cst_23 [1] : vector<16x8xf32> to vector<16xf32>
    %57 = vector.shape_cast %56 : vector<16xf32> to vector<16x1xf32>
    %58 = vector.broadcast %57 : vector<16x1xf32> to vector<16x8xf32>
    %59 = arith.subf %55, %58 : vector<16x8xf32>
    %60 = math.exp %59 : vector<16x8xf32>
    %cst_24 = arith.constant dense<0.000000e+00> : vector<16xf32>
    %61 = vector.multi_reduction <add>, %60, %cst_24 [1] : vector<16x8xf32> to vector<16xf32>
    %62 = vector.shape_cast %61 : vector<16xf32> to vector<16x1xf32>
    %63 = tpu.reciprocal %62 {approx = true} : vector<16x1xf32> -> vector<16x1xf32>
    %64 = vector.broadcast %63 : vector<16x1xf32> to vector<16x8xf32>
    %65 = arith.mulf %60, %64 : vector<16x8xf32>
    %66 = arith.truncf %65 : vector<16x8xf32> to vector<16x8xbf16>
    %67 = vector.extract_strided_slice %20 {offsets = [0, 16], sizes = [8, 8], strides = [1, 1]} : vector<8x32xbf16> to vector<8x8xbf16>
    "tpu.trace_start"() <{level = 10 : i32, message = "qk,kd->qd"}> : () -> ()
    %cst_25 = arith.constant dense<0.000000e+00> : vector<16x8xf32>
    %68 = tpu.matmul %66, %67, %cst_25 {dimension_numbers = #tpu.dot_dimension_numbers<[1], [0], [0], [1], [0, 0, 1, 1], [], []>} : vector<16x8xbf16>, vector<8x8xbf16>, vector<16x8xf32> -> vector<16x8xf32>
    "tpu.trace_stop"() : () -> ()
    %69 = vector.extract_strided_slice %18 {offsets = [0, 24], sizes = [16, 8], strides = [1, 1]} : vector<16x32xbf16> to vector<16x8xbf16>
    %70 = vector.extract_strided_slice %19 {offsets = [0, 24], sizes = [8, 8], strides = [1, 1]} : vector<8x32xbf16> to vector<8x8xbf16>
    "tpu.trace_start"() <{level = 10 : i32, message = "qd,kd->qk"}> : () -> ()
    %cst_26 = arith.constant dense<0.000000e+00> : vector<16x8xf32>
    %71 = tpu.matmul %69, %70, %cst_26 {dimension_numbers = #tpu.dot_dimension_numbers<[1], [1], [0], [0], [0, 0, 1, 0], [], []>} : vector<16x8xbf16>, vector<8x8xbf16>, vector<16x8xf32> -> vector<16x8xf32>
    "tpu.trace_stop"() : () -> ()
    %cst_27 = arith.constant dense<0xFF800000> : vector<16xf32>
    %72 = vector.multi_reduction <maximumf>, %71, %cst_27 [1] : vector<16x8xf32> to vector<16xf32>
    %73 = vector.shape_cast %72 : vector<16xf32> to vector<16x1xf32>
    %74 = vector.broadcast %73 : vector<16x1xf32> to vector<16x8xf32>
    %75 = arith.subf %71, %74 : vector<16x8xf32>
    %76 = math.exp %75 : vector<16x8xf32>
    %cst_28 = arith.constant dense<0.000000e+00> : vector<16xf32>
    %77 = vector.multi_reduction <add>, %76, %cst_28 [1] : vector<16x8xf32> to vector<16xf32>
    %78 = vector.shape_cast %77 : vector<16xf32> to vector<16x1xf32>
    %79 = tpu.reciprocal %78 {approx = true} : vector<16x1xf32> -> vector<16x1xf32>
    %80 = vector.broadcast %79 : vector<16x1xf32> to vector<16x8xf32>
    %81 = arith.mulf %76, %80 : vector<16x8xf32>
    %82 = arith.truncf %81 : vector<16x8xf32> to vector<16x8xbf16>
    %83 = vector.extract_strided_slice %20 {offsets = [0, 24], sizes = [8, 8], strides = [1, 1]} : vector<8x32xbf16> to vector<8x8xbf16>
    "tpu.trace_start"() <{level = 10 : i32, message = "qk,kd->qd"}> : () -> ()
    %cst_29 = arith.constant dense<0.000000e+00> : vector<16x8xf32>
    %84 = tpu.matmul %82, %83, %cst_29 {dimension_numbers = #tpu.dot_dimension_numbers<[1], [0], [0], [1], [0, 0, 1, 1], [], []>} : vector<16x8xbf16>, vector<8x8xbf16>, vector<16x8xf32> -> vector<16x8xf32>
    "tpu.trace_stop"() : () -> ()
    %85 = tpu.concatenate %36, %52, %68, %84 in 1 : vector<16x8xf32>, vector<16x8xf32>, vector<16x8xf32>, vector<16x8xf32> -> vector<16x32xf32>
    %86 = arith.truncf %85 : vector<16x32xf32> to vector<16x32xbf16>
    %c0_30 = arith.constant 0 : index
    %c0_31 = arith.constant 0 : index
    %87 = vector.load %arg7[%c0_30, %c0_31] : memref<32x32xbf16, #tpu.memory_space<vmem>>, vector<32x32xbf16>
    %cst_32 = arith.constant dense<0.000000e+00> : vector<16x32xf32>
    %88 = tpu.matmul %86, %87, %cst_32 {dimension_numbers = #tpu.dot_dimension_numbers<[1], [0], [0], [1], [0, 0, 1, 1], [], []>} : vector<16x32xbf16>, vector<32x32xbf16>, vector<16x32xf32> -> vector<16x32xf32>
    %c0_33 = arith.constant 0 : index
    %c0_34 = arith.constant 0 : index
    %89 = vector.load %arg8[%c0_33, %c0_34] : memref<1x32xf32, #tpu.memory_space<vmem>>, vector<1x32xf32>
    %90 = vector.broadcast %89 : vector<1x32xf32> to vector<16x32xf32>
    %91 = arith.addf %88, %90 : vector<16x32xf32>
    %92 = arith.addf %1, %91 : vector<16x32xf32>
    %cst_35 = arith.constant dense<0.000000e+00> : vector<16xf32>
    %93 = vector.multi_reduction <add>, %92, %cst_35 [1] : vector<16x32xf32> to vector<16xf32>
    %94 = vector.shape_cast %93 : vector<16xf32> to vector<16x1xf32>
    %cst_36 = arith.constant 3.200000e+01 : f32
    %95 = vector.broadcast %cst_36 : f32 to vector<16x1xf32>
    %96 = arith.divf %94, %95 : vector<16x1xf32>
    %97 = vector.broadcast %96 : vector<16x1xf32> to vector<16x32xf32>
    %98 = arith.subf %92, %97 : vector<16x32xf32>
    %99 = arith.mulf %98, %98 : vector<16x32xf32>
    %cst_37 = arith.constant dense<0.000000e+00> : vector<16xf32>
    %100 = vector.multi_reduction <add>, %99, %cst_37 [1] : vector<16x32xf32> to vector<16xf32>
    %101 = vector.shape_cast %100 : vector<16xf32> to vector<16x1xf32>
    %cst_38 = arith.constant 3.200000e+01 : f32
    %102 = vector.broadcast %cst_38 : f32 to vector<16x1xf32>
    %103 = arith.divf %101, %102 : vector<16x1xf32>
    %104 = vector.broadcast %96 : vector<16x1xf32> to vector<16x32xf32>
    %105 = arith.subf %92, %104 : vector<16x32xf32>
    %cst_39 = arith.constant 9.99999974E-6 : f32
    %106 = vector.broadcast %cst_39 : f32 to vector<16x1xf32>
    %107 = arith.addf %103, %106 : vector<16x1xf32>
    %108 = math.rsqrt %107 : vector<16x1xf32>
    %109 = vector.broadcast %108 : vector<16x1xf32> to vector<16x32xf32>
    %110 = arith.mulf %105, %109 : vector<16x32xf32>
    %c0_40 = arith.constant 0 : index
    %c0_41 = arith.constant 0 : index
    %111 = vector.load %arg9[%c0_40, %c0_41] : memref<1x32xf32, #tpu.memory_space<vmem>>, vector<1x32xf32>
    %112 = vector.broadcast %111 : vector<1x32xf32> to vector<16x32xf32>
    %113 = arith.mulf %110, %112 : vector<16x32xf32>
    %c0_42 = arith.constant 0 : index
    %c0_43 = arith.constant 0 : index
    %114 = vector.load %arg10[%c0_42, %c0_43] : memref<1x32xf32, #tpu.memory_space<vmem>>, vector<1x32xf32>
    %115 = vector.broadcast %114 : vector<1x32xf32> to vector<16x32xf32>
    %116 = arith.addf %113, %115 : vector<16x32xf32>
    %c0_44 = arith.constant 0 : index
    %c0_45 = arith.constant 0 : index
    %c0_46 = arith.constant 0 : index
    %117 = vector.load %arg11[%c0_44, %c0_45, %c0_46] : memref<1x16x32xf32, #tpu.memory_space<vmem>>, vector<1x16x32xf32>
    %118 = vector.shape_cast %117 : vector<1x16x32xf32> to vector<16x32xf32>
    %119 = vector.shape_cast %116 : vector<16x32xf32> to vector<1x16x32xf32>
    tpu.vector_store %arg11[%c0_44, %c0_45, %c0_46], %119 {strides = array<i32>} : memref<1x16x32xf32, #tpu.memory_space<vmem>>, vector<1x16x32xf32>,
    return
  }
  func.func @transform_0(%arg0: i32) -> (i32, i32, i32) {
    %c0_i32 = arith.constant 0 : i32
    %c0_i32_0 = arith.constant 0 : i32
    %c0_i32_1 = arith.constant 0 : i32
    return %arg0, %c0_i32, %c0_i32_0 : i32, i32, i32
  }
  func.func @transform_1(%arg0: i32) -> (i32, i32, i32) {
    %c0_i32 = arith.constant 0 : i32
    %c0_i32_0 = arith.constant 0 : i32
    %c0_i32_1 = arith.constant 0 : i32
    return %arg0, %c0_i32, %c0_i32_0 : i32, i32, i32
  }
  func.func @transform_2(%arg0: i32) -> (i32, i32) {
    %c0_i32 = arith.constant 0 : i32
    %c0_i32_0 = arith.constant 0 : i32
    %c0_i32_1 = arith.constant 0 : i32
    return %c0_i32, %c0_i32_0 : i32, i32
  }
  func.func @transform_3(%arg0: i32) -> (i32, i32) {
    %c0_i32 = arith.constant 0 : i32
    %c0_i32_0 = arith.constant 0 : i32
    %c0_i32_1 = arith.constant 0 : i32
    return %c0_i32, %c0_i32_0 : i32, i32
  }
  func.func @transform_4(%arg0: i32) -> (i32, i32) {
    %c0_i32 = arith.constant 0 : i32
    %c0_i32_0 = arith.constant 0 : i32
    %c0_i32_1 = arith.constant 0 : i32
    return %c0_i32, %c0_i32_0 : i32, i32
  }
  func.func @transform_5(%arg0: i32) -> (i32, i32) {
    %c0_i32 = arith.constant 0 : i32
    %c0_i32_0 = arith.constant 0 : i32
    %c0_i32_1 = arith.constant 0 : i32
    return %c0_i32, %c0_i32_0 : i32, i32
  }
  func.func @transform_6(%arg0: i32) -> (i32, i32) {
    %c0_i32 = arith.constant 0 : i32
    %c0_i32_0 = arith.constant 0 : i32
    %c0_i32_1 = arith.constant 0 : i32
    return %c0_i32, %c0_i32_0 : i32, i32
  }
  func.func @transform_7(%arg0: i32) -> (i32, i32) {
    %c0_i32 = arith.constant 0 : i32
    %c0_i32_0 = arith.constant 0 : i32
    %c0_i32_1 = arith.constant 0 : i32
    return %c0_i32, %c0_i32_0 : i32, i32
  }
  func.func @transform_8(%arg0: i32) -> (i32, i32) {
    %c0_i32 = arith.constant 0 : i32
    %c0_i32_0 = arith.constant 0 : i32
    %c0_i32_1 = arith.constant 0 : i32
    return %c0_i32, %c0_i32_0 : i32, i32
  }
  func.func @transform_9(%arg0: i32) -> (i32, i32) {
    %c0_i32 = arith.constant 0 : i32
    %c0_i32_0 = arith.constant 0 : i32
    %c0_i32_1 = arith.constant 0 : i32
    return %c0_i32, %c0_i32_0 : i32, i32
  }
  func.func @transform_10(%arg0: i32) -> (i32, i32, i32) {
    %c0_i32 = arith.constant 0 : i32
    %c0_i32_0 = arith.constant 0 : i32
    %c0_i32_1 = arith.constant 0 : i32
    return %arg0, %c0_i32, %c0_i32_0 : i32, i32, i32
  }
}

module attributes {stable_mosaic.version = 11 : i64} {
  func.func @kernel(%arg0: i32, %arg1: memref<32x32xf32, #tpu.memory_space<vmem>>, %arg2: memref<1x32xf32, #tpu.memory_space<vmem>>, %arg3: memref<1x32xf32, #tpu.memory_space<vmem>>, %arg4: memref<32x32xf32, #tpu.memory_space<vmem>>) attributes {dimension_semantics = [#tpu.dimension_semantics<parallel>], iteration_bounds = array<i64: 1>, scalar_prefetch = 0 : i64, scratch_operands = 0 : i64, tpu.core_type = #tpu.core_type<tc>, window_params = [{transform_indices = @transform_0, window_bounds = array<i64: 32, 32>}, {pipeline_mode = #tpu.pipeline_mode<synchronous>, transform_indices = @transform_1, window_bounds = array<i64: 1, 32>}, {pipeline_mode = #tpu.pipeline_mode<synchronous>, transform_indices = @transform_2, window_bounds = array<i64: 1, 32>}, {transform_indices = @transform_3, window_bounds = array<i64: 32, 32>}]} {
    %c0 = arith.constant 0 : index
    %c0_0 = arith.constant 0 : index
    %0 = vector.load %arg1[%c0, %c0_0] : memref<32x32xf32, #tpu.memory_space<vmem>>, vector<32x32xf32>
    %cst = arith.constant dense<0.000000e+00> : vector<32xf32>
    %1 = vector.multi_reduction <add>, %0, %cst [1] : vector<32x32xf32> to vector<32xf32>
    %2 = vector.shape_cast %1 : vector<32xf32> to vector<32x1xf32>
    %cst_1 = arith.constant 3.200000e+01 : f32
    %3 = vector.broadcast %cst_1 : f32 to vector<32x1xf32>
    %4 = arith.divf %2, %3 : vector<32x1xf32>
    %5 = vector.broadcast %4 : vector<32x1xf32> to vector<32x32xf32>
    %6 = arith.subf %0, %5 : vector<32x32xf32>
    %7 = arith.mulf %6, %6 : vector<32x32xf32>
    %cst_2 = arith.constant dense<0.000000e+00> : vector<32xf32>
    %8 = vector.multi_reduction <add>, %7, %cst_2 [1] : vector<32x32xf32> to vector<32xf32>
    %9 = vector.shape_cast %8 : vector<32xf32> to vector<32x1xf32>
    %cst_3 = arith.constant 3.200000e+01 : f32
    %10 = vector.broadcast %cst_3 : f32 to vector<32x1xf32>
    %11 = arith.divf %9, %10 : vector<32x1xf32>
    %12 = vector.broadcast %4 : vector<32x1xf32> to vector<32x32xf32>
    %13 = arith.subf %0, %12 : vector<32x32xf32>
    %cst_4 = arith.constant 9.99999974E-6 : f32
    %14 = vector.broadcast %cst_4 : f32 to vector<32x1xf32>
    %15 = arith.addf %11, %14 : vector<32x1xf32>
    %16 = math.rsqrt %15 : vector<32x1xf32>
    %17 = vector.broadcast %16 : vector<32x1xf32> to vector<32x32xf32>
    %18 = arith.mulf %13, %17 : vector<32x32xf32>
    %c0_5 = arith.constant 0 : index
    %c0_6 = arith.constant 0 : index
    %19 = vector.load %arg2[%c0_5, %c0_6] : memref<1x32xf32, #tpu.memory_space<vmem>>, vector<1x32xf32>
    %20 = vector.broadcast %19 : vector<1x32xf32> to vector<32x32xf32>
    %21 = arith.mulf %18, %20 : vector<32x32xf32>
    %c0_7 = arith.constant 0 : index
    %c0_8 = arith.constant 0 : index
    %22 = vector.load %arg3[%c0_7, %c0_8] : memref<1x32xf32, #tpu.memory_space<vmem>>, vector<1x32xf32>
    %23 = vector.broadcast %22 : vector<1x32xf32> to vector<32x32xf32>
    %24 = arith.addf %21, %23 : vector<32x32xf32>
    %c0_9 = arith.constant 0 : index
    %c0_10 = arith.constant 0 : index
    %25 = vector.load %arg4[%c0_9, %c0_10] : memref<32x32xf32, #tpu.memory_space<vmem>>, vector<32x32xf32>
    tpu.vector_store %arg4[%c0_9, %c0_10], %24 {strides = array<i32>} : memref<32x32xf32, #tpu.memory_space<vmem>>, vector<32x32xf32>,
    return
  }
  func.func @transform_0(%arg0: i32) -> (i32, i32) {
    %c0_i32 = arith.constant 0 : i32
    %c0_i32_0 = arith.constant 0 : i32
    return %arg0, %c0_i32 : i32, i32
  }
  func.func @transform_1(%arg0: i32) -> (i32, i32) {
    %c0_i32 = arith.constant 0 : i32
    %c0_i32_0 = arith.constant 0 : i32
    %c0_i32_1 = arith.constant 0 : i32
    return %c0_i32, %c0_i32_0 : i32, i32
  }
  func.func @transform_2(%arg0: i32) -> (i32, i32) {
    %c0_i32 = arith.constant 0 : i32
    %c0_i32_0 = arith.constant 0 : i32
    %c0_i32_1 = arith.constant 0 : i32
    return %c0_i32, %c0_i32_0 : i32, i32
  }
  func.func @transform_3(%arg0: i32) -> (i32, i32) {
    %c0_i32 = arith.constant 0 : i32
    %c0_i32_0 = arith.constant 0 : i32
    return %arg0, %c0_i32 : i32, i32
  }
}

module attributes {stable_mosaic.version = 11 : i64} {
  func.func @kernel(%arg0: i32, %arg1: i32, %arg2: i32, %arg3: memref<32x32xbf16, #tpu.memory_space<vmem>>, %arg4: memref<32x4xbf16, #tpu.memory_space<vmem>>, %arg5: memref<1x4xf32, #tpu.memory_space<vmem>>, %arg6: memref<32x4xf32, #tpu.memory_space<vmem>>, %arg7: memref<32x4xf32, #tpu.memory_space<vmem>>) attributes {dimension_semantics = [#tpu.dimension_semantics<parallel>, #tpu.dimension_semantics<parallel>, #tpu.dimension_semantics<arbitrary>], iteration_bounds = array<i64: 1, 1, 1>, scalar_prefetch = 0 : i64, scratch_operands = 1 : i64, tpu.core_type = #tpu.core_type<tc>, window_params = [{transform_indices = @transform_0, window_bounds = array<i64: 32, 32>}, {transform_indices = @transform_1, window_bounds = array<i64: 32, 4>}, {transform_indices = @transform_2, window_bounds = array<i64: 1, 4>}, {transform_indices = @transform_3, window_bounds = array<i64: 32, 4>}]} {
    %c0_i32 = arith.constant 0 : i32
    %0 = arith.cmpi eq, %arg2, %c0_i32 : i32
    %1 = arith.extui %0 : i1 to i32
    %c0_i32_0 = arith.constant 0 : i32
    %2 = arith.cmpi ne, %1, %c0_i32_0 : i32
    scf.if %2 {
      %cst_10 = arith.constant 0.000000e+00 : f32
      %12 = vector.broadcast %cst_10 : f32 to vector<32x4xf32>
      %c0_11 = arith.constant 0 : index
      %c0_12 = arith.constant 0 : index
      %13 = vector.load %arg7[%c0_11, %c0_12] : memref<32x4xf32, #tpu.memory_space<vmem>>, vector<32x4xf32>
      tpu.vector_store %arg7[%c0_11, %c0_12], %12 {strides = array<i32>} : memref<32x4xf32, #tpu.memory_space<vmem>>, vector<32x4xf32>,
    } else {
    }
    %c0 = arith.constant 0 : index
    %c0_1 = arith.constant 0 : index
    %3 = vector.load %arg7[%c0, %c0_1] : memref<32x4xf32, #tpu.memory_space<vmem>>, vector<32x4xf32>
    %c0_2 = arith.constant 0 : index
    %c0_3 = arith.constant 0 : index
    %4 = vector.load %arg3[%c0_2, %c0_3] : memref<32x32xbf16, #tpu.memory_space<vmem>>, vector<32x32xbf16>
    %c0_4 = arith.constant 0 : index
    %c0_5 = arith.constant 0 : index
    %5 = vector.load %arg4[%c0_4, %c0_5] : memref<32x4xbf16, #tpu.memory_space<vmem>>, vector<32x4xbf16>
    %cst = arith.constant dense<0.000000e+00> : vector<32x4xf32>
    %6 = tpu.matmul %4, %5, %cst {dimension_numbers = #tpu.dot_dimension_numbers<[1], [0], [0], [1], [0, 0, 1, 1], [], []>} : vector<32x32xbf16>, vector<32x4xbf16>, vector<32x4xf32> -> vector<32x4xf32>
    %7 = arith.addf %3, %6 : vector<32x4xf32>
    %c0_6 = arith.constant 0 : index
    %c0_7 = arith.constant 0 : index
    %8 = vector.load %arg7[%c0_6, %c0_7] : memref<32x4xf32, #tpu.memory_space<vmem>>, vector<32x4xf32>
    tpu.vector_store %arg7[%c0_6, %c0_7], %7 {strides = array<i32>} : memref<32x4xf32, #tpu.memory_space<vmem>>, vector<32x4xf32>,
    %c0_i32_8 = arith.constant 0 : i32
    %9 = arith.cmpi eq, %arg2, %c0_i32_8 : i32
    %10 = arith.extui %9 : i1 to i32
    %c0_i32_9 = arith.constant 0 : i32
    %11 = arith.cmpi ne, %10, %c0_i32_9 : i32
    scf.if %11 {
      %c0_10 = arith.constant 0 : index
      %c0_11 = arith.constant 0 : index
      %12 = vector.load %arg7[%c0_10, %c0_11] : memref<32x4xf32, #tpu.memory_space<vmem>>, vector<32x4xf32>
      %c0_12 = arith.constant 0 : index
      %c0_13 = arith.constant 0 : index
      %13 = vector.load %arg5[%c0_12, %c0_13] : memref<1x4xf32, #tpu.memory_space<vmem>>, vector<1x4xf32>
      %14 = vector.broadcast %13 : vector<1x4xf32> to vector<32x4xf32>
      %15 = arith.addf %12, %14 : vector<32x4xf32>
      %c0_14 = arith.constant 0 : index
      %c0_15 = arith.constant 0 : index
      %16 = vector.load %arg6[%c0_14, %c0_15] : memref<32x4xf32, #tpu.memory_space<vmem>>, vector<32x4xf32>
      tpu.vector_store %arg6[%c0_14, %c0_15], %15 {strides = array<i32>} : memref<32x4xf32, #tpu.memory_space<vmem>>, vector<32x4xf32>,
    } else {
    }
    return
  }
  func.func @transform_0(%arg0: i32, %arg1: i32, %arg2: i32) -> (i32, i32) {
    %c0_i32 = arith.constant 0 : i32
    return %arg0, %arg2 : i32, i32
  }
  func.func @transform_1(%arg0: i32, %arg1: i32, %arg2: i32) -> (i32, i32) {
    %c0_i32 = arith.constant 0 : i32
    return %arg2, %arg1 : i32, i32
  }
  func.func @transform_2(%arg0: i32, %arg1: i32, %arg2: i32) -> (i32, i32) {
    %c0_i32 = arith.constant 0 : i32
    %c0_i32_0 = arith.constant 0 : i32
    return %c0_i32, %arg1 : i32, i32
  }
  func.func @transform_3(%arg0: i32, %arg1: i32, %arg2: i32) -> (i32, i32) {
    %c0_i32 = arith.constant 0 : i32
    return %arg0, %arg1 : i32, i32
  }
}

</mosaic_0001>

<llo_original>
// kernel: informer_forward.21
$region0: #{informer_forward.21}
  #allocation0 [shape = 'u32[]', space=smem, size = 0x4, offset = 0x4, fixed_abs, tag = 'smem constant byte address 0x4 - core index']
  #allocation1 [shape = 'u32[72,128]{1,0:T(1,128)}', space=vmem, size = 0x9000, scoped, tag = 'internal scratch']
  %s0 = inlined_call_operand.vmem [shape: f32[2,16,4], index: 0, kind: input, shape index: {}]
  %s1 = inlined_call_operand.vmem [shape: f32[2,16,32], index: 1, kind: input, shape index: {}]
  %s2 = inlined_call_operand.vmem [shape: bf16[12,32], index: 2, kind: input, shape index: {}]
  %s3 = inlined_call_operand.vmem [shape: f32[2,16,32], index: 3, kind: output, shape index: {}]
  %s4 = sld [smem:[#allocation0]]
  $region45: #{informer_forward.21} parent=0
    _
  %s6 = ssub.s32 1, %s4
  %s7 = scalar_select 0, %s6, %s4
  loop: start=0, step=1, limit=4
  $region2: #{informer_forward.21} parent=0 // loop_pre_header
    _
  $region3: #{informer_forward.21} parent=0 // loop_header
    %s9 = sphi 0, %s13
    %p10 = scmp.ge.s32.totalorder %s9, 4
    %s19 = sphi 0, %s21
    %s22 = sphi 0, %s19
    %s23 = sphi 0, %s22
    %s39 = sphi 0, %s23
    %s45 = sphi 0, %s47
    %s48 = sphi 0, %s45
    %s49 = sphi 0, %s48
    %s65 = sphi 0, %s49
    %s69 = sphi 0, %s69
    %s71 = sphi 0, %s69
    %s72 = sphi 0, %s71
    %s86 = sphi 0, %s72
    %s92 = sphi 0, %s94
    %s95 = sphi 0, %s92
    %s96 = sphi 0, %s95
    %s112 = sphi 0, %s96
  $region4: #{informer_forward.21} parent=0 // loop_header_branch
    %12 = sbr.rel (%p10) target = $region8
  $region5: #{informer_forward.21} parent=0 // loop_body
    %s14 = ssub.s32 %s9, 1
    %s15 = ssub.s32 %s9, 2
    %s16 = sadd.s32 %s9, 1
    %s17 = ssub.s32 %s9, %s16
    %p18 = scmp.eq.s32.totalorder %s17, 0
    %s20 = sadd.s32 %s19, 1
    %s21 = scalar_select %p18, %s19, %s20
    %p24 = pneg %p18
    %p25 = scmp.eq.s32.totalorder %s9, 1
    %p26 = por %p24, %p25
    %p27 = scmp.ne.s32.totalorder %s19, %s22
    %p28 = scmp.eq.s32.totalorder %s9, 0
    %p29 = por %p27, %p28
    %p30 = scmp.ne.s32.totalorder %s19, %s22
    %p31 = scmp.eq.s32.totalorder %s14, 1
    %p32 = por %p30, %p31
    %p33 = scmp.ne.s32.totalorder %s22, %s23
    %p34 = scmp.eq.s32.totalorder %s14, 0
    %p35 = por %p33, %p34
    %p36 = scmp.ne.s32.totalorder %s22, %s23
    %p37 = scmp.eq.s32.totalorder %s15, 1
    %p38 = por %p36, %p37
    %p40 = scmp.ne.s32.totalorder %s23, %s39
    %p41 = scmp.eq.s32.totalorder %s15, 0
    %p42 = por %p40, %p41
    %s43 = ssub.s32 %s9, %s16
    %p44 = scmp.eq.s32.totalorder %s43, 0
    %s46 = sadd.s32 %s45, 1
    %s47 = scalar_select %p44, %s45, %s46
    %p50 = pneg %p44
    %p51 = scmp.eq.s32.totalorder %s9, 1
    %p52 = por %p50, %p51
    %p53 = scmp.ne.s32.totalorder %s45, %s48
    %p54 = scmp.eq.s32.totalorder %s9, 0
    %p55 = por %p53, %p54
    %p56 = scmp.ne.s32.totalorder %s45, %s48
    %p57 = scmp.eq.s32.totalorder %s14, 1
    %p58 = por %p56, %p57
    %p59 = scmp.ne.s32.totalorder %s48, %s49
    %p60 = scmp.eq.s32.totalorder %s14, 0
    %p61 = por %p59, %p60
    %p62 = scmp.ne.s32.totalorder %s48, %s49
    %p63 = scmp.eq.s32.totalorder %s15, 1
    %p64 = por %p62, %p63
    %p66 = scmp.ne.s32.totalorder %s49, %s65
    %p67 = scmp.eq.s32.totalorder %s15, 0
    %p68 = por %p66, %p67
    %s70 = sadd.s32 %s69, 1
    %p73 = scmp.eq.s32.totalorder %s9, 1
    %p74 = scmp.ne.s32.totalorder %s69, %s71
    %p75 = scmp.eq.s32.totalorder %s9, 0
    %p76 = por %p74, %p75
    %p77 = scmp.ne.s32.totalorder %s69, %s71
    %p78 = scmp.eq.s32.totalorder %s14, 1
    %p79 = por %p77, %p78
    %p80 = scmp.ne.s32.totalorder %s71, %s72
    %p81 = scmp.eq.s32.totalorder %s14, 0
    %p82 = por %p80, %p81
    %p83 = scmp.ne.s32.totalorder %s71, %s72
    %p84 = scmp.eq.s32.totalorder %s15, 1
    %p85 = por %p83, %p84
    %p87 = scmp.ne.s32.totalorder %s72, %s86
    %p88 = scmp.eq.s32.totalorder %s15, 0
    %p89 = por %p87, %p88
    %s90 = ssub.s32 %s9, %s16
    %p91 = scmp.eq.s32.totalorder %s90, 0
    %s93 = sadd.s32 %s92, 1
    %s94 = scalar_select %p91, %s92, %s93
    %p97 = pneg %p91
    %p98 = scmp.eq.s32.totalorder %s9, 1
    %p99 = por %p97, %p98
    %p100 = scmp.ne.s32.totalorder %s92, %s95
    %p101 = scmp.eq.s32.totalorder %s9, 0
    %p102 = por %p100, %p101
    %p103 = scmp.ne.s32.totalorder %s92, %s95
    %p104 = scmp.eq.s32.totalorder %s14, 1
    %p105 = por %p103, %p104
    %p106 = scmp.ne.s32.totalorder %s95, %s96
    %p107 = scmp.eq.s32.totalorder %s14, 0
    %p108 = por %p106, %p107
    %p109 = scmp.ne.s32.totalorder %s95, %s96
    %p110 = scmp.eq.s32.totalorder %s15, 1
    %p111 = por %p109, %p110
    %p113 = scmp.ne.s32.totalorder %s96, %s112
    %p114 = scmp.eq.s32.totalorder %s15, 0
    %p115 = por %p113, %p114
    %p116 = scmp.le.s32.totalorder 1, %s9
    %p117 = scmp.lt.s32.totalorder %s9, 3
    %p118 = pnand %p116, %p117
    %p119 = pneg %p118
    // Predicated region
    $region9: #{informer_forward.21} parent=5 // pred_check
      _
    $region10: #{informer_forward.21} parent=5 // pred_check_branch
      %121 = sbr.rel (%p118) target = $region12
    $region11: #{informer_forward.21} parent=5 // pred_region
      %s122 = ssub.s32 %s9, 1
      // Predicated region
      $region13: #{informer_forward.21} parent=11 // pred_check
        %p123 = pneg %p82
      $region14: #{informer_forward.21} parent=11 // pred_check_branch
        %125 = sbr.rel (%p123) target = $region16
      $region15: #{informer_forward.21} parent=11 // pred_region
        _
      $region16: #{informer_forward.21} parent=11 // pred_fallthru
        _
    $region12: #{informer_forward.21} parent=5 // pred_fallthru
      _
    %p126 = scmp.lt.s32.totalorder %s9, 2
    // Predicated region
    $region17: #{informer_forward.21} parent=5 // pred_check
      %p127 = pneg %p126
    $region18: #{informer_forward.21} parent=5 // pred_check_branch
      %129 = sbr.rel (%p127) target = $region20
    $region19: #{informer_forward.21} parent=5 // pred_region
      // Predicated region
      $region21: #{informer_forward.21} parent=19 // pred_check
        %p130 = pneg %p29
      $region22: #{informer_forward.21} parent=19 // pred_check_branch
        %132 = sbr.rel (%p130) target = $region24
      $region23: #{informer_forward.21} parent=19 // pred_region
        %p133 = scmp.lt.s32.totalorder %s9, 1
        %s134 = scalar_select %p133, %s9, 1
        %s135 = smul.addr %s134, 2
        %s136 = smul.addr %s135, 8
        %s137 = scalar_lea.vmem %s0, %s136
      $region24: #{informer_forward.21} parent=19 // pred_fallthru
        _
      // Predicated region
      $region25: #{informer_forward.21} parent=19 // pred_check
        %p138 = pneg %p55
      $region26: #{informer_forward.21} parent=19 // pred_check_branch
        %140 = sbr.rel (%p138) target = $region28
      $region27: #{informer_forward.21} parent=19 // pred_region
        %p141 = scmp.lt.s32.totalorder %s9, 1
        %s142 = scalar_select %p141, %s9, 1
        %s143 = smul.addr %s142, 2
        %s144 = smul.addr %s143, 8
        %s145 = scalar_lea.vmem %s1, %s144
      $region28: #{informer_forward.21} parent=19 // pred_fallthru
        _
    $region20: #{informer_forward.21} parent=5 // pred_fallthru
      _
    %p146 = scmp.le.s32.totalorder 1, %s9
    %p147 = scmp.lt.s32.totalorder %s9, 3
    %p148 = pnand %p146, %p147
    %p149 = pneg %p148
    // Predicated region
    $region29: #{informer_forward.21} parent=5 // pred_check
      _
    $region30: #{informer_forward.21} parent=5 // pred_check_branch
      %151 = sbr.rel (%p148) target = $region32
    $region31: #{informer_forward.21} parent=5 // pred_region
      %s152 = ssub.s32 %s9, 1
      %p153 = scmp.lt.s32.totalorder %s14, 1
      %s154 = scalar_select %p153, %s14, 1
      %s155 = smul.addr %s154, 2
      %s156 = smul.addr %s155, 8
      %s157 = scalar_lea.vmem %s0, %s156
      %p158 = pneg %p35
      %p159 = pneg %p32
      %p160 = scmp.lt.s32.totalorder %s14, 1
      %s161 = scalar_select %p160, %s14, 1
      %s162 = smul.addr %s161, 2
      %s163 = smul.addr %s162, 8
      %s164 = scalar_lea.vmem %s1, %s163
      %p165 = pneg %p61
      %p166 = pneg %p58
      %p167 = pneg %p82
      %p168 = pneg %p79
      %p169 = pneg %p108
      %p170 = pneg %p105
      %p171 = scmp.lt.s32.totalorder %s14, 1
      %s172 = scalar_select %p171, %s14, 1
      %s173 = smul.addr %s172, 2
      %s174 = smul.addr %s173, 8
      %s175 = scalar_lea.vmem %s3, %s174
      %p176 = scmp.lt.s32.totalorder %s14, 1
      %s177 = scalar_select %p176, %s14, 1
      %s178 = smul.addr %s177, 2
      %s179 = smul.addr %s178, 8
      %s180 = scalar_lea.vmem %s0, %s179
      %p181 = scmp.lt.s32.totalorder %s14, 1
      %s182 = scalar_select %p181, %s14, 1
      %s183 = smul.addr %s182, 2
      %s184 = smul.addr %s183, 8
      %s185 = scalar_lea.vmem %s1, %s184
      %p186 = scmp.lt.s32.totalorder %s14, 1
      %s187 = scalar_select %p186, %s14, 1
      %s188 = smul.addr %s187, 2
      %s189 = smul.addr %s188, 8
      %s190 = scalar_lea.vmem %s3, %s189
      %v192 = vld [vmem:[%s180] sm:$0xff]
      %v193 = vld [vmem:[%s180 + $0x8] sm:$0xff]
      %v194 = vrot.slane %v192, 7
      %v195 = vrot.slane %v193, 7
      %v196 = vlaneseq
      %v197 = vshrl.u32 %v196, 7
      %vm198 = vcmp.lt.s32.totalorder %v197, 1
      %v199 = vsel %vm198, %v194, %v195
      %v200 = vsel %vm198, %v195, %v194
      %v201 = vrot.slane %v192, 1
      %v202 = vrot.slane %v193, 1
      %vm203 = vcmp.lt.s32.totalorder %v197, 7
      %v204 = vsel %vm203, %v201, %v202
      %v205 = vsel %vm203, %v202, %v201
      %208 = vrot.lane.b32.xlu0 %v192, 4
      %v209 = vpop.permute.xlu0 %208
      %210 = vrot.lane.b32.xlu0 %v193, 4
      %v211 = vpop.permute.xlu0 %210
      %216 = vrot.lane.b32.xlu0 %v204, 8
      %v217 = vpop.permute.xlu0 %216
      %218 = vrot.lane.b32.xlu0 %v205, 8
      %v219 = vpop.permute.xlu0 %218
      %vm222 = vcmask 31744
      %v223 = vsel %vm222, %v200, %v209
      %v224 = vsel %vm222, %v199, %v211
      %vm225 = vcmask 64512
      %v226 = vsel %vm225, %v223, %v217
      %v227 = vsel %vm225, %v224, %v219
      %v228 = vpack.c.bf16 %v227, %v226
      %v229 = vld [vmem:[%s2] sm:$0xf]
      %v230 = vld [vmem:[%s2 + $0x4] sm:$0x3]
      %v231 = vld [vmem:[%s185] sm:$0xff]
      %v232 = vld [vmem:[%s185 + $0x8] sm:$0xff]
      %v235 = vunpack.c.l.b16 %v229
      %v236 = vunpack.c.l.b16 %v230
      %v237 = vpack.c.b16 %v236, %v235
      %vm238 = vcmask 97280
      %v240 = vsel %vm238, %v228, 0
      %vm242 = vcmask 1045504
      %v244 = vsel %vm242, %v237, 0
      %246 = vmatpush.bf16.msra.mxu0 0
      %247 = vmatpush.bf16.msra.mxu0 0
      %248 = vmatpush.bf16.msra.mxu0 0
      %249 = vmatpush.bf16.msra.mxu0 0
      %250 = vmatpush.bf16.msra.mxu0 0
      %251 = vmatpush.bf16.msra.mxu0 0
      %252 = vmatpush.bf16.msra.mxu0 0
      %253 = vmatpush.bf16.msra.mxu0 %v244
      %254 = vmatmul.bf16.gmra.mxu0 %v240
      %v255 = vpop.f32.mrf.mxu0
      %v256 = vadd.f32 %v231, %v255
      %v257 = vpop.f32.mrf.mxu0
      %v258 = vadd.f32 %v232, %v257
      %259 = vdwg.mxu0
      %vm260 = vcmask 261120
      %261 = vst.msk [vmem:[%s190] sm:$0xff] %vm260, %v256
      %262 = vst.msk [vmem:[%s190 + $0x8] sm:$0xff] %vm260, %v258
      %p263 = scmp.lt.s32.totalorder %s14, 1
      %s264 = scalar_select %p263, %s14, 1
      %s265 = smul.addr %s264, 2
      %s266 = smul.addr %s265, 8
      %s267 = scalar_lea.vmem %s3, %s266
      // Predicated region
      $region33: #{informer_forward.21} parent=31 // pred_check
        %p268 = pneg %p105
      $region34: #{informer_forward.21} parent=31 // pred_check_branch
        %270 = sbr.rel (%p268) target = $region36
      $region35: #{informer_forward.21} parent=31 // pred_region
        _
      $region36: #{informer_forward.21} parent=31 // pred_fallthru
        _
    $region32: #{informer_forward.21} parent=5 // pred_fallthru
      _
    %p271 = scmp.le.s32.totalorder 2, %s9
    // Predicated region
    $region37: #{informer_forward.21} parent=5 // pred_check
      %p272 = pneg %p271
    $region38: #{informer_forward.21} parent=5 // pred_check_branch
      %274 = sbr.rel (%p272) target = $region40
    $region39: #{informer_forward.21} parent=5 // pred_region
      %s275 = ssub.s32 %s9, 2
      // Predicated region
      $region41: #{informer_forward.21} parent=39 // pred_check
        %p276 = pneg %p111
      $region42: #{informer_forward.21} parent=39 // pred_check_branch
        %278 = sbr.rel (%p276) target = $region44
      $region43: #{informer_forward.21} parent=39 // pred_region
        %p279 = scmp.lt.s32.totalorder %s15, 1
        %s280 = scalar_select %p279, %s15, 1
        %s281 = smul.addr %s280, 2
        %s282 = smul.addr %s281, 8
        %s283 = scalar_lea.vmem %s3, %s282
      $region44: #{informer_forward.21} parent=39 // pred_fallthru
        _
    $region40: #{informer_forward.21} parent=5 // pred_fallthru
      _
  $region6: #{informer_forward.21} parent=0 // loop_footer
    %s13 = sadd.s32 1, %s9
  $region7: #{informer_forward.21} parent=0 // loop_footer_branch
    %8 = sbr.rel target = $region3
  $region8: #{informer_forward.21} parent=0 // loop_exit
    _

// kernel: informer_forward.22
$region0: #{informer_forward.22}
  #allocation0 [shape = 'u32[]', space=smem, size = 0x4, offset = 0x4, fixed_abs, tag = 'smem constant byte address 0x4 - core index']
  #allocation1 [shape = 'u32[72,128]{1,0:T(1,128)}', space=vmem, size = 0x9000, scoped, tag = 'internal scratch']
  %s0 = inlined_call_operand.vmem [shape: f32[2,16,32], index: 0, kind: input, shape index: {}]
  %s1 = inlined_call_operand.vmem [shape: bf16[32,96], index: 1, kind: input, shape index: {}]
  %s2 = inlined_call_operand.vmem [shape: f32[1,96], index: 2, kind: input, shape index: {}]
  %s3 = inlined_call_operand.vmem [shape: f32[2,16,32], index: 3, kind: output, shape index: {}]
  %s4 = sld [smem:[#allocation0]]
  $region45: #{informer_forward.22} parent=0
    _
  %s6 = ssub.s32 1, %s4
  %s7 = scalar_select 0, %s6, %s4
  loop: start=0, step=1, limit=4
  $region2: #{informer_forward.22} parent=0 // loop_pre_header
    _
  $region3: #{informer_forward.22} parent=0 // loop_header
    %s9 = sphi 0, %s13
    %p10 = scmp.ge.s32.totalorder %s9, 4
    %s19 = sphi 0, %s21
    %s22 = sphi 0, %s19
    %s23 = sphi 0, %s22
    %s39 = sphi 0, %s23
    %s43 = sphi 0, %s43
    %s45 = sphi 0, %s43
    %s46 = sphi 0, %s45
    %s60 = sphi 0, %s46
    %s64 = sphi 0, %s64
    %s66 = sphi 0, %s64
    %s67 = sphi 0, %s66
    %s81 = sphi 0, %s67
    %s87 = sphi 0, %s89
    %s90 = sphi 0, %s87
    %s91 = sphi 0, %s90
    %s107 = sphi 0, %s91
  $region4: #{informer_forward.22} parent=0 // loop_header_branch
    %12 = sbr.rel (%p10) target = $region8
  $region5: #{informer_forward.22} parent=0 // loop_body
    %s14 = ssub.s32 %s9, 1
    %s15 = ssub.s32 %s9, 2
    %s16 = sadd.s32 %s9, 1
    %s17 = ssub.s32 %s9, %s16
    %p18 = scmp.eq.s32.totalorder %s17, 0
    %s20 = sadd.s32 %s19, 1
    %s21 = scalar_select %p18, %s19, %s20
    %p24 = pneg %p18
    %p25 = scmp.eq.s32.totalorder %s9, 1
    %p26 = por %p24, %p25
    %p27 = scmp.ne.s32.totalorder %s19, %s22
    %p28 = scmp.eq.s32.totalorder %s9, 0
    %p29 = por %p27, %p28
    %p30 = scmp.ne.s32.totalorder %s19, %s22
    %p31 = scmp.eq.s32.totalorder %s14, 1
    %p32 = por %p30, %p31
    %p33 = scmp.ne.s32.totalorder %s22, %s23
    %p34 = scmp.eq.s32.totalorder %s14, 0
    %p35 = por %p33, %p34
    %p36 = scmp.ne.s32.totalorder %s22, %s23
    %p37 = scmp.eq.s32.totalorder %s15, 1
    %p38 = por %p36, %p37
    %p40 = scmp.ne.s32.totalorder %s23, %s39
    %p41 = scmp.eq.s32.totalorder %s15, 0
    %p42 = por %p40, %p41
    %s44 = sadd.s32 %s43, 1
    %p47 = scmp.eq.s32.totalorder %s9, 1
    %p48 = scmp.ne.s32.totalorder %s43, %s45
    %p49 = scmp.eq.s32.totalorder %s9, 0
    %p50 = por %p48, %p49
    %p51 = scmp.ne.s32.totalorder %s43, %s45
    %p52 = scmp.eq.s32.totalorder %s14, 1
    %p53 = por %p51, %p52
    %p54 = scmp.ne.s32.totalorder %s45, %s46
    %p55 = scmp.eq.s32.totalorder %s14, 0
    %p56 = por %p54, %p55
    %p57 = scmp.ne.s32.totalorder %s45, %s46
    %p58 = scmp.eq.s32.totalorder %s15, 1
    %p59 = por %p57, %p58
    %p61 = scmp.ne.s32.totalorder %s46, %s60
    %p62 = scmp.eq.s32.totalorder %s15, 0
    %p63 = por %p61, %p62
    %s65 = sadd.s32 %s64, 1
    %p68 = scmp.eq.s32.totalorder %s9, 1
    %p69 = scmp.ne.s32.totalorder %s64, %s66
    %p70 = scmp.eq.s32.totalorder %s9, 0
    %p71 = por %p69, %p70
    %p72 = scmp.ne.s32.totalorder %s64, %s66
    %p73 = scmp.eq.s32.totalorder %s14, 1
    %p74 = por %p72, %p73
    %p75 = scmp.ne.s32.totalorder %s66, %s67
    %p76 = scmp.eq.s32.totalorder %s14, 0
    %p77 = por %p75, %p76
    %p78 = scmp.ne.s32.totalorder %s66, %s67
    %p79 = scmp.eq.s32.totalorder %s15, 1
    %p80 = por %p78, %p79
    %p82 = scmp.ne.s32.totalorder %s67, %s81
    %p83 = scmp.eq.s32.totalorder %s15, 0
    %p84 = por %p82, %p83
    %s85 = ssub.s32 %s9, %s16
    %p86 = scmp.eq.s32.totalorder %s85, 0
    %s88 = sadd.s32 %s87, 1
    %s89 = scalar_select %p86, %s87, %s88
    %p92 = pneg %p86
    %p93 = scmp.eq.s32.totalorder %s9, 1
    %p94 = por %p92, %p93
    %p95 = scmp.ne.s32.totalorder %s87, %s90
    %p96 = scmp.eq.s32.totalorder %s9, 0
    %p97 = por %p95, %p96
    %p98 = scmp.ne.s32.totalorder %s87, %s90
    %p99 = scmp.eq.s32.totalorder %s14, 1
    %p100 = por %p98, %p99
    %p101 = scmp.ne.s32.totalorder %s90, %s91
    %p102 = scmp.eq.s32.totalorder %s14, 0
    %p103 = por %p101, %p102
    %p104 = scmp.ne.s32.totalorder %s90, %s91
    %p105 = scmp.eq.s32.totalorder %s15, 1
    %p106 = por %p104, %p105
    %p108 = scmp.ne.s32.totalorder %s91, %s107
    %p109 = scmp.eq.s32.totalorder %s15, 0
    %p110 = por %p108, %p109
    %p111 = scmp.le.s32.totalorder 1, %s9
    %p112 = scmp.lt.s32.totalorder %s9, 3
    %p113 = pnand %p111, %p112
    %p114 = pneg %p113
    // Predicated region
    $region9: #{informer_forward.22} parent=5 // pred_check
      _
    $region10: #{informer_forward.22} parent=5 // pred_check_branch
      %116 = sbr.rel (%p113) target = $region12
    $region11: #{informer_forward.22} parent=5 // pred_region
      %s117 = ssub.s32 %s9, 1
      // Predicated region
      $region13: #{informer_forward.22} parent=11 // pred_check
        %p118 = pneg %p56
      $region14: #{informer_forward.22} parent=11 // pred_check_branch
        %120 = sbr.rel (%p118) target = $region16
      $region15: #{informer_forward.22} parent=11 // pred_region
        _
      $region16: #{informer_forward.22} parent=11 // pred_fallthru
        _
      // Predicated region
      $region17: #{informer_forward.22} parent=11 // pred_check
        %p121 = pneg %p77
      $region18: #{informer_forward.22} parent=11 // pred_check_branch
        %123 = sbr.rel (%p121) target = $region20
      $region19: #{informer_forward.22} parent=11 // pred_region
        _
      $region20: #{informer_forward.22} parent=11 // pred_fallthru
        _
    $region12: #{informer_forward.22} parent=5 // pred_fallthru
      _
    %p124 = scmp.lt.s32.totalorder %s9, 2
    // Predicated region
    $region21: #{informer_forward.22} parent=5 // pred_check
      %p125 = pneg %p124
    $region22: #{informer_forward.22} parent=5 // pred_check_branch
      %127 = sbr.rel (%p125) target = $region24
    $region23: #{informer_forward.22} parent=5 // pred_region
      // Predicated region
      $region25: #{informer_forward.22} parent=23 // pred_check
        %p128 = pneg %p29
      $region26: #{informer_forward.22} parent=23 // pred_check_branch
        %130 = sbr.rel (%p128) target = $region28
      $region27: #{informer_forward.22} parent=23 // pred_region
        %p131 = scmp.lt.s32.totalorder %s9, 1
        %s132 = scalar_select %p131, %s9, 1
        %s133 = smul.addr %s132, 2
        %s134 = smul.addr %s133, 8
        %s135 = scalar_lea.vmem %s0, %s134
      $region28: #{informer_forward.22} parent=23 // pred_fallthru
        _
    $region24: #{informer_forward.22} parent=5 // pred_fallthru
      _
    %p136 = scmp.le.s32.totalorder 1, %s9
    %p137 = scmp.lt.s32.totalorder %s9, 3
    %p138 = pnand %p136, %p137
    %p139 = pneg %p138
    // Predicated region
    $region29: #{informer_forward.22} parent=5 // pred_check
      _
    $region30: #{informer_forward.22} parent=5 // pred_check_branch
      %141 = sbr.rel (%p138) target = $region32
    $region31: #{informer_forward.22} parent=5 // pred_region
      %s142 = ssub.s32 %s9, 1
      %p143 = scmp.lt.s32.totalorder %s14, 1
      %s144 = scalar_select %p143, %s14, 1
      %s145 = smul.addr %s144, 2
      %s146 = smul.addr %s145, 8
      %s147 = scalar_lea.vmem %s0, %s146
      %p148 = pneg %p35
      %p149 = pneg %p32
      %p150 = pneg %p56
      %p151 = pneg %p53
      %p152 = pneg %p77
      %p153 = pneg %p74
      %p154 = pneg %p103
      %p155 = pneg %p100
      %p156 = scmp.lt.s32.totalorder %s14, 1
      %s157 = scalar_select %p156, %s14, 1
      %s158 = smul.addr %s157, 2
      %s159 = smul.addr %s158, 8
      %s160 = scalar_lea.vmem %s3, %s159
      %p161 = scmp.lt.s32.totalorder %s14, 1
      %s162 = scalar_select %p161, %s14, 1
      %s163 = smul.addr %s162, 2
      %s164 = smul.addr %s163, 8
      %s165 = scalar_lea.vmem %s0, %s164
      %p166 = scmp.lt.s32.totalorder %s14, 1
      %s167 = scalar_select %p166, %s14, 1
      %s168 = smul.addr %s167, 2
      %s169 = smul.addr %s168, 8
      %s170 = scalar_lea.vmem %s3, %s169
      %v172 = vld [vmem:[%s165] sm:$0xff]
      %v173 = vld [vmem:[%s165 + $0x8] sm:$0xff]
      %v174 = vpack.c.bf16 %v173, %v172
      %v175 = vld [vmem:[%s1] sm:$0xf]
      %v176 = vld [vmem:[%s1 + $0x4] sm:$0xf]
      %v177 = vld [vmem:[%s1 + $0x8] sm:$0xf]
      %v178 = vld [vmem:[%s1 + $0xc] sm:$0xf]
      %v179 = vld [vmem:[%s2] sm:$0x1]
      %v181 = vperm.slane %v179, 0
      %v187 = vunpack.c.l.b16 %v175
      %v188 = vunpack.c.l.b16 %v176
      %v189 = vunpack.c.l.b16 %v177
      %v190 = vunpack.c.l.b16 %v178
      %v191 = vpack.c.b16 %v188, %v187
      %v192 = vpack.c.b16 %v190, %v189
      %vm195 = vcmask 261120
      %v197 = vsel %vm195, %v174, 0
      %199 = vmatpush.bf16.msra.mxu0 0
      %200 = vmatpush.bf16.msra.mxu0 0
      %201 = vmatpush.bf16.msra.mxu0 0
      %202 = vmatpush.bf16.msra.mxu0 0
      %203 = vmatpush.bf16.msra.mxu0 0
      %204 = vmatpush.bf16.msra.mxu0 0
      %205 = vmatpush.bf16.msra.mxu0 %v192
      %206 = vmatpush.bf16.msra.mxu0 %v191
      %207 = vmatmul.bf16.gmra.mxu0 %v197
      %v208 = vpop.f32.mrf.mxu0
      %v209 = vadd.f32 %v181, %v208
      %v210 = vpop.f32.mrf.mxu0
      %v211 = vadd.f32 %v181, %v210
      %212 = vdwg.mxu0
      %v213 = vpack.c.bf16 %v209, %v209
      %v214 = vpack.c.bf16 %v211, %v211
      %v215 = vlaneseq
      %v216 = vshrl.u32 %v215, 7
      %v217 = vadd.s32 %v216, 8
      %v218 = vlaneseq
      %v219 = vand.u32 %v218, 127
      %vm220 = vcmp.le.s32.totalorder %v219, %v216
      %vm221 = vcmp.le.s32.totalorder %v219, %v217
      %v222 = vsel %vm220, 0.0, -1e+30
      %v223 = vsel %vm221, 0.0, -1e+30
      %v226 = vunpack.c.l.b16 %v213
      %v227 = vunpack.c.l.b16 %v214
      %v228 = vpack.c.b16 %v227, %v226
      %229 = vrot.lane.b32.xlu0 %v228, 96
      %v230 = vpop.permute.xlu0 %229
      %vm231 = vcmask 64512
      %v233 = vsel %vm231, %v228, 0
      %v236 = vsel %vm231, %v230, 0
      %238 = vmatpush.bf16.xpose.msra.mxu0 0
      %239 = vmatpush.bf16.xpose.msra.mxu0 0
      %240 = vmatpush.bf16.xpose.msra.mxu0 0
      %241 = vmatpush.bf16.xpose.msra.mxu0 0
      %242 = vmatpush.bf16.xpose.msra.mxu0 0
      %243 = vmatpush.bf16.xpose.msra.mxu0 0
      %244 = vmatpush.bf16.xpose.msra.mxu0 0
      %245 = vmatpush.bf16.xpose.msra.mxu0 %v236
      %246 = vmatmul.bf16.gmra.mxu0 %v233
      %v247 = vpop.f32.mrf.mxu0
      %v248 = vadd.f32 %v222, %v247
      %v249 = vpop.f32.mrf.mxu0
      %v250 = vadd.f32 %v223, %v249
      %251 = vdwg.mxu0
      %vm252 = vcmask 130048
      %v253 = vsel %vm252, %v248, -inf
      %254 = vmax.xlane.f32.xlu0 %v253
      %v255 = vpop.xlane.xlu0 %254
      %v256 = vsel %vm252, %v250, -inf
      %257 = vmax.xlane.f32.xlu0 %v256
      %v258 = vpop.xlane.xlu0 %257
      %v259 = vsub.f32 %v248, %v255
      %v260 = vsub.f32 %v250, %v258
      %v261 = vmul.f32 %v259, 1.442695
      %v262 = vpow.pop %v261
      %v263 = vmul.f32 %v260, 1.442695
      %v264 = vpow.pop %v263
      %v265 = vsel %vm252, %v262, 0.0
      %266 = vadd.xlane.f32.xlu0 %v265
      %v267 = vpop.xlane.xlu0 %266
      %v268 = vsel %vm252, %v264, 0.0
      %269 = vadd.xlane.f32.xlu0 %v268
      %v270 = vpop.xlane.xlu0 %269
      %v271 = vrcp.pop %v267
      %v272 = vrcp.pop %v270
      %v273 = vmul.f32 %v262, %v271
      %v274 = vmul.f32 %v264, %v272
      %v275 = vpack.c.bf16 %v274, %v273
      %276 = vrot.lane.b32.xlu0 %v228, 64
      %v277 = vpop.permute.xlu0 %276
      %v280 = vsel %vm252, %v275, 0
      %282 = vmatpush.bf16.msra.mxu0 0
      %283 = vmatpush.bf16.msra.mxu0 0
      %284 = vmatpush.bf16.msra.mxu0 0
      %285 = vmatpush.bf16.msra.mxu0 0
      %286 = vmatpush.bf16.msra.mxu0 0
      %287 = vmatpush.bf16.msra.mxu0 0
      %288 = vmatpush.bf16.msra.mxu0 0
      %289 = vmatpush.bf16.msra.mxu0 %v277
      %290 = vmatmul.bf16.gmra.mxu0 %v280
      %v291 = vpop.f32.mrf.mxu0
      %v292 = vadd.f32 0.0, %v291
      %v293 = vpop.f32.mrf.mxu0
      %v294 = vadd.f32 0.0, %v293
      %295 = vdwg.mxu0
      %296 = vrot.lane.b32.xlu0 %v228, 120
      %v297 = vpop.permute.xlu0 %296
      %298 = vrot.lane.b32.xlu0 %v228, 88
      %v299 = vpop.permute.xlu0 %298
      %v301 = vsel %vm231, %v297, 0
      %v304 = vsel %vm231, %v299, 0
      %306 = vmatpush.bf16.xpose.msra.mxu0 0
      %307 = vmatpush.bf16.xpose.msra.mxu0 0
      %308 = vmatpush.bf16.xpose.msra.mxu0 0
      %309 = vmatpush.bf16.xpose.msra.mxu0 0
      %310 = vmatpush.bf16.xpose.msra.mxu0 0
      %311 = vmatpush.bf16.xpose.msra.mxu0 0
      %312 = vmatpush.bf16.xpose.msra.mxu0 0
      %313 = vmatpush.bf16.xpose.msra.mxu0 %v304
      %314 = vmatmul.bf16.gmra.mxu0 %v301
      %v315 = vpop.f32.mrf.mxu0
      %v316 = vadd.f32 %v222, %v315
      %v317 = vpop.f32.mrf.mxu0
      %v318 = vadd.f32 %v223, %v317
      %319 = vdwg.mxu0
      %v320 = vsel %vm252, %v316, -inf
      %321 = vmax.xlane.f32.xlu0 %v320
      %v322 = vpop.xlane.xlu0 %321
      %v323 = vsel %vm252, %v318, -inf
      %324 = vmax.xlane.f32.xlu0 %v323
      %v325 = vpop.xlane.xlu0 %324
      %v326 = vsub.f32 %v316, %v322
      %v327 = vsub.f32 %v318, %v325
      %v328 = vmul.f32 %v326, 1.442695
      %v329 = vpow.pop %v328
      %v330 = vmul.f32 %v327, 1.442695
      %v331 = vpow.pop %v330
      %v332 = vsel %vm252, %v329, 0.0
      %333 = vadd.xlane.f32.xlu0 %v332
      %v334 = vpop.xlane.xlu0 %333
      %v335 = vsel %vm252, %v331, 0.0
      %336 = vadd.xlane.f32.xlu0 %v335
      %v337 = vpop.xlane.xlu0 %336
      %v338 = vrcp.pop %v334
      %v339 = vrcp.pop %v337
      %v340 = vmul.f32 %v329, %v338
      %v341 = vmul.f32 %v331, %v339
      %v342 = vpack.c.bf16 %v341, %v340
      %343 = vrot.lane.b32.xlu0 %v228, 56
      %v344 = vpop.permute.xlu0 %343
      %v347 = vsel %vm252, %v342, 0
      %349 = vmatpush.bf16.msra.mxu0 0
      %350 = vmatpush.bf16.msra.mxu0 0
      %351 = vmatpush.bf16.msra.mxu0 0
      %352 = vmatpush.bf16.msra.mxu0 0
      %353 = vmatpush.bf16.msra.mxu0 0
      %354 = vmatpush.bf16.msra.mxu0 0
      %355 = vmatpush.bf16.msra.mxu0 0
      %356 = vmatpush.bf16.msra.mxu0 %v344
      %357 = vmatmul.bf16.gmra.mxu0 %v347
      %v358 = vpop.f32.mrf.mxu0
      %v359 = vadd.f32 0.0, %v358
      %v360 = vpop.f32.mrf.mxu0
      %v361 = vadd.f32 0.0, %v360
      %362 = vdwg.mxu0
      %363 = vrot.lane.b32.xlu0 %v228, 112
      %v364 = vpop.permute.xlu0 %363
      %365 = vrot.lane.b32.xlu0 %v228, 80
      %v366 = vpop.permute.xlu0 %365
      %v368 = vsel %vm231, %v364, 0
      %v371 = vsel %vm231, %v366, 0
      %373 = vmatpush.bf16.xpose.msra.mxu0 0
      %374 = vmatpush.bf16.xpose.msra.mxu0 0
      %375 = vmatpush.bf16.xpose.msra.mxu0 0
      %376 = vmatpush.bf16.xpose.msra.mxu0 0
      %377 = vmatpush.bf16.xpose.msra.mxu0 0
      %378 = vmatpush.bf16.xpose.msra.mxu0 0
      %379 = vmatpush.bf16.xpose.msra.mxu0 0
      %380 = vmatpush.bf16.xpose.msra.mxu0 %v371
      %381 = vmatmul.bf16.gmra.mxu0 %v368
      %v382 = vpop.f32.mrf.mxu0
      %v383 = vadd.f32 %v222, %v382
      %v384 = vpop.f32.mrf.mxu0
      %v385 = vadd.f32 %v223, %v384
      %386 = vdwg.mxu0
      %v387 = vsel %vm252, %v383, -inf
      %388 = vmax.xlane.f32.xlu0 %v387
      %v389 = vpop.xlane.xlu0 %388
      %v390 = vsel %vm252, %v385, -inf
      %391 = vmax.xlane.f32.xlu0 %v390
      %v392 = vpop.xlane.xlu0 %391
      %v393 = vsub.f32 %v383, %v389
      %v394 = vsub.f32 %v385, %v392
      %v395 = vmul.f32 %v393, 1.442695
      %v396 = vpow.pop %v395
      %v397 = vmul.f32 %v394, 1.442695
      %v398 = vpow.pop %v397
      %v399 = vsel %vm252, %v396, 0.0
      %400 = vadd.xlane.f32.xlu0 %v399
      %v401 = vpop.xlane.xlu0 %400
      %v402 = vsel %vm252, %v398, 0.0
      %403 = vadd.xlane.f32.xlu0 %v402
      %v404 = vpop.xlane.xlu0 %403
      %v405 = vrcp.pop %v401
      %v406 = vrcp.pop %v404
      %v407 = vmul.f32 %v396, %v405
      %v408 = vmul.f32 %v398, %v406
      %v409 = vpack.c.bf16 %v408, %v407
      %410 = vrot.lane.b32.xlu0 %v228, 48
      %v411 = vpop.permute.xlu0 %410
      %v414 = vsel %vm252, %v409, 0
      %416 = vmatpush.bf16.msra.mxu0 0
      %417 = vmatpush.bf16.msra.mxu0 0
      %418 = vmatpush.bf16.msra.mxu0 0
      %419 = vmatpush.bf16.msra.mxu0 0
      %420 = vmatpush.bf16.msra.mxu0 0
      %421 = vmatpush.bf16.msra.mxu0 0
      %422 = vmatpush.bf16.msra.mxu0 0
      %423 = vmatpush.bf16.msra.mxu0 %v411
      %424 = vmatmul.bf16.gmra.mxu0 %v414
      %v425 = vpop.f32.mrf.mxu0
      %v426 = vadd.f32 0.0, %v425
      %v427 = vpop.f32.mrf.mxu0
      %v428 = vadd.f32 0.0, %v427
      %429 = vdwg.mxu0
      %430 = vrot.lane.b32.xlu0 %v228, 104
      %v431 = vpop.permute.xlu0 %430
      %432 = vrot.lane.b32.xlu0 %v228, 72
      %v433 = vpop.permute.xlu0 %432
      %v435 = vsel %vm231, %v431, 0
      %v438 = vsel %vm231, %v433, 0
      %440 = vmatpush.bf16.xpose.msra.mxu0 0
      %441 = vmatpush.bf16.xpose.msra.mxu0 0
      %442 = vmatpush.bf16.xpose.msra.mxu0 0
      %443 = vmatpush.bf16.xpose.msra.mxu0 0
      %444 = vmatpush.bf16.xpose.msra.mxu0 0
      %445 = vmatpush.bf16.xpose.msra.mxu0 0
      %446 = vmatpush.bf16.xpose.msra.mxu0 0
      %447 = vmatpush.bf16.xpose.msra.mxu0 %v438
      %448 = vmatmul.bf16.gmra.mxu0 %v435
      %v449 = vpop.f32.mrf.mxu0
      %v450 = vadd.f32 %v222, %v449
      %v451 = vpop.f32.mrf.mxu0
      %v452 = vadd.f32 %v223, %v451
      %453 = vdwg.mxu0
      %v454 = vsel %vm252, %v450, -inf
      %455 = vmax.xlane.f32.xlu0 %v454
      %v456 = vpop.xlane.xlu0 %455
      %v457 = vsel %vm252, %v452, -inf
      %458 = vmax.xlane.f32.xlu0 %v457
      %v459 = vpop.xlane.xlu0 %458
      %v460 = vsub.f32 %v450, %v456
      %v461 = vsub.f32 %v452, %v459
      %v462 = vmul.f32 %v460, 1.442695
      %v463 = vpow.pop %v462
      %v464 = vmul.f32 %v461, 1.442695
      %v465 = vpow.pop %v464
      %v466 = vsel %vm252, %v463, 0.0
      %467 = vadd.xlane.f32.xlu0 %v466
      %v468 = vpop.xlane.xlu0 %467
      %v469 = vsel %vm252, %v465, 0.0
      %470 = vadd.xlane.f32.xlu0 %v469
      %v471 = vpop.xlane.xlu0 %470
      %v472 = vrcp.pop %v468
      %v473 = vrcp.pop %v471
      %v474 = vmul.f32 %v463, %v472
      %v475 = vmul.f32 %v465, %v473
      %v476 = vpack.c.bf16 %v475, %v474
      %477 = vrot.lane.b32.xlu0 %v228, 40
      %v478 = vpop.permute.xlu0 %477
      %v481 = vsel %vm252, %v476, 0
      %483 = vmatpush.bf16.msra.mxu0 0
      %484 = vmatpush.bf16.msra.mxu0 0
      %485 = vmatpush.bf16.msra.mxu0 0
      %486 = vmatpush.bf16.msra.mxu0 0
      %487 = vmatpush.bf16.msra.mxu0 0
      %488 = vmatpush.bf16.msra.mxu0 0
      %489 = vmatpush.bf16.msra.mxu0 0
      %490 = vmatpush.bf16.msra.mxu0 %v478
      %491 = vmatmul.bf16.gmra.mxu0 %v481
      %v492 = vpop.f32.mrf.mxu0
      %v493 = vadd.f32 0.0, %v492
      %v494 = vpop.f32.mrf.mxu0
      %v495 = vadd.f32 0.0, %v494
      %496 = vdwg.mxu0
      %499 = vrot.lane.b32.xlu0 %v359, 8
      %v500 = vpop.permute.xlu0 %499
      %501 = vrot.lane.b32.xlu0 %v361, 8
      %v502 = vpop.permute.xlu0 %501
      %507 = vrot.lane.b32.xlu0 %v426, 16
      %v508 = vpop.permute.xlu0 %507
      %509 = vrot.lane.b32.xlu0 %v428, 16
      %v510 = vpop.permute.xlu0 %509
      %515 = vrot.lane.b32.xlu0 %v493, 24
      %v516 = vpop.permute.xlu0 %515
      %517 = vrot.lane.b32.xlu0 %v495, 24
      %v518 = vpop.permute.xlu0 %517
      %v521 = vsel %vm231, %v292, %v500
      %v522 = vsel %vm231, %v294, %v502
      %v523 = vsel %vm252, %v521, %v508
      %v524 = vsel %vm252, %v522, %v510
      %vm525 = vcmask 195584
      %v526 = vsel %vm525, %v523, %v516
      %v527 = vsel %vm525, %v524, %v518
      %528 = vst.msk [vmem:[%s170] sm:$0xff] %vm195, %v526
      %529 = vst.msk [vmem:[%s170 + $0x8] sm:$0xff] %vm195, %v527
      %p530 = scmp.lt.s32.totalorder %s14, 1
      %s531 = scalar_select %p530, %s14, 1
      %s532 = smul.addr %s531, 2
      %s533 = smul.addr %s532, 8
      %s534 = scalar_lea.vmem %s3, %s533
      // Predicated region
      $region33: #{informer_forward.22} parent=31 // pred_check
        %p535 = pneg %p100
      $region34: #{informer_forward.22} parent=31 // pred_check_branch
        %537 = sbr.rel (%p535) target = $region36
      $region35: #{informer_forward.22} parent=31 // pred_region
        _
      $region36: #{informer_forward.22} parent=31 // pred_fallthru
        _
    $region32: #{informer_forward.22} parent=5 // pred_fallthru
      _
    %p538 = scmp.le.s32.totalorder 2, %s9
    // Predicated region
    $region37: #{informer_forward.22} parent=5 // pred_check
      %p539 = pneg %p538
    $region38: #{informer_forward.22} parent=5 // pred_check_branch
      %541 = sbr.rel (%p539) target = $region40
    $region39: #{informer_forward.22} parent=5 // pred_region
      %s542 = ssub.s32 %s9, 2
      // Predicated region
      $region41: #{informer_forward.22} parent=39 // pred_check
        %p543 = pneg %p106
      $region42: #{informer_forward.22} parent=39 // pred_check_branch
        %545 = sbr.rel (%p543) target = $region44
      $region43: #{informer_forward.22} parent=39 // pred_region
        %p546 = scmp.lt.s32.totalorder %s15, 1
        %s547 = scalar_select %p546, %s15, 1
        %s548 = smul.addr %s547, 2
        %s549 = smul.addr %s548, 8
        %s550 = scalar_lea.vmem %s3, %s549
      $region44: #{informer_forward.22} parent=39 // pred_fallthru
        _
    $region40: #{informer_forward.22} parent=5 // pred_fallthru
      _
  $region6: #{informer_forward.22} parent=0 // loop_footer
    %s13 = sadd.s32 1, %s9
  $region7: #{informer_forward.22} parent=0 // loop_footer_branch
    %8 = sbr.rel target = $region3
  $region8: #{informer_forward.22} parent=0 // loop_exit
    _

// kernel: informer_forward.23
$region0: #{informer_forward.23}
  #allocation0 [shape = 'u32[]', space=smem, size = 0x4, offset = 0x4, fixed_abs, tag = 'smem constant byte address 0x4 - core index']
  #allocation1 [shape = 'u32[72,128]{1,0:T(1,128)}', space=vmem, size = 0x9000, scoped, tag = 'internal scratch']
  %s0 = inlined_call_operand.vmem [shape: f32[2,16,32], index: 0, kind: input, shape index: {}]
  %s1 = inlined_call_operand.vmem [shape: f32[2,16,32], index: 1, kind: input, shape index: {}]
  %s2 = inlined_call_operand.vmem [shape: bf16[32,32], index: 2, kind: input, shape index: {}]
  %s3 = inlined_call_operand.vmem [shape: f32[1,32], index: 3, kind: input, shape index: {}]
  %s4 = inlined_call_operand.vmem [shape: f32[1,32], index: 4, kind: input, shape index: {}]
  %s5 = inlined_call_operand.vmem [shape: f32[1,32], index: 5, kind: input, shape index: {}]
  %s6 = inlined_call_operand.vmem [shape: f32[2,16,32], index: 6, kind: output, shape index: {}]
  %s7 = sld [smem:[#allocation0]]
  $region57: #{informer_forward.23} parent=0
    _
  %s9 = ssub.s32 1, %s7
  %s10 = scalar_select 0, %s9, %s7
  loop: start=0, step=1, limit=4
  $region2: #{informer_forward.23} parent=0 // loop_pre_header
    _
  $region3: #{informer_forward.23} parent=0 // loop_header
    %s12 = sphi 0, %s16
    %p13 = scmp.ge.s32.totalorder %s12, 4
    %s22 = sphi 0, %s24
    %s25 = sphi 0, %s22
    %s26 = sphi 0, %s25
    %s42 = sphi 0, %s26
    %s48 = sphi 0, %s50
    %s51 = sphi 0, %s48
    %s52 = sphi 0, %s51
    %s68 = sphi 0, %s52
    %s72 = sphi 0, %s72
    %s74 = sphi 0, %s72
    %s75 = sphi 0, %s74
    %s89 = sphi 0, %s75
    %s93 = sphi 0, %s93
    %s95 = sphi 0, %s93
    %s96 = sphi 0, %s95
    %s110 = sphi 0, %s96
    %s114 = sphi 0, %s114
    %s116 = sphi 0, %s114
    %s117 = sphi 0, %s116
    %s131 = sphi 0, %s117
    %s135 = sphi 0, %s135
    %s137 = sphi 0, %s135
    %s138 = sphi 0, %s137
    %s152 = sphi 0, %s138
    %s158 = sphi 0, %s160
    %s161 = sphi 0, %s158
    %s162 = sphi 0, %s161
    %s178 = sphi 0, %s162
  $region4: #{informer_forward.23} parent=0 // loop_header_branch
    %15 = sbr.rel (%p13) target = $region8
  $region5: #{informer_forward.23} parent=0 // loop_body
    %s17 = ssub.s32 %s12, 1
    %s18 = ssub.s32 %s12, 2
    %s19 = sadd.s32 %s12, 1
    %s20 = ssub.s32 %s12, %s19
    %p21 = scmp.eq.s32.totalorder %s20, 0
    %s23 = sadd.s32 %s22, 1
    %s24 = scalar_select %p21, %s22, %s23
    %p27 = pneg %p21
    %p28 = scmp.eq.s32.totalorder %s12, 1
    %p29 = por %p27, %p28
    %p30 = scmp.ne.s32.totalorder %s22, %s25
    %p31 = scmp.eq.s32.totalorder %s12, 0
    %p32 = por %p30, %p31
    %p33 = scmp.ne.s32.totalorder %s22, %s25
    %p34 = scmp.eq.s32.totalorder %s17, 1
    %p35 = por %p33, %p34
    %p36 = scmp.ne.s32.totalorder %s25, %s26
    %p37 = scmp.eq.s32.totalorder %s17, 0
    %p38 = por %p36, %p37
    %p39 = scmp.ne.s32.totalorder %s25, %s26
    %p40 = scmp.eq.s32.totalorder %s18, 1
    %p41 = por %p39, %p40
    %p43 = scmp.ne.s32.totalorder %s26, %s42
    %p44 = scmp.eq.s32.totalorder %s18, 0
    %p45 = por %p43, %p44
    %s46 = ssub.s32 %s12, %s19
    %p47 = scmp.eq.s32.totalorder %s46, 0
    %s49 = sadd.s32 %s48, 1
    %s50 = scalar_select %p47, %s48, %s49
    %p53 = pneg %p47
    %p54 = scmp.eq.s32.totalorder %s12, 1
    %p55 = por %p53, %p54
    %p56 = scmp.ne.s32.totalorder %s48, %s51
    %p57 = scmp.eq.s32.totalorder %s12, 0
    %p58 = por %p56, %p57
    %p59 = scmp.ne.s32.totalorder %s48, %s51
    %p60 = scmp.eq.s32.totalorder %s17, 1
    %p61 = por %p59, %p60
    %p62 = scmp.ne.s32.totalorder %s51, %s52
    %p63 = scmp.eq.s32.totalorder %s17, 0
    %p64 = por %p62, %p63
    %p65 = scmp.ne.s32.totalorder %s51, %s52
    %p66 = scmp.eq.s32.totalorder %s18, 1
    %p67 = por %p65, %p66
    %p69 = scmp.ne.s32.totalorder %s52, %s68
    %p70 = scmp.eq.s32.totalorder %s18, 0
    %p71 = por %p69, %p70
    %s73 = sadd.s32 %s72, 1
    %p76 = scmp.eq.s32.totalorder %s12, 1
    %p77 = scmp.ne.s32.totalorder %s72, %s74
    %p78 = scmp.eq.s32.totalorder %s12, 0
    %p79 = por %p77, %p78
    %p80 = scmp.ne.s32.totalorder %s72, %s74
    %p81 = scmp.eq.s32.totalorder %s17, 1
    %p82 = por %p80, %p81
    %p83 = scmp.ne.s32.totalorder %s74, %s75
    %p84 = scmp.eq.s32.totalorder %s17, 0
    %p85 = por %p83, %p84
    %p86 = scmp.ne.s32.totalorder %s74, %s75
    %p87 = scmp.eq.s32.totalorder %s18, 1
    %p88 = por %p86, %p87
    %p90 = scmp.ne.s32.totalorder %s75, %s89
    %p91 = scmp.eq.s32.totalorder %s18, 0
    %p92 = por %p90, %p91
    %s94 = sadd.s32 %s93, 1
    %p97 = scmp.eq.s32.totalorder %s12, 1
    %p98 = scmp.ne.s32.totalorder %s93, %s95
    %p99 = scmp.eq.s32.totalorder %s12, 0
    %p100 = por %p98, %p99
    %p101 = scmp.ne.s32.totalorder %s93, %s95
    %p102 = scmp.eq.s32.totalorder %s17, 1
    %p103 = por %p101, %p102
    %p104 = scmp.ne.s32.totalorder %s95, %s96
    %p105 = scmp.eq.s32.totalorder %s17, 0
    %p106 = por %p104, %p105
    %p107 = scmp.ne.s32.totalorder %s95, %s96
    %p108 = scmp.eq.s32.totalorder %s18, 1
    %p109 = por %p107, %p108
    %p111 = scmp.ne.s32.totalorder %s96, %s110
    %p112 = scmp.eq.s32.totalorder %s18, 0
    %p113 = por %p111, %p112
    %s115 = sadd.s32 %s114, 1
    %p118 = scmp.eq.s32.totalorder %s12, 1
    %p119 = scmp.ne.s32.totalorder %s114, %s116
    %p120 = scmp.eq.s32.totalorder %s12, 0
    %p121 = por %p119, %p120
    %p122 = scmp.ne.s32.totalorder %s114, %s116
    %p123 = scmp.eq.s32.totalorder %s17, 1
    %p124 = por %p122, %p123
    %p125 = scmp.ne.s32.totalorder %s116, %s117
    %p126 = scmp.eq.s32.totalorder %s17, 0
    %p127 = por %p125, %p126
    %p128 = scmp.ne.s32.totalorder %s116, %s117
    %p129 = scmp.eq.s32.totalorder %s18, 1
    %p130 = por %p128, %p129
    %p132 = scmp.ne.s32.totalorder %s117, %s131
    %p133 = scmp.eq.s32.totalorder %s18, 0
    %p134 = por %p132, %p133
    %s136 = sadd.s32 %s135, 1
    %p139 = scmp.eq.s32.totalorder %s12, 1
    %p140 = scmp.ne.s32.totalorder %s135, %s137
    %p141 = scmp.eq.s32.totalorder %s12, 0
    %p142 = por %p140, %p141
    %p143 = scmp.ne.s32.totalorder %s135, %s137
    %p144 = scmp.eq.s32.totalorder %s17, 1
    %p145 = por %p143, %p144
    %p146 = scmp.ne.s32.totalorder %s137, %s138
    %p147 = scmp.eq.s32.totalorder %s17, 0
    %p148 = por %p146, %p147
    %p149 = scmp.ne.s32.totalorder %s137, %s138
    %p150 = scmp.eq.s32.totalorder %s18, 1
    %p151 = por %p149, %p150
    %p153 = scmp.ne.s32.totalorder %s138, %s152
    %p154 = scmp.eq.s32.totalorder %s18, 0
    %p155 = por %p153, %p154
    %s156 = ssub.s32 %s12, %s19
    %p157 = scmp.eq.s32.totalorder %s156, 0
    %s159 = sadd.s32 %s158, 1
    %s160 = scalar_select %p157, %s158, %s159
    %p163 = pneg %p157
    %p164 = scmp.eq.s32.totalorder %s12, 1
    %p165 = por %p163, %p164
    %p166 = scmp.ne.s32.totalorder %s158, %s161
    %p167 = scmp.eq.s32.totalorder %s12, 0
    %p168 = por %p166, %p167
    %p169 = scmp.ne.s32.totalorder %s158, %s161
    %p170 = scmp.eq.s32.totalorder %s17, 1
    %p171 = por %p169, %p170
    %p172 = scmp.ne.s32.totalorder %s161, %s162
    %p173 = scmp.eq.s32.totalorder %s17, 0
    %p174 = por %p172, %p173
    %p175 = scmp.ne.s32.totalorder %s161, %s162
    %p176 = scmp.eq.s32.totalorder %s18, 1
    %p177 = por %p175, %p176
    %p179 = scmp.ne.s32.totalorder %s162, %s178
    %p180 = scmp.eq.s32.totalorder %s18, 0
    %p181 = por %p179, %p180
    %p182 = scmp.le.s32.totalorder 1, %s12
    %p183 = scmp.lt.s32.totalorder %s12, 3
    %p184 = pnand %p182, %p183
    %p185 = pneg %p184
    // Predicated region
    $region9: #{informer_forward.23} parent=5 // pred_check
      _
    $region10: #{informer_forward.23} parent=5 // pred_check_branch
      %187 = sbr.rel (%p184) target = $region12
    $region11: #{informer_forward.23} parent=5 // pred_region
      %s188 = ssub.s32 %s12, 1
      // Predicated region
      $region13: #{informer_forward.23} parent=11 // pred_check
        %p189 = pneg %p85
      $region14: #{informer_forward.23} parent=11 // pred_check_branch
        %191 = sbr.rel (%p189) target = $region16
      $region15: #{informer_forward.23} parent=11 // pred_region
        _
      $region16: #{informer_forward.23} parent=11 // pred_fallthru
        _
      // Predicated region
      $region17: #{informer_forward.23} parent=11 // pred_check
        %p192 = pneg %p106
      $region18: #{informer_forward.23} parent=11 // pred_check_branch
        %194 = sbr.rel (%p192) target = $region20
      $region19: #{informer_forward.23} parent=11 // pred_region
        _
      $region20: #{informer_forward.23} parent=11 // pred_fallthru
        _
      // Predicated region
      $region21: #{informer_forward.23} parent=11 // pred_check
        %p195 = pneg %p127
      $region22: #{informer_forward.23} parent=11 // pred_check_branch
        %197 = sbr.rel (%p195) target = $region24
      $region23: #{informer_forward.23} parent=11 // pred_region
        _
      $region24: #{informer_forward.23} parent=11 // pred_fallthru
        _
      // Predicated region
      $region25: #{informer_forward.23} parent=11 // pred_check
        %p198 = pneg %p148
      $region26: #{informer_forward.23} parent=11 // pred_check_branch
        %200 = sbr.rel (%p198) target = $region28
      $region27: #{informer_forward.23} parent=11 // pred_region
        _
      $region28: #{informer_forward.23} parent=11 // pred_fallthru
        _
    $region12: #{informer_forward.23} parent=5 // pred_fallthru
      _
    %p201 = scmp.lt.s32.totalorder %s12, 2
    // Predicated region
    $region29: #{informer_forward.23} parent=5 // pred_check
      %p202 = pneg %p201
    $region30: #{informer_forward.23} parent=5 // pred_check_branch
      %204 = sbr.rel (%p202) target = $region32
    $region31: #{informer_forward.23} parent=5 // pred_region
      // Predicated region
      $region33: #{informer_forward.23} parent=31 // pred_check
        %p205 = pneg %p32
      $region34: #{informer_forward.23} parent=31 // pred_check_branch
        %207 = sbr.rel (%p205) target = $region36
      $region35: #{informer_forward.23} parent=31 // pred_region
        %p208 = scmp.lt.s32.totalorder %s12, 1
        %s209 = scalar_select %p208, %s12, 1
        %s210 = smul.addr %s209, 2
        %s211 = smul.addr %s210, 8
        %s212 = scalar_lea.vmem %s0, %s211
      $region36: #{informer_forward.23} parent=31 // pred_fallthru
        _
      // Predicated region
      $region37: #{informer_forward.23} parent=31 // pred_check
        %p213 = pneg %p58
      $region38: #{informer_forward.23} parent=31 // pred_check_branch
        %215 = sbr.rel (%p213) target = $region40
      $region39: #{informer_forward.23} parent=31 // pred_region
        %p216 = scmp.lt.s32.totalorder %s12, 1
        %s217 = scalar_select %p216, %s12, 1
        %s218 = smul.addr %s217, 2
        %s219 = smul.addr %s218, 8
        %s220 = scalar_lea.vmem %s1, %s219
      $region40: #{informer_forward.23} parent=31 // pred_fallthru
        _
    $region32: #{informer_forward.23} parent=5 // pred_fallthru
      _
    %p221 = scmp.le.s32.totalorder 1, %s12
    %p222 = scmp.lt.s32.totalorder %s12, 3
    %p223 = pnand %p221, %p222
    %p224 = pneg %p223
    // Predicated region
    $region41: #{informer_forward.23} parent=5 // pred_check
      _
    $region42: #{informer_forward.23} parent=5 // pred_check_branch
      %226 = sbr.rel (%p223) target = $region44
    $region43: #{informer_forward.23} parent=5 // pred_region
      %s227 = ssub.s32 %s12, 1
      %p228 = scmp.lt.s32.totalorder %s17, 1
      %s229 = scalar_select %p228, %s17, 1
      %s230 = smul.addr %s229, 2
      %s231 = smul.addr %s230, 8
      %s232 = scalar_lea.vmem %s0, %s231
      %p233 = pneg %p38
      %p234 = pneg %p35
      %p235 = scmp.lt.s32.totalorder %s17, 1
      %s236 = scalar_select %p235, %s17, 1
      %s237 = smul.addr %s236, 2
      %s238 = smul.addr %s237, 8
      %s239 = scalar_lea.vmem %s1, %s238
      %p240 = pneg %p64
      %p241 = pneg %p61
      %p242 = pneg %p85
      %p243 = pneg %p82
      %p244 = pneg %p106
      %p245 = pneg %p103
      %p246 = pneg %p127
      %p247 = pneg %p124
      %p248 = pneg %p148
      %p249 = pneg %p145
      %p250 = pneg %p174
      %p251 = pneg %p171
      %p252 = scmp.lt.s32.totalorder %s17, 1
      %s253 = scalar_select %p252, %s17, 1
      %s254 = smul.addr %s253, 2
      %s255 = smul.addr %s254, 8
      %s256 = scalar_lea.vmem %s6, %s255
      %p257 = scmp.lt.s32.totalorder %s17, 1
      %s258 = scalar_select %p257, %s17, 1
      %s259 = smul.addr %s258, 2
      %s260 = smul.addr %s259, 8
      %s261 = scalar_lea.vmem %s0, %s260
      %p262 = scmp.lt.s32.totalorder %s17, 1
      %s263 = scalar_select %p262, %s17, 1
      %s264 = smul.addr %s263, 2
      %s265 = smul.addr %s264, 8
      %s266 = scalar_lea.vmem %s1, %s265
      %p267 = scmp.lt.s32.totalorder %s17, 1
      %s268 = scalar_select %p267, %s17, 1
      %s269 = smul.addr %s268, 2
      %s270 = smul.addr %s269, 8
      %s271 = scalar_lea.vmem %s6, %s270
      %v273 = vld [vmem:[%s261] sm:$0xff]
      %v274 = vld [vmem:[%s261 + $0x8] sm:$0xff]
      %v275 = vpack.c.bf16 %v274, %v273
      %v276 = vld [vmem:[%s2] sm:$0xf]
      %v277 = vld [vmem:[%s2 + $0x4] sm:$0xf]
      %v278 = vld [vmem:[%s2 + $0x8] sm:$0xf]
      %v279 = vld [vmem:[%s2 + $0xc] sm:$0xf]
      %v280 = vld [vmem:[%s3] sm:$0x1]
      %v282 = vperm.slane %v280, 0
      %v288 = vunpack.c.l.b16 %v276
      %v289 = vunpack.c.l.b16 %v277
      %v290 = vunpack.c.l.b16 %v278
      %v291 = vunpack.c.l.b16 %v279
      %v292 = vpack.c.b16 %v289, %v288
      %v293 = vpack.c.b16 %v291, %v290
      %vm296 = vcmask 261120
      %v298 = vsel %vm296, %v275, 0
      %300 = vmatpush.bf16.msra.mxu0 0
      %301 = vmatpush.bf16.msra.mxu0 0
      %302 = vmatpush.bf16.msra.mxu0 0
      %303 = vmatpush.bf16.msra.mxu0 0
      %304 = vmatpush.bf16.msra.mxu0 0
      %305 = vmatpush.bf16.msra.mxu0 0
      %306 = vmatpush.bf16.msra.mxu0 %v293
      %307 = vmatpush.bf16.msra.mxu0 %v292
      %308 = vmatmul.bf16.gmra.mxu0 %v298
      %v309 = vpop.f32.mrf.mxu0
      %v310 = vadd.f32 %v282, %v309
      %v311 = vpop.f32.mrf.mxu0
      %v312 = vadd.f32 %v282, %v311
      %313 = vdwg.mxu0
      %v314 = vld [vmem:[%s266] sm:$0xff]
      %v315 = vld [vmem:[%s266 + $0x8] sm:$0xff]
      %v316 = vadd.f32 %v314, %v310
      %v317 = vadd.f32 %v315, %v312
      %v318 = vsel %vm296, %v316, 0.0
      %319 = vadd.xlane.f32.xlu0 %v318
      %v320 = vpop.xlane.xlu0 %319
      %v321 = vsel %vm296, %v317, 0.0
      %322 = vadd.xlane.f32.xlu0 %v321
      %v323 = vpop.xlane.xlu0 %322
      %v324 = vrcp.pop 32.0
      %v325 = vmul.f32 32.0, %v324
      %v326 = vsub.f32 1.0, %v325
      %v327 = vmul.f32 %v324, %v326
      %v328 = vadd.f32 %v324, %v327
      %vm329 = vweird.f32 %v324
      %v330 = vsel %vm329, %v324, %v328
      %v331 = vmul.f32 %v320, %v330
      %v332 = vmul.f32 %v323, %v330
      %v333 = vsub.f32 %v316, %v331
      %v334 = vsub.f32 %v317, %v332
      %v335 = vmul.f32 %v333, %v333
      %v336 = vmul.f32 %v334, %v334
      %v337 = vsel %vm296, %v335, 0.0
      %338 = vadd.xlane.f32.xlu0 %v337
      %v339 = vpop.xlane.xlu0 %338
      %v340 = vsel %vm296, %v336, 0.0
      %341 = vadd.xlane.f32.xlu0 %v340
      %v342 = vpop.xlane.xlu0 %341
      %v343 = vmul.f32 %v339, %v330
      %v344 = vmul.f32 %v342, %v330
      %v345 = vadd.f32 %v343, 1e-05
      %v346 = vadd.f32 %v344, 1e-05
      %v347 = vrsqrt.pop %v345
      %v348 = vmul.f32 %v347, %v345
      %v349 = vmul.f32 %v348, %v347
      %v350 = vmul.f32 0.5, %v349
      %v351 = vsub.f32 1.5, %v350
      %v352 = vmul.f32 %v347, %v351
      %vm353 = vweird.f32 %v345
      %vm354 = vweird.f32 %v347
      %vm355 = vmor %vm353, %vm354
      %v356 = vsel %vm355, %v347, %v352
      %v357 = vrsqrt.pop %v346
      %v358 = vmul.f32 %v357, %v346
      %v359 = vmul.f32 %v358, %v357
      %v360 = vmul.f32 0.5, %v359
      %v361 = vsub.f32 1.5, %v360
      %v362 = vmul.f32 %v357, %v361
      %vm363 = vweird.f32 %v346
      %vm364 = vweird.f32 %v357
      %vm365 = vmor %vm363, %vm364
      %v366 = vsel %vm365, %v357, %v362
      %v367 = vmul.f32 %v333, %v356
      %v368 = vmul.f32 %v334, %v366
      %v369 = vld [vmem:[%s4] sm:$0x1]
      %v371 = vperm.slane %v369, 0
      %v373 = vmul.f32 %v367, %v371
      %v374 = vmul.f32 %v368, %v371
      %v375 = vld [vmem:[%s5] sm:$0x1]
      %v377 = vperm.slane %v375, 0
      %v379 = vadd.f32 %v373, %v377
      %v380 = vadd.f32 %v374, %v377
      %381 = vst.msk [vmem:[%s271] sm:$0xff] %vm296, %v379
      %382 = vst.msk [vmem:[%s271 + $0x8] sm:$0xff] %vm296, %v380
      %p383 = scmp.lt.s32.totalorder %s17, 1
      %s384 = scalar_select %p383, %s17, 1
      %s385 = smul.addr %s384, 2
      %s386 = smul.addr %s385, 8
      %s387 = scalar_lea.vmem %s6, %s386
      // Predicated region
      $region45: #{informer_forward.23} parent=43 // pred_check
        %p388 = pneg %p171
      $region46: #{informer_forward.23} parent=43 // pred_check_branch
        %390 = sbr.rel (%p388) target = $region48
      $region47: #{informer_forward.23} parent=43 // pred_region
        _
      $region48: #{informer_forward.23} parent=43 // pred_fallthru
        _
    $region44: #{informer_forward.23} parent=5 // pred_fallthru
      _
    %p391 = scmp.le.s32.totalorder 2, %s12
    // Predicated region
    $region49: #{informer_forward.23} parent=5 // pred_check
      %p392 = pneg %p391
    $region50: #{informer_forward.23} parent=5 // pred_check_branch
      %394 = sbr.rel (%p392) target = $region52
    $region51: #{informer_forward.23} parent=5 // pred_region
      %s395 = ssub.s32 %s12, 2
      // Predicated region
      $region53: #{informer_forward.23} parent=51 // pred_check
        %p396 = pneg %p177
      $region54: #{informer_forward.23} parent=51 // pred_check_branch
        %398 = sbr.rel (%p396) target = $region56
      $region55: #{informer_forward.23} parent=51 // pred_region
        %p399 = scmp.lt.s32.totalorder %s18, 1
        %s400 = scalar_select %p399, %s18, 1
        %s401 = smul.addr %s400, 2
        %s402 = smul.addr %s401, 8
        %s403 = scalar_lea.vmem %s6, %s402
      $region56: #{informer_forward.23} parent=51 // pred_fallthru
        _
    $region52: #{informer_forward.23} parent=5 // pred_fallthru
      _
  $region6: #{informer_forward.23} parent=0 // loop_footer
    %s16 = sadd.s32 1, %s12
  $region7: #{informer_forward.23} parent=0 // loop_footer_branch
    %11 = sbr.rel target = $region3
  $region8: #{informer_forward.23} parent=0 // loop_exit
    _

// kernel: informer_forward.15
$region0: #{informer_forward.15}
  #allocation0 [shape = 'u32[]', space=smem, size = 0x4, offset = 0x4, fixed_abs, tag = 'smem constant byte address 0x4 - core index']
  #allocation1 [shape = 'u32[72,128]{1,0:T(1,128)}', space=vmem, size = 0x9000, scoped, tag = 'internal scratch']
  %s0 = inlined_call_operand.vmem [shape: f32[2,16,32], index: 0, kind: input, shape index: {}]
  %s1 = inlined_call_operand.vmem [shape: bf16[32,96], index: 1, kind: input, shape index: {}]
  %s2 = inlined_call_operand.vmem [shape: f32[1,96], index: 2, kind: input, shape index: {}]
  %s3 = inlined_call_operand.vmem [shape: bf16[32,32], index: 3, kind: input, shape index: {}]
  %s4 = inlined_call_operand.vmem [shape: f32[1,32], index: 4, kind: input, shape index: {}]
  %s5 = inlined_call_operand.vmem [shape: f32[1,32], index: 5, kind: input, shape index: {}]
  %s6 = inlined_call_operand.vmem [shape: f32[1,32], index: 6, kind: input, shape index: {}]
  %s7 = inlined_call_operand.vmem [shape: f32[2,16,32], index: 7, kind: output, shape index: {}]
  %s8 = sld [smem:[#allocation0]]
  $region61: #{informer_forward.15} parent=0
    _
  %s10 = ssub.s32 1, %s8
  %s11 = scalar_select 0, %s10, %s8
  loop: start=0, step=1, limit=4
  $region2: #{informer_forward.15} parent=0 // loop_pre_header
    _
  $region3: #{informer_forward.15} parent=0 // loop_header
    %s13 = sphi 0, %s17
    %p14 = scmp.ge.s32.totalorder %s13, 4
    %s23 = sphi 0, %s25
    %s26 = sphi 0, %s23
    %s27 = sphi 0, %s26
    %s43 = sphi 0, %s27
    %s47 = sphi 0, %s47
    %s49 = sphi 0, %s47
    %s50 = sphi 0, %s49
    %s64 = sphi 0, %s50
    %s68 = sphi 0, %s68
    %s70 = sphi 0, %s68
    %s71 = sphi 0, %s70
    %s85 = sphi 0, %s71
    %s89 = sphi 0, %s89
    %s91 = sphi 0, %s89
    %s92 = sphi 0, %s91
    %s106 = sphi 0, %s92
    %s110 = sphi 0, %s110
    %s112 = sphi 0, %s110
    %s113 = sphi 0, %s112
    %s127 = sphi 0, %s113
    %s131 = sphi 0, %s131
    %s133 = sphi 0, %s131
    %s134 = sphi 0, %s133
    %s148 = sphi 0, %s134
    %s152 = sphi 0, %s152
    %s154 = sphi 0, %s152
    %s155 = sphi 0, %s154
    %s169 = sphi 0, %s155
    %s175 = sphi 0, %s177
    %s178 = sphi 0, %s175
    %s179 = sphi 0, %s178
    %s195 = sphi 0, %s179
  $region4: #{informer_forward.15} parent=0 // loop_header_branch
    %16 = sbr.rel (%p14) target = $region8
  $region5: #{informer_forward.15} parent=0 // loop_body
    %s18 = ssub.s32 %s13, 1
    %s19 = ssub.s32 %s13, 2
    %s20 = sadd.s32 %s13, 1
    %s21 = ssub.s32 %s13, %s20
    %p22 = scmp.eq.s32.totalorder %s21, 0
    %s24 = sadd.s32 %s23, 1
    %s25 = scalar_select %p22, %s23, %s24
    %p28 = pneg %p22
    %p29 = scmp.eq.s32.totalorder %s13, 1
    %p30 = por %p28, %p29
    %p31 = scmp.ne.s32.totalorder %s23, %s26
    %p32 = scmp.eq.s32.totalorder %s13, 0
    %p33 = por %p31, %p32
    %p34 = scmp.ne.s32.totalorder %s23, %s26
    %p35 = scmp.eq.s32.totalorder %s18, 1
    %p36 = por %p34, %p35
    %p37 = scmp.ne.s32.totalorder %s26, %s27
    %p38 = scmp.eq.s32.totalorder %s18, 0
    %p39 = por %p37, %p38
    %p40 = scmp.ne.s32.totalorder %s26, %s27
    %p41 = scmp.eq.s32.totalorder %s19, 1
    %p42 = por %p40, %p41
    %p44 = scmp.ne.s32.totalorder %s27, %s43
    %p45 = scmp.eq.s32.totalorder %s19, 0
    %p46 = por %p44, %p45
    %s48 = sadd.s32 %s47, 1
    %p51 = scmp.eq.s32.totalorder %s13, 1
    %p52 = scmp.ne.s32.totalorder %s47, %s49
    %p53 = scmp.eq.s32.totalorder %s13, 0
    %p54 = por %p52, %p53
    %p55 = scmp.ne.s32.totalorder %s47, %s49
    %p56 = scmp.eq.s32.totalorder %s18, 1
    %p57 = por %p55, %p56
    %p58 = scmp.ne.s32.totalorder %s49, %s50
    %p59 = scmp.eq.s32.totalorder %s18, 0
    %p60 = por %p58, %p59
    %p61 = scmp.ne.s32.totalorder %s49, %s50
    %p62 = scmp.eq.s32.totalorder %s19, 1
    %p63 = por %p61, %p62
    %p65 = scmp.ne.s32.totalorder %s50, %s64
    %p66 = scmp.eq.s32.totalorder %s19, 0
    %p67 = por %p65, %p66
    %s69 = sadd.s32 %s68, 1
    %p72 = scmp.eq.s32.totalorder %s13, 1
    %p73 = scmp.ne.s32.totalorder %s68, %s70
    %p74 = scmp.eq.s32.totalorder %s13, 0
    %p75 = por %p73, %p74
    %p76 = scmp.ne.s32.totalorder %s68, %s70
    %p77 = scmp.eq.s32.totalorder %s18, 1
    %p78 = por %p76, %p77
    %p79 = scmp.ne.s32.totalorder %s70, %s71
    %p80 = scmp.eq.s32.totalorder %s18, 0
    %p81 = por %p79, %p80
    %p82 = scmp.ne.s32.totalorder %s70, %s71
    %p83 = scmp.eq.s32.totalorder %s19, 1
    %p84 = por %p82, %p83
    %p86 = scmp.ne.s32.totalorder %s71, %s85
    %p87 = scmp.eq.s32.totalorder %s19, 0
    %p88 = por %p86, %p87
    %s90 = sadd.s32 %s89, 1
    %p93 = scmp.eq.s32.totalorder %s13, 1
    %p94 = scmp.ne.s32.totalorder %s89, %s91
    %p95 = scmp.eq.s32.totalorder %s13, 0
    %p96 = por %p94, %p95
    %p97 = scmp.ne.s32.totalorder %s89, %s91
    %p98 = scmp.eq.s32.totalorder %s18, 1
    %p99 = por %p97, %p98
    %p100 = scmp.ne.s32.totalorder %s91, %s92
    %p101 = scmp.eq.s32.totalorder %s18, 0
    %p102 = por %p100, %p101
    %p103 = scmp.ne.s32.totalorder %s91, %s92
    %p104 = scmp.eq.s32.totalorder %s19, 1
    %p105 = por %p103, %p104
    %p107 = scmp.ne.s32.totalorder %s92, %s106
    %p108 = scmp.eq.s32.totalorder %s19, 0
    %p109 = por %p107, %p108
    %s111 = sadd.s32 %s110, 1
    %p114 = scmp.eq.s32.totalorder %s13, 1
    %p115 = scmp.ne.s32.totalorder %s110, %s112
    %p116 = scmp.eq.s32.totalorder %s13, 0
    %p117 = por %p115, %p116
    %p118 = scmp.ne.s32.totalorder %s110, %s112
    %p119 = scmp.eq.s32.totalorder %s18, 1
    %p120 = por %p118, %p119
    %p121 = scmp.ne.s32.totalorder %s112, %s113
    %p122 = scmp.eq.s32.totalorder %s18, 0
    %p123 = por %p121, %p122
    %p124 = scmp.ne.s32.totalorder %s112, %s113
    %p125 = scmp.eq.s32.totalorder %s19, 1
    %p126 = por %p124, %p125
    %p128 = scmp.ne.s32.totalorder %s113, %s127
    %p129 = scmp.eq.s32.totalorder %s19, 0
    %p130 = por %p128, %p129
    %s132 = sadd.s32 %s131, 1
    %p135 = scmp.eq.s32.totalorder %s13, 1
    %p136 = scmp.ne.s32.totalorder %s131, %s133
    %p137 = scmp.eq.s32.totalorder %s13, 0
    %p138 = por %p136, %p137
    %p139 = scmp.ne.s32.totalorder %s131, %s133
    %p140 = scmp.eq.s32.totalorder %s18, 1
    %p141 = por %p139, %p140
    %p142 = scmp.ne.s32.totalorder %s133, %s134
    %p143 = scmp.eq.s32.totalorder %s18, 0
    %p144 = por %p142, %p143
    %p145 = scmp.ne.s32.totalorder %s133, %s134
    %p146 = scmp.eq.s32.totalorder %s19, 1
    %p147 = por %p145, %p146
    %p149 = scmp.ne.s32.totalorder %s134, %s148
    %p150 = scmp.eq.s32.totalorder %s19, 0
    %p151 = por %p149, %p150
    %s153 = sadd.s32 %s152, 1
    %p156 = scmp.eq.s32.totalorder %s13, 1
    %p157 = scmp.ne.s32.totalorder %s152, %s154
    %p158 = scmp.eq.s32.totalorder %s13, 0
    %p159 = por %p157, %p158
    %p160 = scmp.ne.s32.totalorder %s152, %s154
    %p161 = scmp.eq.s32.totalorder %s18, 1
    %p162 = por %p160, %p161
    %p163 = scmp.ne.s32.totalorder %s154, %s155
    %p164 = scmp.eq.s32.totalorder %s18, 0
    %p165 = por %p163, %p164
    %p166 = scmp.ne.s32.totalorder %s154, %s155
    %p167 = scmp.eq.s32.totalorder %s19, 1
    %p168 = por %p166, %p167
    %p170 = scmp.ne.s32.totalorder %s155, %s169
    %p171 = scmp.eq.s32.totalorder %s19, 0
    %p172 = por %p170, %p171
    %s173 = ssub.s32 %s13, %s20
    %p174 = scmp.eq.s32.totalorder %s173, 0
    %s176 = sadd.s32 %s175, 1
    %s177 = scalar_select %p174, %s175, %s176
    %p180 = pneg %p174
    %p181 = scmp.eq.s32.totalorder %s13, 1
    %p182 = por %p180, %p181
    %p183 = scmp.ne.s32.totalorder %s175, %s178
    %p184 = scmp.eq.s32.totalorder %s13, 0
    %p185 = por %p183, %p184
    %p186 = scmp.ne.s32.totalorder %s175, %s178
    %p187 = scmp.eq.s32.totalorder %s18, 1
    %p188 = por %p186, %p187
    %p189 = scmp.ne.s32.totalorder %s178, %s179
    %p190 = scmp.eq.s32.totalorder %s18, 0
    %p191 = por %p189, %p190
    %p192 = scmp.ne.s32.totalorder %s178, %s179
    %p193 = scmp.eq.s32.totalorder %s19, 1
    %p194 = por %p192, %p193
    %p196 = scmp.ne.s32.totalorder %s179, %s195
    %p197 = scmp.eq.s32.totalorder %s19, 0
    %p198 = por %p196, %p197
    %p199 = scmp.le.s32.totalorder 1, %s13
    %p200 = scmp.lt.s32.totalorder %s13, 3
    %p201 = pnand %p199, %p200
    %p202 = pneg %p201
    // Predicated region
    $region9: #{informer_forward.15} parent=5 // pred_check
      _
    $region10: #{informer_forward.15} parent=5 // pred_check_branch
      %204 = sbr.rel (%p201) target = $region12
    $region11: #{informer_forward.15} parent=5 // pred_region
      %s205 = ssub.s32 %s13, 1
      // Predicated region
      $region13: #{informer_forward.15} parent=11 // pred_check
        %p206 = pneg %p60
      $region14: #{informer_forward.15} parent=11 // pred_check_branch
        %208 = sbr.rel (%p206) target = $region16
      $region15: #{informer_forward.15} parent=11 // pred_region
        _
      $region16: #{informer_forward.15} parent=11 // pred_fallthru
        _
      // Predicated region
      $region17: #{informer_forward.15} parent=11 // pred_check
        %p209 = pneg %p81
      $region18: #{informer_forward.15} parent=11 // pred_check_branch
        %211 = sbr.rel (%p209) target = $region20
      $region19: #{informer_forward.15} parent=11 // pred_region
        _
      $region20: #{informer_forward.15} parent=11 // pred_fallthru
        _
      // Predicated region
      $region21: #{informer_forward.15} parent=11 // pred_check
        %p212 = pneg %p102
      $region22: #{informer_forward.15} parent=11 // pred_check_branch
        %214 = sbr.rel (%p212) target = $region24
      $region23: #{informer_forward.15} parent=11 // pred_region
        _
      $region24: #{informer_forward.15} parent=11 // pred_fallthru
        _
      // Predicated region
      $region25: #{informer_forward.15} parent=11 // pred_check
        %p215 = pneg %p123
      $region26: #{informer_forward.15} parent=11 // pred_check_branch
        %217 = sbr.rel (%p215) target = $region28
      $region27: #{informer_forward.15} parent=11 // pred_region
        _
      $region28: #{informer_forward.15} parent=11 // pred_fallthru
        _
      // Predicated region
      $region29: #{informer_forward.15} parent=11 // pred_check
        %p218 = pneg %p144
      $region30: #{informer_forward.15} parent=11 // pred_check_branch
        %220 = sbr.rel (%p218) target = $region32
      $region31: #{informer_forward.15} parent=11 // pred_region
        _
      $region32: #{informer_forward.15} parent=11 // pred_fallthru
        _
      // Predicated region
      $region33: #{informer_forward.15} parent=11 // pred_check
        %p221 = pneg %p165
      $region34: #{informer_forward.15} parent=11 // pred_check_branch
        %223 = sbr.rel (%p221) target = $region36
      $region35: #{informer_forward.15} parent=11 // pred_region
        _
      $region36: #{informer_forward.15} parent=11 // pred_fallthru
        _
    $region12: #{informer_forward.15} parent=5 // pred_fallthru
      _
    %p224 = scmp.lt.s32.totalorder %s13, 2
    // Predicated region
    $region37: #{informer_forward.15} parent=5 // pred_check
      %p225 = pneg %p224
    $region38: #{informer_forward.15} parent=5 // pred_check_branch
      %227 = sbr.rel (%p225) target = $region40
    $region39: #{informer_forward.15} parent=5 // pred_region
      // Predicated region
      $region41: #{informer_forward.15} parent=39 // pred_check
        %p228 = pneg %p33
      $region42: #{informer_forward.15} parent=39 // pred_check_branch
        %230 = sbr.rel (%p228) target = $region44
      $region43: #{informer_forward.15} parent=39 // pred_region
        %p231 = scmp.lt.s32.totalorder %s13, 1
        %s232 = scalar_select %p231, %s13, 1
        %s233 = smul.addr %s232, 2
        %s234 = smul.addr %s233, 8
        %s235 = scalar_lea.vmem %s0, %s234
      $region44: #{informer_forward.15} parent=39 // pred_fallthru
        _
    $region40: #{informer_forward.15} parent=5 // pred_fallthru
      _
    %p236 = scmp.le.s32.totalorder 1, %s13
    %p237 = scmp.lt.s32.totalorder %s13, 3
    %p238 = pnand %p236, %p237
    %p239 = pneg %p238
    // Predicated region
    $region45: #{informer_forward.15} parent=5 // pred_check
      _
    $region46: #{informer_forward.15} parent=5 // pred_check_branch
      %241 = sbr.rel (%p238) target = $region48
    $region47: #{informer_forward.15} parent=5 // pred_region
      %s242 = ssub.s32 %s13, 1
      %p243 = scmp.lt.s32.totalorder %s18, 1
      %s244 = scalar_select %p243, %s18, 1
      %s245 = smul.addr %s244, 2
      %s246 = smul.addr %s245, 8
      %s247 = scalar_lea.vmem %s0, %s246
      %p248 = pneg %p39
      %p249 = pneg %p36
      %p250 = pneg %p60
      %p251 = pneg %p57
      %p252 = pneg %p81
      %p253 = pneg %p78
      %p254 = pneg %p102
      %p255 = pneg %p99
      %p256 = pneg %p123
      %p257 = pneg %p120
      %p258 = pneg %p144
      %p259 = pneg %p141
      %p260 = pneg %p165
      %p261 = pneg %p162
      %p262 = pneg %p191
      %p263 = pneg %p188
      %p264 = scmp.lt.s32.totalorder %s18, 1
      %s265 = scalar_select %p264, %s18, 1
      %s266 = smul.addr %s265, 2
      %s267 = smul.addr %s266, 8
      %s268 = scalar_lea.vmem %s7, %s267
      %p269 = scmp.lt.s32.totalorder %s18, 1
      %s270 = scalar_select %p269, %s18, 1
      %s271 = smul.addr %s270, 2
      %s272 = smul.addr %s271, 8
      %s273 = scalar_lea.vmem %s0, %s272
      %p274 = scmp.lt.s32.totalorder %s18, 1
      %s275 = scalar_select %p274, %s18, 1
      %s276 = smul.addr %s275, 2
      %s277 = smul.addr %s276, 8
      %s278 = scalar_lea.vmem %s7, %s277
      %v280 = vld [vmem:[%s273] sm:$0xff]
      %v281 = vld [vmem:[%s273 + $0x8] sm:$0xff]
      %v282 = vpack.c.bf16 %v281, %v280
      %v283 = vld [vmem:[%s1] sm:$0xf]
      %v284 = vld [vmem:[%s1 + $0x4] sm:$0xf]
      %v285 = vld [vmem:[%s1 + $0x8] sm:$0xf]
      %v286 = vld [vmem:[%s1 + $0xc] sm:$0xf]
      %v287 = vld [vmem:[%s2] sm:$0x1]
      %v289 = vperm.slane %v287, 0
      %v295 = vunpack.c.l.b16 %v283
      %v296 = vunpack.c.l.b16 %v284
      %v297 = vunpack.c.l.b16 %v285
      %v298 = vunpack.c.l.b16 %v286
      %v299 = vpack.c.b16 %v296, %v295
      %v300 = vpack.c.b16 %v298, %v297
      %vm303 = vcmask 261120
      %v305 = vsel %vm303, %v282, 0
      %307 = vmatpush.bf16.msra.mxu0 0
      %308 = vmatpush.bf16.msra.mxu0 0
      %309 = vmatpush.bf16.msra.mxu0 0
      %310 = vmatpush.bf16.msra.mxu0 0
      %311 = vmatpush.bf16.msra.mxu0 0
      %312 = vmatpush.bf16.msra.mxu0 0
      %313 = vmatpush.bf16.msra.mxu0 %v300
      %314 = vmatpush.bf16.msra.mxu0 %v299
      %315 = vmatmul.bf16.gmra.mxu0 %v305
      %v316 = vpop.f32.mrf.mxu0
      %v317 = vadd.f32 %v289, %v316
      %v318 = vpop.f32.mrf.mxu0
      %v319 = vadd.f32 %v289, %v318
      %320 = vdwg.mxu0
      %v321 = vpack.c.bf16 %v317, %v317
      %v322 = vpack.c.bf16 %v319, %v319
      %v325 = vunpack.c.l.b16 %v321
      %v326 = vunpack.c.l.b16 %v322
      %v327 = vpack.c.b16 %v326, %v325
      %328 = vrot.lane.b32.xlu0 %v327, 96
      %v329 = vpop.permute.xlu0 %328
      %vm330 = vcmask 64512
      %v332 = vsel %vm330, %v327, 0
      %v335 = vsel %vm330, %v329, 0
      %337 = vmatpush.bf16.xpose.msra.mxu0 0
      %338 = vmatpush.bf16.xpose.msra.mxu0 0
      %339 = vmatpush.bf16.xpose.msra.mxu0 0
      %340 = vmatpush.bf16.xpose.msra.mxu0 0
      %341 = vmatpush.bf16.xpose.msra.mxu0 0
      %342 = vmatpush.bf16.xpose.msra.mxu0 0
      %343 = vmatpush.bf16.xpose.msra.mxu0 0
      %344 = vmatpush.bf16.xpose.msra.mxu0 %v335
      %345 = vmatmul.bf16.gmra.mxu0 %v332
      %v346 = vpop.f32.mrf.mxu0
      %v347 = vadd.f32 0.0, %v346
      %v348 = vpop.f32.mrf.mxu0
      %v349 = vadd.f32 0.0, %v348
      %350 = vdwg.mxu0
      %vm351 = vcmask 130048
      %v352 = vsel %vm351, %v347, -inf
      %353 = vmax.xlane.f32.xlu0 %v352
      %v354 = vpop.xlane.xlu0 %353
      %v355 = vsel %vm351, %v349, -inf
      %356 = vmax.xlane.f32.xlu0 %v355
      %v357 = vpop.xlane.xlu0 %356
      %v358 = vsub.f32 %v347, %v354
      %v359 = vsub.f32 %v349, %v357
      %v360 = vmul.f32 %v358, 1.442695
      %v361 = vpow.pop %v360
      %v362 = vmul.f32 %v359, 1.442695
      %v363 = vpow.pop %v362
      %v364 = vsel %vm351, %v361, 0.0
      %365 = vadd.xlane.f32.xlu0 %v364
      %v366 = vpop.xlane.xlu0 %365
      %v367 = vsel %vm351, %v363, 0.0
      %368 = vadd.xlane.f32.xlu0 %v367
      %v369 = vpop.xlane.xlu0 %368
      %v370 = vrcp.pop %v366
      %v371 = vrcp.pop %v369
      %v372 = vmul.f32 %v361, %v370
      %v373 = vmul.f32 %v363, %v371
      %v374 = vpack.c.bf16 %v373, %v372
      %375 = vrot.lane.b32.xlu0 %v327, 64
      %v376 = vpop.permute.xlu0 %375
      %v379 = vsel %vm351, %v374, 0
      %381 = vmatpush.bf16.msra.mxu0 0
      %382 = vmatpush.bf16.msra.mxu0 0
      %383 = vmatpush.bf16.msra.mxu0 0
      %384 = vmatpush.bf16.msra.mxu0 0
      %385 = vmatpush.bf16.msra.mxu0 0
      %386 = vmatpush.bf16.msra.mxu0 0
      %387 = vmatpush.bf16.msra.mxu0 0
      %388 = vmatpush.bf16.msra.mxu0 %v376
      %389 = vmatmul.bf16.gmra.mxu0 %v379
      %v390 = vpop.f32.mrf.mxu0
      %v391 = vadd.f32 0.0, %v390
      %v392 = vpop.f32.mrf.mxu0
      %v393 = vadd.f32 0.0, %v392
      %394 = vdwg.mxu0
      %395 = vrot.lane.b32.xlu0 %v327, 120
      %v396 = vpop.permute.xlu0 %395
      %397 = vrot.lane.b32.xlu0 %v327, 88
      %v398 = vpop.permute.xlu0 %397
      %v400 = vsel %vm330, %v396, 0
      %v403 = vsel %vm330, %v398, 0
      %405 = vmatpush.bf16.xpose.msra.mxu0 0
      %406 = vmatpush.bf16.xpose.msra.mxu0 0
      %407 = vmatpush.bf16.xpose.msra.mxu0 0
      %408 = vmatpush.bf16.xpose.msra.mxu0 0
      %409 = vmatpush.bf16.xpose.msra.mxu0 0
      %410 = vmatpush.bf16.xpose.msra.mxu0 0
      %411 = vmatpush.bf16.xpose.msra.mxu0 0
      %412 = vmatpush.bf16.xpose.msra.mxu0 %v403
      %413 = vmatmul.bf16.gmra.mxu0 %v400
      %v414 = vpop.f32.mrf.mxu0
      %v415 = vadd.f32 0.0, %v414
      %v416 = vpop.f32.mrf.mxu0
      %v417 = vadd.f32 0.0, %v416
      %418 = vdwg.mxu0
      %v419 = vsel %vm351, %v415, -inf
      %420 = vmax.xlane.f32.xlu0 %v419
      %v421 = vpop.xlane.xlu0 %420
      %v422 = vsel %vm351, %v417, -inf
      %423 = vmax.xlane.f32.xlu0 %v422
      %v424 = vpop.xlane.xlu0 %423
      %v425 = vsub.f32 %v415, %v421
      %v426 = vsub.f32 %v417, %v424
      %v427 = vmul.f32 %v425, 1.442695
      %v428 = vpow.pop %v427
      %v429 = vmul.f32 %v426, 1.442695
      %v430 = vpow.pop %v429
      %v431 = vsel %vm351, %v428, 0.0
      %432 = vadd.xlane.f32.xlu0 %v431
      %v433 = vpop.xlane.xlu0 %432
      %v434 = vsel %vm351, %v430, 0.0
      %435 = vadd.xlane.f32.xlu0 %v434
      %v436 = vpop.xlane.xlu0 %435
      %v437 = vrcp.pop %v433
      %v438 = vrcp.pop %v436
      %v439 = vmul.f32 %v428, %v437
      %v440 = vmul.f32 %v430, %v438
      %v441 = vpack.c.bf16 %v440, %v439
      %442 = vrot.lane.b32.xlu0 %v327, 56
      %v443 = vpop.permute.xlu0 %442
      %v446 = vsel %vm351, %v441, 0
      %448 = vmatpush.bf16.msra.mxu0 0
      %449 = vmatpush.bf16.msra.mxu0 0
      %450 = vmatpush.bf16.msra.mxu0 0
      %451 = vmatpush.bf16.msra.mxu0 0
      %452 = vmatpush.bf16.msra.mxu0 0
      %453 = vmatpush.bf16.msra.mxu0 0
      %454 = vmatpush.bf16.msra.mxu0 0
      %455 = vmatpush.bf16.msra.mxu0 %v443
      %456 = vmatmul.bf16.gmra.mxu0 %v446
      %v457 = vpop.f32.mrf.mxu0
      %v458 = vadd.f32 0.0, %v457
      %v459 = vpop.f32.mrf.mxu0
      %v460 = vadd.f32 0.0, %v459
      %461 = vdwg.mxu0
      %462 = vrot.lane.b32.xlu0 %v327, 112
      %v463 = vpop.permute.xlu0 %462
      %464 = vrot.lane.b32.xlu0 %v327, 80
      %v465 = vpop.permute.xlu0 %464
      %v467 = vsel %vm330, %v463, 0
      %v470 = vsel %vm330, %v465, 0
      %472 = vmatpush.bf16.xpose.msra.mxu0 0
      %473 = vmatpush.bf16.xpose.msra.mxu0 0
      %474 = vmatpush.bf16.xpose.msra.mxu0 0
      %475 = vmatpush.bf16.xpose.msra.mxu0 0
      %476 = vmatpush.bf16.xpose.msra.mxu0 0
      %477 = vmatpush.bf16.xpose.msra.mxu0 0
      %478 = vmatpush.bf16.xpose.msra.mxu0 0
      %479 = vmatpush.bf16.xpose.msra.mxu0 %v470
      %480 = vmatmul.bf16.gmra.mxu0 %v467
      %v481 = vpop.f32.mrf.mxu0
      %v482 = vadd.f32 0.0, %v481
      %v483 = vpop.f32.mrf.mxu0
      %v484 = vadd.f32 0.0, %v483
      %485 = vdwg.mxu0
      %v486 = vsel %vm351, %v482, -inf
      %487 = vmax.xlane.f32.xlu0 %v486
      %v488 = vpop.xlane.xlu0 %487
      %v489 = vsel %vm351, %v484, -inf
      %490 = vmax.xlane.f32.xlu0 %v489
      %v491 = vpop.xlane.xlu0 %490
      %v492 = vsub.f32 %v482, %v488
      %v493 = vsub.f32 %v484, %v491
      %v494 = vmul.f32 %v492, 1.442695
      %v495 = vpow.pop %v494
      %v496 = vmul.f32 %v493, 1.442695
      %v497 = vpow.pop %v496
      %v498 = vsel %vm351, %v495, 0.0
      %499 = vadd.xlane.f32.xlu0 %v498
      %v500 = vpop.xlane.xlu0 %499
      %v501 = vsel %vm351, %v497, 0.0
      %502 = vadd.xlane.f32.xlu0 %v501
      %v503 = vpop.xlane.xlu0 %502
      %v504 = vrcp.pop %v500
      %v505 = vrcp.pop %v503
      %v506 = vmul.f32 %v495, %v504
      %v507 = vmul.f32 %v497, %v505
      %v508 = vpack.c.bf16 %v507, %v506
      %509 = vrot.lane.b32.xlu0 %v327, 48
      %v510 = vpop.permute.xlu0 %509
      %v513 = vsel %vm351, %v508, 0
      %515 = vmatpush.bf16.msra.mxu0 0
      %516 = vmatpush.bf16.msra.mxu0 0
      %517 = vmatpush.bf16.msra.mxu0 0
      %518 = vmatpush.bf16.msra.mxu0 0
      %519 = vmatpush.bf16.msra.mxu0 0
      %520 = vmatpush.bf16.msra.mxu0 0
      %521 = vmatpush.bf16.msra.mxu0 0
      %522 = vmatpush.bf16.msra.mxu0 %v510
      %523 = vmatmul.bf16.gmra.mxu0 %v513
      %v524 = vpop.f32.mrf.mxu0
      %v525 = vadd.f32 0.0, %v524
      %v526 = vpop.f32.mrf.mxu0
      %v527 = vadd.f32 0.0, %v526
      %528 = vdwg.mxu0
      %529 = vrot.lane.b32.xlu0 %v327, 104
      %v530 = vpop.permute.xlu0 %529
      %531 = vrot.lane.b32.xlu0 %v327, 72
      %v532 = vpop.permute.xlu0 %531
      %v534 = vsel %vm330, %v530, 0
      %v537 = vsel %vm330, %v532, 0
      %539 = vmatpush.bf16.xpose.msra.mxu0 0
      %540 = vmatpush.bf16.xpose.msra.mxu0 0
      %541 = vmatpush.bf16.xpose.msra.mxu0 0
      %542 = vmatpush.bf16.xpose.msra.mxu0 0
      %543 = vmatpush.bf16.xpose.msra.mxu0 0
      %544 = vmatpush.bf16.xpose.msra.mxu0 0
      %545 = vmatpush.bf16.xpose.msra.mxu0 0
      %546 = vmatpush.bf16.xpose.msra.mxu0 %v537
      %547 = vmatmul.bf16.gmra.mxu0 %v534
      %v548 = vpop.f32.mrf.mxu0
      %v549 = vadd.f32 0.0, %v548
      %v550 = vpop.f32.mrf.mxu0
      %v551 = vadd.f32 0.0, %v550
      %552 = vdwg.mxu0
      %v553 = vsel %vm351, %v549, -inf
      %554 = vmax.xlane.f32.xlu0 %v553
      %v555 = vpop.xlane.xlu0 %554
      %v556 = vsel %vm351, %v551, -inf
      %557 = vmax.xlane.f32.xlu0 %v556
      %v558 = vpop.xlane.xlu0 %557
      %v559 = vsub.f32 %v549, %v555
      %v560 = vsub.f32 %v551, %v558
      %v561 = vmul.f32 %v559, 1.442695
      %v562 = vpow.pop %v561
      %v563 = vmul.f32 %v560, 1.442695
      %v564 = vpow.pop %v563
      %v565 = vsel %vm351, %v562, 0.0
      %566 = vadd.xlane.f32.xlu0 %v565
      %v567 = vpop.xlane.xlu0 %566
      %v568 = vsel %vm351, %v564, 0.0
      %569 = vadd.xlane.f32.xlu0 %v568
      %v570 = vpop.xlane.xlu0 %569
      %v571 = vrcp.pop %v567
      %v572 = vrcp.pop %v570
      %v573 = vmul.f32 %v562, %v571
      %v574 = vmul.f32 %v564, %v572
      %v575 = vpack.c.bf16 %v574, %v573
      %576 = vrot.lane.b32.xlu0 %v327, 40
      %v577 = vpop.permute.xlu0 %576
      %v580 = vsel %vm351, %v575, 0
      %582 = vmatpush.bf16.msra.mxu0 0
      %583 = vmatpush.bf16.msra.mxu0 0
      %584 = vmatpush.bf16.msra.mxu0 0
      %585 = vmatpush.bf16.msra.mxu0 0
      %586 = vmatpush.bf16.msra.mxu0 0
      %587 = vmatpush.bf16.msra.mxu0 0
      %588 = vmatpush.bf16.msra.mxu0 0
      %589 = vmatpush.bf16.msra.mxu0 %v577
      %590 = vmatmul.bf16.gmra.mxu0 %v580
      %v591 = vpop.f32.mrf.mxu0
      %v592 = vadd.f32 0.0, %v591
      %v593 = vpop.f32.mrf.mxu0
      %v594 = vadd.f32 0.0, %v593
      %595 = vdwg.mxu0
      %598 = vrot.lane.b32.xlu0 %v458, 8
      %v599 = vpop.permute.xlu0 %598
      %600 = vrot.lane.b32.xlu0 %v460, 8
      %v601 = vpop.permute.xlu0 %600
      %606 = vrot.lane.b32.xlu0 %v525, 16
      %v607 = vpop.permute.xlu0 %606
      %608 = vrot.lane.b32.xlu0 %v527, 16
      %v609 = vpop.permute.xlu0 %608
      %614 = vrot.lane.b32.xlu0 %v592, 24
      %v615 = vpop.permute.xlu0 %614
      %616 = vrot.lane.b32.xlu0 %v594, 24
      %v617 = vpop.permute.xlu0 %616
      %v620 = vsel %vm330, %v391, %v599
      %v621 = vsel %vm330, %v393, %v601
      %v622 = vsel %vm351, %v620, %v607
      %v623 = vsel %vm351, %v621, %v609
      %vm624 = vcmask 195584
      %v625 = vsel %vm624, %v622, %v615
      %v626 = vsel %vm624, %v623, %v617
      %v627 = vpack.c.bf16 %v626, %v625
      %v628 = vld [vmem:[%s3] sm:$0xf]
      %v629 = vld [vmem:[%s3 + $0x4] sm:$0xf]
      %v630 = vld [vmem:[%s3 + $0x8] sm:$0xf]
      %v631 = vld [vmem:[%s3 + $0xc] sm:$0xf]
      %v632 = vld [vmem:[%s4] sm:$0x1]
      %v634 = vperm.slane %v632, 0
      %v640 = vunpack.c.l.b16 %v628
      %v641 = vunpack.c.l.b16 %v629
      %v642 = vunpack.c.l.b16 %v630
      %v643 = vunpack.c.l.b16 %v631
      %v644 = vpack.c.b16 %v641, %v640
      %v645 = vpack.c.b16 %v643, %v642
      %v649 = vsel %vm303, %v627, 0
      %651 = vmatpush.bf16.msra.mxu0 0
      %652 = vmatpush.bf16.msra.mxu0 0
      %653 = vmatpush.bf16.msra.mxu0 0
      %654 = vmatpush.bf16.msra.mxu0 0
      %655 = vmatpush.bf16.msra.mxu0 0
      %656 = vmatpush.bf16.msra.mxu0 0
      %657 = vmatpush.bf16.msra.mxu0 %v645
      %658 = vmatpush.bf16.msra.mxu0 %v644
      %659 = vmatmul.bf16.gmra.mxu0 %v649
      %v660 = vpop.f32.mrf.mxu0
      %v661 = vadd.f32 %v634, %v660
      %v662 = vpop.f32.mrf.mxu0
      %v663 = vadd.f32 %v634, %v662
      %664 = vdwg.mxu0
      %v665 = vadd.f32 %v280, %v661
      %v666 = vadd.f32 %v281, %v663
      %v667 = vsel %vm303, %v665, 0.0
      %668 = vadd.xlane.f32.xlu0 %v667
      %v669 = vpop.xlane.xlu0 %668
      %v670 = vsel %vm303, %v666, 0.0
      %671 = vadd.xlane.f32.xlu0 %v670
      %v672 = vpop.xlane.xlu0 %671
      %v673 = vrcp.pop 32.0
      %v674 = vmul.f32 32.0, %v673
      %v675 = vsub.f32 1.0, %v674
      %v676 = vmul.f32 %v673, %v675
      %v677 = vadd.f32 %v673, %v676
      %vm678 = vweird.f32 %v673
      %v679 = vsel %vm678, %v673, %v677
      %v680 = vmul.f32 %v669, %v679
      %v681 = vmul.f32 %v672, %v679
      %v682 = vsub.f32 %v665, %v680
      %v683 = vsub.f32 %v666, %v681
      %v684 = vmul.f32 %v682, %v682
      %v685 = vmul.f32 %v683, %v683
      %v686 = vsel %vm303, %v684, 0.0
      %687 = vadd.xlane.f32.xlu0 %v686
      %v688 = vpop.xlane.xlu0 %687
      %v689 = vsel %vm303, %v685, 0.0
      %690 = vadd.xlane.f32.xlu0 %v689
      %v691 = vpop.xlane.xlu0 %690
      %v692 = vmul.f32 %v688, %v679
      %v693 = vmul.f32 %v691, %v679
      %v694 = vadd.f32 %v692, 1e-05
      %v695 = vadd.f32 %v693, 1e-05
      %v696 = vrsqrt.pop %v694
      %v697 = vmul.f32 %v696, %v694
      %v698 = vmul.f32 %v697, %v696
      %v699 = vmul.f32 0.5, %v698
      %v700 = vsub.f32 1.5, %v699
      %v701 = vmul.f32 %v696, %v700
      %vm702 = vweird.f32 %v694
      %vm703 = vweird.f32 %v696
      %vm704 = vmor %vm702, %vm703
      %v705 = vsel %vm704, %v696, %v701
      %v706 = vrsqrt.pop %v695
      %v707 = vmul.f32 %v706, %v695
      %v708 = vmul.f32 %v707, %v706
      %v709 = vmul.f32 0.5, %v708
      %v710 = vsub.f32 1.5, %v709
      %v711 = vmul.f32 %v706, %v710
      %vm712 = vweird.f32 %v695
      %vm713 = vweird.f32 %v706
      %vm714 = vmor %vm712, %vm713
      %v715 = vsel %vm714, %v706, %v711
      %v716 = vmul.f32 %v682, %v705
      %v717 = vmul.f32 %v683, %v715
      %v718 = vld [vmem:[%s5] sm:$0x1]
      %v720 = vperm.slane %v718, 0
      %v722 = vmul.f32 %v716, %v720
      %v723 = vmul.f32 %v717, %v720
      %v724 = vld [vmem:[%s6] sm:$0x1]
      %v726 = vperm.slane %v724, 0
      %v728 = vadd.f32 %v722, %v726
      %v729 = vadd.f32 %v723, %v726
      %730 = vst.msk [vmem:[%s278] sm:$0xff] %vm303, %v728
      %731 = vst.msk [vmem:[%s278 + $0x8] sm:$0xff] %vm303, %v729
      %p732 = scmp.lt.s32.totalorder %s18, 1
      %s733 = scalar_select %p732, %s18, 1
      %s734 = smul.addr %s733, 2
      %s735 = smul.addr %s734, 8
      %s736 = scalar_lea.vmem %s7, %s735
      // Predicated region
      $region49: #{informer_forward.15} parent=47 // pred_check
        %p737 = pneg %p188
      $region50: #{informer_forward.15} parent=47 // pred_check_branch
        %739 = sbr.rel (%p737) target = $region52
      $region51: #{informer_forward.15} parent=47 // pred_region
        _
      $region52: #{informer_forward.15} parent=47 // pred_fallthru
        _
    $region48: #{informer_forward.15} parent=5 // pred_fallthru
      _
    %p740 = scmp.le.s32.totalorder 2, %s13
    // Predicated region
    $region53: #{informer_forward.15} parent=5 // pred_check
      %p741 = pneg %p740
    $region54: #{informer_forward.15} parent=5 // pred_check_branch
      %743 = sbr.rel (%p741) target = $region56
    $region55: #{informer_forward.15} parent=5 // pred_region
      %s744 = ssub.s32 %s13, 2
      // Predicated region
      $region57: #{informer_forward.15} parent=55 // pred_check
        %p745 = pneg %p194
      $region58: #{informer_forward.15} parent=55 // pred_check_branch
        %747 = sbr.rel (%p745) target = $region60
      $region59: #{informer_forward.15} parent=55 // pred_region
        %p748 = scmp.lt.s32.totalorder %s19, 1
        %s749 = scalar_select %p748, %s19, 1
        %s750 = smul.addr %s749, 2
        %s751 = smul.addr %s750, 8
        %s752 = scalar_lea.vmem %s7, %s751
      $region60: #{informer_forward.15} parent=55 // pred_fallthru
        _
    $region56: #{informer_forward.15} parent=5 // pred_fallthru
      _
  $region6: #{informer_forward.15} parent=0 // loop_footer
    %s17 = sadd.s32 1, %s13
  $region7: #{informer_forward.15} parent=0 // loop_footer_branch
    %12 = sbr.rel target = $region3
  $region8: #{informer_forward.15} parent=0 // loop_exit
    _

// kernel: informer_forward.17
$region0: #{informer_forward.17}
  #allocation0 [shape = 'u32[]', space=smem, size = 0x4, offset = 0x4, fixed_abs, tag = 'smem constant byte address 0x4 - core index']
  #allocation1 [shape = 'u32[72,128]{1,0:T(1,128)}', space=vmem, size = 0x9000, scoped, tag = 'internal scratch']
  %s0 = inlined_call_operand.vmem [shape: f32[2,16,32], index: 0, kind: input, shape index: {}]
  %s1 = inlined_call_operand.vmem [shape: bf16[96,32], index: 1, kind: input, shape index: {}]
  %s2 = inlined_call_operand.vmem [shape: f32[1,32], index: 2, kind: input, shape index: {}]
  %s3 = inlined_call_operand.vmem [shape: f32[2,16,32], index: 3, kind: output, shape index: {}]
  %s4 = sld [smem:[#allocation0]]
  $region45: #{informer_forward.17} parent=0
    _
  %s6 = ssub.s32 1, %s4
  %s7 = scalar_select 0, %s6, %s4
  loop: start=0, step=1, limit=4
  $region2: #{informer_forward.17} parent=0 // loop_pre_header
    _
  $region3: #{informer_forward.17} parent=0 // loop_header
    %s9 = sphi 0, %s13
    %p10 = scmp.ge.s32.totalorder %s9, 4
    %s19 = sphi 0, %s21
    %s22 = sphi 0, %s19
    %s23 = sphi 0, %s22
    %s39 = sphi 0, %s23
    %s43 = sphi 0, %s43
    %s45 = sphi 0, %s43
    %s46 = sphi 0, %s45
    %s60 = sphi 0, %s46
    %s64 = sphi 0, %s64
    %s66 = sphi 0, %s64
    %s67 = sphi 0, %s66
    %s81 = sphi 0, %s67
    %s87 = sphi 0, %s89
    %s90 = sphi 0, %s87
    %s91 = sphi 0, %s90
    %s107 = sphi 0, %s91
  $region4: #{informer_forward.17} parent=0 // loop_header_branch
    %12 = sbr.rel (%p10) target = $region8
  $region5: #{informer_forward.17} parent=0 // loop_body
    %s14 = ssub.s32 %s9, 1
    %s15 = ssub.s32 %s9, 2
    %s16 = sadd.s32 %s9, 1
    %s17 = ssub.s32 %s9, %s16
    %p18 = scmp.eq.s32.totalorder %s17, 0
    %s20 = sadd.s32 %s19, 1
    %s21 = scalar_select %p18, %s19, %s20
    %p24 = pneg %p18
    %p25 = scmp.eq.s32.totalorder %s9, 1
    %p26 = por %p24, %p25
    %p27 = scmp.ne.s32.totalorder %s19, %s22
    %p28 = scmp.eq.s32.totalorder %s9, 0
    %p29 = por %p27, %p28
    %p30 = scmp.ne.s32.totalorder %s19, %s22
    %p31 = scmp.eq.s32.totalorder %s14, 1
    %p32 = por %p30, %p31
    %p33 = scmp.ne.s32.totalorder %s22, %s23
    %p34 = scmp.eq.s32.totalorder %s14, 0
    %p35 = por %p33, %p34
    %p36 = scmp.ne.s32.totalorder %s22, %s23
    %p37 = scmp.eq.s32.totalorder %s15, 1
    %p38 = por %p36, %p37
    %p40 = scmp.ne.s32.totalorder %s23, %s39
    %p41 = scmp.eq.s32.totalorder %s15, 0
    %p42 = por %p40, %p41
    %s44 = sadd.s32 %s43, 1
    %p47 = scmp.eq.s32.totalorder %s9, 1
    %p48 = scmp.ne.s32.totalorder %s43, %s45
    %p49 = scmp.eq.s32.totalorder %s9, 0
    %p50 = por %p48, %p49
    %p51 = scmp.ne.s32.totalorder %s43, %s45
    %p52 = scmp.eq.s32.totalorder %s14, 1
    %p53 = por %p51, %p52
    %p54 = scmp.ne.s32.totalorder %s45, %s46
    %p55 = scmp.eq.s32.totalorder %s14, 0
    %p56 = por %p54, %p55
    %p57 = scmp.ne.s32.totalorder %s45, %s46
    %p58 = scmp.eq.s32.totalorder %s15, 1
    %p59 = por %p57, %p58
    %p61 = scmp.ne.s32.totalorder %s46, %s60
    %p62 = scmp.eq.s32.totalorder %s15, 0
    %p63 = por %p61, %p62
    %s65 = sadd.s32 %s64, 1
    %p68 = scmp.eq.s32.totalorder %s9, 1
    %p69 = scmp.ne.s32.totalorder %s64, %s66
    %p70 = scmp.eq.s32.totalorder %s9, 0
    %p71 = por %p69, %p70
    %p72 = scmp.ne.s32.totalorder %s64, %s66
    %p73 = scmp.eq.s32.totalorder %s14, 1
    %p74 = por %p72, %p73
    %p75 = scmp.ne.s32.totalorder %s66, %s67
    %p76 = scmp.eq.s32.totalorder %s14, 0
    %p77 = por %p75, %p76
    %p78 = scmp.ne.s32.totalorder %s66, %s67
    %p79 = scmp.eq.s32.totalorder %s15, 1
    %p80 = por %p78, %p79
    %p82 = scmp.ne.s32.totalorder %s67, %s81
    %p83 = scmp.eq.s32.totalorder %s15, 0
    %p84 = por %p82, %p83
    %s85 = ssub.s32 %s9, %s16
    %p86 = scmp.eq.s32.totalorder %s85, 0
    %s88 = sadd.s32 %s87, 1
    %s89 = scalar_select %p86, %s87, %s88
    %p92 = pneg %p86
    %p93 = scmp.eq.s32.totalorder %s9, 1
    %p94 = por %p92, %p93
    %p95 = scmp.ne.s32.totalorder %s87, %s90
    %p96 = scmp.eq.s32.totalorder %s9, 0
    %p97 = por %p95, %p96
    %p98 = scmp.ne.s32.totalorder %s87, %s90
    %p99 = scmp.eq.s32.totalorder %s14, 1
    %p100 = por %p98, %p99
    %p101 = scmp.ne.s32.totalorder %s90, %s91
    %p102 = scmp.eq.s32.totalorder %s14, 0
    %p103 = por %p101, %p102
    %p104 = scmp.ne.s32.totalorder %s90, %s91
    %p105 = scmp.eq.s32.totalorder %s15, 1
    %p106 = por %p104, %p105
    %p108 = scmp.ne.s32.totalorder %s91, %s107
    %p109 = scmp.eq.s32.totalorder %s15, 0
    %p110 = por %p108, %p109
    %p111 = scmp.le.s32.totalorder 1, %s9
    %p112 = scmp.lt.s32.totalorder %s9, 3
    %p113 = pnand %p111, %p112
    %p114 = pneg %p113
    // Predicated region
    $region9: #{informer_forward.17} parent=5 // pred_check
      _
    $region10: #{informer_forward.17} parent=5 // pred_check_branch
      %116 = sbr.rel (%p113) target = $region12
    $region11: #{informer_forward.17} parent=5 // pred_region
      %s117 = ssub.s32 %s9, 1
      // Predicated region
      $region13: #{informer_forward.17} parent=11 // pred_check
        %p118 = pneg %p56
      $region14: #{informer_forward.17} parent=11 // pred_check_branch
        %120 = sbr.rel (%p118) target = $region16
      $region15: #{informer_forward.17} parent=11 // pred_region
        _
      $region16: #{informer_forward.17} parent=11 // pred_fallthru
        _
      // Predicated region
      $region17: #{informer_forward.17} parent=11 // pred_check
        %p121 = pneg %p77
      $region18: #{informer_forward.17} parent=11 // pred_check_branch
        %123 = sbr.rel (%p121) target = $region20
      $region19: #{informer_forward.17} parent=11 // pred_region
        _
      $region20: #{informer_forward.17} parent=11 // pred_fallthru
        _
    $region12: #{informer_forward.17} parent=5 // pred_fallthru
      _
    %p124 = scmp.lt.s32.totalorder %s9, 2
    // Predicated region
    $region21: #{informer_forward.17} parent=5 // pred_check
      %p125 = pneg %p124
    $region22: #{informer_forward.17} parent=5 // pred_check_branch
      %127 = sbr.rel (%p125) target = $region24
    $region23: #{informer_forward.17} parent=5 // pred_region
      // Predicated region
      $region25: #{informer_forward.17} parent=23 // pred_check
        %p128 = pneg %p29
      $region26: #{informer_forward.17} parent=23 // pred_check_branch
        %130 = sbr.rel (%p128) target = $region28
      $region27: #{informer_forward.17} parent=23 // pred_region
        %p131 = scmp.lt.s32.totalorder %s9, 1
        %s132 = scalar_select %p131, %s9, 1
        %s133 = smul.addr %s132, 2
        %s134 = smul.addr %s133, 8
        %s135 = scalar_lea.vmem %s0, %s134
      $region28: #{informer_forward.17} parent=23 // pred_fallthru
        _
    $region24: #{informer_forward.17} parent=5 // pred_fallthru
      _
    %p136 = scmp.le.s32.totalorder 1, %s9
    %p137 = scmp.lt.s32.totalorder %s9, 3
    %p138 = pnand %p136, %p137
    %p139 = pneg %p138
    // Predicated region
    $region29: #{informer_forward.17} parent=5 // pred_check
      _
    $region30: #{informer_forward.17} parent=5 // pred_check_branch
      %141 = sbr.rel (%p138) target = $region32
    $region31: #{informer_forward.17} parent=5 // pred_region
      %s142 = ssub.s32 %s9, 1
      %p143 = scmp.lt.s32.totalorder %s14, 1
      %s144 = scalar_select %p143, %s14, 1
      %s145 = smul.addr %s144, 2
      %s146 = smul.addr %s145, 8
      %s147 = scalar_lea.vmem %s0, %s146
      %p148 = pneg %p35
      %p149 = pneg %p32
      %p150 = pneg %p56
      %p151 = pneg %p53
      %p152 = pneg %p77
      %p153 = pneg %p74
      %p154 = pneg %p103
      %p155 = pneg %p100
      %p156 = scmp.lt.s32.totalorder %s14, 1
      %s157 = scalar_select %p156, %s14, 1
      %s158 = smul.addr %s157, 2
      %s159 = smul.addr %s158, 8
      %s160 = scalar_lea.vmem %s3, %s159
      %p161 = scmp.lt.s32.totalorder %s14, 1
      %s162 = scalar_select %p161, %s14, 1
      %s163 = smul.addr %s162, 2
      %s164 = smul.addr %s163, 8
      %s165 = scalar_lea.vmem %s0, %s164
      %p166 = scmp.lt.s32.totalorder %s14, 1
      %s167 = scalar_select %p166, %s14, 1
      %s168 = smul.addr %s167, 2
      %s169 = smul.addr %s168, 8
      %s170 = scalar_lea.vmem %s3, %s169
      %v172 = vld [vmem:[%s165] sm:$0xff]
      %v173 = vld [vmem:[%s165 + $0x8] sm:$0xff]
      %v174 = vrot.slane %v172, 7
      %v175 = vrot.slane %v173, 7
      %v176 = vlaneseq
      %v177 = vshrl.u32 %v176, 7
      %vm178 = vcmp.lt.s32.totalorder %v177, 1
      %v179 = vsel %vm178, %v174, %v175
      %v180 = vsel %vm178, %v175, %v174
      %v181 = vrot.slane %v172, 1
      %v182 = vrot.slane %v173, 1
      %vm183 = vcmp.lt.s32.totalorder %v177, 7
      %v184 = vsel %vm183, %v181, %v182
      %v185 = vsel %vm183, %v182, %v181
      %188 = vrot.lane.b32.xlu0 %v172, 32
      %v189 = vpop.permute.xlu0 %188
      %190 = vrot.lane.b32.xlu0 %v173, 32
      %v191 = vpop.permute.xlu0 %190
      %196 = vrot.lane.b32.xlu0 %v184, 64
      %v197 = vpop.permute.xlu0 %196
      %198 = vrot.lane.b32.xlu0 %v185, 64
      %v199 = vpop.permute.xlu0 %198
      %vm202 = vcmask 261120
      %v203 = vsel %vm202, %v180, %v189
      %v204 = vsel %vm202, %v179, %v191
      %vm205 = vcmask 523264
      %v206 = vsel %vm205, %v203, %v197
      %v207 = vsel %vm205, %v204, %v199
      %v208 = vpack.c.bf16 %v207, %v206
      %v209 = vld [vmem:[%s1] sm:$0xf]
      %v210 = vld [vmem:[%s1 + $0x4] sm:$0xf]
      %v211 = vld [vmem:[%s1 + $0x8] sm:$0xf]
      %v212 = vld [vmem:[%s1 + $0xc] sm:$0xf]
      %v213 = vld [vmem:[%s1 + $0x10] sm:$0xf]
      %v214 = vld [vmem:[%s1 + $0x14] sm:$0xf]
      %v215 = vld [vmem:[%s1 + $0x18] sm:$0xf]
      %v216 = vld [vmem:[%s1 + $0x1c] sm:$0xf]
      %v217 = vld [vmem:[%s1 + $0x20] sm:$0xf]
      %v218 = vld [vmem:[%s1 + $0x24] sm:$0xf]
      %v219 = vld [vmem:[%s1 + $0x28] sm:$0xf]
      %v220 = vld [vmem:[%s1 + $0x2c] sm:$0xf]
      %v221 = vld [vmem:[%s2] sm:$0x1]
      %v223 = vperm.slane %v221, 0
      %v237 = vunpack.c.l.b16 %v209
      %v238 = vunpack.c.l.b16 %v210
      %v239 = vunpack.c.l.b16 %v211
      %v240 = vunpack.c.l.b16 %v212
      %v241 = vunpack.c.l.b16 %v213
      %v242 = vunpack.c.l.b16 %v214
      %v243 = vunpack.c.l.b16 %v215
      %v244 = vunpack.c.l.b16 %v216
      %v245 = vunpack.c.l.b16 %v217
      %v246 = vunpack.c.l.b16 %v218
      %v247 = vunpack.c.l.b16 %v219
      %v248 = vunpack.c.l.b16 %v220
      %v249 = vpack.c.b16 %v238, %v237
      %v250 = vpack.c.b16 %v240, %v239
      %v251 = vpack.c.b16 %v242, %v241
      %v252 = vpack.c.b16 %v244, %v243
      %v253 = vpack.c.b16 %v246, %v245
      %v254 = vpack.c.b16 %v248, %v247
      %vm261 = vcmask 785408
      %v263 = vsel %vm261, %v208, 0
      %265 = vmatpush.bf16.msra.mxu0 0
      %266 = vmatpush.bf16.msra.mxu0 0
      %267 = vmatpush.bf16.msra.mxu0 %v254
      %268 = vmatpush.bf16.msra.mxu0 %v253
      %269 = vmatpush.bf16.msra.mxu0 %v252
      %270 = vmatpush.bf16.msra.mxu0 %v251
      %271 = vmatpush.bf16.msra.mxu0 %v250
      %272 = vmatpush.bf16.msra.mxu0 %v249
      %273 = vmatmul.bf16.gmra.mxu0 %v263
      %v274 = vpop.f32.mrf.mxu0
      %v275 = vadd.f32 %v223, %v274
      %v276 = vpop.f32.mrf.mxu0
      %v277 = vadd.f32 %v223, %v276
      %278 = vdwg.mxu0
      %vm279 = vcmp.gt.f32.partialorder %v275, 0.0
      %vm280 = vcmp.gt.f32.partialorder %v277, 0.0
      %v281 = vmin.f32 %v275, 0.0
      %v282 = vmin.f32 %v277, 0.0
      %v283 = vmul.f32 %v281, 1.442695
      %v284 = vpow.pop %v283
      %v285 = vmul.f32 %v282, 1.442695
      %v286 = vpow.pop %v285
      %v287 = vsub.f32 %v284, 1.0
      %v288 = vsub.f32 %v286, 1.0
      %v289 = vsel %vm279, %v275, %v287
      %v290 = vsel %vm280, %v277, %v288
      %v291 = vadd.s32 %v177, 8
      %vm292 = vcmp.eq.s32.totalorder %v177, 0
      %vm293 = vcmp.eq.s32.totalorder %v291, 0
      %v294 = vrot.slane %v289, 7
      %v295 = vrot.slane %v290, 7
      %v296 = vsel %vm178, %v294, %v295
      %v297 = vsel %vm178, %v295, %v294
      %v298 = vsel %vm292, -inf, %v297
      %v299 = vsel %vm293, -inf, %v296
      %vm300 = vcmp.eq.s32.totalorder %v177, 15
      %vm301 = vcmp.eq.s32.totalorder %v291, 15
      %v302 = vrot.slane %v289, 1
      %v303 = vrot.slane %v290, 1
      %v304 = vsel %vm183, %v302, %v303
      %v305 = vsel %vm183, %v303, %v302
      %v306 = vsel %vm300, -inf, %v304
      %v307 = vsel %vm301, -inf, %v305
      %v308 = vmax.f32 %v298, %v289
      %v309 = vmax.f32 %v299, %v290
      %v310 = vmax.f32 %v308, %v306
      %v311 = vmax.f32 %v309, %v307
      %312 = vst.msk [vmem:[%s170] sm:$0xff] %vm202, %v310
      %313 = vst.msk [vmem:[%s170 + $0x8] sm:$0xff] %vm202, %v311
      %p314 = scmp.lt.s32.totalorder %s14, 1
      %s315 = scalar_select %p314, %s14, 1
      %s316 = smul.addr %s315, 2
      %s317 = smul.addr %s316, 8
      %s318 = scalar_lea.vmem %s3, %s317
      // Predicated region
      $region33: #{informer_forward.17} parent=31 // pred_check
        %p319 = pneg %p100
      $region34: #{informer_forward.17} parent=31 // pred_check_branch
        %321 = sbr.rel (%p319) target = $region36
      $region35: #{informer_forward.17} parent=31 // pred_region
        _
      $region36: #{informer_forward.17} parent=31 // pred_fallthru
        _
    $region32: #{informer_forward.17} parent=5 // pred_fallthru
      _
    %p322 = scmp.le.s32.totalorder 2, %s9
    // Predicated region
    $region37: #{informer_forward.17} parent=5 // pred_check
      %p323 = pneg %p322
    $region38: #{informer_forward.17} parent=5 // pred_check_branch
      %325 = sbr.rel (%p323) target = $region40
    $region39: #{informer_forward.17} parent=5 // pred_region
      %s326 = ssub.s32 %s9, 2
      // Predicated region
      $region41: #{informer_forward.17} parent=39 // pred_check
        %p327 = pneg %p106
      $region42: #{informer_forward.17} parent=39 // pred_check_branch
        %329 = sbr.rel (%p327) target = $region44
      $region43: #{informer_forward.17} parent=39 // pred_region
        %p330 = scmp.lt.s32.totalorder %s15, 1
        %s331 = scalar_select %p330, %s15, 1
        %s332 = smul.addr %s331, 2
        %s333 = smul.addr %s332, 8
        %s334 = scalar_lea.vmem %s3, %s333
      $region44: #{informer_forward.17} parent=39 // pred_fallthru
        _
    $region40: #{informer_forward.17} parent=5 // pred_fallthru
      _
  $region6: #{informer_forward.17} parent=0 // loop_footer
    %s13 = sadd.s32 1, %s9
  $region7: #{informer_forward.17} parent=0 // loop_footer_branch
    %8 = sbr.rel target = $region3
  $region8: #{informer_forward.17} parent=0 // loop_exit
    _

// kernel: informer_forward.16
$region0: #{informer_forward.16}
  #allocation0 [shape = 'u32[]', space=smem, size = 0x4, offset = 0x4, fixed_abs, tag = 'smem constant byte address 0x4 - core index']
  #allocation1 [shape = 'u32[72,128]{1,0:T(1,128)}', space=vmem, size = 0x9000, scoped, tag = 'internal scratch']
  %s0 = inlined_call_operand.vmem [shape: f32[32,32], index: 0, kind: input, shape index: {}]
  %s1 = inlined_call_operand.vmem [shape: bf16[32,32], index: 1, kind: input, shape index: {}]
  %s2 = inlined_call_operand.vmem [shape: f32[1,32], index: 2, kind: input, shape index: {}]
  %s3 = inlined_call_operand.vmem [shape: bf16[32,32], index: 3, kind: input, shape index: {}]
  %s4 = inlined_call_operand.vmem [shape: f32[1,32], index: 4, kind: input, shape index: {}]
  %s5 = inlined_call_operand.vmem [shape: bf16[32,16], index: 5, kind: input, shape index: {}]
  %s6 = inlined_call_operand.vmem [shape: f32[1,16], index: 6, kind: input, shape index: {}]
  %s7 = inlined_call_operand.vmem [shape: bf16[16,32], index: 7, kind: input, shape index: {}]
  %s8 = inlined_call_operand.vmem [shape: f32[1,32], index: 8, kind: input, shape index: {}]
  %s9 = inlined_call_operand.vmem [shape: f32[1,32], index: 9, kind: input, shape index: {}]
  %s10 = inlined_call_operand.vmem [shape: f32[1,32], index: 10, kind: input, shape index: {}]
  %s11 = inlined_call_operand.vmem [shape: f32[32,32], index: 11, kind: output, shape index: {}]
  %s12 = sld [smem:[#allocation0]]
  $region54: #{informer_forward.16} parent=0
    _
  %s14 = ssub.s32 1, %s12
  %s15 = scalar_select 0, %s14, %s12
  // Predicated region
  $region2: #{informer_forward.16} parent=0 // pred_check
    _
  $region3: #{informer_forward.16} parent=0 // pred_check_branch
    %17 = sbr.rel (0) target = $region5
  $region4: #{informer_forward.16} parent=0 // pred_region
    _
  $region5: #{informer_forward.16} parent=0 // pred_fallthru
    _
  // Predicated region
  $region6: #{informer_forward.16} parent=0 // pred_check
    _
  $region7: #{informer_forward.16} parent=0 // pred_check_branch
    %19 = sbr.rel (0) target = $region9
  $region8: #{informer_forward.16} parent=0 // pred_region
    _
  $region9: #{informer_forward.16} parent=0 // pred_fallthru
    _
  // Predicated region
  $region10: #{informer_forward.16} parent=0 // pred_check
    _
  $region11: #{informer_forward.16} parent=0 // pred_check_branch
    %21 = sbr.rel (0) target = $region13
  $region12: #{informer_forward.16} parent=0 // pred_region
    _
  $region13: #{informer_forward.16} parent=0 // pred_fallthru
    _
  // Predicated region
  $region14: #{informer_forward.16} parent=0 // pred_check
    _
  $region15: #{informer_forward.16} parent=0 // pred_check_branch
    %23 = sbr.rel (0) target = $region17
  $region16: #{informer_forward.16} parent=0 // pred_region
    _
  $region17: #{informer_forward.16} parent=0 // pred_fallthru
    _
  // Predicated region
  $region18: #{informer_forward.16} parent=0 // pred_check
    _
  $region19: #{informer_forward.16} parent=0 // pred_check_branch
    %25 = sbr.rel (0) target = $region21
  $region20: #{informer_forward.16} parent=0 // pred_region
    _
  $region21: #{informer_forward.16} parent=0 // pred_fallthru
    _
  // Predicated region
  $region22: #{informer_forward.16} parent=0 // pred_check
    _
  $region23: #{informer_forward.16} parent=0 // pred_check_branch
    %27 = sbr.rel (0) target = $region25
  $region24: #{informer_forward.16} parent=0 // pred_region
    _
  $region25: #{informer_forward.16} parent=0 // pred_fallthru
    _
  // Predicated region
  $region26: #{informer_forward.16} parent=0 // pred_check
    _
  $region27: #{informer_forward.16} parent=0 // pred_check_branch
    %29 = sbr.rel (0) target = $region29
  $region28: #{informer_forward.16} parent=0 // pred_region
    _
  $region29: #{informer_forward.16} parent=0 // pred_fallthru
    _
  // Predicated region
  $region30: #{informer_forward.16} parent=0 // pred_check
    _
  $region31: #{informer_forward.16} parent=0 // pred_check_branch
    %31 = sbr.rel (0) target = $region33
  $region32: #{informer_forward.16} parent=0 // pred_region
    _
  $region33: #{informer_forward.16} parent=0 // pred_fallthru
    _
  // Predicated region
  $region34: #{informer_forward.16} parent=0 // pred_check
    _
  $region35: #{informer_forward.16} parent=0 // pred_check_branch
    %33 = sbr.rel (0) target = $region37
  $region36: #{informer_forward.16} parent=0 // pred_region
    _
  $region37: #{informer_forward.16} parent=0 // pred_fallthru
    _
  // Predicated region
  $region38: #{informer_forward.16} parent=0 // pred_check
    _
  $region39: #{informer_forward.16} parent=0 // pred_check_branch
    %35 = sbr.rel (0) target = $region41
  $region40: #{informer_forward.16} parent=0 // pred_region
    _
  $region41: #{informer_forward.16} parent=0 // pred_fallthru
    _
  // Predicated region
  $region42: #{informer_forward.16} parent=0 // pred_check
    _
  $region43: #{informer_forward.16} parent=0 // pred_check_branch
    %37 = sbr.rel (0) target = $region45
  $region44: #{informer_forward.16} parent=0 // pred_region
    _
  $region45: #{informer_forward.16} parent=0 // pred_fallthru
    _
  %v39 = vld [vmem:[%s0] sm:$0xff]
  %v40 = vld [vmem:[%s0 + $0x8] sm:$0xff]
  %v41 = vld [vmem:[%s0 + $0x10] sm:$0xff]
  %v42 = vld [vmem:[%s0 + $0x18] sm:$0xff]
  %v43 = vpack.c.bf16 %v40, %v39
  %v44 = vpack.c.bf16 %v42, %v41
  %v45 = vld [vmem:[%s1] sm:$0xf]
  %v46 = vld [vmem:[%s1 + $0x4] sm:$0xf]
  %v47 = vld [vmem:[%s1 + $0x8] sm:$0xf]
  %v48 = vld [vmem:[%s1 + $0xc] sm:$0xf]
  %v49 = vld [vmem:[%s2] sm:$0x1]
  %v51 = vperm.slane %v49, 0
  %v57 = vunpack.c.l.b16 %v45
  %v58 = vunpack.c.l.b16 %v46
  %v59 = vunpack.c.l.b16 %v47
  %v60 = vunpack.c.l.b16 %v48
  %v61 = vpack.c.b16 %v58, %v57
  %v62 = vpack.c.b16 %v60, %v59
  %vm65 = vcmask 261120
  %v67 = vsel %vm65, %v43, 0
  %v70 = vsel %vm65, %v44, 0
  %72 = vmatpush.bf16.msra.mxu0 0
  %73 = vmatpush.bf16.msra.mxu0 0
  %74 = vmatpush.bf16.msra.mxu0 0
  %75 = vmatpush.bf16.msra.mxu0 0
  %76 = vmatpush.bf16.msra.mxu0 0
  %77 = vmatpush.bf16.msra.mxu0 0
  %78 = vmatpush.bf16.msra.mxu0 %v62
  %79 = vmatpush.bf16.msra.mxu0 %v61
  %80 = vmatmul.bf16.gmra.mxu0 %v67
  %v81 = vpop.f32.mrf.mxu0
  %v82 = vadd.f32 %v51, %v81
  %v83 = vpop.f32.mrf.mxu0
  %v84 = vadd.f32 %v51, %v83
  %85 = vmatmul.bf16.gmra.mxu0 %v70
  %v86 = vpop.f32.mrf.mxu0
  %v87 = vadd.f32 %v51, %v86
  %v88 = vpop.f32.mrf.mxu0
  %v89 = vadd.f32 %v51, %v88
  %90 = vdwg.mxu0
  %v91 = vmul.f32 %v82, %v82
  %v92 = vmul.f32 %v84, %v84
  %v93 = vmul.f32 %v87, %v87
  %v94 = vmul.f32 %v89, %v89
  %v95 = vmul.f32 %v82, %v91
  %v96 = vmul.f32 %v84, %v92
  %v97 = vmul.f32 %v87, %v93
  %v98 = vmul.f32 %v89, %v94
  %v99 = vmul.f32 %v95, 0.044715
  %v100 = vmul.f32 %v96, 0.044715
  %v101 = vmul.f32 %v97, 0.044715
  %v102 = vmul.f32 %v98, 0.044715
  %v103 = vadd.f32 %v82, %v99
  %v104 = vadd.f32 %v84, %v100
  %v105 = vadd.f32 %v87, %v101
  %v106 = vadd.f32 %v89, %v102
  %v107 = vmul.f32 %v103, 0.7978846
  %v108 = vmul.f32 %v104, 0.7978846
  %v109 = vmul.f32 %v105, 0.7978846
  %v110 = vmul.f32 %v106, 0.7978846
  %v111 = vtanh.pop %v107
  %v112 = vtanh.pop %v108
  %v113 = vtanh.pop %v109
  %v114 = vtanh.pop %v110
  %v115 = vadd.f32 %v111, 1.0
  %v116 = vadd.f32 %v112, 1.0
  %v117 = vadd.f32 %v113, 1.0
  %v118 = vadd.f32 %v114, 1.0
  %v119 = vmul.f32 %v115, 0.5
  %v120 = vmul.f32 %v116, 0.5
  %v121 = vmul.f32 %v117, 0.5
  %v122 = vmul.f32 %v118, 0.5
  %v123 = vmul.f32 %v82, %v119
  %v124 = vmul.f32 %v84, %v120
  %v125 = vmul.f32 %v87, %v121
  %v126 = vmul.f32 %v89, %v122
  %v127 = vpack.c.bf16 %v124, %v123
  %v128 = vpack.c.bf16 %v126, %v125
  %v129 = vld [vmem:[%s3] sm:$0xf]
  %v130 = vld [vmem:[%s3 + $0x4] sm:$0xf]
  %v131 = vld [vmem:[%s3 + $0x8] sm:$0xf]
  %v132 = vld [vmem:[%s3 + $0xc] sm:$0xf]
  %v133 = vld [vmem:[%s4] sm:$0x1]
  %v135 = vperm.slane %v133, 0
  %v141 = vunpack.c.l.b16 %v129
  %v142 = vunpack.c.l.b16 %v130
  %v143 = vunpack.c.l.b16 %v131
  %v144 = vunpack.c.l.b16 %v132
  %v145 = vpack.c.b16 %v142, %v141
  %v146 = vpack.c.b16 %v144, %v143
  %v150 = vsel %vm65, %v127, 0
  %v153 = vsel %vm65, %v128, 0
  %155 = vmatpush.bf16.msra.mxu0 0
  %156 = vmatpush.bf16.msra.mxu0 0
  %157 = vmatpush.bf16.msra.mxu0 0
  %158 = vmatpush.bf16.msra.mxu0 0
  %159 = vmatpush.bf16.msra.mxu0 0
  %160 = vmatpush.bf16.msra.mxu0 0
  %161 = vmatpush.bf16.msra.mxu0 %v146
  %162 = vmatpush.bf16.msra.mxu0 %v145
  %163 = vmatmul.bf16.gmra.mxu0 %v150
  %v164 = vpop.f32.mrf.mxu0
  %v165 = vadd.f32 %v135, %v164
  %v166 = vpop.f32.mrf.mxu0
  %v167 = vadd.f32 %v135, %v166
  %168 = vmatmul.bf16.gmra.mxu0 %v153
  %v169 = vpop.f32.mrf.mxu0
  %v170 = vadd.f32 %v135, %v169
  %v171 = vpop.f32.mrf.mxu0
  %v172 = vadd.f32 %v135, %v171
  %173 = vdwg.mxu0
  %v174 = vpack.c.bf16 %v167, %v165
  %v175 = vpack.c.bf16 %v172, %v170
  %v176 = vld [vmem:[%s5] sm:$0xf]
  %v177 = vld [vmem:[%s5 + $0x4] sm:$0xf]
  %v178 = vld [vmem:[%s5 + $0x8] sm:$0xf]
  %v179 = vld [vmem:[%s5 + $0xc] sm:$0xf]
  %v180 = vld [vmem:[%s6] sm:$0x1]
  %v182 = vperm.slane %v180, 0
  %v188 = vunpack.c.l.b16 %v176
  %v189 = vunpack.c.l.b16 %v177
  %v190 = vunpack.c.l.b16 %v178
  %v191 = vunpack.c.l.b16 %v179
  %v192 = vpack.c.b16 %v189, %v188
  %v193 = vpack.c.b16 %v191, %v190
  %v197 = vsel %vm65, %v174, 0
  %v200 = vsel %vm65, %v175, 0
  %202 = vmatpush.bf16.msra.mxu0 0
  %203 = vmatpush.bf16.msra.mxu0 0
  %204 = vmatpush.bf16.msra.mxu0 0
  %205 = vmatpush.bf16.msra.mxu0 0
  %206 = vmatpush.bf16.msra.mxu0 0
  %207 = vmatpush.bf16.msra.mxu0 0
  %208 = vmatpush.bf16.msra.mxu0 %v193
  %209 = vmatpush.bf16.msra.mxu0 %v192
  %210 = vmatmul.bf16.gmra.mxu0 %v197
  %v211 = vpop.f32.mrf.mxu0
  %v212 = vadd.f32 %v182, %v211
  %v213 = vpop.f32.mrf.mxu0
  %v214 = vadd.f32 %v182, %v213
  %215 = vmatmul.bf16.gmra.mxu0 %v200
  %v216 = vpop.f32.mrf.mxu0
  %v217 = vadd.f32 %v182, %v216
  %v218 = vpop.f32.mrf.mxu0
  %v219 = vadd.f32 %v182, %v218
  %220 = vdwg.mxu0
  %v221 = vmax.f32 %v212, 0.0
  %v222 = vmax.f32 %v214, 0.0
  %v223 = vmax.f32 %v217, 0.0
  %v224 = vmax.f32 %v219, 0.0
  %v225 = vpack.c.bf16 %v222, %v221
  %v226 = vpack.c.bf16 %v224, %v223
  %v227 = vld [vmem:[%s7] sm:$0xf]
  %v228 = vld [vmem:[%s7 + $0x4] sm:$0xf]
  %v231 = vunpack.c.l.b16 %v227
  %v232 = vunpack.c.l.b16 %v228
  %v233 = vpack.c.b16 %v232, %v231
  %vm235 = vcmask 130048
  %v237 = vsel %vm235, %v225, 0
  %v240 = vsel %vm235, %v226, 0
  %242 = vmatpush.bf16.msra.mxu0 0
  %243 = vmatpush.bf16.msra.mxu0 0
  %244 = vmatpush.bf16.msra.mxu0 0
  %245 = vmatpush.bf16.msra.mxu0 0
  %246 = vmatpush.bf16.msra.mxu0 0
  %247 = vmatpush.bf16.msra.mxu0 0
  %248 = vmatpush.bf16.msra.mxu0 0
  %249 = vmatpush.bf16.msra.mxu0 %v233
  %250 = vmatmul.bf16.gmra.mxu0 %v237
  %v251 = vpop.f32.mrf.mxu0
  %v252 = vadd.f32 0.0, %v251
  %v253 = vpop.f32.mrf.mxu0
  %v254 = vadd.f32 0.0, %v253
  %255 = vmatmul.bf16.gmra.mxu0 %v240
  %v256 = vpop.f32.mrf.mxu0
  %v257 = vadd.f32 0.0, %v256
  %v258 = vpop.f32.mrf.mxu0
  %v259 = vadd.f32 0.0, %v258
  %260 = vdwg.mxu0
  %v261 = vadd.f32 %v165, %v252
  %v262 = vadd.f32 %v167, %v254
  %v263 = vadd.f32 %v170, %v257
  %v264 = vadd.f32 %v172, %v259
  %v265 = vld [vmem:[%s8] sm:$0x1]
  %v267 = vperm.slane %v265, 0
  %v269 = vadd.f32 %v261, %v267
  %v270 = vadd.f32 %v262, %v267
  %v271 = vadd.f32 %v263, %v267
  %v272 = vadd.f32 %v264, %v267
  %v273 = vadd.f32 %v39, %v269
  %v274 = vadd.f32 %v40, %v270
  %v275 = vadd.f32 %v41, %v271
  %v276 = vadd.f32 %v42, %v272
  %v277 = vsel %vm65, %v273, 0.0
  %278 = vadd.xlane.f32.xlu0 %v277
  %v279 = vpop.xlane.xlu0 %278
  %v280 = vsel %vm65, %v274, 0.0
  %281 = vadd.xlane.f32.xlu0 %v280
  %v282 = vpop.xlane.xlu0 %281
  %v283 = vsel %vm65, %v275, 0.0
  %284 = vadd.xlane.f32.xlu0 %v283
  %v285 = vpop.xlane.xlu0 %284
  %v286 = vsel %vm65, %v276, 0.0
  %287 = vadd.xlane.f32.xlu0 %v286
  %v288 = vpop.xlane.xlu0 %287
  %v289 = vrcp.pop 32.0
  %v290 = vmul.f32 32.0, %v289
  %v291 = vsub.f32 1.0, %v290
  %v292 = vmul.f32 %v289, %v291
  %v293 = vadd.f32 %v289, %v292
  %vm294 = vweird.f32 %v289
  %v295 = vsel %vm294, %v289, %v293
  %v296 = vmul.f32 %v279, %v295
  %v297 = vmul.f32 %v282, %v295
  %v298 = vmul.f32 %v285, %v295
  %v299 = vmul.f32 %v288, %v295
  %v300 = vsub.f32 %v273, %v296
  %v301 = vsub.f32 %v274, %v297
  %v302 = vsub.f32 %v275, %v298
  %v303 = vsub.f32 %v276, %v299
  %v304 = vmul.f32 %v300, %v300
  %v305 = vmul.f32 %v301, %v301
  %v306 = vmul.f32 %v302, %v302
  %v307 = vmul.f32 %v303, %v303
  %v308 = vsel %vm65, %v304, 0.0
  %309 = vadd.xlane.f32.xlu0 %v308
  %v310 = vpop.xlane.xlu0 %309
  %v311 = vsel %vm65, %v305, 0.0
  %312 = vadd.xlane.f32.xlu0 %v311
  %v313 = vpop.xlane.xlu0 %312
  %v314 = vsel %vm65, %v306, 0.0
  %315 = vadd.xlane.f32.xlu0 %v314
  %v316 = vpop.xlane.xlu0 %315
  %v317 = vsel %vm65, %v307, 0.0
  %318 = vadd.xlane.f32.xlu0 %v317
  %v319 = vpop.xlane.xlu0 %318
  %v320 = vmul.f32 %v310, %v295
  %v321 = vmul.f32 %v313, %v295
  %v322 = vmul.f32 %v316, %v295
  %v323 = vmul.f32 %v319, %v295
  %v324 = vadd.f32 %v320, 1e-05
  %v325 = vadd.f32 %v321, 1e-05
  %v326 = vadd.f32 %v322, 1e-05
  %v327 = vadd.f32 %v323, 1e-05
  %v328 = vrsqrt.pop %v324
  %v329 = vmul.f32 %v328, %v324
  %v330 = vmul.f32 %v329, %v328
  %v331 = vmul.f32 0.5, %v330
  %v332 = vsub.f32 1.5, %v331
  %v333 = vmul.f32 %v328, %v332
  %vm334 = vweird.f32 %v324
  %vm335 = vweird.f32 %v328
  %vm336 = vmor %vm334, %vm335
  %v337 = vsel %vm336, %v328, %v333
  %v338 = vrsqrt.pop %v325
  %v339 = vmul.f32 %v338, %v325
  %v340 = vmul.f32 %v339, %v338
  %v341 = vmul.f32 0.5, %v340
  %v342 = vsub.f32 1.5, %v341
  %v343 = vmul.f32 %v338, %v342
  %vm344 = vweird.f32 %v325
  %vm345 = vweird.f32 %v338
  %vm346 = vmor %vm344, %vm345
  %v347 = vsel %vm346, %v338, %v343
  %v348 = vrsqrt.pop %v326
  %v349 = vmul.f32 %v348, %v326
  %v350 = vmul.f32 %v349, %v348
  %v351 = vmul.f32 0.5, %v350
  %v352 = vsub.f32 1.5, %v351
  %v353 = vmul.f32 %v348, %v352
  %vm354 = vweird.f32 %v326
  %vm355 = vweird.f32 %v348
  %vm356 = vmor %vm354, %vm355
  %v357 = vsel %vm356, %v348, %v353
  %v358 = vrsqrt.pop %v327
  %v359 = vmul.f32 %v358, %v327
  %v360 = vmul.f32 %v359, %v358
  %v361 = vmul.f32 0.5, %v360
  %v362 = vsub.f32 1.5, %v361
  %v363 = vmul.f32 %v358, %v362
  %vm364 = vweird.f32 %v327
  %vm365 = vweird.f32 %v358
  %vm366 = vmor %vm364, %vm365
  %v367 = vsel %vm366, %v358, %v363
  %v368 = vmul.f32 %v300, %v337
  %v369 = vmul.f32 %v301, %v347
  %v370 = vmul.f32 %v302, %v357
  %v371 = vmul.f32 %v303, %v367
  %v372 = vld [vmem:[%s9] sm:$0x1]
  %v374 = vperm.slane %v372, 0
  %v376 = vmul.f32 %v368, %v374
  %v377 = vmul.f32 %v369, %v374
  %v378 = vmul.f32 %v370, %v374
  %v379 = vmul.f32 %v371, %v374
  %v380 = vld [vmem:[%s10] sm:$0x1]
  %v382 = vperm.slane %v380, 0
  %v384 = vadd.f32 %v376, %v382
  %v385 = vadd.f32 %v377, %v382
  %v386 = vadd.f32 %v378, %v382
  %v387 = vadd.f32 %v379, %v382
  %388 = vst.msk [vmem:[%s11] sm:$0xff] %vm65, %v384
  %389 = vst.msk [vmem:[%s11 + $0x8] sm:$0xff] %vm65, %v385
  %390 = vst.msk [vmem:[%s11 + $0x10] sm:$0xff] %vm65, %v386
  %391 = vst.msk [vmem:[%s11 + $0x18] sm:$0xff] %vm65, %v387
  // Predicated region
  $region46: #{informer_forward.16} parent=0 // pred_check
    _
  $region47: #{informer_forward.16} parent=0 // pred_check_branch
    %393 = sbr.rel (0) target = $region49
  $region48: #{informer_forward.16} parent=0 // pred_region
    _
  $region49: #{informer_forward.16} parent=0 // pred_fallthru
    _
  // Predicated region
  $region50: #{informer_forward.16} parent=0 // pred_check
    _
  $region51: #{informer_forward.16} parent=0 // pred_check_branch
    %395 = sbr.rel (0) target = $region53
  $region52: #{informer_forward.16} parent=0 // pred_region
    _
  $region53: #{informer_forward.16} parent=0 // pred_fallthru
    _

// kernel: informer_forward.18
$region0: #{informer_forward.18}
  #allocation0 [shape = 'u32[]', space=smem, size = 0x4, offset = 0x4, fixed_abs, tag = 'smem constant byte address 0x4 - core index']
  #allocation1 [shape = 'u32[72,128]{1,0:T(1,128)}', space=vmem, size = 0x9000, scoped, tag = 'internal scratch']
  %s0 = inlined_call_operand.vmem [shape: f32[2,8,32], index: 0, kind: input, shape index: {}]
  %s1 = inlined_call_operand.vmem [shape: bf16[32,96], index: 1, kind: input, shape index: {}]
  %s2 = inlined_call_operand.vmem [shape: f32[1,96], index: 2, kind: input, shape index: {}]
  %s3 = inlined_call_operand.vmem [shape: bf16[32,32], index: 3, kind: input, shape index: {}]
  %s4 = inlined_call_operand.vmem [shape: f32[1,32], index: 4, kind: input, shape index: {}]
  %s5 = inlined_call_operand.vmem [shape: f32[1,32], index: 5, kind: input, shape index: {}]
  %s6 = inlined_call_operand.vmem [shape: f32[1,32], index: 6, kind: input, shape index: {}]
  %s7 = inlined_call_operand.vmem [shape: f32[2,8,32], index: 7, kind: output, shape index: {}]
  %s8 = sld [smem:[#allocation0]]
  $region61: #{informer_forward.18} parent=0
    _
  %s10 = ssub.s32 1, %s8
  %s11 = scalar_select 0, %s10, %s8
  loop: start=0, step=1, limit=4
  $region2: #{informer_forward.18} parent=0 // loop_pre_header
    _
  $region3: #{informer_forward.18} parent=0 // loop_header
    %s13 = sphi 0, %s17
    %p14 = scmp.ge.s32.totalorder %s13, 4
    %s23 = sphi 0, %s25
    %s26 = sphi 0, %s23
    %s27 = sphi 0, %s26
    %s43 = sphi 0, %s27
    %s47 = sphi 0, %s47
    %s49 = sphi 0, %s47
    %s50 = sphi 0, %s49
    %s64 = sphi 0, %s50
    %s68 = sphi 0, %s68
    %s70 = sphi 0, %s68
    %s71 = sphi 0, %s70
    %s85 = sphi 0, %s71
    %s89 = sphi 0, %s89
    %s91 = sphi 0, %s89
    %s92 = sphi 0, %s91
    %s106 = sphi 0, %s92
    %s110 = sphi 0, %s110
    %s112 = sphi 0, %s110
    %s113 = sphi 0, %s112
    %s127 = sphi 0, %s113
    %s131 = sphi 0, %s131
    %s133 = sphi 0, %s131
    %s134 = sphi 0, %s133
    %s148 = sphi 0, %s134
    %s152 = sphi 0, %s152
    %s154 = sphi 0, %s152
    %s155 = sphi 0, %s154
    %s169 = sphi 0, %s155
    %s175 = sphi 0, %s177
    %s178 = sphi 0, %s175
    %s179 = sphi 0, %s178
    %s195 = sphi 0, %s179
  $region4: #{informer_forward.18} parent=0 // loop_header_branch
    %16 = sbr.rel (%p14) target = $region8
  $region5: #{informer_forward.18} parent=0 // loop_body
    %s18 = ssub.s32 %s13, 1
    %s19 = ssub.s32 %s13, 2
    %s20 = sadd.s32 %s13, 1
    %s21 = ssub.s32 %s13, %s20
    %p22 = scmp.eq.s32.totalorder %s21, 0
    %s24 = sadd.s32 %s23, 1
    %s25 = scalar_select %p22, %s23, %s24
    %p28 = pneg %p22
    %p29 = scmp.eq.s32.totalorder %s13, 1
    %p30 = por %p28, %p29
    %p31 = scmp.ne.s32.totalorder %s23, %s26
    %p32 = scmp.eq.s32.totalorder %s13, 0
    %p33 = por %p31, %p32
    %p34 = scmp.ne.s32.totalorder %s23, %s26
    %p35 = scmp.eq.s32.totalorder %s18, 1
    %p36 = por %p34, %p35
    %p37 = scmp.ne.s32.totalorder %s26, %s27
    %p38 = scmp.eq.s32.totalorder %s18, 0
    %p39 = por %p37, %p38
    %p40 = scmp.ne.s32.totalorder %s26, %s27
    %p41 = scmp.eq.s32.totalorder %s19, 1
    %p42 = por %p40, %p41
    %p44 = scmp.ne.s32.totalorder %s27, %s43
    %p45 = scmp.eq.s32.totalorder %s19, 0
    %p46 = por %p44, %p45
    %s48 = sadd.s32 %s47, 1
    %p51 = scmp.eq.s32.totalorder %s13, 1
    %p52 = scmp.ne.s32.totalorder %s47, %s49
    %p53 = scmp.eq.s32.totalorder %s13, 0
    %p54 = por %p52, %p53
    %p55 = scmp.ne.s32.totalorder %s47, %s49
    %p56 = scmp.eq.s32.totalorder %s18, 1
    %p57 = por %p55, %p56
    %p58 = scmp.ne.s32.totalorder %s49, %s50
    %p59 = scmp.eq.s32.totalorder %s18, 0
    %p60 = por %p58, %p59
    %p61 = scmp.ne.s32.totalorder %s49, %s50
    %p62 = scmp.eq.s32.totalorder %s19, 1
    %p63 = por %p61, %p62
    %p65 = scmp.ne.s32.totalorder %s50, %s64
    %p66 = scmp.eq.s32.totalorder %s19, 0
    %p67 = por %p65, %p66
    %s69 = sadd.s32 %s68, 1
    %p72 = scmp.eq.s32.totalorder %s13, 1
    %p73 = scmp.ne.s32.totalorder %s68, %s70
    %p74 = scmp.eq.s32.totalorder %s13, 0
    %p75 = por %p73, %p74
    %p76 = scmp.ne.s32.totalorder %s68, %s70
    %p77 = scmp.eq.s32.totalorder %s18, 1
    %p78 = por %p76, %p77
    %p79 = scmp.ne.s32.totalorder %s70, %s71
    %p80 = scmp.eq.s32.totalorder %s18, 0
    %p81 = por %p79, %p80
    %p82 = scmp.ne.s32.totalorder %s70, %s71
    %p83 = scmp.eq.s32.totalorder %s19, 1
    %p84 = por %p82, %p83
    %p86 = scmp.ne.s32.totalorder %s71, %s85
    %p87 = scmp.eq.s32.totalorder %s19, 0
    %p88 = por %p86, %p87
    %s90 = sadd.s32 %s89, 1
    %p93 = scmp.eq.s32.totalorder %s13, 1
    %p94 = scmp.ne.s32.totalorder %s89, %s91
    %p95 = scmp.eq.s32.totalorder %s13, 0
    %p96 = por %p94, %p95
    %p97 = scmp.ne.s32.totalorder %s89, %s91
    %p98 = scmp.eq.s32.totalorder %s18, 1
    %p99 = por %p97, %p98
    %p100 = scmp.ne.s32.totalorder %s91, %s92
    %p101 = scmp.eq.s32.totalorder %s18, 0
    %p102 = por %p100, %p101
    %p103 = scmp.ne.s32.totalorder %s91, %s92
    %p104 = scmp.eq.s32.totalorder %s19, 1
    %p105 = por %p103, %p104
    %p107 = scmp.ne.s32.totalorder %s92, %s106
    %p108 = scmp.eq.s32.totalorder %s19, 0
    %p109 = por %p107, %p108
    %s111 = sadd.s32 %s110, 1
    %p114 = scmp.eq.s32.totalorder %s13, 1
    %p115 = scmp.ne.s32.totalorder %s110, %s112
    %p116 = scmp.eq.s32.totalorder %s13, 0
    %p117 = por %p115, %p116
    %p118 = scmp.ne.s32.totalorder %s110, %s112
    %p119 = scmp.eq.s32.totalorder %s18, 1
    %p120 = por %p118, %p119
    %p121 = scmp.ne.s32.totalorder %s112, %s113
    %p122 = scmp.eq.s32.totalorder %s18, 0
    %p123 = por %p121, %p122
    %p124 = scmp.ne.s32.totalorder %s112, %s113
    %p125 = scmp.eq.s32.totalorder %s19, 1
    %p126 = por %p124, %p125
    %p128 = scmp.ne.s32.totalorder %s113, %s127
    %p129 = scmp.eq.s32.totalorder %s19, 0
    %p130 = por %p128, %p129
    %s132 = sadd.s32 %s131, 1
    %p135 = scmp.eq.s32.totalorder %s13, 1
    %p136 = scmp.ne.s32.totalorder %s131, %s133
    %p137 = scmp.eq.s32.totalorder %s13, 0
    %p138 = por %p136, %p137
    %p139 = scmp.ne.s32.totalorder %s131, %s133
    %p140 = scmp.eq.s32.totalorder %s18, 1
    %p141 = por %p139, %p140
    %p142 = scmp.ne.s32.totalorder %s133, %s134
    %p143 = scmp.eq.s32.totalorder %s18, 0
    %p144 = por %p142, %p143
    %p145 = scmp.ne.s32.totalorder %s133, %s134
    %p146 = scmp.eq.s32.totalorder %s19, 1
    %p147 = por %p145, %p146
    %p149 = scmp.ne.s32.totalorder %s134, %s148
    %p150 = scmp.eq.s32.totalorder %s19, 0
    %p151 = por %p149, %p150
    %s153 = sadd.s32 %s152, 1
    %p156 = scmp.eq.s32.totalorder %s13, 1
    %p157 = scmp.ne.s32.totalorder %s152, %s154
    %p158 = scmp.eq.s32.totalorder %s13, 0
    %p159 = por %p157, %p158
    %p160 = scmp.ne.s32.totalorder %s152, %s154
    %p161 = scmp.eq.s32.totalorder %s18, 1
    %p162 = por %p160, %p161
    %p163 = scmp.ne.s32.totalorder %s154, %s155
    %p164 = scmp.eq.s32.totalorder %s18, 0
    %p165 = por %p163, %p164
    %p166 = scmp.ne.s32.totalorder %s154, %s155
    %p167 = scmp.eq.s32.totalorder %s19, 1
    %p168 = por %p166, %p167
    %p170 = scmp.ne.s32.totalorder %s155, %s169
    %p171 = scmp.eq.s32.totalorder %s19, 0
    %p172 = por %p170, %p171
    %s173 = ssub.s32 %s13, %s20
    %p174 = scmp.eq.s32.totalorder %s173, 0
    %s176 = sadd.s32 %s175, 1
    %s177 = scalar_select %p174, %s175, %s176
    %p180 = pneg %p174
    %p181 = scmp.eq.s32.totalorder %s13, 1
    %p182 = por %p180, %p181
    %p183 = scmp.ne.s32.totalorder %s175, %s178
    %p184 = scmp.eq.s32.totalorder %s13, 0
    %p185 = por %p183, %p184
    %p186 = scmp.ne.s32.totalorder %s175, %s178
    %p187 = scmp.eq.s32.totalorder %s18, 1
    %p188 = por %p186, %p187
    %p189 = scmp.ne.s32.totalorder %s178, %s179
    %p190 = scmp.eq.s32.totalorder %s18, 0
    %p191 = por %p189, %p190
    %p192 = scmp.ne.s32.totalorder %s178, %s179
    %p193 = scmp.eq.s32.totalorder %s19, 1
    %p194 = por %p192, %p193
    %p196 = scmp.ne.s32.totalorder %s179, %s195
    %p197 = scmp.eq.s32.totalorder %s19, 0
    %p198 = por %p196, %p197
    %p199 = scmp.le.s32.totalorder 1, %s13
    %p200 = scmp.lt.s32.totalorder %s13, 3
    %p201 = pnand %p199, %p200
    %p202 = pneg %p201
    // Predicated region
    $region9: #{informer_forward.18} parent=5 // pred_check
      _
    $region10: #{informer_forward.18} parent=5 // pred_check_branch
      %204 = sbr.rel (%p201) target = $region12
    $region11: #{informer_forward.18} parent=5 // pred_region
      %s205 = ssub.s32 %s13, 1
      // Predicated region
      $region13: #{informer_forward.18} parent=11 // pred_check
        %p206 = pneg %p60
      $region14: #{informer_forward.18} parent=11 // pred_check_branch
        %208 = sbr.rel (%p206) target = $region16
      $region15: #{informer_forward.18} parent=11 // pred_region
        _
      $region16: #{informer_forward.18} parent=11 // pred_fallthru
        _
      // Predicated region
      $region17: #{informer_forward.18} parent=11 // pred_check
        %p209 = pneg %p81
      $region18: #{informer_forward.18} parent=11 // pred_check_branch
        %211 = sbr.rel (%p209) target = $region20
      $region19: #{informer_forward.18} parent=11 // pred_region
        _
      $region20: #{informer_forward.18} parent=11 // pred_fallthru
        _
      // Predicated region
      $region21: #{informer_forward.18} parent=11 // pred_check
        %p212 = pneg %p102
      $region22: #{informer_forward.18} parent=11 // pred_check_branch
        %214 = sbr.rel (%p212) target = $region24
      $region23: #{informer_forward.18} parent=11 // pred_region
        _
      $region24: #{informer_forward.18} parent=11 // pred_fallthru
        _
      // Predicated region
      $region25: #{informer_forward.18} parent=11 // pred_check
        %p215 = pneg %p123
      $region26: #{informer_forward.18} parent=11 // pred_check_branch
        %217 = sbr.rel (%p215) target = $region28
      $region27: #{informer_forward.18} parent=11 // pred_region
        _
      $region28: #{informer_forward.18} parent=11 // pred_fallthru
        _
      // Predicated region
      $region29: #{informer_forward.18} parent=11 // pred_check
        %p218 = pneg %p144
      $region30: #{informer_forward.18} parent=11 // pred_check_branch
        %220 = sbr.rel (%p218) target = $region32
      $region31: #{informer_forward.18} parent=11 // pred_region
        _
      $region32: #{informer_forward.18} parent=11 // pred_fallthru
        _
      // Predicated region
      $region33: #{informer_forward.18} parent=11 // pred_check
        %p221 = pneg %p165
      $region34: #{informer_forward.18} parent=11 // pred_check_branch
        %223 = sbr.rel (%p221) target = $region36
      $region35: #{informer_forward.18} parent=11 // pred_region
        _
      $region36: #{informer_forward.18} parent=11 // pred_fallthru
        _
    $region12: #{informer_forward.18} parent=5 // pred_fallthru
      _
    %p224 = scmp.lt.s32.totalorder %s13, 2
    // Predicated region
    $region37: #{informer_forward.18} parent=5 // pred_check
      %p225 = pneg %p224
    $region38: #{informer_forward.18} parent=5 // pred_check_branch
      %227 = sbr.rel (%p225) target = $region40
    $region39: #{informer_forward.18} parent=5 // pred_region
      // Predicated region
      $region41: #{informer_forward.18} parent=39 // pred_check
        %p228 = pneg %p33
      $region42: #{informer_forward.18} parent=39 // pred_check_branch
        %230 = sbr.rel (%p228) target = $region44
      $region43: #{informer_forward.18} parent=39 // pred_region
        %p231 = scmp.lt.s32.totalorder %s13, 1
        %s232 = scalar_select %p231, %s13, 1
        %s233 = smul.addr %s232, 8
        %s234 = scalar_lea.vmem %s0, %s233
      $region44: #{informer_forward.18} parent=39 // pred_fallthru
        _
    $region40: #{informer_forward.18} parent=5 // pred_fallthru
      _
    %p235 = scmp.le.s32.totalorder 1, %s13
    %p236 = scmp.lt.s32.totalorder %s13, 3
    %p237 = pnand %p235, %p236
    %p238 = pneg %p237
    // Predicated region
    $region45: #{informer_forward.18} parent=5 // pred_check
      _
    $region46: #{informer_forward.18} parent=5 // pred_check_branch
      %240 = sbr.rel (%p237) target = $region48
    $region47: #{informer_forward.18} parent=5 // pred_region
      %s241 = ssub.s32 %s13, 1
      %p242 = scmp.lt.s32.totalorder %s18, 1
      %s243 = scalar_select %p242, %s18, 1
      %s244 = smul.addr %s243, 8
      %s245 = scalar_lea.vmem %s0, %s244
      %p246 = pneg %p39
      %p247 = pneg %p36
      %p248 = pneg %p60
      %p249 = pneg %p57
      %p250 = pneg %p81
      %p251 = pneg %p78
      %p252 = pneg %p102
      %p253 = pneg %p99
      %p254 = pneg %p123
      %p255 = pneg %p120
      %p256 = pneg %p144
      %p257 = pneg %p141
      %p258 = pneg %p165
      %p259 = pneg %p162
      %p260 = pneg %p191
      %p261 = pneg %p188
      %p262 = scmp.lt.s32.totalorder %s18, 1
      %s263 = scalar_select %p262, %s18, 1
      %s264 = smul.addr %s263, 8
      %s265 = scalar_lea.vmem %s7, %s264
      %p266 = scmp.lt.s32.totalorder %s18, 1
      %s267 = scalar_select %p266, %s18, 1
      %s268 = smul.addr %s267, 8
      %s269 = scalar_lea.vmem %s0, %s268
      %p270 = scmp.lt.s32.totalorder %s18, 1
      %s271 = scalar_select %p270, %s18, 1
      %s272 = smul.addr %s271, 8
      %s273 = scalar_lea.vmem %s7, %s272
      %v275 = vld [vmem:[%s269] sm:$0xff]
      %v276 = vpack.c.bf16 %v275, %v275
      %v277 = vld [vmem:[%s1] sm:$0xf]
      %v278 = vld [vmem:[%s1 + $0x4] sm:$0xf]
      %v279 = vld [vmem:[%s1 + $0x8] sm:$0xf]
      %v280 = vld [vmem:[%s1 + $0xc] sm:$0xf]
      %v281 = vld [vmem:[%s2] sm:$0x1]
      %v283 = vperm.slane %v281, 0
      %v289 = vunpack.c.l.b16 %v277
      %v290 = vunpack.c.l.b16 %v278
      %v291 = vunpack.c.l.b16 %v279
      %v292 = vunpack.c.l.b16 %v280
      %v293 = vpack.c.b16 %v290, %v289
      %v294 = vpack.c.b16 %v292, %v291
      %vm297 = vcmask 261120
      %v299 = vsel %vm297, %v276, 0
      %301 = vmatpush.bf16.msra.mxu0 0
      %302 = vmatpush.bf16.msra.mxu0 0
      %303 = vmatpush.bf16.msra.mxu0 0
      %304 = vmatpush.bf16.msra.mxu0 0
      %305 = vmatpush.bf16.msra.mxu0 0
      %306 = vmatpush.bf16.msra.mxu0 0
      %307 = vmatpush.bf16.msra.mxu0 %v294
      %308 = vmatpush.bf16.msra.mxu0 %v293
      %309 = vmatmul.bf16.gmra.mxu0 %v299
      %v310 = vpop.f32.mrf.mxu0
      %v311 = vadd.f32 %v283, %v310
      %v312 = vpop.f32.mrf.mxu0
      %313 = vdwg.mxu0
      %v314 = vpack.c.bf16 %v311, %v311
      %v316 = vunpack.c.l.b16 %v314
      %v317 = vpack.c.b16 %v316, %v316
      %318 = vrot.lane.b32.xlu0 %v317, 96
      %v319 = vpop.permute.xlu0 %318
      %vm320 = vcmask 64512
      %v322 = vsel %vm320, %v314, 0
      %v325 = vsel %vm320, %v319, 0
      %327 = vmatpush.bf16.xpose.msra.mxu0 0
      %328 = vmatpush.bf16.xpose.msra.mxu0 0
      %329 = vmatpush.bf16.xpose.msra.mxu0 0
      %330 = vmatpush.bf16.xpose.msra.mxu0 0
      %331 = vmatpush.bf16.xpose.msra.mxu0 0
      %332 = vmatpush.bf16.xpose.msra.mxu0 0
      %333 = vmatpush.bf16.xpose.msra.mxu0 0
      %334 = vmatpush.bf16.xpose.msra.mxu0 %v325
      %335 = vmatmul.bf16.gmra.mxu0 %v322
      %v336 = vpop.f32.mrf.mxu0
      %v337 = vadd.f32 0.0, %v336
      %v338 = vpop.f32.mrf.mxu0
      %339 = vdwg.mxu0
      %v340 = vsel %vm320, %v337, -inf
      %341 = vmax.xlane.f32.xlu0 %v340
      %v342 = vpop.xlane.xlu0 %341
      %v343 = vsub.f32 %v337, %v342
      %v344 = vmul.f32 %v343, 1.442695
      %v345 = vpow.pop %v344
      %v346 = vsel %vm320, %v345, 0.0
      %347 = vadd.xlane.f32.xlu0 %v346
      %v348 = vpop.xlane.xlu0 %347
      %v349 = vrcp.pop %v348
      %v350 = vmul.f32 %v345, %v349
      %v351 = vpack.c.bf16 %v350, %v350
      %352 = vrot.lane.b32.xlu0 %v317, 64
      %v353 = vpop.permute.xlu0 %352
      %v355 = vsel %vm320, %v351, 0
      %vm357 = vcmask 1043456
      %v359 = vsel %vm357, %v353, 0
      %361 = vmatpush.bf16.msra.mxu0 0
      %362 = vmatpush.bf16.msra.mxu0 0
      %363 = vmatpush.bf16.msra.mxu0 0
      %364 = vmatpush.bf16.msra.mxu0 0
      %365 = vmatpush.bf16.msra.mxu0 0
      %366 = vmatpush.bf16.msra.mxu0 0
      %367 = vmatpush.bf16.msra.mxu0 0
      %368 = vmatpush.bf16.msra.mxu0 %v359
      %369 = vmatmul.bf16.gmra.mxu0 %v355
      %v370 = vpop.f32.mrf.mxu0
      %v371 = vadd.f32 0.0, %v370
      %v372 = vpop.f32.mrf.mxu0
      %373 = vdwg.mxu0
      %374 = vrot.lane.b32.xlu0 %v317, 120
      %v375 = vpop.permute.xlu0 %374
      %376 = vrot.lane.b32.xlu0 %v317, 88
      %v377 = vpop.permute.xlu0 %376
      %v379 = vsel %vm320, %v375, 0
      %v382 = vsel %vm320, %v377, 0
      %384 = vmatpush.bf16.xpose.msra.mxu0 0
      %385 = vmatpush.bf16.xpose.msra.mxu0 0
      %386 = vmatpush.bf16.xpose.msra.mxu0 0
      %387 = vmatpush.bf16.xpose.msra.mxu0 0
      %388 = vmatpush.bf16.xpose.msra.mxu0 0
      %389 = vmatpush.bf16.xpose.msra.mxu0 0
      %390 = vmatpush.bf16.xpose.msra.mxu0 0
      %391 = vmatpush.bf16.xpose.msra.mxu0 %v382
      %392 = vmatmul.bf16.gmra.mxu0 %v379
      %v393 = vpop.f32.mrf.mxu0
      %v394 = vadd.f32 0.0, %v393
      %v395 = vpop.f32.mrf.mxu0
      %396 = vdwg.mxu0
      %v397 = vsel %vm320, %v394, -inf
      %398 = vmax.xlane.f32.xlu0 %v397
      %v399 = vpop.xlane.xlu0 %398
      %v400 = vsub.f32 %v394, %v399
      %v401 = vmul.f32 %v400, 1.442695
      %v402 = vpow.pop %v401
      %v403 = vsel %vm320, %v402, 0.0
      %404 = vadd.xlane.f32.xlu0 %v403
      %v405 = vpop.xlane.xlu0 %404
      %v406 = vrcp.pop %v405
      %v407 = vmul.f32 %v402, %v406
      %v408 = vpack.c.bf16 %v407, %v407
      %409 = vrot.lane.b32.xlu0 %v317, 56
      %v410 = vpop.permute.xlu0 %409
      %v412 = vsel %vm320, %v408, 0
      %v415 = vsel %vm357, %v410, 0
      %417 = vmatpush.bf16.msra.mxu0 0
      %418 = vmatpush.bf16.msra.mxu0 0
      %419 = vmatpush.bf16.msra.mxu0 0
      %420 = vmatpush.bf16.msra.mxu0 0
      %421 = vmatpush.bf16.msra.mxu0 0
      %422 = vmatpush.bf16.msra.mxu0 0
      %423 = vmatpush.bf16.msra.mxu0 0
      %424 = vmatpush.bf16.msra.mxu0 %v415
      %425 = vmatmul.bf16.gmra.mxu0 %v412
      %v426 = vpop.f32.mrf.mxu0
      %v427 = vadd.f32 0.0, %v426
      %v428 = vpop.f32.mrf.mxu0
      %429 = vdwg.mxu0
      %430 = vrot.lane.b32.xlu0 %v317, 112
      %v431 = vpop.permute.xlu0 %430
      %432 = vrot.lane.b32.xlu0 %v317, 80
      %v433 = vpop.permute.xlu0 %432
      %v435 = vsel %vm320, %v431, 0
      %v438 = vsel %vm320, %v433, 0
      %440 = vmatpush.bf16.xpose.msra.mxu0 0
      %441 = vmatpush.bf16.xpose.msra.mxu0 0
      %442 = vmatpush.bf16.xpose.msra.mxu0 0
      %443 = vmatpush.bf16.xpose.msra.mxu0 0
      %444 = vmatpush.bf16.xpose.msra.mxu0 0
      %445 = vmatpush.bf16.xpose.msra.mxu0 0
      %446 = vmatpush.bf16.xpose.msra.mxu0 0
      %447 = vmatpush.bf16.xpose.msra.mxu0 %v438
      %448 = vmatmul.bf16.gmra.mxu0 %v435
      %v449 = vpop.f32.mrf.mxu0
      %v450 = vadd.f32 0.0, %v449
      %v451 = vpop.f32.mrf.mxu0
      %452 = vdwg.mxu0
      %v453 = vsel %vm320, %v450, -inf
      %454 = vmax.xlane.f32.xlu0 %v453
      %v455 = vpop.xlane.xlu0 %454
      %v456 = vsub.f32 %v450, %v455
      %v457 = vmul.f32 %v456, 1.442695
      %v458 = vpow.pop %v457
      %v459 = vsel %vm320, %v458, 0.0
      %460 = vadd.xlane.f32.xlu0 %v459
      %v461 = vpop.xlane.xlu0 %460
      %v462 = vrcp.pop %v461
      %v463 = vmul.f32 %v458, %v462
      %v464 = vpack.c.bf16 %v463, %v463
      %465 = vrot.lane.b32.xlu0 %v317, 48
      %v466 = vpop.permute.xlu0 %465
      %v468 = vsel %vm320, %v464, 0
      %v471 = vsel %vm357, %v466, 0
      %473 = vmatpush.bf16.msra.mxu0 0
      %474 = vmatpush.bf16.msra.mxu0 0
      %475 = vmatpush.bf16.msra.mxu0 0
      %476 = vmatpush.bf16.msra.mxu0 0
      %477 = vmatpush.bf16.msra.mxu0 0
      %478 = vmatpush.bf16.msra.mxu0 0
      %479 = vmatpush.bf16.msra.mxu0 0
      %480 = vmatpush.bf16.msra.mxu0 %v471
      %481 = vmatmul.bf16.gmra.mxu0 %v468
      %v482 = vpop.f32.mrf.mxu0
      %v483 = vadd.f32 0.0, %v482
      %v484 = vpop.f32.mrf.mxu0
      %485 = vdwg.mxu0
      %486 = vrot.lane.b32.xlu0 %v317, 104
      %v487 = vpop.permute.xlu0 %486
      %488 = vrot.lane.b32.xlu0 %v317, 72
      %v489 = vpop.permute.xlu0 %488
      %v491 = vsel %vm320, %v487, 0
      %v494 = vsel %vm320, %v489, 0
      %496 = vmatpush.bf16.xpose.msra.mxu0 0
      %497 = vmatpush.bf16.xpose.msra.mxu0 0
      %498 = vmatpush.bf16.xpose.msra.mxu0 0
      %499 = vmatpush.bf16.xpose.msra.mxu0 0
      %500 = vmatpush.bf16.xpose.msra.mxu0 0
      %501 = vmatpush.bf16.xpose.msra.mxu0 0
      %502 = vmatpush.bf16.xpose.msra.mxu0 0
      %503 = vmatpush.bf16.xpose.msra.mxu0 %v494
      %504 = vmatmul.bf16.gmra.mxu0 %v491
      %v505 = vpop.f32.mrf.mxu0
      %v506 = vadd.f32 0.0, %v505
      %v507 = vpop.f32.mrf.mxu0
      %508 = vdwg.mxu0
      %v509 = vsel %vm320, %v506, -inf
      %510 = vmax.xlane.f32.xlu0 %v509
      %v511 = vpop.xlane.xlu0 %510
      %v512 = vsub.f32 %v506, %v511
      %v513 = vmul.f32 %v512, 1.442695
      %v514 = vpow.pop %v513
      %v515 = vsel %vm320, %v514, 0.0
      %516 = vadd.xlane.f32.xlu0 %v515
      %v517 = vpop.xlane.xlu0 %516
      %v518 = vrcp.pop %v517
      %v519 = vmul.f32 %v514, %v518
      %v520 = vpack.c.bf16 %v519, %v519
      %521 = vrot.lane.b32.xlu0 %v317, 40
      %v522 = vpop.permute.xlu0 %521
      %v524 = vsel %vm320, %v520, 0
      %v527 = vsel %vm357, %v522, 0
      %529 = vmatpush.bf16.msra.mxu0 0
      %530 = vmatpush.bf16.msra.mxu0 0
      %531 = vmatpush.bf16.msra.mxu0 0
      %532 = vmatpush.bf16.msra.mxu0 0
      %533 = vmatpush.bf16.msra.mxu0 0
      %534 = vmatpush.bf16.msra.mxu0 0
      %535 = vmatpush.bf16.msra.mxu0 0
      %536 = vmatpush.bf16.msra.mxu0 %v527
      %537 = vmatmul.bf16.gmra.mxu0 %v524
      %v538 = vpop.f32.mrf.mxu0
      %v539 = vadd.f32 0.0, %v538
      %v540 = vpop.f32.mrf.mxu0
      %541 = vdwg.mxu0
      %543 = vrot.lane.b32.xlu0 %v427, 8
      %v544 = vpop.permute.xlu0 %543
      %547 = vrot.lane.b32.xlu0 %v483, 16
      %v548 = vpop.permute.xlu0 %547
      %551 = vrot.lane.b32.xlu0 %v539, 24
      %v552 = vpop.permute.xlu0 %551
      %v554 = vsel %vm320, %v371, %v544
      %vm555 = vcmask 130048
      %v556 = vsel %vm555, %v554, %v548
      %vm557 = vcmask 195584
      %v558 = vsel %vm557, %v556, %v552
      %v559 = vpack.c.bf16 %v558, %v558
      %v560 = vld [vmem:[%s3] sm:$0xf]
      %v561 = vld [vmem:[%s3 + $0x4] sm:$0xf]
      %v562 = vld [vmem:[%s3 + $0x8] sm:$0xf]
      %v563 = vld [vmem:[%s3 + $0xc] sm:$0xf]
      %v564 = vld [vmem:[%s4] sm:$0x1]
      %v566 = vperm.slane %v564, 0
      %v572 = vunpack.c.l.b16 %v560
      %v573 = vunpack.c.l.b16 %v561
      %v574 = vunpack.c.l.b16 %v562
      %v575 = vunpack.c.l.b16 %v563
      %v576 = vpack.c.b16 %v573, %v572
      %v577 = vpack.c.b16 %v575, %v574
      %v581 = vsel %vm297, %v559, 0
      %583 = vmatpush.bf16.msra.mxu0 0
      %584 = vmatpush.bf16.msra.mxu0 0
      %585 = vmatpush.bf16.msra.mxu0 0
      %586 = vmatpush.bf16.msra.mxu0 0
      %587 = vmatpush.bf16.msra.mxu0 0
      %588 = vmatpush.bf16.msra.mxu0 0
      %589 = vmatpush.bf16.msra.mxu0 %v577
      %590 = vmatpush.bf16.msra.mxu0 %v576
      %591 = vmatmul.bf16.gmra.mxu0 %v581
      %v592 = vpop.f32.mrf.mxu0
      %v593 = vadd.f32 %v566, %v592
      %v594 = vpop.f32.mrf.mxu0
      %595 = vdwg.mxu0
      %v596 = vadd.f32 %v275, %v593
      %v597 = vsel %vm297, %v596, 0.0
      %598 = vadd.xlane.f32.xlu0 %v597
      %v599 = vpop.xlane.xlu0 %598
      %v600 = vrcp.pop 32.0
      %v601 = vmul.f32 32.0, %v600
      %v602 = vsub.f32 1.0, %v601
      %v603 = vmul.f32 %v600, %v602
      %v604 = vadd.f32 %v600, %v603
      %vm605 = vweird.f32 %v600
      %v606 = vsel %vm605, %v600, %v604
      %v607 = vmul.f32 %v599, %v606
      %v608 = vsub.f32 %v596, %v607
      %v609 = vmul.f32 %v608, %v608
      %v610 = vsel %vm297, %v609, 0.0
      %611 = vadd.xlane.f32.xlu0 %v610
      %v612 = vpop.xlane.xlu0 %611
      %v613 = vmul.f32 %v612, %v606
      %v614 = vadd.f32 %v613, 1e-05
      %v615 = vrsqrt.pop %v614
      %v616 = vmul.f32 %v615, %v614
      %v617 = vmul.f32 %v616, %v615
      %v618 = vmul.f32 0.5, %v617
      %v619 = vsub.f32 1.5, %v618
      %v620 = vmul.f32 %v615, %v619
      %vm621 = vweird.f32 %v614
      %vm622 = vweird.f32 %v615
      %vm623 = vmor %vm621, %vm622
      %v624 = vsel %vm623, %v615, %v620
      %v625 = vmul.f32 %v608, %v624
      %v626 = vld [vmem:[%s5] sm:$0x1]
      %v628 = vperm.slane %v626, 0
      %v630 = vmul.f32 %v625, %v628
      %v631 = vld [vmem:[%s6] sm:$0x1]
      %v633 = vperm.slane %v631, 0
      %v635 = vadd.f32 %v630, %v633
      %636 = vst.msk [vmem:[%s273] sm:$0xff] %vm297, %v635
      %p637 = scmp.lt.s32.totalorder %s18, 1
      %s638 = scalar_select %p637, %s18, 1
      %s639 = smul.addr %s638, 8
      %s640 = scalar_lea.vmem %s7, %s639
      // Predicated region
      $region49: #{informer_forward.18} parent=47 // pred_check
        %p641 = pneg %p188
      $region50: #{informer_forward.18} parent=47 // pred_check_branch
        %643 = sbr.rel (%p641) target = $region52
      $region51: #{informer_forward.18} parent=47 // pred_region
        _
      $region52: #{informer_forward.18} parent=47 // pred_fallthru
        _
    $region48: #{informer_forward.18} parent=5 // pred_fallthru
      _
    %p644 = scmp.le.s32.totalorder 2, %s13
    // Predicated region
    $region53: #{informer_forward.18} parent=5 // pred_check
      %p645 = pneg %p644
    $region54: #{informer_forward.18} parent=5 // pred_check_branch
      %647 = sbr.rel (%p645) target = $region56
    $region55: #{informer_forward.18} parent=5 // pred_region
      %s648 = ssub.s32 %s13, 2
      // Predicated region
      $region57: #{informer_forward.18} parent=55 // pred_check
        %p649 = pneg %p194
      $region58: #{informer_forward.18} parent=55 // pred_check_branch
        %651 = sbr.rel (%p649) target = $region60
      $region59: #{informer_forward.18} parent=55 // pred_region
        %p652 = scmp.lt.s32.totalorder %s19, 1
        %s653 = scalar_select %p652, %s19, 1
        %s654 = smul.addr %s653, 8
        %s655 = scalar_lea.vmem %s7, %s654
      $region60: #{informer_forward.18} parent=55 // pred_fallthru
        _
    $region56: #{informer_forward.18} parent=5 // pred_fallthru
      _
  $region6: #{informer_forward.18} parent=0 // loop_footer
    %s17 = sadd.s32 1, %s13
  $region7: #{informer_forward.18} parent=0 // loop_footer_branch
    %12 = sbr.rel target = $region3
  $region8: #{informer_forward.18} parent=0 // loop_exit
    _

// kernel: informer_forward.19
$region0: #{informer_forward.19}
  #allocation0 [shape = 'u32[]', space=smem, size = 0x4, offset = 0x4, fixed_abs, tag = 'smem constant byte address 0x4 - core index']
  #allocation1 [shape = 'u32[72,128]{1,0:T(1,128)}', space=vmem, size = 0x9000, scoped, tag = 'internal scratch']
  %s0 = inlined_call_operand.vmem [shape: f32[16,32], index: 0, kind: input, shape index: {}]
  %s1 = inlined_call_operand.vmem [shape: bf16[32,32], index: 1, kind: input, shape index: {}]
  %s2 = inlined_call_operand.vmem [shape: f32[1,32], index: 2, kind: input, shape index: {}]
  %s3 = inlined_call_operand.vmem [shape: bf16[32,32], index: 3, kind: input, shape index: {}]
  %s4 = inlined_call_operand.vmem [shape: f32[1,32], index: 4, kind: input, shape index: {}]
  %s5 = inlined_call_operand.vmem [shape: bf16[32,16], index: 5, kind: input, shape index: {}]
  %s6 = inlined_call_operand.vmem [shape: f32[1,16], index: 6, kind: input, shape index: {}]
  %s7 = inlined_call_operand.vmem [shape: bf16[16,32], index: 7, kind: input, shape index: {}]
  %s8 = inlined_call_operand.vmem [shape: f32[1,32], index: 8, kind: input, shape index: {}]
  %s9 = inlined_call_operand.vmem [shape: f32[1,32], index: 9, kind: input, shape index: {}]
  %s10 = inlined_call_operand.vmem [shape: f32[1,32], index: 10, kind: input, shape index: {}]
  %s11 = inlined_call_operand.vmem [shape: f32[16,32], index: 11, kind: output, shape index: {}]
  %s12 = sld [smem:[#allocation0]]
  $region54: #{informer_forward.19} parent=0
    _
  %s14 = ssub.s32 1, %s12
  %s15 = scalar_select 0, %s14, %s12
  // Predicated region
  $region2: #{informer_forward.19} parent=0 // pred_check
    _
  $region3: #{informer_forward.19} parent=0 // pred_check_branch
    %17 = sbr.rel (0) target = $region5
  $region4: #{informer_forward.19} parent=0 // pred_region
    _
  $region5: #{informer_forward.19} parent=0 // pred_fallthru
    _
  // Predicated region
  $region6: #{informer_forward.19} parent=0 // pred_check
    _
  $region7: #{informer_forward.19} parent=0 // pred_check_branch
    %19 = sbr.rel (0) target = $region9
  $region8: #{informer_forward.19} parent=0 // pred_region
    _
  $region9: #{informer_forward.19} parent=0 // pred_fallthru
    _
  // Predicated region
  $region10: #{informer_forward.19} parent=0 // pred_check
    _
  $region11: #{informer_forward.19} parent=0 // pred_check_branch
    %21 = sbr.rel (0) target = $region13
  $region12: #{informer_forward.19} parent=0 // pred_region
    _
  $region13: #{informer_forward.19} parent=0 // pred_fallthru
    _
  // Predicated region
  $region14: #{informer_forward.19} parent=0 // pred_check
    _
  $region15: #{informer_forward.19} parent=0 // pred_check_branch
    %23 = sbr.rel (0) target = $region17
  $region16: #{informer_forward.19} parent=0 // pred_region
    _
  $region17: #{informer_forward.19} parent=0 // pred_fallthru
    _
  // Predicated region
  $region18: #{informer_forward.19} parent=0 // pred_check
    _
  $region19: #{informer_forward.19} parent=0 // pred_check_branch
    %25 = sbr.rel (0) target = $region21
  $region20: #{informer_forward.19} parent=0 // pred_region
    _
  $region21: #{informer_forward.19} parent=0 // pred_fallthru
    _
  // Predicated region
  $region22: #{informer_forward.19} parent=0 // pred_check
    _
  $region23: #{informer_forward.19} parent=0 // pred_check_branch
    %27 = sbr.rel (0) target = $region25
  $region24: #{informer_forward.19} parent=0 // pred_region
    _
  $region25: #{informer_forward.19} parent=0 // pred_fallthru
    _
  // Predicated region
  $region26: #{informer_forward.19} parent=0 // pred_check
    _
  $region27: #{informer_forward.19} parent=0 // pred_check_branch
    %29 = sbr.rel (0) target = $region29
  $region28: #{informer_forward.19} parent=0 // pred_region
    _
  $region29: #{informer_forward.19} parent=0 // pred_fallthru
    _
  // Predicated region
  $region30: #{informer_forward.19} parent=0 // pred_check
    _
  $region31: #{informer_forward.19} parent=0 // pred_check_branch
    %31 = sbr.rel (0) target = $region33
  $region32: #{informer_forward.19} parent=0 // pred_region
    _
  $region33: #{informer_forward.19} parent=0 // pred_fallthru
    _
  // Predicated region
  $region34: #{informer_forward.19} parent=0 // pred_check
    _
  $region35: #{informer_forward.19} parent=0 // pred_check_branch
    %33 = sbr.rel (0) target = $region37
  $region36: #{informer_forward.19} parent=0 // pred_region
    _
  $region37: #{informer_forward.19} parent=0 // pred_fallthru
    _
  // Predicated region
  $region38: #{informer_forward.19} parent=0 // pred_check
    _
  $region39: #{informer_forward.19} parent=0 // pred_check_branch
    %35 = sbr.rel (0) target = $region41
  $region40: #{informer_forward.19} parent=0 // pred_region
    _
  $region41: #{informer_forward.19} parent=0 // pred_fallthru
    _
  // Predicated region
  $region42: #{informer_forward.19} parent=0 // pred_check
    _
  $region43: #{informer_forward.19} parent=0 // pred_check_branch
    %37 = sbr.rel (0) target = $region45
  $region44: #{informer_forward.19} parent=0 // pred_region
    _
  $region45: #{informer_forward.19} parent=0 // pred_fallthru
    _
  %v39 = vld [vmem:[%s0] sm:$0xff]
  %v40 = vld [vmem:[%s0 + $0x8] sm:$0xff]
  %v41 = vpack.c.bf16 %v40, %v39
  %v42 = vld [vmem:[%s1] sm:$0xf]
  %v43 = vld [vmem:[%s1 + $0x4] sm:$0xf]
  %v44 = vld [vmem:[%s1 + $0x8] sm:$0xf]
  %v45 = vld [vmem:[%s1 + $0xc] sm:$0xf]
  %v46 = vld [vmem:[%s2] sm:$0x1]
  %v48 = vperm.slane %v46, 0
  %v54 = vunpack.c.l.b16 %v42
  %v55 = vunpack.c.l.b16 %v43
  %v56 = vunpack.c.l.b16 %v44
  %v57 = vunpack.c.l.b16 %v45
  %v58 = vpack.c.b16 %v55, %v54
  %v59 = vpack.c.b16 %v57, %v56
  %vm62 = vcmask 261120
  %v64 = vsel %vm62, %v41, 0
  %66 = vmatpush.bf16.msra.mxu0 0
  %67 = vmatpush.bf16.msra.mxu0 0
  %68 = vmatpush.bf16.msra.mxu0 0
  %69 = vmatpush.bf16.msra.mxu0 0
  %70 = vmatpush.bf16.msra.mxu0 0
  %71 = vmatpush.bf16.msra.mxu0 0
  %72 = vmatpush.bf16.msra.mxu0 %v59
  %73 = vmatpush.bf16.msra.mxu0 %v58
  %74 = vmatmul.bf16.gmra.mxu0 %v64
  %v75 = vpop.f32.mrf.mxu0
  %v76 = vadd.f32 %v48, %v75
  %v77 = vpop.f32.mrf.mxu0
  %v78 = vadd.f32 %v48, %v77
  %79 = vdwg.mxu0
  %v80 = vmul.f32 %v76, %v76
  %v81 = vmul.f32 %v78, %v78
  %v82 = vmul.f32 %v76, %v80
  %v83 = vmul.f32 %v78, %v81
  %v84 = vmul.f32 %v82, 0.044715
  %v85 = vmul.f32 %v83, 0.044715
  %v86 = vadd.f32 %v76, %v84
  %v87 = vadd.f32 %v78, %v85
  %v88 = vmul.f32 %v86, 0.7978846
  %v89 = vmul.f32 %v87, 0.7978846
  %v90 = vtanh.pop %v88
  %v91 = vtanh.pop %v89
  %v92 = vadd.f32 %v90, 1.0
  %v93 = vadd.f32 %v91, 1.0
  %v94 = vmul.f32 %v92, 0.5
  %v95 = vmul.f32 %v93, 0.5
  %v96 = vmul.f32 %v76, %v94
  %v97 = vmul.f32 %v78, %v95
  %v98 = vpack.c.bf16 %v97, %v96
  %v99 = vld [vmem:[%s3] sm:$0xf]
  %v100 = vld [vmem:[%s3 + $0x4] sm:$0xf]
  %v101 = vld [vmem:[%s3 + $0x8] sm:$0xf]
  %v102 = vld [vmem:[%s3 + $0xc] sm:$0xf]
  %v103 = vld [vmem:[%s4] sm:$0x1]
  %v105 = vperm.slane %v103, 0
  %v111 = vunpack.c.l.b16 %v99
  %v112 = vunpack.c.l.b16 %v100
  %v113 = vunpack.c.l.b16 %v101
  %v114 = vunpack.c.l.b16 %v102
  %v115 = vpack.c.b16 %v112, %v111
  %v116 = vpack.c.b16 %v114, %v113
  %v120 = vsel %vm62, %v98, 0
  %122 = vmatpush.bf16.msra.mxu0 0
  %123 = vmatpush.bf16.msra.mxu0 0
  %124 = vmatpush.bf16.msra.mxu0 0
  %125 = vmatpush.bf16.msra.mxu0 0
  %126 = vmatpush.bf16.msra.mxu0 0
  %127 = vmatpush.bf16.msra.mxu0 0
  %128 = vmatpush.bf16.msra.mxu0 %v116
  %129 = vmatpush.bf16.msra.mxu0 %v115
  %130 = vmatmul.bf16.gmra.mxu0 %v120
  %v131 = vpop.f32.mrf.mxu0
  %v132 = vadd.f32 %v105, %v131
  %v133 = vpop.f32.mrf.mxu0
  %v134 = vadd.f32 %v105, %v133
  %135 = vdwg.mxu0
  %v136 = vpack.c.bf16 %v134, %v132
  %v137 = vld [vmem:[%s5] sm:$0xf]
  %v138 = vld [vmem:[%s5 + $0x4] sm:$0xf]
  %v139 = vld [vmem:[%s5 + $0x8] sm:$0xf]
  %v140 = vld [vmem:[%s5 + $0xc] sm:$0xf]
  %v141 = vld [vmem:[%s6] sm:$0x1]
  %v143 = vperm.slane %v141, 0
  %v149 = vunpack.c.l.b16 %v137
  %v150 = vunpack.c.l.b16 %v138
  %v151 = vunpack.c.l.b16 %v139
  %v152 = vunpack.c.l.b16 %v140
  %v153 = vpack.c.b16 %v150, %v149
  %v154 = vpack.c.b16 %v152, %v151
  %v158 = vsel %vm62, %v136, 0
  %160 = vmatpush.bf16.msra.mxu0 0
  %161 = vmatpush.bf16.msra.mxu0 0
  %162 = vmatpush.bf16.msra.mxu0 0
  %163 = vmatpush.bf16.msra.mxu0 0
  %164 = vmatpush.bf16.msra.mxu0 0
  %165 = vmatpush.bf16.msra.mxu0 0
  %166 = vmatpush.bf16.msra.mxu0 %v154
  %167 = vmatpush.bf16.msra.mxu0 %v153
  %168 = vmatmul.bf16.gmra.mxu0 %v158
  %v169 = vpop.f32.mrf.mxu0
  %v170 = vadd.f32 %v143, %v169
  %v171 = vpop.f32.mrf.mxu0
  %v172 = vadd.f32 %v143, %v171
  %173 = vdwg.mxu0
  %v174 = vmax.f32 %v170, 0.0
  %v175 = vmax.f32 %v172, 0.0
  %v176 = vpack.c.bf16 %v175, %v174
  %v177 = vld [vmem:[%s7] sm:$0xf]
  %v178 = vld [vmem:[%s7 + $0x4] sm:$0xf]
  %v181 = vunpack.c.l.b16 %v177
  %v182 = vunpack.c.l.b16 %v178
  %v183 = vpack.c.b16 %v182, %v181
  %vm185 = vcmask 130048
  %v187 = vsel %vm185, %v176, 0
  %189 = vmatpush.bf16.msra.mxu0 0
  %190 = vmatpush.bf16.msra.mxu0 0
  %191 = vmatpush.bf16.msra.mxu0 0
  %192 = vmatpush.bf16.msra.mxu0 0
  %193 = vmatpush.bf16.msra.mxu0 0
  %194 = vmatpush.bf16.msra.mxu0 0
  %195 = vmatpush.bf16.msra.mxu0 0
  %196 = vmatpush.bf16.msra.mxu0 %v183
  %197 = vmatmul.bf16.gmra.mxu0 %v187
  %v198 = vpop.f32.mrf.mxu0
  %v199 = vadd.f32 0.0, %v198
  %v200 = vpop.f32.mrf.mxu0
  %v201 = vadd.f32 0.0, %v200
  %202 = vdwg.mxu0
  %v203 = vadd.f32 %v132, %v199
  %v204 = vadd.f32 %v134, %v201
  %v205 = vld [vmem:[%s8] sm:$0x1]
  %v207 = vperm.slane %v205, 0
  %v209 = vadd.f32 %v203, %v207
  %v210 = vadd.f32 %v204, %v207
  %v211 = vadd.f32 %v39, %v209
  %v212 = vadd.f32 %v40, %v210
  %v213 = vsel %vm62, %v211, 0.0
  %214 = vadd.xlane.f32.xlu0 %v213
  %v215 = vpop.xlane.xlu0 %214
  %v216 = vsel %vm62, %v212, 0.0
  %217 = vadd.xlane.f32.xlu0 %v216
  %v218 = vpop.xlane.xlu0 %217
  %v219 = vrcp.pop 32.0
  %v220 = vmul.f32 32.0, %v219
  %v221 = vsub.f32 1.0, %v220
  %v222 = vmul.f32 %v219, %v221
  %v223 = vadd.f32 %v219, %v222
  %vm224 = vweird.f32 %v219
  %v225 = vsel %vm224, %v219, %v223
  %v226 = vmul.f32 %v215, %v225
  %v227 = vmul.f32 %v218, %v225
  %v228 = vsub.f32 %v211, %v226
  %v229 = vsub.f32 %v212, %v227
  %v230 = vmul.f32 %v228, %v228
  %v231 = vmul.f32 %v229, %v229
  %v232 = vsel %vm62, %v230, 0.0
  %233 = vadd.xlane.f32.xlu0 %v232
  %v234 = vpop.xlane.xlu0 %233
  %v235 = vsel %vm62, %v231, 0.0
  %236 = vadd.xlane.f32.xlu0 %v235
  %v237 = vpop.xlane.xlu0 %236
  %v238 = vmul.f32 %v234, %v225
  %v239 = vmul.f32 %v237, %v225
  %v240 = vadd.f32 %v238, 1e-05
  %v241 = vadd.f32 %v239, 1e-05
  %v242 = vrsqrt.pop %v240
  %v243 = vmul.f32 %v242, %v240
  %v244 = vmul.f32 %v243, %v242
  %v245 = vmul.f32 0.5, %v244
  %v246 = vsub.f32 1.5, %v245
  %v247 = vmul.f32 %v242, %v246
  %vm248 = vweird.f32 %v240
  %vm249 = vweird.f32 %v242
  %vm250 = vmor %vm248, %vm249
  %v251 = vsel %vm250, %v242, %v247
  %v252 = vrsqrt.pop %v241
  %v253 = vmul.f32 %v252, %v241
  %v254 = vmul.f32 %v253, %v252
  %v255 = vmul.f32 0.5, %v254
  %v256 = vsub.f32 1.5, %v255
  %v257 = vmul.f32 %v252, %v256
  %vm258 = vweird.f32 %v241
  %vm259 = vweird.f32 %v252
  %vm260 = vmor %vm258, %vm259
  %v261 = vsel %vm260, %v252, %v257
  %v262 = vmul.f32 %v228, %v251
  %v263 = vmul.f32 %v229, %v261
  %v264 = vld [vmem:[%s9] sm:$0x1]
  %v266 = vperm.slane %v264, 0
  %v268 = vmul.f32 %v262, %v266
  %v269 = vmul.f32 %v263, %v266
  %v270 = vld [vmem:[%s10] sm:$0x1]
  %v272 = vperm.slane %v270, 0
  %v274 = vadd.f32 %v268, %v272
  %v275 = vadd.f32 %v269, %v272
  %276 = vst.msk [vmem:[%s11] sm:$0xff] %vm62, %v274
  %277 = vst.msk [vmem:[%s11 + $0x8] sm:$0xff] %vm62, %v275
  // Predicated region
  $region46: #{informer_forward.19} parent=0 // pred_check
    _
  $region47: #{informer_forward.19} parent=0 // pred_check_branch
    %279 = sbr.rel (0) target = $region49
  $region48: #{informer_forward.19} parent=0 // pred_region
    _
  $region49: #{informer_forward.19} parent=0 // pred_fallthru
    _
  // Predicated region
  $region50: #{informer_forward.19} parent=0 // pred_check
    _
  $region51: #{informer_forward.19} parent=0 // pred_check_branch
    %281 = sbr.rel (0) target = $region53
  $region52: #{informer_forward.19} parent=0 // pred_region
    _
  $region53: #{informer_forward.19} parent=0 // pred_fallthru
    _

// kernel: informer_forward.20
$region0: #{informer_forward.20}
  #allocation0 [shape = 'u32[]', space=smem, size = 0x4, offset = 0x4, fixed_abs, tag = 'smem constant byte address 0x4 - core index']
  #allocation1 [shape = 'u32[72,128]{1,0:T(1,128)}', space=vmem, size = 0x9000, scoped, tag = 'internal scratch']
  %s0 = inlined_call_operand.vmem [shape: f32[16,32], index: 0, kind: input, shape index: {}]
  %s1 = inlined_call_operand.vmem [shape: f32[1,32], index: 1, kind: input, shape index: {}]
  %s2 = inlined_call_operand.vmem [shape: f32[1,32], index: 2, kind: input, shape index: {}]
  %s3 = inlined_call_operand.vmem [shape: f32[16,32], index: 3, kind: output, shape index: {}]
  %s4 = sld [smem:[#allocation0]]
  $region22: #{informer_forward.20} parent=0
    _
  %s6 = ssub.s32 1, %s4
  %s7 = scalar_select 0, %s6, %s4
  // Predicated region
  $region2: #{informer_forward.20} parent=0 // pred_check
    _
  $region3: #{informer_forward.20} parent=0 // pred_check_branch
    %9 = sbr.rel (0) target = $region5
  $region4: #{informer_forward.20} parent=0 // pred_region
    _
  $region5: #{informer_forward.20} parent=0 // pred_fallthru
    _
  // Predicated region
  $region6: #{informer_forward.20} parent=0 // pred_check
    _
  $region7: #{informer_forward.20} parent=0 // pred_check_branch
    %11 = sbr.rel (0) target = $region9
  $region8: #{informer_forward.20} parent=0 // pred_region
    _
  $region9: #{informer_forward.20} parent=0 // pred_fallthru
    _
  // Predicated region
  $region10: #{informer_forward.20} parent=0 // pred_check
    _
  $region11: #{informer_forward.20} parent=0 // pred_check_branch
    %13 = sbr.rel (0) target = $region13
  $region12: #{informer_forward.20} parent=0 // pred_region
    _
  $region13: #{informer_forward.20} parent=0 // pred_fallthru
    _
  %v14 = vld [vmem:[%s0] sm:$0xff]
  %v15 = vld [vmem:[%s0 + $0x8] sm:$0xff]
  %vm16 = vcmask 261120
  %v17 = vsel %vm16, %v14, 0.0
  %18 = vadd.xlane.f32.xlu0 %v17
  %v19 = vpop.xlane.xlu0 %18
  %v20 = vsel %vm16, %v15, 0.0
  %21 = vadd.xlane.f32.xlu0 %v20
  %v22 = vpop.xlane.xlu0 %21
  %v23 = vrcp.pop 32.0
  %v24 = vmul.f32 32.0, %v23
  %v25 = vsub.f32 1.0, %v24
  %v26 = vmul.f32 %v23, %v25
  %v27 = vadd.f32 %v23, %v26
  %vm28 = vweird.f32 %v23
  %v29 = vsel %vm28, %v23, %v27
  %v30 = vmul.f32 %v19, %v29
  %v31 = vmul.f32 %v22, %v29
  %v32 = vsub.f32 %v14, %v30
  %v33 = vsub.f32 %v15, %v31
  %v34 = vmul.f32 %v32, %v32
  %v35 = vmul.f32 %v33, %v33
  %v36 = vsel %vm16, %v34, 0.0
  %37 = vadd.xlane.f32.xlu0 %v36
  %v38 = vpop.xlane.xlu0 %37
  %v39 = vsel %vm16, %v35, 0.0
  %40 = vadd.xlane.f32.xlu0 %v39
  %v41 = vpop.xlane.xlu0 %40
  %v42 = vmul.f32 %v38, %v29
  %v43 = vmul.f32 %v41, %v29
  %v44 = vadd.f32 %v42, 1e-05
  %v45 = vadd.f32 %v43, 1e-05
  %v46 = vrsqrt.pop %v44
  %v47 = vmul.f32 %v46, %v44
  %v48 = vmul.f32 %v47, %v46
  %v49 = vmul.f32 0.5, %v48
  %v50 = vsub.f32 1.5, %v49
  %v51 = vmul.f32 %v46, %v50
  %vm52 = vweird.f32 %v44
  %vm53 = vweird.f32 %v46
  %vm54 = vmor %vm52, %vm53
  %v55 = vsel %vm54, %v46, %v51
  %v56 = vrsqrt.pop %v45
  %v57 = vmul.f32 %v56, %v45
  %v58 = vmul.f32 %v57, %v56
  %v59 = vmul.f32 0.5, %v58
  %v60 = vsub.f32 1.5, %v59
  %v61 = vmul.f32 %v56, %v60
  %vm62 = vweird.f32 %v45
  %vm63 = vweird.f32 %v56
  %vm64 = vmor %vm62, %vm63
  %v65 = vsel %vm64, %v56, %v61
  %v66 = vmul.f32 %v32, %v55
  %v67 = vmul.f32 %v33, %v65
  %v68 = vld [vmem:[%s1] sm:$0x1]
  %v70 = vperm.slane %v68, 0
  %v72 = vmul.f32 %v66, %v70
  %v73 = vmul.f32 %v67, %v70
  %v74 = vld [vmem:[%s2] sm:$0x1]
  %v76 = vperm.slane %v74, 0
  %v78 = vadd.f32 %v72, %v76
  %v79 = vadd.f32 %v73, %v76
  %80 = vst.msk [vmem:[%s3] sm:$0xff] %vm16, %v78
  %81 = vst.msk [vmem:[%s3 + $0x8] sm:$0xff] %vm16, %v79
  // Predicated region
  $region14: #{informer_forward.20} parent=0 // pred_check
    _
  $region15: #{informer_forward.20} parent=0 // pred_check_branch
    %83 = sbr.rel (0) target = $region17
  $region16: #{informer_forward.20} parent=0 // pred_region
    _
  $region17: #{informer_forward.20} parent=0 // pred_fallthru
    _
  // Predicated region
  $region18: #{informer_forward.20} parent=0 // pred_check
    _
  $region19: #{informer_forward.20} parent=0 // pred_check_branch
    %85 = sbr.rel (0) target = $region21
  $region20: #{informer_forward.20} parent=0 // pred_region
    _
  $region21: #{informer_forward.20} parent=0 // pred_fallthru
    _

// kernel: informer_forward.26
$region0: #{informer_forward.26}
  #allocation0 [shape = 'u32[]', space=smem, size = 0x4, offset = 0x4, fixed_abs, tag = 'smem constant byte address 0x4 - core index']
  #allocation1 [shape = 'u32[72,128]{1,0:T(1,128)}', space=vmem, size = 0x9000, scoped, tag = 'internal scratch']
  %s0 = inlined_call_operand.vmem [shape: f32[32,32], index: 0, kind: input, shape index: {}]
  %s1 = inlined_call_operand.vmem [shape: f32[1,32], index: 1, kind: input, shape index: {}]
  %s2 = inlined_call_operand.vmem [shape: f32[1,32], index: 2, kind: input, shape index: {}]
  %s3 = inlined_call_operand.vmem [shape: f32[32,32], index: 3, kind: output, shape index: {}]
  %s4 = sld [smem:[#allocation0]]
  $region22: #{informer_forward.26} parent=0
    _
  %s6 = ssub.s32 1, %s4
  %s7 = scalar_select 0, %s6, %s4
  // Predicated region
  $region2: #{informer_forward.26} parent=0 // pred_check
    _
  $region3: #{informer_forward.26} parent=0 // pred_check_branch
    %9 = sbr.rel (0) target = $region5
  $region4: #{informer_forward.26} parent=0 // pred_region
    _
  $region5: #{informer_forward.26} parent=0 // pred_fallthru
    _
  // Predicated region
  $region6: #{informer_forward.26} parent=0 // pred_check
    _
  $region7: #{informer_forward.26} parent=0 // pred_check_branch
    %11 = sbr.rel (0) target = $region9
  $region8: #{informer_forward.26} parent=0 // pred_region
    _
  $region9: #{informer_forward.26} parent=0 // pred_fallthru
    _
  // Predicated region
  $region10: #{informer_forward.26} parent=0 // pred_check
    _
  $region11: #{informer_forward.26} parent=0 // pred_check_branch
    %13 = sbr.rel (0) target = $region13
  $region12: #{informer_forward.26} parent=0 // pred_region
    _
  $region13: #{informer_forward.26} parent=0 // pred_fallthru
    _
  %v14 = vld [vmem:[%s0] sm:$0xff]
  %v15 = vld [vmem:[%s0 + $0x8] sm:$0xff]
  %v16 = vld [vmem:[%s0 + $0x10] sm:$0xff]
  %v17 = vld [vmem:[%s0 + $0x18] sm:$0xff]
  %vm18 = vcmask 261120
  %v19 = vsel %vm18, %v14, 0.0
  %20 = vadd.xlane.f32.xlu0 %v19
  %v21 = vpop.xlane.xlu0 %20
  %v22 = vsel %vm18, %v15, 0.0
  %23 = vadd.xlane.f32.xlu0 %v22
  %v24 = vpop.xlane.xlu0 %23
  %v25 = vsel %vm18, %v16, 0.0
  %26 = vadd.xlane.f32.xlu0 %v25
  %v27 = vpop.xlane.xlu0 %26
  %v28 = vsel %vm18, %v17, 0.0
  %29 = vadd.xlane.f32.xlu0 %v28
  %v30 = vpop.xlane.xlu0 %29
  %v31 = vrcp.pop 32.0
  %v32 = vmul.f32 32.0, %v31
  %v33 = vsub.f32 1.0, %v32
  %v34 = vmul.f32 %v31, %v33
  %v35 = vadd.f32 %v31, %v34
  %vm36 = vweird.f32 %v31
  %v37 = vsel %vm36, %v31, %v35
  %v38 = vmul.f32 %v21, %v37
  %v39 = vmul.f32 %v24, %v37
  %v40 = vmul.f32 %v27, %v37
  %v41 = vmul.f32 %v30, %v37
  %v42 = vsub.f32 %v14, %v38
  %v43 = vsub.f32 %v15, %v39
  %v44 = vsub.f32 %v16, %v40
  %v45 = vsub.f32 %v17, %v41
  %v46 = vmul.f32 %v42, %v42
  %v47 = vmul.f32 %v43, %v43
  %v48 = vmul.f32 %v44, %v44
  %v49 = vmul.f32 %v45, %v45
  %v50 = vsel %vm18, %v46, 0.0
  %51 = vadd.xlane.f32.xlu0 %v50
  %v52 = vpop.xlane.xlu0 %51
  %v53 = vsel %vm18, %v47, 0.0
  %54 = vadd.xlane.f32.xlu0 %v53
  %v55 = vpop.xlane.xlu0 %54
  %v56 = vsel %vm18, %v48, 0.0
  %57 = vadd.xlane.f32.xlu0 %v56
  %v58 = vpop.xlane.xlu0 %57
  %v59 = vsel %vm18, %v49, 0.0
  %60 = vadd.xlane.f32.xlu0 %v59
  %v61 = vpop.xlane.xlu0 %60
  %v62 = vmul.f32 %v52, %v37
  %v63 = vmul.f32 %v55, %v37
  %v64 = vmul.f32 %v58, %v37
  %v65 = vmul.f32 %v61, %v37
  %v66 = vadd.f32 %v62, 1e-05
  %v67 = vadd.f32 %v63, 1e-05
  %v68 = vadd.f32 %v64, 1e-05
  %v69 = vadd.f32 %v65, 1e-05
  %v70 = vrsqrt.pop %v66
  %v71 = vmul.f32 %v70, %v66
  %v72 = vmul.f32 %v71, %v70
  %v73 = vmul.f32 0.5, %v72
  %v74 = vsub.f32 1.5, %v73
  %v75 = vmul.f32 %v70, %v74
  %vm76 = vweird.f32 %v66
  %vm77 = vweird.f32 %v70
  %vm78 = vmor %vm76, %vm77
  %v79 = vsel %vm78, %v70, %v75
  %v80 = vrsqrt.pop %v67
  %v81 = vmul.f32 %v80, %v67
  %v82 = vmul.f32 %v81, %v80
  %v83 = vmul.f32 0.5, %v82
  %v84 = vsub.f32 1.5, %v83
  %v85 = vmul.f32 %v80, %v84
  %vm86 = vweird.f32 %v67
  %vm87 = vweird.f32 %v80
  %vm88 = vmor %vm86, %vm87
  %v89 = vsel %vm88, %v80, %v85
  %v90 = vrsqrt.pop %v68
  %v91 = vmul.f32 %v90, %v68
  %v92 = vmul.f32 %v91, %v90
  %v93 = vmul.f32 0.5, %v92
  %v94 = vsub.f32 1.5, %v93
  %v95 = vmul.f32 %v90, %v94
  %vm96 = vweird.f32 %v68
  %vm97 = vweird.f32 %v90
  %vm98 = vmor %vm96, %vm97
  %v99 = vsel %vm98, %v90, %v95
  %v100 = vrsqrt.pop %v69
  %v101 = vmul.f32 %v100, %v69
  %v102 = vmul.f32 %v101, %v100
  %v103 = vmul.f32 0.5, %v102
  %v104 = vsub.f32 1.5, %v103
  %v105 = vmul.f32 %v100, %v104
  %vm106 = vweird.f32 %v69
  %vm107 = vweird.f32 %v100
  %vm108 = vmor %vm106, %vm107
  %v109 = vsel %vm108, %v100, %v105
  %v110 = vmul.f32 %v42, %v79
  %v111 = vmul.f32 %v43, %v89
  %v112 = vmul.f32 %v44, %v99
  %v113 = vmul.f32 %v45, %v109
  %v114 = vld [vmem:[%s1] sm:$0x1]
  %v116 = vperm.slane %v114, 0
  %v118 = vmul.f32 %v110, %v116
  %v119 = vmul.f32 %v111, %v116
  %v120 = vmul.f32 %v112, %v116
  %v121 = vmul.f32 %v113, %v116
  %v122 = vld [vmem:[%s2] sm:$0x1]
  %v124 = vperm.slane %v122, 0
  %v126 = vadd.f32 %v118, %v124
  %v127 = vadd.f32 %v119, %v124
  %v128 = vadd.f32 %v120, %v124
  %v129 = vadd.f32 %v121, %v124
  %130 = vst.msk [vmem:[%s3] sm:$0xff] %vm18, %v126
  %131 = vst.msk [vmem:[%s3 + $0x8] sm:$0xff] %vm18, %v127
  %132 = vst.msk [vmem:[%s3 + $0x10] sm:$0xff] %vm18, %v128
  %133 = vst.msk [vmem:[%s3 + $0x18] sm:$0xff] %vm18, %v129
  // Predicated region
  $region14: #{informer_forward.26} parent=0 // pred_check
    _
  $region15: #{informer_forward.26} parent=0 // pred_check_branch
    %135 = sbr.rel (0) target = $region17
  $region16: #{informer_forward.26} parent=0 // pred_region
    _
  $region17: #{informer_forward.26} parent=0 // pred_fallthru
    _
  // Predicated region
  $region18: #{informer_forward.26} parent=0 // pred_check
    _
  $region19: #{informer_forward.26} parent=0 // pred_check_branch
    %137 = sbr.rel (0) target = $region21
  $region20: #{informer_forward.26} parent=0 // pred_region
    _
  $region21: #{informer_forward.26} parent=0 // pred_fallthru
    _

// kernel: informer_forward.27
$region0: #{informer_forward.27}
  #allocation0 [shape = 'u32[]', space=smem, size = 0x4, offset = 0x4, fixed_abs, tag = 'smem constant byte address 0x4 - core index']
  #allocation1 [shape = 'u32[72,128]{1,0:T(1,128)}', space=vmem, size = 0x9000, scoped, tag = 'internal scratch']
  #allocation2 [shape = 'f32[32,4]{1,0:T(8,128)}', space=vmem, size = 0x4000, scoped, tag = 'scratch operand']
  %s0 = inlined_call_operand.vmem [shape: bf16[32,32], index: 0, kind: input, shape index: {}]
  %s1 = inlined_call_operand.vmem [shape: bf16[32,4], index: 1, kind: input, shape index: {}]
  %s2 = inlined_call_operand.vmem [shape: f32[1,4], index: 2, kind: input, shape index: {}]
  %s3 = inlined_call_operand.vmem [shape: f32[32,4], index: 3, kind: output, shape index: {}]
  %s4 = sld [smem:[#allocation0]]
  $region30: #{informer_forward.27} parent=0
    _
  %s6 = ssub.s32 1, %s4
  %s7 = scalar_select 0, %s6, %s4
  // Predicated region
  $region2: #{informer_forward.27} parent=0 // pred_check
    _
  $region3: #{informer_forward.27} parent=0 // pred_check_branch
    %9 = sbr.rel (0) target = $region5
  $region4: #{informer_forward.27} parent=0 // pred_region
    _
  $region5: #{informer_forward.27} parent=0 // pred_fallthru
    _
  // Predicated region
  $region6: #{informer_forward.27} parent=0 // pred_check
    _
  $region7: #{informer_forward.27} parent=0 // pred_check_branch
    %11 = sbr.rel (0) target = $region9
  $region8: #{informer_forward.27} parent=0 // pred_region
    _
  $region9: #{informer_forward.27} parent=0 // pred_fallthru
    _
  // Predicated region
  $region10: #{informer_forward.27} parent=0 // pred_check
    _
  $region11: #{informer_forward.27} parent=0 // pred_check_branch
    %13 = sbr.rel (0) target = $region13
  $region12: #{informer_forward.27} parent=0 // pred_region
    _
  $region13: #{informer_forward.27} parent=0 // pred_fallthru
    _
  %p15 = scmp.eq.s32.totalorder 0, 0
  // Predicated region
  $region14: #{informer_forward.27} parent=0 // pred_check
    %p16 = pneg %p15
  $region15: #{informer_forward.27} parent=0 // pred_check_branch
    %18 = sbr.rel (%p16) target = $region17
  $region16: #{informer_forward.27} parent=0 // pred_region
    %vm19 = vcmask 31744
    %20 = vst.msk [vmem:[#allocation2] sm:$0xff] %vm19, 0.0
    %21 = vst.msk [vmem:[#allocation2 + $0x8] sm:$0xff] %vm19, 0.0
    %22 = vst.msk [vmem:[#allocation2 + $0x10] sm:$0xff] %vm19, 0.0
    %23 = vst.msk [vmem:[#allocation2 + $0x18] sm:$0xff] %vm19, 0.0
  $region17: #{informer_forward.27} parent=0 // pred_fallthru
    _
  %v24 = vld [vmem:[#allocation2] sm:$0xff]
  %v25 = vld [vmem:[#allocation2 + $0x8] sm:$0xff]
  %v26 = vld [vmem:[#allocation2 + $0x10] sm:$0xff]
  %v27 = vld [vmem:[#allocation2 + $0x18] sm:$0xff]
  %v28 = vld [vmem:[%s0] sm:$0xf]
  %v29 = vld [vmem:[%s0 + $0x4] sm:$0xf]
  %v30 = vld [vmem:[%s0 + $0x8] sm:$0xf]
  %v31 = vld [vmem:[%s0 + $0xc] sm:$0xf]
  %v32 = vld [vmem:[%s1] sm:$0xf]
  %v33 = vld [vmem:[%s1 + $0x4] sm:$0xf]
  %v34 = vld [vmem:[%s1 + $0x8] sm:$0xf]
  %v35 = vld [vmem:[%s1 + $0xc] sm:$0xf]
  %v40 = vunpack.c.l.b16 %v28
  %v41 = vunpack.c.l.b16 %v29
  %v42 = vunpack.c.l.b16 %v30
  %v43 = vunpack.c.l.b16 %v31
  %v44 = vpack.c.b16 %v41, %v40
  %v45 = vpack.c.b16 %v43, %v42
  %v50 = vunpack.c.l.b16 %v32
  %v51 = vunpack.c.l.b16 %v33
  %v52 = vunpack.c.l.b16 %v34
  %v53 = vunpack.c.l.b16 %v35
  %v54 = vpack.c.b16 %v51, %v50
  %v55 = vpack.c.b16 %v53, %v52
  %vm58 = vcmask 261120
  %v60 = vsel %vm58, %v44, 0
  %v63 = vsel %vm58, %v45, 0
  %65 = vmatpush.bf16.msra.mxu0 0
  %66 = vmatpush.bf16.msra.mxu0 0
  %67 = vmatpush.bf16.msra.mxu0 0
  %68 = vmatpush.bf16.msra.mxu0 0
  %69 = vmatpush.bf16.msra.mxu0 0
  %70 = vmatpush.bf16.msra.mxu0 0
  %71 = vmatpush.bf16.msra.mxu0 %v55
  %72 = vmatpush.bf16.msra.mxu0 %v54
  %73 = vmatmul.bf16.gmra.mxu0 %v60
  %v74 = vpop.f32.mrf.mxu0
  %v75 = vadd.f32 0.0, %v74
  %v76 = vpop.f32.mrf.mxu0
  %v77 = vadd.f32 0.0, %v76
  %78 = vmatmul.bf16.gmra.mxu0 %v63
  %v79 = vpop.f32.mrf.mxu0
  %v80 = vadd.f32 0.0, %v79
  %v81 = vpop.f32.mrf.mxu0
  %v82 = vadd.f32 0.0, %v81
  %83 = vdwg.mxu0
  %v84 = vadd.f32 %v24, %v75
  %v85 = vadd.f32 %v25, %v77
  %v86 = vadd.f32 %v26, %v80
  %v87 = vadd.f32 %v27, %v82
  %vm88 = vcmask 31744
  %89 = vst.msk [vmem:[#allocation2] sm:$0xff] %vm88, %v84
  %90 = vst.msk [vmem:[#allocation2 + $0x8] sm:$0xff] %vm88, %v85
  %91 = vst.msk [vmem:[#allocation2 + $0x10] sm:$0xff] %vm88, %v86
  %92 = vst.msk [vmem:[#allocation2 + $0x18] sm:$0xff] %vm88, %v87
  // Predicated region
  $region18: #{informer_forward.27} parent=0 // pred_check
    %p93 = pneg %p15
  $region19: #{informer_forward.27} parent=0 // pred_check_branch
    %95 = sbr.rel (%p93) target = $region21
  $region20: #{informer_forward.27} parent=0 // pred_region
    %v96 = vld [vmem:[#allocation2] sm:$0xff]
    %v97 = vld [vmem:[#allocation2 + $0x8] sm:$0xff]
    %v98 = vld [vmem:[#allocation2 + $0x10] sm:$0xff]
    %v99 = vld [vmem:[#allocation2 + $0x18] sm:$0xff]
    %v100 = vld [vmem:[%s2] sm:$0x1]
    %v102 = vperm.slane %v100, 0
    %v104 = vadd.f32 %v96, %v102
    %v105 = vadd.f32 %v97, %v102
    %v106 = vadd.f32 %v98, %v102
    %v107 = vadd.f32 %v99, %v102
    %108 = vst.msk [vmem:[%s3] sm:$0xff] %vm88, %v104
    %109 = vst.msk [vmem:[%s3 + $0x8] sm:$0xff] %vm88, %v105
    %110 = vst.msk [vmem:[%s3 + $0x10] sm:$0xff] %vm88, %v106
    %111 = vst.msk [vmem:[%s3 + $0x18] sm:$0xff] %vm88, %v107
  $region21: #{informer_forward.27} parent=0 // pred_fallthru
    _
  // Predicated region
  $region22: #{informer_forward.27} parent=0 // pred_check
    _
  $region23: #{informer_forward.27} parent=0 // pred_check_branch
    %113 = sbr.rel (0) target = $region25
  $region24: #{informer_forward.27} parent=0 // pred_region
    _
  $region25: #{informer_forward.27} parent=0 // pred_fallthru
    _
  // Predicated region
  $region26: #{informer_forward.27} parent=0 // pred_check
    _
  $region27: #{informer_forward.27} parent=0 // pred_check_branch
    %115 = sbr.rel (0) target = $region29
  $region28: #{informer_forward.27} parent=0 // pred_region
    _
  $region29: #{informer_forward.27} parent=0 // pred_fallthru
    _

// kernel: informer_forward.24
$region0: #{informer_forward.24}
  #allocation0 [shape = 'u32[]', space=smem, size = 0x4, offset = 0x4, fixed_abs, tag = 'smem constant byte address 0x4 - core index']
  #allocation1 [shape = 'u32[72,128]{1,0:T(1,128)}', space=vmem, size = 0x9000, scoped, tag = 'internal scratch']
  %s0 = inlined_call_operand.vmem [shape: f32[2,16,32], index: 0, kind: input, shape index: {}]
  %s1 = inlined_call_operand.vmem [shape: f32[2,8,32], index: 1, kind: input, shape index: {}]
  %s2 = inlined_call_operand.vmem [shape: bf16[32,32], index: 2, kind: input, shape index: {}]
  %s3 = inlined_call_operand.vmem [shape: f32[1,32], index: 3, kind: input, shape index: {}]
  %s4 = inlined_call_operand.vmem [shape: bf16[32,64], index: 4, kind: input, shape index: {}]
  %s5 = inlined_call_operand.vmem [shape: f32[1,64], index: 5, kind: input, shape index: {}]
  %s6 = inlined_call_operand.vmem [shape: bf16[32,32], index: 6, kind: input, shape index: {}]
  %s7 = inlined_call_operand.vmem [shape: f32[1,32], index: 7, kind: input, shape index: {}]
  %s8 = inlined_call_operand.vmem [shape: f32[1,32], index: 8, kind: input, shape index: {}]
  %s9 = inlined_call_operand.vmem [shape: f32[1,32], index: 9, kind: input, shape index: {}]
  %s10 = inlined_call_operand.vmem [shape: f32[2,16,32], index: 10, kind: output, shape index: {}]
  %s11 = sld [smem:[#allocation0]]
  $region73: #{informer_forward.24} parent=0
    _
  %s13 = ssub.s32 1, %s11
  %s14 = scalar_select 0, %s13, %s11
  loop: start=0, step=1, limit=4
  $region2: #{informer_forward.24} parent=0 // loop_pre_header
    _
  $region3: #{informer_forward.24} parent=0 // loop_header
    %s16 = sphi 0, %s20
    %p17 = scmp.ge.s32.totalorder %s16, 4
    %s26 = sphi 0, %s28
    %s29 = sphi 0, %s26
    %s30 = sphi 0, %s29
    %s46 = sphi 0, %s30
    %s52 = sphi 0, %s54
    %s55 = sphi 0, %s52
    %s56 = sphi 0, %s55
    %s72 = sphi 0, %s56
    %s76 = sphi 0, %s76
    %s78 = sphi 0, %s76
    %s79 = sphi 0, %s78
    %s93 = sphi 0, %s79
    %s97 = sphi 0, %s97
    %s99 = sphi 0, %s97
    %s100 = sphi 0, %s99
    %s114 = sphi 0, %s100
    %s118 = sphi 0, %s118
    %s120 = sphi 0, %s118
    %s121 = sphi 0, %s120
    %s135 = sphi 0, %s121
    %s139 = sphi 0, %s139
    %s141 = sphi 0, %s139
    %s142 = sphi 0, %s141
    %s156 = sphi 0, %s142
    %s160 = sphi 0, %s160
    %s162 = sphi 0, %s160
    %s163 = sphi 0, %s162
    %s177 = sphi 0, %s163
    %s181 = sphi 0, %s181
    %s183 = sphi 0, %s181
    %s184 = sphi 0, %s183
    %s198 = sphi 0, %s184
    %s202 = sphi 0, %s202
    %s204 = sphi 0, %s202
    %s205 = sphi 0, %s204
    %s219 = sphi 0, %s205
    %s223 = sphi 0, %s223
    %s225 = sphi 0, %s223
    %s226 = sphi 0, %s225
    %s240 = sphi 0, %s226
    %s246 = sphi 0, %s248
    %s249 = sphi 0, %s246
    %s250 = sphi 0, %s249
    %s266 = sphi 0, %s250
  $region4: #{informer_forward.24} parent=0 // loop_header_branch
    %19 = sbr.rel (%p17) target = $region8
  $region5: #{informer_forward.24} parent=0 // loop_body
    %s21 = ssub.s32 %s16, 1
    %s22 = ssub.s32 %s16, 2
    %s23 = sadd.s32 %s16, 1
    %s24 = ssub.s32 %s16, %s23
    %p25 = scmp.eq.s32.totalorder %s24, 0
    %s27 = sadd.s32 %s26, 1
    %s28 = scalar_select %p25, %s26, %s27
    %p31 = pneg %p25
    %p32 = scmp.eq.s32.totalorder %s16, 1
    %p33 = por %p31, %p32
    %p34 = scmp.ne.s32.totalorder %s26, %s29
    %p35 = scmp.eq.s32.totalorder %s16, 0
    %p36 = por %p34, %p35
    %p37 = scmp.ne.s32.totalorder %s26, %s29
    %p38 = scmp.eq.s32.totalorder %s21, 1
    %p39 = por %p37, %p38
    %p40 = scmp.ne.s32.totalorder %s29, %s30
    %p41 = scmp.eq.s32.totalorder %s21, 0
    %p42 = por %p40, %p41
    %p43 = scmp.ne.s32.totalorder %s29, %s30
    %p44 = scmp.eq.s32.totalorder %s22, 1
    %p45 = por %p43, %p44
    %p47 = scmp.ne.s32.totalorder %s30, %s46
    %p48 = scmp.eq.s32.totalorder %s22, 0
    %p49 = por %p47, %p48
    %s50 = ssub.s32 %s16, %s23
    %p51 = scmp.eq.s32.totalorder %s50, 0
    %s53 = sadd.s32 %s52, 1
    %s54 = scalar_select %p51, %s52, %s53
    %p57 = pneg %p51
    %p58 = scmp.eq.s32.totalorder %s16, 1
    %p59 = por %p57, %p58
    %p60 = scmp.ne.s32.totalorder %s52, %s55
    %p61 = scmp.eq.s32.totalorder %s16, 0
    %p62 = por %p60, %p61
    %p63 = scmp.ne.s32.totalorder %s52, %s55
    %p64 = scmp.eq.s32.totalorder %s21, 1
    %p65 = por %p63, %p64
    %p66 = scmp.ne.s32.totalorder %s55, %s56
    %p67 = scmp.eq.s32.totalorder %s21, 0
    %p68 = por %p66, %p67
    %p69 = scmp.ne.s32.totalorder %s55, %s56
    %p70 = scmp.eq.s32.totalorder %s22, 1
    %p71 = por %p69, %p70
    %p73 = scmp.ne.s32.totalorder %s56, %s72
    %p74 = scmp.eq.s32.totalorder %s22, 0
    %p75 = por %p73, %p74
    %s77 = sadd.s32 %s76, 1
    %p80 = scmp.eq.s32.totalorder %s16, 1
    %p81 = scmp.ne.s32.totalorder %s76, %s78
    %p82 = scmp.eq.s32.totalorder %s16, 0
    %p83 = por %p81, %p82
    %p84 = scmp.ne.s32.totalorder %s76, %s78
    %p85 = scmp.eq.s32.totalorder %s21, 1
    %p86 = por %p84, %p85
    %p87 = scmp.ne.s32.totalorder %s78, %s79
    %p88 = scmp.eq.s32.totalorder %s21, 0
    %p89 = por %p87, %p88
    %p90 = scmp.ne.s32.totalorder %s78, %s79
    %p91 = scmp.eq.s32.totalorder %s22, 1
    %p92 = por %p90, %p91
    %p94 = scmp.ne.s32.totalorder %s79, %s93
    %p95 = scmp.eq.s32.totalorder %s22, 0
    %p96 = por %p94, %p95
    %s98 = sadd.s32 %s97, 1
    %p101 = scmp.eq.s32.totalorder %s16, 1
    %p102 = scmp.ne.s32.totalorder %s97, %s99
    %p103 = scmp.eq.s32.totalorder %s16, 0
    %p104 = por %p102, %p103
    %p105 = scmp.ne.s32.totalorder %s97, %s99
    %p106 = scmp.eq.s32.totalorder %s21, 1
    %p107 = por %p105, %p106
    %p108 = scmp.ne.s32.totalorder %s99, %s100
    %p109 = scmp.eq.s32.totalorder %s21, 0
    %p110 = por %p108, %p109
    %p111 = scmp.ne.s32.totalorder %s99, %s100
    %p112 = scmp.eq.s32.totalorder %s22, 1
    %p113 = por %p111, %p112
    %p115 = scmp.ne.s32.totalorder %s100, %s114
    %p116 = scmp.eq.s32.totalorder %s22, 0
    %p117 = por %p115, %p116
    %s119 = sadd.s32 %s118, 1
    %p122 = scmp.eq.s32.totalorder %s16, 1
    %p123 = scmp.ne.s32.totalorder %s118, %s120
    %p124 = scmp.eq.s32.totalorder %s16, 0
    %p125 = por %p123, %p124
    %p126 = scmp.ne.s32.totalorder %s118, %s120
    %p127 = scmp.eq.s32.totalorder %s21, 1
    %p128 = por %p126, %p127
    %p129 = scmp.ne.s32.totalorder %s120, %s121
    %p130 = scmp.eq.s32.totalorder %s21, 0
    %p131 = por %p129, %p130
    %p132 = scmp.ne.s32.totalorder %s120, %s121
    %p133 = scmp.eq.s32.totalorder %s22, 1
    %p134 = por %p132, %p133
    %p136 = scmp.ne.s32.totalorder %s121, %s135
    %p137 = scmp.eq.s32.totalorder %s22, 0
    %p138 = por %p136, %p137
    %s140 = sadd.s32 %s139, 1
    %p143 = scmp.eq.s32.totalorder %s16, 1
    %p144 = scmp.ne.s32.totalorder %s139, %s141
    %p145 = scmp.eq.s32.totalorder %s16, 0
    %p146 = por %p144, %p145
    %p147 = scmp.ne.s32.totalorder %s139, %s141
    %p148 = scmp.eq.s32.totalorder %s21, 1
    %p149 = por %p147, %p148
    %p150 = scmp.ne.s32.totalorder %s141, %s142
    %p151 = scmp.eq.s32.totalorder %s21, 0
    %p152 = por %p150, %p151
    %p153 = scmp.ne.s32.totalorder %s141, %s142
    %p154 = scmp.eq.s32.totalorder %s22, 1
    %p155 = por %p153, %p154
    %p157 = scmp.ne.s32.totalorder %s142, %s156
    %p158 = scmp.eq.s32.totalorder %s22, 0
    %p159 = por %p157, %p158
    %s161 = sadd.s32 %s160, 1
    %p164 = scmp.eq.s32.totalorder %s16, 1
    %p165 = scmp.ne.s32.totalorder %s160, %s162
    %p166 = scmp.eq.s32.totalorder %s16, 0
    %p167 = por %p165, %p166
    %p168 = scmp.ne.s32.totalorder %s160, %s162
    %p169 = scmp.eq.s32.totalorder %s21, 1
    %p170 = por %p168, %p169
    %p171 = scmp.ne.s32.totalorder %s162, %s163
    %p172 = scmp.eq.s32.totalorder %s21, 0
    %p173 = por %p171, %p172
    %p174 = scmp.ne.s32.totalorder %s162, %s163
    %p175 = scmp.eq.s32.totalorder %s22, 1
    %p176 = por %p174, %p175
    %p178 = scmp.ne.s32.totalorder %s163, %s177
    %p179 = scmp.eq.s32.totalorder %s22, 0
    %p180 = por %p178, %p179
    %s182 = sadd.s32 %s181, 1
    %p185 = scmp.eq.s32.totalorder %s16, 1
    %p186 = scmp.ne.s32.totalorder %s181, %s183
    %p187 = scmp.eq.s32.totalorder %s16, 0
    %p188 = por %p186, %p187
    %p189 = scmp.ne.s32.totalorder %s181, %s183
    %p190 = scmp.eq.s32.totalorder %s21, 1
    %p191 = por %p189, %p190
    %p192 = scmp.ne.s32.totalorder %s183, %s184
    %p193 = scmp.eq.s32.totalorder %s21, 0
    %p194 = por %p192, %p193
    %p195 = scmp.ne.s32.totalorder %s183, %s184
    %p196 = scmp.eq.s32.totalorder %s22, 1
    %p197 = por %p195, %p196
    %p199 = scmp.ne.s32.totalorder %s184, %s198
    %p200 = scmp.eq.s32.totalorder %s22, 0
    %p201 = por %p199, %p200
    %s203 = sadd.s32 %s202, 1
    %p206 = scmp.eq.s32.totalorder %s16, 1
    %p207 = scmp.ne.s32.totalorder %s202, %s204
    %p208 = scmp.eq.s32.totalorder %s16, 0
    %p209 = por %p207, %p208
    %p210 = scmp.ne.s32.totalorder %s202, %s204
    %p211 = scmp.eq.s32.totalorder %s21, 1
    %p212 = por %p210, %p211
    %p213 = scmp.ne.s32.totalorder %s204, %s205
    %p214 = scmp.eq.s32.totalorder %s21, 0
    %p215 = por %p213, %p214
    %p216 = scmp.ne.s32.totalorder %s204, %s205
    %p217 = scmp.eq.s32.totalorder %s22, 1
    %p218 = por %p216, %p217
    %p220 = scmp.ne.s32.totalorder %s205, %s219
    %p221 = scmp.eq.s32.totalorder %s22, 0
    %p222 = por %p220, %p221
    %s224 = sadd.s32 %s223, 1
    %p227 = scmp.eq.s32.totalorder %s16, 1
    %p228 = scmp.ne.s32.totalorder %s223, %s225
    %p229 = scmp.eq.s32.totalorder %s16, 0
    %p230 = por %p228, %p229
    %p231 = scmp.ne.s32.totalorder %s223, %s225
    %p232 = scmp.eq.s32.totalorder %s21, 1
    %p233 = por %p231, %p232
    %p234 = scmp.ne.s32.totalorder %s225, %s226
    %p235 = scmp.eq.s32.totalorder %s21, 0
    %p236 = por %p234, %p235
    %p237 = scmp.ne.s32.totalorder %s225, %s226
    %p238 = scmp.eq.s32.totalorder %s22, 1
    %p239 = por %p237, %p238
    %p241 = scmp.ne.s32.totalorder %s226, %s240
    %p242 = scmp.eq.s32.totalorder %s22, 0
    %p243 = por %p241, %p242
    %s244 = ssub.s32 %s16, %s23
    %p245 = scmp.eq.s32.totalorder %s244, 0
    %s247 = sadd.s32 %s246, 1
    %s248 = scalar_select %p245, %s246, %s247
    %p251 = pneg %p245
    %p252 = scmp.eq.s32.totalorder %s16, 1
    %p253 = por %p251, %p252
    %p254 = scmp.ne.s32.totalorder %s246, %s249
    %p255 = scmp.eq.s32.totalorder %s16, 0
    %p256 = por %p254, %p255
    %p257 = scmp.ne.s32.totalorder %s246, %s249
    %p258 = scmp.eq.s32.totalorder %s21, 1
    %p259 = por %p257, %p258
    %p260 = scmp.ne.s32.totalorder %s249, %s250
    %p261 = scmp.eq.s32.totalorder %s21, 0
    %p262 = por %p260, %p261
    %p263 = scmp.ne.s32.totalorder %s249, %s250
    %p264 = scmp.eq.s32.totalorder %s22, 1
    %p265 = por %p263, %p264
    %p267 = scmp.ne.s32.totalorder %s250, %s266
    %p268 = scmp.eq.s32.totalorder %s22, 0
    %p269 = por %p267, %p268
    %p270 = scmp.le.s32.totalorder 1, %s16
    %p271 = scmp.lt.s32.totalorder %s16, 3
    %p272 = pnand %p270, %p271
    %p273 = pneg %p272
    // Predicated region
    $region9: #{informer_forward.24} parent=5 // pred_check
      _
    $region10: #{informer_forward.24} parent=5 // pred_check_branch
      %275 = sbr.rel (%p272) target = $region12
    $region11: #{informer_forward.24} parent=5 // pred_region
      %s276 = ssub.s32 %s16, 1
      // Predicated region
      $region13: #{informer_forward.24} parent=11 // pred_check
        %p277 = pneg %p89
      $region14: #{informer_forward.24} parent=11 // pred_check_branch
        %279 = sbr.rel (%p277) target = $region16
      $region15: #{informer_forward.24} parent=11 // pred_region
        _
      $region16: #{informer_forward.24} parent=11 // pred_fallthru
        _
      // Predicated region
      $region17: #{informer_forward.24} parent=11 // pred_check
        %p280 = pneg %p110
      $region18: #{informer_forward.24} parent=11 // pred_check_branch
        %282 = sbr.rel (%p280) target = $region20
      $region19: #{informer_forward.24} parent=11 // pred_region
        _
      $region20: #{informer_forward.24} parent=11 // pred_fallthru
        _
      // Predicated region
      $region21: #{informer_forward.24} parent=11 // pred_check
        %p283 = pneg %p131
      $region22: #{informer_forward.24} parent=11 // pred_check_branch
        %285 = sbr.rel (%p283) target = $region24
      $region23: #{informer_forward.24} parent=11 // pred_region
        _
      $region24: #{informer_forward.24} parent=11 // pred_fallthru
        _
      // Predicated region
      $region25: #{informer_forward.24} parent=11 // pred_check
        %p286 = pneg %p152
      $region26: #{informer_forward.24} parent=11 // pred_check_branch
        %288 = sbr.rel (%p286) target = $region28
      $region27: #{informer_forward.24} parent=11 // pred_region
        _
      $region28: #{informer_forward.24} parent=11 // pred_fallthru
        _
      // Predicated region
      $region29: #{informer_forward.24} parent=11 // pred_check
        %p289 = pneg %p173
      $region30: #{informer_forward.24} parent=11 // pred_check_branch
        %291 = sbr.rel (%p289) target = $region32
      $region31: #{informer_forward.24} parent=11 // pred_region
        _
      $region32: #{informer_forward.24} parent=11 // pred_fallthru
        _
      // Predicated region
      $region33: #{informer_forward.24} parent=11 // pred_check
        %p292 = pneg %p194
      $region34: #{informer_forward.24} parent=11 // pred_check_branch
        %294 = sbr.rel (%p292) target = $region36
      $region35: #{informer_forward.24} parent=11 // pred_region
        _
      $region36: #{informer_forward.24} parent=11 // pred_fallthru
        _
      // Predicated region
      $region37: #{informer_forward.24} parent=11 // pred_check
        %p295 = pneg %p215
      $region38: #{informer_forward.24} parent=11 // pred_check_branch
        %297 = sbr.rel (%p295) target = $region40
      $region39: #{informer_forward.24} parent=11 // pred_region
        _
      $region40: #{informer_forward.24} parent=11 // pred_fallthru
        _
      // Predicated region
      $region41: #{informer_forward.24} parent=11 // pred_check
        %p298 = pneg %p236
      $region42: #{informer_forward.24} parent=11 // pred_check_branch
        %300 = sbr.rel (%p298) target = $region44
      $region43: #{informer_forward.24} parent=11 // pred_region
        _
      $region44: #{informer_forward.24} parent=11 // pred_fallthru
        _
    $region12: #{informer_forward.24} parent=5 // pred_fallthru
      _
    %p301 = scmp.lt.s32.totalorder %s16, 2
    // Predicated region
    $region45: #{informer_forward.24} parent=5 // pred_check
      %p302 = pneg %p301
    $region46: #{informer_forward.24} parent=5 // pred_check_branch
      %304 = sbr.rel (%p302) target = $region48
    $region47: #{informer_forward.24} parent=5 // pred_region
      // Predicated region
      $region49: #{informer_forward.24} parent=47 // pred_check
        %p305 = pneg %p36
      $region50: #{informer_forward.24} parent=47 // pred_check_branch
        %307 = sbr.rel (%p305) target = $region52
      $region51: #{informer_forward.24} parent=47 // pred_region
        %p308 = scmp.lt.s32.totalorder %s16, 1
        %s309 = scalar_select %p308, %s16, 1
        %s310 = smul.addr %s309, 2
        %s311 = smul.addr %s310, 8
        %s312 = scalar_lea.vmem %s0, %s311
      $region52: #{informer_forward.24} parent=47 // pred_fallthru
        _
      // Predicated region
      $region53: #{informer_forward.24} parent=47 // pred_check
        %p313 = pneg %p62
      $region54: #{informer_forward.24} parent=47 // pred_check_branch
        %315 = sbr.rel (%p313) target = $region56
      $region55: #{informer_forward.24} parent=47 // pred_region
        %p316 = scmp.lt.s32.totalorder %s16, 1
        %s317 = scalar_select %p316, %s16, 1
        %s318 = smul.addr %s317, 8
        %s319 = scalar_lea.vmem %s1, %s318
      $region56: #{informer_forward.24} parent=47 // pred_fallthru
        _
    $region48: #{informer_forward.24} parent=5 // pred_fallthru
      _
    %p320 = scmp.le.s32.totalorder 1, %s16
    %p321 = scmp.lt.s32.totalorder %s16, 3
    %p322 = pnand %p320, %p321
    %p323 = pneg %p322
    // Predicated region
    $region57: #{informer_forward.24} parent=5 // pred_check
      _
    $region58: #{informer_forward.24} parent=5 // pred_check_branch
      %325 = sbr.rel (%p322) target = $region60
    $region59: #{informer_forward.24} parent=5 // pred_region
      %s326 = ssub.s32 %s16, 1
      %p327 = scmp.lt.s32.totalorder %s21, 1
      %s328 = scalar_select %p327, %s21, 1
      %s329 = smul.addr %s328, 2
      %s330 = smul.addr %s329, 8
      %s331 = scalar_lea.vmem %s0, %s330
      %p332 = pneg %p42
      %p333 = pneg %p39
      %p334 = scmp.lt.s32.totalorder %s21, 1
      %s335 = scalar_select %p334, %s21, 1
      %s336 = smul.addr %s335, 8
      %s337 = scalar_lea.vmem %s1, %s336
      %p338 = pneg %p68
      %p339 = pneg %p65
      %p340 = pneg %p89
      %p341 = pneg %p86
      %p342 = pneg %p110
      %p343 = pneg %p107
      %p344 = pneg %p131
      %p345 = pneg %p128
      %p346 = pneg %p152
      %p347 = pneg %p149
      %p348 = pneg %p173
      %p349 = pneg %p170
      %p350 = pneg %p194
      %p351 = pneg %p191
      %p352 = pneg %p215
      %p353 = pneg %p212
      %p354 = pneg %p236
      %p355 = pneg %p233
      %p356 = pneg %p262
      %p357 = pneg %p259
      %p358 = scmp.lt.s32.totalorder %s21, 1
      %s359 = scalar_select %p358, %s21, 1
      %s360 = smul.addr %s359, 2
      %s361 = smul.addr %s360, 8
      %s362 = scalar_lea.vmem %s10, %s361
      %p363 = scmp.lt.s32.totalorder %s21, 1
      %s364 = scalar_select %p363, %s21, 1
      %s365 = smul.addr %s364, 2
      %s366 = smul.addr %s365, 8
      %s367 = scalar_lea.vmem %s0, %s366
      %p368 = scmp.lt.s32.totalorder %s21, 1
      %s369 = scalar_select %p368, %s21, 1
      %s370 = smul.addr %s369, 8
      %s371 = scalar_lea.vmem %s1, %s370
      %p372 = scmp.lt.s32.totalorder %s21, 1
      %s373 = scalar_select %p372, %s21, 1
      %s374 = smul.addr %s373, 2
      %s375 = smul.addr %s374, 8
      %s376 = scalar_lea.vmem %s10, %s375
      %v378 = vld [vmem:[%s367] sm:$0xff]
      %v379 = vld [vmem:[%s367 + $0x8] sm:$0xff]
      %v380 = vpack.c.bf16 %v379, %v378
      %v381 = vld [vmem:[%s371] sm:$0xff]
      %v382 = vpack.c.bf16 %v381, %v381
      %v383 = vld [vmem:[%s2] sm:$0xf]
      %v384 = vld [vmem:[%s2 + $0x4] sm:$0xf]
      %v385 = vld [vmem:[%s2 + $0x8] sm:$0xf]
      %v386 = vld [vmem:[%s2 + $0xc] sm:$0xf]
      %v387 = vld [vmem:[%s3] sm:$0x1]
      %v389 = vperm.slane %v387, 0
      %v395 = vunpack.c.l.b16 %v383
      %v396 = vunpack.c.l.b16 %v384
      %v397 = vunpack.c.l.b16 %v385
      %v398 = vunpack.c.l.b16 %v386
      %v399 = vpack.c.b16 %v396, %v395
      %v400 = vpack.c.b16 %v398, %v397
      %vm403 = vcmask 261120
      %v405 = vsel %vm403, %v380, 0
      %407 = vmatpush.bf16.msra.mxu0 0
      %408 = vmatpush.bf16.msra.mxu0 0
      %409 = vmatpush.bf16.msra.mxu0 0
      %410 = vmatpush.bf16.msra.mxu0 0
      %411 = vmatpush.bf16.msra.mxu0 0
      %412 = vmatpush.bf16.msra.mxu0 0
      %413 = vmatpush.bf16.msra.mxu0 %v400
      %414 = vmatpush.bf16.msra.mxu0 %v399
      %415 = vmatmul.bf16.gmra.mxu0 %v405
      %v416 = vpop.f32.mrf.mxu0
      %v417 = vadd.f32 %v389, %v416
      %v418 = vpop.f32.mrf.mxu0
      %v419 = vadd.f32 %v389, %v418
      %420 = vdwg.mxu0
      %v421 = vld [vmem:[%s4] sm:$0xf]
      %v422 = vld [vmem:[%s4 + $0x4] sm:$0xf]
      %v423 = vld [vmem:[%s4 + $0x8] sm:$0xf]
      %v424 = vld [vmem:[%s4 + $0xc] sm:$0xf]
      %v425 = vld [vmem:[%s5] sm:$0x1]
      %v427 = vperm.slane %v425, 0
      %v433 = vunpack.c.l.b16 %v421
      %v434 = vunpack.c.l.b16 %v422
      %v435 = vunpack.c.l.b16 %v423
      %v436 = vunpack.c.l.b16 %v424
      %v437 = vpack.c.b16 %v434, %v433
      %v438 = vpack.c.b16 %v436, %v435
      %v442 = vsel %vm403, %v382, 0
      %444 = vmatpush.bf16.msra.mxu0 0
      %445 = vmatpush.bf16.msra.mxu0 0
      %446 = vmatpush.bf16.msra.mxu0 0
      %447 = vmatpush.bf16.msra.mxu0 0
      %448 = vmatpush.bf16.msra.mxu0 0
      %449 = vmatpush.bf16.msra.mxu0 0
      %450 = vmatpush.bf16.msra.mxu0 %v438
      %451 = vmatpush.bf16.msra.mxu0 %v437
      %452 = vmatmul.bf16.gmra.mxu0 %v442
      %v453 = vpop.f32.mrf.mxu0
      %v454 = vadd.f32 %v427, %v453
      %v455 = vpop.f32.mrf.mxu0
      %456 = vdwg.mxu0
      %v457 = vpack.c.bf16 %v417, %v417
      %v458 = vpack.c.bf16 %v419, %v419
      %v459 = vpack.c.bf16 %v454, %v454
      %v462 = vunpack.c.l.b16 %v457
      %v463 = vunpack.c.l.b16 %v458
      %v464 = vpack.c.b16 %v463, %v462
      %vm465 = vcmask 64512
      %v467 = vsel %vm465, %v464, 0
      %v470 = vsel %vm465, %v459, 0
      %472 = vmatpush.bf16.xpose.msra.mxu0 0
      %473 = vmatpush.bf16.xpose.msra.mxu0 0
      %474 = vmatpush.bf16.xpose.msra.mxu0 0
      %475 = vmatpush.bf16.xpose.msra.mxu0 0
      %476 = vmatpush.bf16.xpose.msra.mxu0 0
      %477 = vmatpush.bf16.xpose.msra.mxu0 0
      %478 = vmatpush.bf16.xpose.msra.mxu0 0
      %479 = vmatpush.bf16.xpose.msra.mxu0 %v470
      %480 = vmatmul.bf16.gmra.mxu0 %v467
      %v481 = vpop.f32.mrf.mxu0
      %v482 = vadd.f32 0.0, %v481
      %v483 = vpop.f32.mrf.mxu0
      %v484 = vadd.f32 0.0, %v483
      %485 = vdwg.mxu0
      %v486 = vsel %vm465, %v482, -inf
      %487 = vmax.xlane.f32.xlu0 %v486
      %v488 = vpop.xlane.xlu0 %487
      %v489 = vsel %vm465, %v484, -inf
      %490 = vmax.xlane.f32.xlu0 %v489
      %v491 = vpop.xlane.xlu0 %490
      %v492 = vsub.f32 %v482, %v488
      %v493 = vsub.f32 %v484, %v491
      %v494 = vmul.f32 %v492, 1.442695
      %v495 = vpow.pop %v494
      %v496 = vmul.f32 %v493, 1.442695
      %v497 = vpow.pop %v496
      %v498 = vsel %vm465, %v495, 0.0
      %499 = vadd.xlane.f32.xlu0 %v498
      %v500 = vpop.xlane.xlu0 %499
      %v501 = vsel %vm465, %v497, 0.0
      %502 = vadd.xlane.f32.xlu0 %v501
      %v503 = vpop.xlane.xlu0 %502
      %v504 = vrcp.pop %v500
      %v505 = vrcp.pop %v503
      %v506 = vmul.f32 %v495, %v504
      %v507 = vmul.f32 %v497, %v505
      %v508 = vpack.c.bf16 %v507, %v506
      %v510 = vunpack.c.l.b16 %v459
      %v511 = vpack.c.b16 %v510, %v510
      %512 = vrot.lane.b32.xlu0 %v511, 96
      %v513 = vpop.permute.xlu0 %512
      %v515 = vsel %vm465, %v508, 0
      %vm517 = vcmask 1043456
      %v519 = vsel %vm517, %v513, 0
      %521 = vmatpush.bf16.msra.mxu0 0
      %522 = vmatpush.bf16.msra.mxu0 0
      %523 = vmatpush.bf16.msra.mxu0 0
      %524 = vmatpush.bf16.msra.mxu0 0
      %525 = vmatpush.bf16.msra.mxu0 0
      %526 = vmatpush.bf16.msra.mxu0 0
      %527 = vmatpush.bf16.msra.mxu0 0
      %528 = vmatpush.bf16.msra.mxu0 %v519
      %529 = vmatmul.bf16.gmra.mxu0 %v515
      %v530 = vpop.f32.mrf.mxu0
      %v531 = vadd.f32 0.0, %v530
      %v532 = vpop.f32.mrf.mxu0
      %v533 = vadd.f32 0.0, %v532
      %534 = vdwg.mxu0
      %535 = vrot.lane.b32.xlu0 %v464, 120
      %v536 = vpop.permute.xlu0 %535
      %537 = vrot.lane.b32.xlu0 %v511, 120
      %v538 = vpop.permute.xlu0 %537
      %v540 = vsel %vm465, %v536, 0
      %v543 = vsel %vm465, %v538, 0
      %545 = vmatpush.bf16.xpose.msra.mxu0 0
      %546 = vmatpush.bf16.xpose.msra.mxu0 0
      %547 = vmatpush.bf16.xpose.msra.mxu0 0
      %548 = vmatpush.bf16.xpose.msra.mxu0 0
      %549 = vmatpush.bf16.xpose.msra.mxu0 0
      %550 = vmatpush.bf16.xpose.msra.mxu0 0
      %551 = vmatpush.bf16.xpose.msra.mxu0 0
      %552 = vmatpush.bf16.xpose.msra.mxu0 %v543
      %553 = vmatmul.bf16.gmra.mxu0 %v540
      %v554 = vpop.f32.mrf.mxu0
      %v555 = vadd.f32 0.0, %v554
      %v556 = vpop.f32.mrf.mxu0
      %v557 = vadd.f32 0.0, %v556
      %558 = vdwg.mxu0
      %v559 = vsel %vm465, %v555, -inf
      %560 = vmax.xlane.f32.xlu0 %v559
      %v561 = vpop.xlane.xlu0 %560
      %v562 = vsel %vm465, %v557, -inf
      %563 = vmax.xlane.f32.xlu0 %v562
      %v564 = vpop.xlane.xlu0 %563
      %v565 = vsub.f32 %v555, %v561
      %v566 = vsub.f32 %v557, %v564
      %v567 = vmul.f32 %v565, 1.442695
      %v568 = vpow.pop %v567
      %v569 = vmul.f32 %v566, 1.442695
      %v570 = vpow.pop %v569
      %v571 = vsel %vm465, %v568, 0.0
      %572 = vadd.xlane.f32.xlu0 %v571
      %v573 = vpop.xlane.xlu0 %572
      %v574 = vsel %vm465, %v570, 0.0
      %575 = vadd.xlane.f32.xlu0 %v574
      %v576 = vpop.xlane.xlu0 %575
      %v577 = vrcp.pop %v573
      %v578 = vrcp.pop %v576
      %v579 = vmul.f32 %v568, %v577
      %v580 = vmul.f32 %v570, %v578
      %v581 = vpack.c.bf16 %v580, %v579
      %582 = vrot.lane.b32.xlu0 %v511, 88
      %v583 = vpop.permute.xlu0 %582
      %v585 = vsel %vm465, %v581, 0
      %v588 = vsel %vm517, %v583, 0
      %590 = vmatpush.bf16.msra.mxu0 0
      %591 = vmatpush.bf16.msra.mxu0 0
      %592 = vmatpush.bf16.msra.mxu0 0
      %593 = vmatpush.bf16.msra.mxu0 0
      %594 = vmatpush.bf16.msra.mxu0 0
      %595 = vmatpush.bf16.msra.mxu0 0
      %596 = vmatpush.bf16.msra.mxu0 0
      %597 = vmatpush.bf16.msra.mxu0 %v588
      %598 = vmatmul.bf16.gmra.mxu0 %v585
      %v599 = vpop.f32.mrf.mxu0
      %v600 = vadd.f32 0.0, %v599
      %v601 = vpop.f32.mrf.mxu0
      %v602 = vadd.f32 0.0, %v601
      %603 = vdwg.mxu0
      %604 = vrot.lane.b32.xlu0 %v464, 112
      %v605 = vpop.permute.xlu0 %604
      %606 = vrot.lane.b32.xlu0 %v511, 112
      %v607 = vpop.permute.xlu0 %606
      %v609 = vsel %vm465, %v605, 0
      %v612 = vsel %vm465, %v607, 0
      %614 = vmatpush.bf16.xpose.msra.mxu0 0
      %615 = vmatpush.bf16.xpose.msra.mxu0 0
      %616 = vmatpush.bf16.xpose.msra.mxu0 0
      %617 = vmatpush.bf16.xpose.msra.mxu0 0
      %618 = vmatpush.bf16.xpose.msra.mxu0 0
      %619 = vmatpush.bf16.xpose.msra.mxu0 0
      %620 = vmatpush.bf16.xpose.msra.mxu0 0
      %621 = vmatpush.bf16.xpose.msra.mxu0 %v612
      %622 = vmatmul.bf16.gmra.mxu0 %v609
      %v623 = vpop.f32.mrf.mxu0
      %v624 = vadd.f32 0.0, %v623
      %v625 = vpop.f32.mrf.mxu0
      %v626 = vadd.f32 0.0, %v625
      %627 = vdwg.mxu0
      %v628 = vsel %vm465, %v624, -inf
      %629 = vmax.xlane.f32.xlu0 %v628
      %v630 = vpop.xlane.xlu0 %629
      %v631 = vsel %vm465, %v626, -inf
      %632 = vmax.xlane.f32.xlu0 %v631
      %v633 = vpop.xlane.xlu0 %632
      %v634 = vsub.f32 %v624, %v630
      %v635 = vsub.f32 %v626, %v633
      %v636 = vmul.f32 %v634, 1.442695
      %v637 = vpow.pop %v636
      %v638 = vmul.f32 %v635, 1.442695
      %v639 = vpow.pop %v638
      %v640 = vsel %vm465, %v637, 0.0
      %641 = vadd.xlane.f32.xlu0 %v640
      %v642 = vpop.xlane.xlu0 %641
      %v643 = vsel %vm465, %v639, 0.0
      %644 = vadd.xlane.f32.xlu0 %v643
      %v645 = vpop.xlane.xlu0 %644
      %v646 = vrcp.pop %v642
      %v647 = vrcp.pop %v645
      %v648 = vmul.f32 %v637, %v646
      %v649 = vmul.f32 %v639, %v647
      %v650 = vpack.c.bf16 %v649, %v648
      %651 = vrot.lane.b32.xlu0 %v511, 80
      %v652 = vpop.permute.xlu0 %651
      %v654 = vsel %vm465, %v650, 0
      %v657 = vsel %vm517, %v652, 0
      %659 = vmatpush.bf16.msra.mxu0 0
      %660 = vmatpush.bf16.msra.mxu0 0
      %661 = vmatpush.bf16.msra.mxu0 0
      %662 = vmatpush.bf16.msra.mxu0 0
      %663 = vmatpush.bf16.msra.mxu0 0
      %664 = vmatpush.bf16.msra.mxu0 0
      %665 = vmatpush.bf16.msra.mxu0 0
      %666 = vmatpush.bf16.msra.mxu0 %v657
      %667 = vmatmul.bf16.gmra.mxu0 %v654
      %v668 = vpop.f32.mrf.mxu0
      %v669 = vadd.f32 0.0, %v668
      %v670 = vpop.f32.mrf.mxu0
      %v671 = vadd.f32 0.0, %v670
      %672 = vdwg.mxu0
      %673 = vrot.lane.b32.xlu0 %v464, 104
      %v674 = vpop.permute.xlu0 %673
      %675 = vrot.lane.b32.xlu0 %v511, 104
      %v676 = vpop.permute.xlu0 %675
      %v678 = vsel %vm465, %v674, 0
      %v681 = vsel %vm465, %v676, 0
      %683 = vmatpush.bf16.xpose.msra.mxu0 0
      %684 = vmatpush.bf16.xpose.msra.mxu0 0
      %685 = vmatpush.bf16.xpose.msra.mxu0 0
      %686 = vmatpush.bf16.xpose.msra.mxu0 0
      %687 = vmatpush.bf16.xpose.msra.mxu0 0
      %688 = vmatpush.bf16.xpose.msra.mxu0 0
      %689 = vmatpush.bf16.xpose.msra.mxu0 0
      %690 = vmatpush.bf16.xpose.msra.mxu0 %v681
      %691 = vmatmul.bf16.gmra.mxu0 %v678
      %v692 = vpop.f32.mrf.mxu0
      %v693 = vadd.f32 0.0, %v692
      %v694 = vpop.f32.mrf.mxu0
      %v695 = vadd.f32 0.0, %v694
      %696 = vdwg.mxu0
      %v697 = vsel %vm465, %v693, -inf
      %698 = vmax.xlane.f32.xlu0 %v697
      %v699 = vpop.xlane.xlu0 %698
      %v700 = vsel %vm465, %v695, -inf
      %701 = vmax.xlane.f32.xlu0 %v700
      %v702 = vpop.xlane.xlu0 %701
      %v703 = vsub.f32 %v693, %v699
      %v704 = vsub.f32 %v695, %v702
      %v705 = vmul.f32 %v703, 1.442695
      %v706 = vpow.pop %v705
      %v707 = vmul.f32 %v704, 1.442695
      %v708 = vpow.pop %v707
      %v709 = vsel %vm465, %v706, 0.0
      %710 = vadd.xlane.f32.xlu0 %v709
      %v711 = vpop.xlane.xlu0 %710
      %v712 = vsel %vm465, %v708, 0.0
      %713 = vadd.xlane.f32.xlu0 %v712
      %v714 = vpop.xlane.xlu0 %713
      %v715 = vrcp.pop %v711
      %v716 = vrcp.pop %v714
      %v717 = vmul.f32 %v706, %v715
      %v718 = vmul.f32 %v708, %v716
      %v719 = vpack.c.bf16 %v718, %v717
      %720 = vrot.lane.b32.xlu0 %v511, 72
      %v721 = vpop.permute.xlu0 %720
      %v723 = vsel %vm465, %v719, 0
      %v726 = vsel %vm517, %v721, 0
      %728 = vmatpush.bf16.msra.mxu0 0
      %729 = vmatpush.bf16.msra.mxu0 0
      %730 = vmatpush.bf16.msra.mxu0 0
      %731 = vmatpush.bf16.msra.mxu0 0
      %732 = vmatpush.bf16.msra.mxu0 0
      %733 = vmatpush.bf16.msra.mxu0 0
      %734 = vmatpush.bf16.msra.mxu0 0
      %735 = vmatpush.bf16.msra.mxu0 %v726
      %736 = vmatmul.bf16.gmra.mxu0 %v723
      %v737 = vpop.f32.mrf.mxu0
      %v738 = vadd.f32 0.0, %v737
      %v739 = vpop.f32.mrf.mxu0
      %v740 = vadd.f32 0.0, %v739
      %741 = vdwg.mxu0
      %744 = vrot.lane.b32.xlu0 %v600, 8
      %v745 = vpop.permute.xlu0 %744
      %746 = vrot.lane.b32.xlu0 %v602, 8
      %v747 = vpop.permute.xlu0 %746
      %752 = vrot.lane.b32.xlu0 %v669, 16
      %v753 = vpop.permute.xlu0 %752
      %754 = vrot.lane.b32.xlu0 %v671, 16
      %v755 = vpop.permute.xlu0 %754
      %760 = vrot.lane.b32.xlu0 %v738, 24
      %v761 = vpop.permute.xlu0 %760
      %762 = vrot.lane.b32.xlu0 %v740, 24
      %v763 = vpop.permute.xlu0 %762
      %v766 = vsel %vm465, %v531, %v745
      %v767 = vsel %vm465, %v533, %v747
      %vm768 = vcmask 130048
      %v769 = vsel %vm768, %v766, %v753
      %v770 = vsel %vm768, %v767, %v755
      %vm771 = vcmask 195584
      %v772 = vsel %vm771, %v769, %v761
      %v773 = vsel %vm771, %v770, %v763
      %v774 = vpack.c.bf16 %v773, %v772
      %v775 = vld [vmem:[%s6] sm:$0xf]
      %v776 = vld [vmem:[%s6 + $0x4] sm:$0xf]
      %v777 = vld [vmem:[%s6 + $0x8] sm:$0xf]
      %v778 = vld [vmem:[%s6 + $0xc] sm:$0xf]
      %v779 = vld [vmem:[%s7] sm:$0x1]
      %v781 = vperm.slane %v779, 0
      %v787 = vunpack.c.l.b16 %v775
      %v788 = vunpack.c.l.b16 %v776
      %v789 = vunpack.c.l.b16 %v777
      %v790 = vunpack.c.l.b16 %v778
      %v791 = vpack.c.b16 %v788, %v787
      %v792 = vpack.c.b16 %v790, %v789
      %v796 = vsel %vm403, %v774, 0
      %798 = vmatpush.bf16.msra.mxu0 0
      %799 = vmatpush.bf16.msra.mxu0 0
      %800 = vmatpush.bf16.msra.mxu0 0
      %801 = vmatpush.bf16.msra.mxu0 0
      %802 = vmatpush.bf16.msra.mxu0 0
      %803 = vmatpush.bf16.msra.mxu0 0
      %804 = vmatpush.bf16.msra.mxu0 %v792
      %805 = vmatpush.bf16.msra.mxu0 %v791
      %806 = vmatmul.bf16.gmra.mxu0 %v796
      %v807 = vpop.f32.mrf.mxu0
      %v808 = vadd.f32 %v781, %v807
      %v809 = vpop.f32.mrf.mxu0
      %v810 = vadd.f32 %v781, %v809
      %811 = vdwg.mxu0
      %v812 = vadd.f32 %v378, %v808
      %v813 = vadd.f32 %v379, %v810
      %v814 = vsel %vm403, %v812, 0.0
      %815 = vadd.xlane.f32.xlu0 %v814
      %v816 = vpop.xlane.xlu0 %815
      %v817 = vsel %vm403, %v813, 0.0
      %818 = vadd.xlane.f32.xlu0 %v817
      %v819 = vpop.xlane.xlu0 %818
      %v820 = vrcp.pop 32.0
      %v821 = vmul.f32 32.0, %v820
      %v822 = vsub.f32 1.0, %v821
      %v823 = vmul.f32 %v820, %v822
      %v824 = vadd.f32 %v820, %v823
      %vm825 = vweird.f32 %v820
      %v826 = vsel %vm825, %v820, %v824
      %v827 = vmul.f32 %v816, %v826
      %v828 = vmul.f32 %v819, %v826
      %v829 = vsub.f32 %v812, %v827
      %v830 = vsub.f32 %v813, %v828
      %v831 = vmul.f32 %v829, %v829
      %v832 = vmul.f32 %v830, %v830
      %v833 = vsel %vm403, %v831, 0.0
      %834 = vadd.xlane.f32.xlu0 %v833
      %v835 = vpop.xlane.xlu0 %834
      %v836 = vsel %vm403, %v832, 0.0
      %837 = vadd.xlane.f32.xlu0 %v836
      %v838 = vpop.xlane.xlu0 %837
      %v839 = vmul.f32 %v835, %v826
      %v840 = vmul.f32 %v838, %v826
      %v841 = vadd.f32 %v839, 1e-05
      %v842 = vadd.f32 %v840, 1e-05
      %v843 = vrsqrt.pop %v841
      %v844 = vmul.f32 %v843, %v841
      %v845 = vmul.f32 %v844, %v843
      %v846 = vmul.f32 0.5, %v845
      %v847 = vsub.f32 1.5, %v846
      %v848 = vmul.f32 %v843, %v847
      %vm849 = vweird.f32 %v841
      %vm850 = vweird.f32 %v843
      %vm851 = vmor %vm849, %vm850
      %v852 = vsel %vm851, %v843, %v848
      %v853 = vrsqrt.pop %v842
      %v854 = vmul.f32 %v853, %v842
      %v855 = vmul.f32 %v854, %v853
      %v856 = vmul.f32 0.5, %v855
      %v857 = vsub.f32 1.5, %v856
      %v858 = vmul.f32 %v853, %v857
      %vm859 = vweird.f32 %v842
      %vm860 = vweird.f32 %v853
      %vm861 = vmor %vm859, %vm860
      %v862 = vsel %vm861, %v853, %v858
      %v863 = vmul.f32 %v829, %v852
      %v864 = vmul.f32 %v830, %v862
      %v865 = vld [vmem:[%s8] sm:$0x1]
      %v867 = vperm.slane %v865, 0
      %v869 = vmul.f32 %v863, %v867
      %v870 = vmul.f32 %v864, %v867
      %v871 = vld [vmem:[%s9] sm:$0x1]
      %v873 = vperm.slane %v871, 0
      %v875 = vadd.f32 %v869, %v873
      %v876 = vadd.f32 %v870, %v873
      %877 = vst.msk [vmem:[%s376] sm:$0xff] %vm403, %v875
      %878 = vst.msk [vmem:[%s376 + $0x8] sm:$0xff] %vm403, %v876
      %p879 = scmp.lt.s32.totalorder %s21, 1
      %s880 = scalar_select %p879, %s21, 1
      %s881 = smul.addr %s880, 2
      %s882 = smul.addr %s881, 8
      %s883 = scalar_lea.vmem %s10, %s882
      // Predicated region
      $region61: #{informer_forward.24} parent=59 // pred_check
        %p884 = pneg %p259
      $region62: #{informer_forward.24} parent=59 // pred_check_branch
        %886 = sbr.rel (%p884) target = $region64
      $region63: #{informer_forward.24} parent=59 // pred_region
        _
      $region64: #{informer_forward.24} parent=59 // pred_fallthru
        _
    $region60: #{informer_forward.24} parent=5 // pred_fallthru
      _
    %p887 = scmp.le.s32.totalorder 2, %s16
    // Predicated region
    $region65: #{informer_forward.24} parent=5 // pred_check
      %p888 = pneg %p887
    $region66: #{informer_forward.24} parent=5 // pred_check_branch
      %890 = sbr.rel (%p888) target = $region68
    $region67: #{informer_forward.24} parent=5 // pred_region
      %s891 = ssub.s32 %s16, 2
      // Predicated region
      $region69: #{informer_forward.24} parent=67 // pred_check
        %p892 = pneg %p265
      $region70: #{informer_forward.24} parent=67 // pred_check_branch
        %894 = sbr.rel (%p892) target = $region72
      $region71: #{informer_forward.24} parent=67 // pred_region
        %p895 = scmp.lt.s32.totalorder %s22, 1
        %s896 = scalar_select %p895, %s22, 1
        %s897 = smul.addr %s896, 2
        %s898 = smul.addr %s897, 8
        %s899 = scalar_lea.vmem %s10, %s898
      $region72: #{informer_forward.24} parent=67 // pred_fallthru
        _
    $region68: #{informer_forward.24} parent=5 // pred_fallthru
      _
  $region6: #{informer_forward.24} parent=0 // loop_footer
    %s20 = sadd.s32 1, %s16
  $region7: #{informer_forward.24} parent=0 // loop_footer_branch
    %15 = sbr.rel target = $region3
  $region8: #{informer_forward.24} parent=0 // loop_exit
    _

</llo_original>
